<compile_context>
chip_gen: v7x
topology: tpu7x:2x2x1
jax: 0.10.0
libtpu: 0.0.40
codegen_flags: <defaults>
</compile_context>

<pallas_src>
import functools

import jax
import jax.numpy as jnp
from jax.experimental import pallas as pl
from jax.experimental.pallas import tpu as pltpu

EPS = 1e-5
VMEM_LIMIT = 32 * 1024 * 1024  # explicit scoped-VMEM cap, safe on v5e/v6e/v7x

_TAPS_3x3 = tuple((dh, dw) for dh in (-1, 0, 1) for dw in (-1, 0, 1))


# ---------------------------------------------------------------------------
# Kernel 1: fused DepthAttentionModel (1x1 convs + 3x3+ReLU + 3x3+Sigmoid
# + depth*att).  Layout: channels on sublanes, flattened pixels on lanes.
# ---------------------------------------------------------------------------
def _depa_kernel(rgb_ref, dep_ref, mask_ref, wr_ref, wd_ref, bc_ref,
                 w1_ref, b1_ref, w2_ref, b2_ref, o_ref, *, offsets):
    m = rgb_ref.shape[1]
    dep = dep_ref[...]                                            # (Cin, M) f32
    rgb_feat = jnp.dot(wr_ref[...], rgb_ref[...].astype(jnp.bfloat16),
                       preferred_element_type=jnp.float32)        # (32, M)
    dep_feat = jnp.dot(wd_ref[...], dep.astype(jnp.bfloat16),
                       preferred_element_type=jnp.float32)        # (32, M)
    combined = jnp.concatenate([rgb_feat, dep_feat], axis=0) + bc_ref[...]

    def conv3x3(x, w_taps_ref, nout):
        # 3x3 "same" conv as 9 shifted (lane-rolled) masked matmuls.
        acc = jnp.zeros((nout, m), jnp.float32)
        for t, off in enumerate(offsets):
            if off == 0:
                sh = x
            else:
                sh = pltpu.roll(x, shift=(-off) % m, axis=1) * mask_ref[t:t + 1, :]
            acc = acc + jnp.dot(w_taps_ref[t], sh.astype(jnp.bfloat16),
                                preferred_element_type=jnp.float32)
        return acc

    a1 = jnp.maximum(conv3x3(combined, w1_ref, 32) + b1_ref[...], 0.0)   # (32, M)
    att_pre = conv3x3(a1, w2_ref, 1) + b2_ref[...]                       # (1, M)
    # Exact sigmoid here: `att` feeds the CAM argmax, keep it tie-stable.
    att = 1.0 / (1.0 + jnp.exp(-att_pre))
    o_ref[...] = (dep * att).astype(o_ref.dtype)


# ---------------------------------------------------------------------------
# Kernel 2: CAM_Multimodal_Module, one grid step per batch element.
# ---------------------------------------------------------------------------
def _cam_kernel(rgb_ref, depT_ref, dep_ref, o_ref):
    rgb = rgb_ref[0]                                              # (C, HW)
    depT = depT_ref[0]                                            # (HW, C)
    dep = dep_ref[0]                                              # (C, HW)
    c = rgb.shape[0]
    energy = jnp.dot(rgb, depT, preferred_element_type=jnp.float32)   # (C, C)
    mx = jnp.max(energy, axis=1, keepdims=True)
    iota = jax.lax.broadcasted_iota(jnp.int32, (c, c), 1)
    idx = jnp.min(jnp.where(energy == mx, iota, c), axis=1, keepdims=True)
    sel = (iota == idx).astype(jnp.float32)                       # one-hot rows
    gathered = jnp.dot(sel, dep, preferred_element_type=jnp.float32)
    o_ref[0] = rgb + gathered


# ---------------------------------------------------------------------------
# Kernel 3: SSA (3 merged 7x7 convs) + sigmoid gate + weighted + f_affo.
# ---------------------------------------------------------------------------
def _ssa_fuse_kernel(pc_ref, wc_ref, bc_ref, fused_ref, rgb_ref, o_ref):
    sa = jnp.dot(pc_ref[...], wc_ref[...],
                 preferred_element_type=jnp.float32) + bc_ref[...]     # (Mt, 3)
    sa1 = sa[:, 0:1]
    sa2 = sa[:, 1:2]
    sa3 = sa[:, 2:3]
    gate = pl.reciprocal(1.0 + jnp.exp(-(sa1 * sa3 + sa2 * sa3 + sa3)),
                         approx=True)                                  # sigmoid
    fused = fused_ref[...]
    o_ref[...] = (gate * fused + fused + rgb_ref[...]).astype(o_ref.dtype)


# ---------------------------------------------------------------------------
# Kernel 4: layer_ful2 = conv matmul + BatchNorm2d(train stats) + ReLU.
# ---------------------------------------------------------------------------
def _conv_bn_relu_kernel(p_ref, w_ref, b_ref, g_ref, beta_ref, o_ref, *, m_rows):
    y = jnp.dot(p_ref[...], w_ref[...],
                preferred_element_type=jnp.float32) + b_ref[...]
    inv_m = 1.0 / float(m_rows)
    mean = jnp.sum(y, axis=0, keepdims=True) * inv_m
    yc = y - mean
    var = jnp.sum(yc * yc, axis=0, keepdims=True) * inv_m          # biased var
    inv = jax.lax.rsqrt(var + EPS)
    o_ref[...] = jnp.maximum(yc * inv * g_ref[...] + beta_ref[...],
                             0.0).astype(o_ref.dtype)


# ---------------------------------------------------------------------------
# Wrappers (XLA glue: transposes, pooling, im2col for patch-based convs)
# ---------------------------------------------------------------------------
def _im2col_nhwc(x_nhwc, kh, kw, pad):
    n, h, w, c = x_nhwc.shape
    oh = h + 2 * pad - kh + 1
    ow = w + 2 * pad - kw + 1
    xp = jnp.pad(x_nhwc, ((0, 0), (pad, pad), (pad, pad), (0, 0)))
    cols = []
    for i in range(kh):
        for j in range(kw):
            cols.append(xp[:, i:i + oh, j:j + ow, :])
    patches = jnp.concatenate(cols, axis=-1).reshape(n * oh * ow, kh * kw * c)
    return patches, oh, ow


def depa_fused(rgb_cm, dep_cm, p, *, n, h, w):
    c_in, m = rgb_cm.shape
    hw = h * w
    hh = jnp.arange(hw) // w
    ww = jnp.arange(hw) % w
    rows = []
    for dh, dw in _TAPS_3x3:
        ok = ((hh + dh >= 0) & (hh + dh < h) & (ww + dw >= 0) & (ww + dw < w))
        rows.append(jnp.tile(ok.astype(jnp.float32), n))
    mask = jnp.stack(rows, axis=0)                                 # (9, M)
    offsets = tuple(dh * w + dw for dh, dw in _TAPS_3x3)

    wr = p["depa_rgb_w"].reshape(32, c_in).astype(jnp.bfloat16)    # (32, Cin)
    wd = p["depa_dep_w"].reshape(32, c_in).astype(jnp.bfloat16)
    bc = jnp.concatenate([p["depa_rgb_b"], p["depa_dep_b"]]
                         ).reshape(64, 1).astype(jnp.float32)
    w1 = jnp.transpose(p["pam1_w"], (2, 3, 0, 1)).reshape(9, 32, 64
                                                          ).astype(jnp.bfloat16)
    b1 = p["pam1_b"].reshape(32, 1).astype(jnp.float32)
    w2 = jnp.transpose(p["pam2_w"], (2, 3, 0, 1)).reshape(9, 1, 32
                                                          ).astype(jnp.bfloat16)
    b2 = p["pam2_b"].reshape(1, 1).astype(jnp.float32)

    kern = functools.partial(_depa_kernel, offsets=offsets)
    flops = 2 * m * (2 * c_in * 32 + 9 * 64 * 32 + 9 * 32) + 40 * m
    return pl.pallas_call(
        kern,
        out_shape=jax.ShapeDtypeStruct((c_in, m), jnp.float32),
        in_specs=[pl.BlockSpec(memory_space=pltpu.MemorySpace.VMEM)] * 10,
        out_specs=pl.BlockSpec(memory_space=pltpu.MemorySpace.VMEM),
        compiler_params=pltpu.CompilerParams(vmem_limit_bytes=VMEM_LIMIT),
        cost_estimate=pl.CostEstimate(
            flops=flops, transcendentals=m,
            bytes_accessed=(3 * c_in * m + 9 * m) * 4
                           + (2 * 32 * c_in + 9 * 32 * 64 + 9 * 32) * 2),
    )(rgb_cm, dep_cm, mask, wr, wd, bc, w1, b1, w2, b2)


def cam_fuse(rgb_chw, w_depth_cm, *, n, c, hw):
    dep_per_b = w_depth_cm.reshape(c, n, hw)
    dep_chw = jnp.transpose(dep_per_b, (1, 0, 2))                  # (n, c, hw)
    depT = jnp.transpose(dep_per_b, (1, 2, 0))                     # (n, hw, c)
    return pl.pallas_call(
        _cam_kernel,
        out_shape=jax.ShapeDtypeStruct((n, c, hw), jnp.float32),
        grid=(n,),
        in_specs=[pl.BlockSpec((1, c, hw), lambda b: (b, 0, 0)),
                  pl.BlockSpec((1, hw, c), lambda b: (b, 0, 0)),
                  pl.BlockSpec((1, c, hw), lambda b: (b, 0, 0))],
        out_specs=pl.BlockSpec((1, c, hw), lambda b: (b, 0, 0)),
        compiler_params=pltpu.CompilerParams(
            dimension_semantics=("parallel",), vmem_limit_bytes=VMEM_LIMIT),
        cost_estimate=pl.CostEstimate(flops=4 * n * c * c * hw, transcendentals=0,
                                      bytes_accessed=4 * n * c * hw * 4),
    )(rgb_chw, depT, dep_chw)


def ssa_fuse(rgb, depth, fused, rgb_m, p):
    n, c, h, w = rgb.shape
    m = n * h * w

    def pool_nhwc(x):
        mx = jnp.max(x, axis=1)
        mn = jnp.mean(x, axis=1)
        return jnp.stack([mx, mn], axis=-1)                        # (n, h, w, 2)

    p_r, _, _ = _im2col_nhwc(pool_nhwc(rgb.astype(jnp.float32)), 7, 7, 3)
    p_d, _, _ = _im2col_nhwc(pool_nhwc(depth.astype(jnp.float32)), 7, 7, 3)
    p_f, _, _ = _im2col_nhwc(pool_nhwc(fused), 7, 7, 3)
    k1 = p_r.shape[1]                                              # 98
    pc = jnp.concatenate([p_r, p_d, p_f], axis=1).astype(jnp.bfloat16)
    kc = pc.shape[1]                                               # 294

    def wcol(name):
        return jnp.transpose(p[name], (2, 3, 1, 0)).reshape(k1, 1
                                                            ).astype(jnp.float32)

    z = jnp.zeros((k1, 1), jnp.float32)
    wc = jnp.concatenate([
        jnp.concatenate([wcol("sa1_w"), z, z], axis=1),
        jnp.concatenate([z, wcol("sa2_w"), z], axis=1),
        jnp.concatenate([z, z, wcol("sa3_w")], axis=1)], axis=0
    ).astype(jnp.bfloat16)                                         # (294, 3)
    bc = jnp.concatenate([p["sa1_b"], p["sa2_b"], p["sa3_b"]]
                         ).reshape(1, 3).astype(jnp.float32)

    fused_m = jnp.transpose(fused, (0, 2, 3, 1)).reshape(m, c)

    mt = 256 if m % 256 == 0 else m
    grid = (m // mt,)
    return pl.pallas_call(
        _ssa_fuse_kernel,
        out_shape=jax.ShapeDtypeStruct((m, c), jnp.float32),
        grid=grid,
        in_specs=[pl.BlockSpec((mt, kc), lambda i: (i, 0)),
                  pl.BlockSpec((kc, 3), lambda i: (0, 0)),
                  pl.BlockSpec((1, 3), lambda i: (0, 0)),
                  pl.BlockSpec((mt, c), lambda i: (i, 0)),
                  pl.BlockSpec((mt, c), lambda i: (i, 0))],
        out_specs=pl.BlockSpec((mt, c), lambda i: (i, 0)),
        compiler_params=pltpu.CompilerParams(
            dimension_semantics=("parallel",), vmem_limit_bytes=VMEM_LIMIT),
        cost_estimate=pl.CostEstimate(
            flops=2 * m * kc * 3 + 10 * m * c, transcendentals=m,
            bytes_accessed=pc.size * 2 + wc.size * 2 + 3 * m * c * 4),
    )(pc, wc, bc, fused_m, rgb_m)


def conv_bn_relu_ful(rgbd_nhwc, weight_oihw, bias, gamma, beta):
    n, h, w, _ = rgbd_nhwc.shape
    cout = weight_oihw.shape[0]
    patches, oh, ow = _im2col_nhwc(rgbd_nhwc, 3, 3, 1)
    m, k = patches.shape
    pbf = patches.astype(jnp.bfloat16)
    wk = jnp.transpose(weight_oihw, (2, 3, 1, 0)).reshape(k, cout
                                                          ).astype(jnp.bfloat16)
    b = bias.reshape(1, cout).astype(jnp.float32)
    g = gamma.reshape(1, cout).astype(jnp.float32)
    bt = beta.reshape(1, cout).astype(jnp.float32)
    kern = functools.partial(_conv_bn_relu_kernel, m_rows=m)
    return pl.pallas_call(
        kern,
        out_shape=jax.ShapeDtypeStruct((m, cout), jnp.float32),
        in_specs=[pl.BlockSpec(memory_space=pltpu.MemorySpace.VMEM)] * 5,
        out_specs=pl.BlockSpec(memory_space=pltpu.MemorySpace.VMEM),
        compiler_params=pltpu.CompilerParams(vmem_limit_bytes=VMEM_LIMIT),
        cost_estimate=pl.CostEstimate(
            flops=2 * m * k * cout + 10 * m * cout, transcendentals=cout,
            bytes_accessed=pbf.size * 2 + wk.size * 2 + m * cout * 4),
    )(pbf, wk, b, g, bt)


def daff_forward(rgb, depth, rgbd_last, p):
    n, c_in, h, w = rgb.shape
    hw = h * w
    m = n * hw

    # --- fused DepthAttentionModel (channels-first (C, M) layout) ---
    rgb_cm = jnp.transpose(rgb, (1, 0, 2, 3)).reshape(c_in, m).astype(jnp.float32)
    dep_cm = jnp.transpose(depth, (1, 0, 2, 3)).reshape(c_in, m).astype(jnp.float32)
    w_depth_cm = depa_fused(rgb_cm, dep_cm, p, n=n, h=h, w=w)      # (C, M)

    # --- CAM_Multimodal_Module ---
    rgb_chw = rgb.reshape(n, c_in, hw).astype(jnp.float32)
    fused_chw = cam_fuse(rgb_chw, w_depth_cm, n=n, c=c_in, hw=hw)  # (n, c, hw)
    fused = fused_chw.reshape(n, c_in, h, w)

    # --- SSA + weighted + f_affo (row-major (M, C) layout) ---
    rgb_m = jnp.transpose(rgb, (0, 2, 3, 1)).reshape(m, c_in).astype(jnp.float32)
    f_affo_m = ssa_fuse(rgb, depth, fused, rgb_m, p)               # (M, C)

    # --- layer_ful2 ---
    rgbd_nhwc = jnp.concatenate(
        [f_affo_m.reshape(n, h, w, c_in),
         jnp.transpose(rgbd_last, (0, 2, 3, 1)).astype(jnp.float32)], axis=-1)
    out_m = conv_bn_relu_ful(rgbd_nhwc, p["ful_w"], p["ful_b"],
                             p["gamma"], p["beta"])
    cout = p["ful_w"].shape[0]
    return jnp.transpose(out_m.reshape(n, h, w, cout), (0, 3, 1, 2))


# ---------------------------------------------------------------------------
# Pure-JAX f32 reference (mirrors the PyTorch forward exactly)
# ---------------------------------------------------------------------------
def _channel_pool_nchw(x):
    return jnp.concatenate([jnp.max(x, axis=1, keepdims=True),
                            jnp.mean(x, axis=1, keepdims=True)], axis=1)


def _reference(rgb, depth, rgbd_last, p):
    def conv(x, w, b, pad):
        y = jax.lax.conv_general_dilated(
            x.astype(jnp.float32), w.astype(jnp.float32), (1, 1),
            [(pad, pad), (pad, pad)],
            dimension_numbers=("NCHW", "OIHW", "NCHW"))
        return y + b.reshape(1, -1, 1, 1)

    rgb_feat = conv(rgb, p["depa_rgb_w"], p["depa_rgb_b"], 0)
    depth_feat = conv(depth, p["depa_dep_w"], p["depa_dep_b"], 0)
    comb = jnp.concatenate([rgb_feat, depth_feat], axis=1)
    a1 = jnp.maximum(conv(comb, p["pam1_w"], p["pam1_b"], 1), 0.0)
    att = jax.nn.sigmoid(conv(a1, p["pam2_w"], p["pam2_b"], 1))
    w_depth = depth * att

    n, c, h, w = rgb.shape
    pq = rgb.reshape(n, c, h * w)
    pk = w_depth.reshape(n, c, h * w)
    energy = jnp.einsum("bcx,bdx->bcd", pq, pk)
    idx = jnp.argmax(energy, axis=2)
    gathered = jnp.take_along_axis(pk, idx[:, :, None], axis=1)
    fused = rgb + gathered.reshape(n, c, h, w)

    sa1 = conv(_channel_pool_nchw(rgb), p["sa1_w"], p["sa1_b"], 3)
    sa2 = conv(_channel_pool_nchw(depth), p["sa2_w"], p["sa2_b"], 3)
    sa3 = conv(_channel_pool_nchw(fused), p["sa3_w"], p["sa3_b"], 3)
    sa = jax.nn.sigmoid(sa1 * sa3 + sa2 * sa3 + sa3)
    weighted = sa * fused + fused
    f_affo = weighted + rgb
    rgbd = jnp.concatenate([f_affo, rgbd_last], axis=1)

    y = conv(rgbd, p["ful_w"], p["ful_b"], 1)
    mean = jnp.mean(y, axis=(0, 2, 3), keepdims=True)
    var = jnp.mean((y - mean) ** 2, axis=(0, 2, 3), keepdims=True)
    y = (y - mean) * jax.lax.rsqrt(var + EPS) * p["gamma"].reshape(1, -1, 1, 1) \
        + p["beta"].reshape(1, -1, 1, 1)
    return jnp.maximum(y, 0.0)


if __name__ == "__main__":
    # DAFF(in_channels=4, out_channels=8, last_channels=4), N=2, 16x16 images.
    in_channels, out_channels, last_channels = 4, 8, 4
    N, H, W = 2, 16, 16

    key = jax.random.PRNGKey(0)
    ks = jax.random.split(key, 12)

    def winit(k, shape):  # Conv2d weights: normal(std=0.01); biases 0 (DAFF init)
        return 0.01 * jax.random.normal(k, shape, dtype=jnp.float32)

    params = {
        "depa_rgb_w": winit(ks[0], (32, in_channels, 1, 1)),
        "depa_rgb_b": jnp.zeros((32,), jnp.float32),
        "depa_dep_w": winit(ks[1], (32, in_channels, 1, 1)),
        "depa_dep_b": jnp.zeros((32,), jnp.float32),
        "pam1_w": winit(ks[2], (32, 64, 3, 3)),
        "pam1_b": jnp.zeros((32,), jnp.float32),
        "pam2_w": winit(ks[3], (1, 32, 3, 3)),
        "pam2_b": jnp.zeros((1,), jnp.float32),
        "sa1_w": winit(ks[4], (1, 2, 7, 7)),
        "sa1_b": jnp.zeros((1,), jnp.float32),
        "sa2_w": winit(ks[5], (1, 2, 7, 7)),
        "sa2_b": jnp.zeros((1,), jnp.float32),
        "sa3_w": winit(ks[6], (1, 2, 7, 7)),
        "sa3_b": jnp.zeros((1,), jnp.float32),
        "ful_w": winit(ks[7], (out_channels, in_channels + last_channels, 3, 3)),
        "ful_b": jnp.zeros((out_channels,), jnp.float32),
        "gamma": jnp.ones((out_channels,), jnp.float32),   # BN default init
        "beta": jnp.zeros((out_channels,), jnp.float32),
    }

    rgb = jax.random.normal(ks[8], (N, in_channels, H, W), jnp.float32)
    depth = jax.random.normal(ks[9], (N, in_channels, H, W), jnp.float32)
    rgbd_last = jax.random.normal(ks[10], (N, last_channels, H, W), jnp.float32)

    out = jax.jit(daff_forward)(rgb, depth, rgbd_last, params)
    out = jax.block_until_ready(out)

    ref = _reference(rgb, depth, rgbd_last, params)
    assert out.shape == (N, out_channels, H, W), out.shape
    # bf16 MXU operands + BatchNorm dividing by a ~0.1 batch std put the final
    # absolute error at the ~1e-2 level; a layout / shift / index bug would
    # show up as O(1) error, so this tolerance still catches real mistakes.
    max_err = float(jnp.max(jnp.abs(out - ref)))
    assert jnp.allclose(out, ref, atol=7.5e-2, rtol=5e-2), max_err
    print("KERNEL_OK")
</pallas_src>

<mosaic_0001>
module attributes {stable_mosaic.version = 11 : i64} {
  func.func @_cam_kernel(%arg0: i32, %arg1: memref<1x4x256xf32, #tpu.memory_space<vmem>>, %arg2: memref<1x256x4xf32, #tpu.memory_space<vmem>>, %arg3: memref<1x4x256xf32, #tpu.memory_space<vmem>>, %arg4: memref<1x4x256xf32, #tpu.memory_space<vmem>>) attributes {dimension_semantics = [#tpu.dimension_semantics<parallel>], iteration_bounds = array<i64: 2>, scalar_prefetch = 0 : i64, scratch_operands = 0 : i64, tpu.core_type = #tpu.core_type<tc>, window_params = [{transform_indices = @transform_0, window_bounds = array<i64: 1, 4, 256>}, {transform_indices = @transform_1, window_bounds = array<i64: 1, 256, 4>}, {transform_indices = @transform_2, window_bounds = array<i64: 1, 4, 256>}, {transform_indices = @transform_3, window_bounds = array<i64: 1, 4, 256>}]} {
    %c0 = arith.constant 0 : index
    %c0_0 = arith.constant 0 : index
    %c0_1 = arith.constant 0 : index
    %0 = vector.load %arg1[%c0, %c0_0, %c0_1] : memref<1x4x256xf32, #tpu.memory_space<vmem>>, vector<1x4x256xf32>
    %1 = vector.shape_cast %0 : vector<1x4x256xf32> to vector<4x256xf32>
    %c0_2 = arith.constant 0 : index
    %c0_3 = arith.constant 0 : index
    %c0_4 = arith.constant 0 : index
    %2 = vector.load %arg2[%c0_2, %c0_3, %c0_4] : memref<1x256x4xf32, #tpu.memory_space<vmem>>, vector<1x256x4xf32>
    %3 = vector.shape_cast %2 : vector<1x256x4xf32> to vector<256x4xf32>
    %c0_5 = arith.constant 0 : index
    %c0_6 = arith.constant 0 : index
    %c0_7 = arith.constant 0 : index
    %4 = vector.load %arg3[%c0_5, %c0_6, %c0_7] : memref<1x4x256xf32, #tpu.memory_space<vmem>>, vector<1x4x256xf32>
    %5 = vector.shape_cast %4 : vector<1x4x256xf32> to vector<4x256xf32>
    %cst = arith.constant dense<0.000000e+00> : vector<4x4xf32>
    %6 = tpu.matmul %1, %3, %cst {dimension_numbers = #tpu.dot_dimension_numbers<[1], [0], [0], [1], [0, 0, 1, 1], [], []>} : vector<4x256xf32>, vector<256x4xf32>, vector<4x4xf32> -> vector<4x4xf32>
    %cst_8 = arith.constant dense<0xFF800000> : vector<4xf32>
    %7 = vector.multi_reduction <maximumf>, %6, %cst_8 [1] : vector<4x4xf32> to vector<4xf32>
    %8 = vector.shape_cast %7 : vector<4xf32> to vector<4x1xf32>
    %9 = tpu.iota {dimensions = array<i32: 1>} : vector<4x4xi32>
    %10 = vector.broadcast %8 : vector<4x1xf32> to vector<4x4xf32>
    %11 = arith.cmpf oeq, %6, %10 : vector<4x4xf32>
    %c4_i32 = arith.constant 4 : i32
    %12 = vector.broadcast %c4_i32 : i32 to vector<4x4xi32>
    %13 = arith.select %11, %9, %12 : vector<4x4xi1>, vector<4x4xi32>
    %cst_9 = arith.constant dense<2147483647> : vector<4xi32>
    %14 = vector.multi_reduction <minsi>, %13, %cst_9 [1] : vector<4x4xi32> to vector<4xi32>
    %15 = vector.shape_cast %14 : vector<4xi32> to vector<4x1xi32>
    %16 = vector.broadcast %15 : vector<4x1xi32> to vector<4x4xi32>
    %17 = arith.cmpi eq, %9, %16 : vector<4x4xi32>
    %18 = arith.extui %17 : vector<4x4xi1> to vector<4x4xi32>
    %19 = arith.sitofp %18 : vector<4x4xi32> to vector<4x4xf32>
    %cst_10 = arith.constant dense<0.000000e+00> : vector<4x256xf32>
    %20 = tpu.matmul %19, %5, %cst_10 {dimension_numbers = #tpu.dot_dimension_numbers<[1], [0], [0], [1], [0, 0, 1, 1], [], []>} : vector<4x4xf32>, vector<4x256xf32>, vector<4x256xf32> -> vector<4x256xf32>
    %21 = arith.addf %1, %20 : vector<4x256xf32>
    %c0_11 = arith.constant 0 : index
    %c0_12 = arith.constant 0 : index
    %c0_13 = arith.constant 0 : index
    %22 = vector.load %arg4[%c0_11, %c0_12, %c0_13] : memref<1x4x256xf32, #tpu.memory_space<vmem>>, vector<1x4x256xf32>
    %23 = vector.shape_cast %22 : vector<1x4x256xf32> to vector<4x256xf32>
    %24 = vector.shape_cast %21 : vector<4x256xf32> to vector<1x4x256xf32>
    tpu.vector_store %arg4[%c0_11, %c0_12, %c0_13], %24 {strides = array<i32>} : memref<1x4x256xf32, #tpu.memory_space<vmem>>, vector<1x4x256xf32>,
    return
  }
  func.func @transform_0(%arg0: i32) -> (i32, i32, i32) {
    %c0_i32 = arith.constant 0 : i32
    %c0_i32_0 = arith.constant 0 : i32
    %c0_i32_1 = arith.constant 0 : i32
    return %arg0, %c0_i32, %c0_i32_0 : i32, i32, i32
  }
  func.func @transform_1(%arg0: i32) -> (i32, i32, i32) {
    %c0_i32 = arith.constant 0 : i32
    %c0_i32_0 = arith.constant 0 : i32
    %c0_i32_1 = arith.constant 0 : i32
    return %arg0, %c0_i32, %c0_i32_0 : i32, i32, i32
  }
  func.func @transform_2(%arg0: i32) -> (i32, i32, i32) {
    %c0_i32 = arith.constant 0 : i32
    %c0_i32_0 = arith.constant 0 : i32
    %c0_i32_1 = arith.constant 0 : i32
    return %arg0, %c0_i32, %c0_i32_0 : i32, i32, i32
  }
  func.func @transform_3(%arg0: i32) -> (i32, i32, i32) {
    %c0_i32 = arith.constant 0 : i32
    %c0_i32_0 = arith.constant 0 : i32
    %c0_i32_1 = arith.constant 0 : i32
    return %arg0, %c0_i32, %c0_i32_0 : i32, i32, i32
  }
}

module attributes {stable_mosaic.version = 11 : i64} {
  func.func @_depa_kernel(%arg0: memref<4x512xf32, #tpu.memory_space<vmem>>, %arg1: memref<4x512xf32, #tpu.memory_space<vmem>>, %arg2: memref<9x512xf32, #tpu.memory_space<vmem>>, %arg3: memref<32x4xbf16, #tpu.memory_space<vmem>>, %arg4: memref<32x4xbf16, #tpu.memory_space<vmem>>, %arg5: memref<64x1xf32, #tpu.memory_space<vmem>>, %arg6: memref<9x32x64xbf16, #tpu.memory_space<vmem>>, %arg7: memref<32x1xf32, #tpu.memory_space<vmem>>, %arg8: memref<9x1x32xbf16, #tpu.memory_space<vmem>>, %arg9: memref<1x1xf32, #tpu.memory_space<vmem>>, %arg10: memref<4x512xf32, #tpu.memory_space<vmem>>) attributes {dimension_semantics = [], scalar_prefetch = 0 : i64, scratch_operands = 0 : i64, tpu.core_type = #tpu.core_type<tc>} {
    %c0 = arith.constant 0 : index
    %c0_0 = arith.constant 0 : index
    %0 = vector.load %arg1[%c0, %c0_0] : memref<4x512xf32, #tpu.memory_space<vmem>>, vector<4x512xf32>
    %c0_1 = arith.constant 0 : index
    %c0_2 = arith.constant 0 : index
    %1 = vector.load %arg3[%c0_1, %c0_2] : memref<32x4xbf16, #tpu.memory_space<vmem>>, vector<32x4xbf16>
    %c0_3 = arith.constant 0 : index
    %c0_4 = arith.constant 0 : index
    %2 = vector.load %arg0[%c0_3, %c0_4] : memref<4x512xf32, #tpu.memory_space<vmem>>, vector<4x512xf32>
    %3 = arith.truncf %2 : vector<4x512xf32> to vector<4x512xbf16>
    %cst = arith.constant dense<0.000000e+00> : vector<32x512xf32>
    %4 = tpu.matmul %1, %3, %cst {dimension_numbers = #tpu.dot_dimension_numbers<[1], [0], [0], [1], [0, 0, 1, 1], [], []>} : vector<32x4xbf16>, vector<4x512xbf16>, vector<32x512xf32> -> vector<32x512xf32>
    %c0_5 = arith.constant 0 : index
    %c0_6 = arith.constant 0 : index
    %5 = vector.load %arg4[%c0_5, %c0_6] : memref<32x4xbf16, #tpu.memory_space<vmem>>, vector<32x4xbf16>
    %6 = arith.truncf %0 : vector<4x512xf32> to vector<4x512xbf16>
    %cst_7 = arith.constant dense<0.000000e+00> : vector<32x512xf32>
    %7 = tpu.matmul %5, %6, %cst_7 {dimension_numbers = #tpu.dot_dimension_numbers<[1], [0], [0], [1], [0, 0, 1, 1], [], []>} : vector<32x4xbf16>, vector<4x512xbf16>, vector<32x512xf32> -> vector<32x512xf32>
    %8 = tpu.concatenate %4, %7 in 0 : vector<32x512xf32>, vector<32x512xf32> -> vector<64x512xf32>
    %c0_8 = arith.constant 0 : index
    %c0_9 = arith.constant 0 : index
    %9 = vector.load %arg5[%c0_8, %c0_9] : memref<64x1xf32, #tpu.memory_space<vmem>>, vector<64x1xf32>
    %10 = vector.broadcast %9 : vector<64x1xf32> to vector<64x512xf32>
    %11 = arith.addf %8, %10 : vector<64x512xf32>
    %cst_10 = arith.constant 0.000000e+00 : f32
    %12 = vector.broadcast %cst_10 : f32 to vector<32x512xf32>
    %c17_i32 = arith.constant 17 : i32
    %13 = tpu.dynamic_rotate %11 by %c17_i32 dim 1 : vector<64x512xf32>, i32 -> vector<64x512xf32>
    %c0_11 = arith.constant 0 : index
    %c0_12 = arith.constant 0 : index
    %14 = vector.load %arg2[%c0_11, %c0_12] : memref<9x512xf32, #tpu.memory_space<vmem>>, vector<1x512xf32>
    %15 = vector.broadcast %14 : vector<1x512xf32> to vector<64x512xf32>
    %16 = arith.mulf %13, %15 : vector<64x512xf32>
    %c0_13 = arith.constant 0 : index
    %c0_14 = arith.constant 0 : index
    %c0_15 = arith.constant 0 : index
    %17 = vector.load %arg6[%c0_13, %c0_14, %c0_15] : memref<9x32x64xbf16, #tpu.memory_space<vmem>>, vector<1x32x64xbf16>
    %18 = vector.shape_cast %17 : vector<1x32x64xbf16> to vector<32x64xbf16>
    %19 = arith.truncf %16 : vector<64x512xf32> to vector<64x512xbf16>
    %cst_16 = arith.constant dense<0.000000e+00> : vector<32x512xf32>
    %20 = tpu.matmul %18, %19, %cst_16 {dimension_numbers = #tpu.dot_dimension_numbers<[1], [0], [0], [1], [0, 0, 1, 1], [], []>} : vector<32x64xbf16>, vector<64x512xbf16>, vector<32x512xf32> -> vector<32x512xf32>
    %21 = arith.addf %12, %20 : vector<32x512xf32>
    %c16_i32 = arith.constant 16 : i32
    %22 = tpu.dynamic_rotate %11 by %c16_i32 dim 1 : vector<64x512xf32>, i32 -> vector<64x512xf32>
    %c1 = arith.constant 1 : index
    %c0_17 = arith.constant 0 : index
    %23 = vector.load %arg2[%c1, %c0_17] : memref<9x512xf32, #tpu.memory_space<vmem>>, vector<1x512xf32>
    %24 = vector.broadcast %23 : vector<1x512xf32> to vector<64x512xf32>
    %25 = arith.mulf %22, %24 : vector<64x512xf32>
    %c1_18 = arith.constant 1 : index
    %c0_19 = arith.constant 0 : index
    %c0_20 = arith.constant 0 : index
    %26 = vector.load %arg6[%c1_18, %c0_19, %c0_20] : memref<9x32x64xbf16, #tpu.memory_space<vmem>>, vector<1x32x64xbf16>
    %27 = vector.shape_cast %26 : vector<1x32x64xbf16> to vector<32x64xbf16>
    %28 = arith.truncf %25 : vector<64x512xf32> to vector<64x512xbf16>
    %cst_21 = arith.constant dense<0.000000e+00> : vector<32x512xf32>
    %29 = tpu.matmul %27, %28, %cst_21 {dimension_numbers = #tpu.dot_dimension_numbers<[1], [0], [0], [1], [0, 0, 1, 1], [], []>} : vector<32x64xbf16>, vector<64x512xbf16>, vector<32x512xf32> -> vector<32x512xf32>
    %30 = arith.addf %21, %29 : vector<32x512xf32>
    %c15_i32 = arith.constant 15 : i32
    %31 = tpu.dynamic_rotate %11 by %c15_i32 dim 1 : vector<64x512xf32>, i32 -> vector<64x512xf32>
    %c2 = arith.constant 2 : index
    %c0_22 = arith.constant 0 : index
    %32 = vector.load %arg2[%c2, %c0_22] : memref<9x512xf32, #tpu.memory_space<vmem>>, vector<1x512xf32>
    %33 = vector.broadcast %32 : vector<1x512xf32> to vector<64x512xf32>
    %34 = arith.mulf %31, %33 : vector<64x512xf32>
    %c2_23 = arith.constant 2 : index
    %c0_24 = arith.constant 0 : index
    %c0_25 = arith.constant 0 : index
    %35 = vector.load %arg6[%c2_23, %c0_24, %c0_25] : memref<9x32x64xbf16, #tpu.memory_space<vmem>>, vector<1x32x64xbf16>
    %36 = vector.shape_cast %35 : vector<1x32x64xbf16> to vector<32x64xbf16>
    %37 = arith.truncf %34 : vector<64x512xf32> to vector<64x512xbf16>
    %cst_26 = arith.constant dense<0.000000e+00> : vector<32x512xf32>
    %38 = tpu.matmul %36, %37, %cst_26 {dimension_numbers = #tpu.dot_dimension_numbers<[1], [0], [0], [1], [0, 0, 1, 1], [], []>} : vector<32x64xbf16>, vector<64x512xbf16>, vector<32x512xf32> -> vector<32x512xf32>
    %39 = arith.addf %30, %38 : vector<32x512xf32>
    %c1_i32 = arith.constant 1 : i32
    %40 = tpu.dynamic_rotate %11 by %c1_i32 dim 1 : vector<64x512xf32>, i32 -> vector<64x512xf32>
    %c3 = arith.constant 3 : index
    %c0_27 = arith.constant 0 : index
    %41 = vector.load %arg2[%c3, %c0_27] : memref<9x512xf32, #tpu.memory_space<vmem>>, vector<1x512xf32>
    %42 = vector.broadcast %41 : vector<1x512xf32> to vector<64x512xf32>
    %43 = arith.mulf %40, %42 : vector<64x512xf32>
    %c3_28 = arith.constant 3 : index
    %c0_29 = arith.constant 0 : index
    %c0_30 = arith.constant 0 : index
    %44 = vector.load %arg6[%c3_28, %c0_29, %c0_30] : memref<9x32x64xbf16, #tpu.memory_space<vmem>>, vector<1x32x64xbf16>
    %45 = vector.shape_cast %44 : vector<1x32x64xbf16> to vector<32x64xbf16>
    %46 = arith.truncf %43 : vector<64x512xf32> to vector<64x512xbf16>
    %cst_31 = arith.constant dense<0.000000e+00> : vector<32x512xf32>
    %47 = tpu.matmul %45, %46, %cst_31 {dimension_numbers = #tpu.dot_dimension_numbers<[1], [0], [0], [1], [0, 0, 1, 1], [], []>} : vector<32x64xbf16>, vector<64x512xbf16>, vector<32x512xf32> -> vector<32x512xf32>
    %48 = arith.addf %39, %47 : vector<32x512xf32>
    %c4 = arith.constant 4 : index
    %c0_32 = arith.constant 0 : index
    %c0_33 = arith.constant 0 : index
    %49 = vector.load %arg6[%c4, %c0_32, %c0_33] : memref<9x32x64xbf16, #tpu.memory_space<vmem>>, vector<1x32x64xbf16>
    %50 = vector.shape_cast %49 : vector<1x32x64xbf16> to vector<32x64xbf16>
    %51 = arith.truncf %11 : vector<64x512xf32> to vector<64x512xbf16>
    %cst_34 = arith.constant dense<0.000000e+00> : vector<32x512xf32>
    %52 = tpu.matmul %50, %51, %cst_34 {dimension_numbers = #tpu.dot_dimension_numbers<[1], [0], [0], [1], [0, 0, 1, 1], [], []>} : vector<32x64xbf16>, vector<64x512xbf16>, vector<32x512xf32> -> vector<32x512xf32>
    %53 = arith.addf %48, %52 : vector<32x512xf32>
    %c511_i32 = arith.constant 511 : i32
    %54 = tpu.dynamic_rotate %11 by %c511_i32 dim 1 : vector<64x512xf32>, i32 -> vector<64x512xf32>
    %c5 = arith.constant 5 : index
    %c0_35 = arith.constant 0 : index
    %55 = vector.load %arg2[%c5, %c0_35] : memref<9x512xf32, #tpu.memory_space<vmem>>, vector<1x512xf32>
    %56 = vector.broadcast %55 : vector<1x512xf32> to vector<64x512xf32>
    %57 = arith.mulf %54, %56 : vector<64x512xf32>
    %c5_36 = arith.constant 5 : index
    %c0_37 = arith.constant 0 : index
    %c0_38 = arith.constant 0 : index
    %58 = vector.load %arg6[%c5_36, %c0_37, %c0_38] : memref<9x32x64xbf16, #tpu.memory_space<vmem>>, vector<1x32x64xbf16>
    %59 = vector.shape_cast %58 : vector<1x32x64xbf16> to vector<32x64xbf16>
    %60 = arith.truncf %57 : vector<64x512xf32> to vector<64x512xbf16>
    %cst_39 = arith.constant dense<0.000000e+00> : vector<32x512xf32>
    %61 = tpu.matmul %59, %60, %cst_39 {dimension_numbers = #tpu.dot_dimension_numbers<[1], [0], [0], [1], [0, 0, 1, 1], [], []>} : vector<32x64xbf16>, vector<64x512xbf16>, vector<32x512xf32> -> vector<32x512xf32>
    %62 = arith.addf %53, %61 : vector<32x512xf32>
    %c497_i32 = arith.constant 497 : i32
    %63 = tpu.dynamic_rotate %11 by %c497_i32 dim 1 : vector<64x512xf32>, i32 -> vector<64x512xf32>
    %c6 = arith.constant 6 : index
    %c0_40 = arith.constant 0 : index
    %64 = vector.load %arg2[%c6, %c0_40] : memref<9x512xf32, #tpu.memory_space<vmem>>, vector<1x512xf32>
    %65 = vector.broadcast %64 : vector<1x512xf32> to vector<64x512xf32>
    %66 = arith.mulf %63, %65 : vector<64x512xf32>
    %c6_41 = arith.constant 6 : index
    %c0_42 = arith.constant 0 : index
    %c0_43 = arith.constant 0 : index
    %67 = vector.load %arg6[%c6_41, %c0_42, %c0_43] : memref<9x32x64xbf16, #tpu.memory_space<vmem>>, vector<1x32x64xbf16>
    %68 = vector.shape_cast %67 : vector<1x32x64xbf16> to vector<32x64xbf16>
    %69 = arith.truncf %66 : vector<64x512xf32> to vector<64x512xbf16>
    %cst_44 = arith.constant dense<0.000000e+00> : vector<32x512xf32>
    %70 = tpu.matmul %68, %69, %cst_44 {dimension_numbers = #tpu.dot_dimension_numbers<[1], [0], [0], [1], [0, 0, 1, 1], [], []>} : vector<32x64xbf16>, vector<64x512xbf16>, vector<32x512xf32> -> vector<32x512xf32>
    %71 = arith.addf %62, %70 : vector<32x512xf32>
    %c496_i32 = arith.constant 496 : i32
    %72 = tpu.dynamic_rotate %11 by %c496_i32 dim 1 : vector<64x512xf32>, i32 -> vector<64x512xf32>
    %c7 = arith.constant 7 : index
    %c0_45 = arith.constant 0 : index
    %73 = vector.load %arg2[%c7, %c0_45] : memref<9x512xf32, #tpu.memory_space<vmem>>, vector<1x512xf32>
    %74 = vector.broadcast %73 : vector<1x512xf32> to vector<64x512xf32>
    %75 = arith.mulf %72, %74 : vector<64x512xf32>
    %c7_46 = arith.constant 7 : index
    %c0_47 = arith.constant 0 : index
    %c0_48 = arith.constant 0 : index
    %76 = vector.load %arg6[%c7_46, %c0_47, %c0_48] : memref<9x32x64xbf16, #tpu.memory_space<vmem>>, vector<1x32x64xbf16>
    %77 = vector.shape_cast %76 : vector<1x32x64xbf16> to vector<32x64xbf16>
    %78 = arith.truncf %75 : vector<64x512xf32> to vector<64x512xbf16>
    %cst_49 = arith.constant dense<0.000000e+00> : vector<32x512xf32>
    %79 = tpu.matmul %77, %78, %cst_49 {dimension_numbers = #tpu.dot_dimension_numbers<[1], [0], [0], [1], [0, 0, 1, 1], [], []>} : vector<32x64xbf16>, vector<64x512xbf16>, vector<32x512xf32> -> vector<32x512xf32>
    %80 = arith.addf %71, %79 : vector<32x512xf32>
    %c495_i32 = arith.constant 495 : i32
    %81 = tpu.dynamic_rotate %11 by %c495_i32 dim 1 : vector<64x512xf32>, i32 -> vector<64x512xf32>
    %c8 = arith.constant 8 : index
    %c0_50 = arith.constant 0 : index
    %82 = vector.load %arg2[%c8, %c0_50] : memref<9x512xf32, #tpu.memory_space<vmem>>, vector<1x512xf32>
    %83 = vector.broadcast %82 : vector<1x512xf32> to vector<64x512xf32>
    %84 = arith.mulf %81, %83 : vector<64x512xf32>
    %c8_51 = arith.constant 8 : index
    %c0_52 = arith.constant 0 : index
    %c0_53 = arith.constant 0 : index
    %85 = vector.load %arg6[%c8_51, %c0_52, %c0_53] : memref<9x32x64xbf16, #tpu.memory_space<vmem>>, vector<1x32x64xbf16>
    %86 = vector.shape_cast %85 : vector<1x32x64xbf16> to vector<32x64xbf16>
    %87 = arith.truncf %84 : vector<64x512xf32> to vector<64x512xbf16>
    %cst_54 = arith.constant dense<0.000000e+00> : vector<32x512xf32>
    %88 = tpu.matmul %86, %87, %cst_54 {dimension_numbers = #tpu.dot_dimension_numbers<[1], [0], [0], [1], [0, 0, 1, 1], [], []>} : vector<32x64xbf16>, vector<64x512xbf16>, vector<32x512xf32> -> vector<32x512xf32>
    %89 = arith.addf %80, %88 : vector<32x512xf32>
    %c0_55 = arith.constant 0 : index
    %c0_56 = arith.constant 0 : index
    %90 = vector.load %arg7[%c0_55, %c0_56] : memref<32x1xf32, #tpu.memory_space<vmem>>, vector<32x1xf32>
    %91 = vector.broadcast %90 : vector<32x1xf32> to vector<32x512xf32>
    %92 = arith.addf %89, %91 : vector<32x512xf32>
    %cst_57 = arith.constant 0.000000e+00 : f32
    %93 = vector.broadcast %cst_57 : f32 to vector<32x512xf32>
    %94 = arith.maximumf %92, %93 : vector<32x512xf32>
    %cst_58 = arith.constant 0.000000e+00 : f32
    %95 = vector.broadcast %cst_58 : f32 to vector<1x512xf32>
    %c17_i32_59 = arith.constant 17 : i32
    %96 = tpu.dynamic_rotate %94 by %c17_i32_59 dim 1 : vector<32x512xf32>, i32 -> vector<32x512xf32>
    %c0_60 = arith.constant 0 : index
    %c0_61 = arith.constant 0 : index
    %97 = vector.load %arg2[%c0_60, %c0_61] : memref<9x512xf32, #tpu.memory_space<vmem>>, vector<1x512xf32>
    %98 = vector.broadcast %97 : vector<1x512xf32> to vector<32x512xf32>
    %99 = arith.mulf %96, %98 : vector<32x512xf32>
    %c0_62 = arith.constant 0 : index
    %c0_63 = arith.constant 0 : index
    %c0_64 = arith.constant 0 : index
    %100 = vector.load %arg8[%c0_62, %c0_63, %c0_64] : memref<9x1x32xbf16, #tpu.memory_space<vmem>>, vector<1x1x32xbf16>
    %101 = vector.shape_cast %100 : vector<1x1x32xbf16> to vector<1x32xbf16>
    %102 = arith.truncf %99 : vector<32x512xf32> to vector<32x512xbf16>
    %cst_65 = arith.constant dense<0.000000e+00> : vector<1x512xf32>
    %103 = tpu.matmul %101, %102, %cst_65 {dimension_numbers = #tpu.dot_dimension_numbers<[1], [0], [0], [1], [0, 0, 1, 1], [], []>} : vector<1x32xbf16>, vector<32x512xbf16>, vector<1x512xf32> -> vector<1x512xf32>
    %104 = arith.addf %95, %103 : vector<1x512xf32>
    %c16_i32_66 = arith.constant 16 : i32
    %105 = tpu.dynamic_rotate %94 by %c16_i32_66 dim 1 : vector<32x512xf32>, i32 -> vector<32x512xf32>
    %c1_67 = arith.constant 1 : index
    %c0_68 = arith.constant 0 : index
    %106 = vector.load %arg2[%c1_67, %c0_68] : memref<9x512xf32, #tpu.memory_space<vmem>>, vector<1x512xf32>
    %107 = vector.broadcast %106 : vector<1x512xf32> to vector<32x512xf32>
    %108 = arith.mulf %105, %107 : vector<32x512xf32>
    %c1_69 = arith.constant 1 : index
    %c0_70 = arith.constant 0 : index
    %c0_71 = arith.constant 0 : index
    %109 = vector.load %arg8[%c1_69, %c0_70, %c0_71] : memref<9x1x32xbf16, #tpu.memory_space<vmem>>, vector<1x1x32xbf16>
    %110 = vector.shape_cast %109 : vector<1x1x32xbf16> to vector<1x32xbf16>
    %111 = arith.truncf %108 : vector<32x512xf32> to vector<32x512xbf16>
    %cst_72 = arith.constant dense<0.000000e+00> : vector<1x512xf32>
    %112 = tpu.matmul %110, %111, %cst_72 {dimension_numbers = #tpu.dot_dimension_numbers<[1], [0], [0], [1], [0, 0, 1, 1], [], []>} : vector<1x32xbf16>, vector<32x512xbf16>, vector<1x512xf32> -> vector<1x512xf32>
    %113 = arith.addf %104, %112 : vector<1x512xf32>
    %c15_i32_73 = arith.constant 15 : i32
    %114 = tpu.dynamic_rotate %94 by %c15_i32_73 dim 1 : vector<32x512xf32>, i32 -> vector<32x512xf32>
    %c2_74 = arith.constant 2 : index
    %c0_75 = arith.constant 0 : index
    %115 = vector.load %arg2[%c2_74, %c0_75] : memref<9x512xf32, #tpu.memory_space<vmem>>, vector<1x512xf32>
    %116 = vector.broadcast %115 : vector<1x512xf32> to vector<32x512xf32>
    %117 = arith.mulf %114, %116 : vector<32x512xf32>
    %c2_76 = arith.constant 2 : index
    %c0_77 = arith.constant 0 : index
    %c0_78 = arith.constant 0 : index
    %118 = vector.load %arg8[%c2_76, %c0_77, %c0_78] : memref<9x1x32xbf16, #tpu.memory_space<vmem>>, vector<1x1x32xbf16>
    %119 = vector.shape_cast %118 : vector<1x1x32xbf16> to vector<1x32xbf16>
    %120 = arith.truncf %117 : vector<32x512xf32> to vector<32x512xbf16>
    %cst_79 = arith.constant dense<0.000000e+00> : vector<1x512xf32>
    %121 = tpu.matmul %119, %120, %cst_79 {dimension_numbers = #tpu.dot_dimension_numbers<[1], [0], [0], [1], [0, 0, 1, 1], [], []>} : vector<1x32xbf16>, vector<32x512xbf16>, vector<1x512xf32> -> vector<1x512xf32>
    %122 = arith.addf %113, %121 : vector<1x512xf32>
    %c1_i32_80 = arith.constant 1 : i32
    %123 = tpu.dynamic_rotate %94 by %c1_i32_80 dim 1 : vector<32x512xf32>, i32 -> vector<32x512xf32>
    %c3_81 = arith.constant 3 : index
    %c0_82 = arith.constant 0 : index
    %124 = vector.load %arg2[%c3_81, %c0_82] : memref<9x512xf32, #tpu.memory_space<vmem>>, vector<1x512xf32>
    %125 = vector.broadcast %124 : vector<1x512xf32> to vector<32x512xf32>
    %126 = arith.mulf %123, %125 : vector<32x512xf32>
    %c3_83 = arith.constant 3 : index
    %c0_84 = arith.constant 0 : index
    %c0_85 = arith.constant 0 : index
    %127 = vector.load %arg8[%c3_83, %c0_84, %c0_85] : memref<9x1x32xbf16, #tpu.memory_space<vmem>>, vector<1x1x32xbf16>
    %128 = vector.shape_cast %127 : vector<1x1x32xbf16> to vector<1x32xbf16>
    %129 = arith.truncf %126 : vector<32x512xf32> to vector<32x512xbf16>
    %cst_86 = arith.constant dense<0.000000e+00> : vector<1x512xf32>
    %130 = tpu.matmul %128, %129, %cst_86 {dimension_numbers = #tpu.dot_dimension_numbers<[1], [0], [0], [1], [0, 0, 1, 1], [], []>} : vector<1x32xbf16>, vector<32x512xbf16>, vector<1x512xf32> -> vector<1x512xf32>
    %131 = arith.addf %122, %130 : vector<1x512xf32>
    %c4_87 = arith.constant 4 : index
    %c0_88 = arith.constant 0 : index
    %c0_89 = arith.constant 0 : index
    %132 = vector.load %arg8[%c4_87, %c0_88, %c0_89] : memref<9x1x32xbf16, #tpu.memory_space<vmem>>, vector<1x1x32xbf16>
    %133 = vector.shape_cast %132 : vector<1x1x32xbf16> to vector<1x32xbf16>
    %134 = arith.truncf %94 : vector<32x512xf32> to vector<32x512xbf16>
    %cst_90 = arith.constant dense<0.000000e+00> : vector<1x512xf32>
    %135 = tpu.matmul %133, %134, %cst_90 {dimension_numbers = #tpu.dot_dimension_numbers<[1], [0], [0], [1], [0, 0, 1, 1], [], []>} : vector<1x32xbf16>, vector<32x512xbf16>, vector<1x512xf32> -> vector<1x512xf32>
    %136 = arith.addf %131, %135 : vector<1x512xf32>
    %c511_i32_91 = arith.constant 511 : i32
    %137 = tpu.dynamic_rotate %94 by %c511_i32_91 dim 1 : vector<32x512xf32>, i32 -> vector<32x512xf32>
    %c5_92 = arith.constant 5 : index
    %c0_93 = arith.constant 0 : index
    %138 = vector.load %arg2[%c5_92, %c0_93] : memref<9x512xf32, #tpu.memory_space<vmem>>, vector<1x512xf32>
    %139 = vector.broadcast %138 : vector<1x512xf32> to vector<32x512xf32>
    %140 = arith.mulf %137, %139 : vector<32x512xf32>
    %c5_94 = arith.constant 5 : index
    %c0_95 = arith.constant 0 : index
    %c0_96 = arith.constant 0 : index
    %141 = vector.load %arg8[%c5_94, %c0_95, %c0_96] : memref<9x1x32xbf16, #tpu.memory_space<vmem>>, vector<1x1x32xbf16>
    %142 = vector.shape_cast %141 : vector<1x1x32xbf16> to vector<1x32xbf16>
    %143 = arith.truncf %140 : vector<32x512xf32> to vector<32x512xbf16>
    %cst_97 = arith.constant dense<0.000000e+00> : vector<1x512xf32>
    %144 = tpu.matmul %142, %143, %cst_97 {dimension_numbers = #tpu.dot_dimension_numbers<[1], [0], [0], [1], [0, 0, 1, 1], [], []>} : vector<1x32xbf16>, vector<32x512xbf16>, vector<1x512xf32> -> vector<1x512xf32>
    %145 = arith.addf %136, %144 : vector<1x512xf32>
    %c497_i32_98 = arith.constant 497 : i32
    %146 = tpu.dynamic_rotate %94 by %c497_i32_98 dim 1 : vector<32x512xf32>, i32 -> vector<32x512xf32>
    %c6_99 = arith.constant 6 : index
    %c0_100 = arith.constant 0 : index
    %147 = vector.load %arg2[%c6_99, %c0_100] : memref<9x512xf32, #tpu.memory_space<vmem>>, vector<1x512xf32>
    %148 = vector.broadcast %147 : vector<1x512xf32> to vector<32x512xf32>
    %149 = arith.mulf %146, %148 : vector<32x512xf32>
    %c6_101 = arith.constant 6 : index
    %c0_102 = arith.constant 0 : index
    %c0_103 = arith.constant 0 : index
    %150 = vector.load %arg8[%c6_101, %c0_102, %c0_103] : memref<9x1x32xbf16, #tpu.memory_space<vmem>>, vector<1x1x32xbf16>
    %151 = vector.shape_cast %150 : vector<1x1x32xbf16> to vector<1x32xbf16>
    %152 = arith.truncf %149 : vector<32x512xf32> to vector<32x512xbf16>
    %cst_104 = arith.constant dense<0.000000e+00> : vector<1x512xf32>
    %153 = tpu.matmul %151, %152, %cst_104 {dimension_numbers = #tpu.dot_dimension_numbers<[1], [0], [0], [1], [0, 0, 1, 1], [], []>} : vector<1x32xbf16>, vector<32x512xbf16>, vector<1x512xf32> -> vector<1x512xf32>
    %154 = arith.addf %145, %153 : vector<1x512xf32>
    %c496_i32_105 = arith.constant 496 : i32
    %155 = tpu.dynamic_rotate %94 by %c496_i32_105 dim 1 : vector<32x512xf32>, i32 -> vector<32x512xf32>
    %c7_106 = arith.constant 7 : index
    %c0_107 = arith.constant 0 : index
    %156 = vector.load %arg2[%c7_106, %c0_107] : memref<9x512xf32, #tpu.memory_space<vmem>>, vector<1x512xf32>
    %157 = vector.broadcast %156 : vector<1x512xf32> to vector<32x512xf32>
    %158 = arith.mulf %155, %157 : vector<32x512xf32>
    %c7_108 = arith.constant 7 : index
    %c0_109 = arith.constant 0 : index
    %c0_110 = arith.constant 0 : index
    %159 = vector.load %arg8[%c7_108, %c0_109, %c0_110] : memref<9x1x32xbf16, #tpu.memory_space<vmem>>, vector<1x1x32xbf16>
    %160 = vector.shape_cast %159 : vector<1x1x32xbf16> to vector<1x32xbf16>
    %161 = arith.truncf %158 : vector<32x512xf32> to vector<32x512xbf16>
    %cst_111 = arith.constant dense<0.000000e+00> : vector<1x512xf32>
    %162 = tpu.matmul %160, %161, %cst_111 {dimension_numbers = #tpu.dot_dimension_numbers<[1], [0], [0], [1], [0, 0, 1, 1], [], []>} : vector<1x32xbf16>, vector<32x512xbf16>, vector<1x512xf32> -> vector<1x512xf32>
    %163 = arith.addf %154, %162 : vector<1x512xf32>
    %c495_i32_112 = arith.constant 495 : i32
    %164 = tpu.dynamic_rotate %94 by %c495_i32_112 dim 1 : vector<32x512xf32>, i32 -> vector<32x512xf32>
    %c8_113 = arith.constant 8 : index
    %c0_114 = arith.constant 0 : index
    %165 = vector.load %arg2[%c8_113, %c0_114] : memref<9x512xf32, #tpu.memory_space<vmem>>, vector<1x512xf32>
    %166 = vector.broadcast %165 : vector<1x512xf32> to vector<32x512xf32>
    %167 = arith.mulf %164, %166 : vector<32x512xf32>
    %c8_115 = arith.constant 8 : index
    %c0_116 = arith.constant 0 : index
    %c0_117 = arith.constant 0 : index
    %168 = vector.load %arg8[%c8_115, %c0_116, %c0_117] : memref<9x1x32xbf16, #tpu.memory_space<vmem>>, vector<1x1x32xbf16>
    %169 = vector.shape_cast %168 : vector<1x1x32xbf16> to vector<1x32xbf16>
    %170 = arith.truncf %167 : vector<32x512xf32> to vector<32x512xbf16>
    %cst_118 = arith.constant dense<0.000000e+00> : vector<1x512xf32>
    %171 = tpu.matmul %169, %170, %cst_118 {dimension_numbers = #tpu.dot_dimension_numbers<[1], [0], [0], [1], [0, 0, 1, 1], [], []>} : vector<1x32xbf16>, vector<32x512xbf16>, vector<1x512xf32> -> vector<1x512xf32>
    %172 = arith.addf %163, %171 : vector<1x512xf32>
    %c0_119 = arith.constant 0 : index
    %c0_120 = arith.constant 0 : index
    %173 = vector.load %arg9[%c0_119, %c0_120] : memref<1x1xf32, #tpu.memory_space<vmem>>, vector<1x1xf32>
    %174 = vector.broadcast %173 : vector<1x1xf32> to vector<1x512xf32>
    %175 = arith.addf %172, %174 : vector<1x512xf32>
    %cst_121 = arith.constant 0.000000e+00 : f32
    %176 = vector.broadcast %cst_121 : f32 to vector<1x512xf32>
    %177 = arith.subf %176, %175 : vector<1x512xf32>
    %178 = math.exp %177 : vector<1x512xf32>
    %cst_122 = arith.constant 1.000000e+00 : f32
    %179 = vector.broadcast %cst_122 : f32 to vector<1x512xf32>
    %180 = arith.addf %179, %178 : vector<1x512xf32>
    %cst_123 = arith.constant 1.000000e+00 : f32
    %181 = vector.broadcast %cst_123 : f32 to vector<1x512xf32>
    %182 = arith.divf %181, %180 : vector<1x512xf32>
    %183 = vector.broadcast %182 : vector<1x512xf32> to vector<4x512xf32>
    %184 = arith.mulf %0, %183 : vector<4x512xf32>
    %c0_124 = arith.constant 0 : index
    %c0_125 = arith.constant 0 : index
    %185 = vector.load %arg10[%c0_124, %c0_125] : memref<4x512xf32, #tpu.memory_space<vmem>>, vector<4x512xf32>
    tpu.vector_store %arg10[%c0_124, %c0_125], %184 {strides = array<i32>} : memref<4x512xf32, #tpu.memory_space<vmem>>, vector<4x512xf32>,
    return
  }
}

module attributes {stable_mosaic.version = 11 : i64} {
  func.func @_ssa_fuse_kernel(%arg0: i32, %arg1: memref<256x294xbf16, #tpu.memory_space<vmem>>, %arg2: memref<294x3xbf16, #tpu.memory_space<vmem>>, %arg3: memref<1x3xf32, #tpu.memory_space<vmem>>, %arg4: memref<256x4xf32, #tpu.memory_space<vmem>>, %arg5: memref<256x4xf32, #tpu.memory_space<vmem>>, %arg6: memref<256x4xf32, #tpu.memory_space<vmem>>) attributes {dimension_semantics = [#tpu.dimension_semantics<parallel>], iteration_bounds = array<i64: 2>, scalar_prefetch = 0 : i64, scratch_operands = 0 : i64, tpu.core_type = #tpu.core_type<tc>, window_params = [{transform_indices = @transform_0, window_bounds = array<i64: 256, 294>}, {pipeline_mode = #tpu.pipeline_mode<synchronous>, transform_indices = @transform_1, window_bounds = array<i64: 294, 3>}, {pipeline_mode = #tpu.pipeline_mode<synchronous>, transform_indices = @transform_2, window_bounds = array<i64: 1, 3>}, {transform_indices = @transform_3, window_bounds = array<i64: 256, 4>}, {transform_indices = @transform_4, window_bounds = array<i64: 256, 4>}, {transform_indices = @transform_5, window_bounds = array<i64: 256, 4>}]} {
    %c0 = arith.constant 0 : index
    %c0_0 = arith.constant 0 : index
    %0 = vector.load %arg1[%c0, %c0_0] : memref<256x294xbf16, #tpu.memory_space<vmem>>, vector<256x294xbf16>
    %c0_1 = arith.constant 0 : index
    %c0_2 = arith.constant 0 : index
    %1 = vector.load %arg2[%c0_1, %c0_2] : memref<294x3xbf16, #tpu.memory_space<vmem>>, vector<294x3xbf16>
    %cst = arith.constant dense<0.000000e+00> : vector<256x3xf32>
    %2 = tpu.matmul %0, %1, %cst {dimension_numbers = #tpu.dot_dimension_numbers<[1], [0], [0], [1], [0, 0, 1, 1], [], []>} : vector<256x294xbf16>, vector<294x3xbf16>, vector<256x3xf32> -> vector<256x3xf32>
    %c0_3 = arith.constant 0 : index
    %c0_4 = arith.constant 0 : index
    %3 = vector.load %arg3[%c0_3, %c0_4] : memref<1x3xf32, #tpu.memory_space<vmem>>, vector<1x3xf32>
    %4 = vector.broadcast %3 : vector<1x3xf32> to vector<256x3xf32>
    %5 = arith.addf %2, %4 : vector<256x3xf32>
    %6 = vector.extract_strided_slice %5 {offsets = [0, 0], sizes = [256, 1], strides = [1, 1]} : vector<256x3xf32> to vector<256x1xf32>
    %7 = vector.extract_strided_slice %5 {offsets = [0, 1], sizes = [256, 1], strides = [1, 1]} : vector<256x3xf32> to vector<256x1xf32>
    %8 = vector.extract_strided_slice %5 {offsets = [0, 2], sizes = [256, 1], strides = [1, 1]} : vector<256x3xf32> to vector<256x1xf32>
    %9 = arith.mulf %6, %8 : vector<256x1xf32>
    %10 = arith.mulf %7, %8 : vector<256x1xf32>
    %11 = arith.addf %9, %10 : vector<256x1xf32>
    %12 = arith.addf %11, %8 : vector<256x1xf32>
    %cst_5 = arith.constant 0.000000e+00 : f32
    %13 = vector.broadcast %cst_5 : f32 to vector<256x1xf32>
    %14 = arith.subf %13, %12 : vector<256x1xf32>
    %15 = math.exp %14 : vector<256x1xf32>
    %cst_6 = arith.constant 1.000000e+00 : f32
    %16 = vector.broadcast %cst_6 : f32 to vector<256x1xf32>
    %17 = arith.addf %16, %15 : vector<256x1xf32>
    %18 = tpu.reciprocal %17 {approx = true} : vector<256x1xf32> -> vector<256x1xf32>
    %c0_7 = arith.constant 0 : index
    %c0_8 = arith.constant 0 : index
    %19 = vector.load %arg4[%c0_7, %c0_8] : memref<256x4xf32, #tpu.memory_space<vmem>>, vector<256x4xf32>
    %20 = vector.broadcast %18 : vector<256x1xf32> to vector<256x4xf32>
    %21 = arith.mulf %20, %19 : vector<256x4xf32>
    %22 = arith.addf %21, %19 : vector<256x4xf32>
    %c0_9 = arith.constant 0 : index
    %c0_10 = arith.constant 0 : index
    %23 = vector.load %arg5[%c0_9, %c0_10] : memref<256x4xf32, #tpu.memory_space<vmem>>, vector<256x4xf32>
    %24 = arith.addf %22, %23 : vector<256x4xf32>
    %c0_11 = arith.constant 0 : index
    %c0_12 = arith.constant 0 : index
    %25 = vector.load %arg6[%c0_11, %c0_12] : memref<256x4xf32, #tpu.memory_space<vmem>>, vector<256x4xf32>
    tpu.vector_store %arg6[%c0_11, %c0_12], %24 {strides = array<i32>} : memref<256x4xf32, #tpu.memory_space<vmem>>, vector<256x4xf32>,
    return
  }
  func.func @transform_0(%arg0: i32) -> (i32, i32) {
    %c0_i32 = arith.constant 0 : i32
    %c0_i32_0 = arith.constant 0 : i32
    return %arg0, %c0_i32 : i32, i32
  }
  func.func @transform_1(%arg0: i32) -> (i32, i32) {
    %c0_i32 = arith.constant 0 : i32
    %c0_i32_0 = arith.constant 0 : i32
    %c0_i32_1 = arith.constant 0 : i32
    return %c0_i32, %c0_i32_0 : i32, i32
  }
  func.func @transform_2(%arg0: i32) -> (i32, i32) {
    %c0_i32 = arith.constant 0 : i32
    %c0_i32_0 = arith.constant 0 : i32
    %c0_i32_1 = arith.constant 0 : i32
    return %c0_i32, %c0_i32_0 : i32, i32
  }
  func.func @transform_3(%arg0: i32) -> (i32, i32) {
    %c0_i32 = arith.constant 0 : i32
    %c0_i32_0 = arith.constant 0 : i32
    return %arg0, %c0_i32 : i32, i32
  }
  func.func @transform_4(%arg0: i32) -> (i32, i32) {
    %c0_i32 = arith.constant 0 : i32
    %c0_i32_0 = arith.constant 0 : i32
    return %arg0, %c0_i32 : i32, i32
  }
  func.func @transform_5(%arg0: i32) -> (i32, i32) {
    %c0_i32 = arith.constant 0 : i32
    %c0_i32_0 = arith.constant 0 : i32
    return %arg0, %c0_i32 : i32, i32
  }
}

module attributes {stable_mosaic.version = 11 : i64} {
  func.func @_conv_bn_relu_kernel(%arg0: memref<512x72xbf16, #tpu.memory_space<vmem>>, %arg1: memref<72x8xbf16, #tpu.memory_space<vmem>>, %arg2: memref<1x8xf32, #tpu.memory_space<vmem>>, %arg3: memref<1x8xf32, #tpu.memory_space<vmem>>, %arg4: memref<1x8xf32, #tpu.memory_space<vmem>>, %arg5: memref<512x8xf32, #tpu.memory_space<vmem>>) attributes {dimension_semantics = [], scalar_prefetch = 0 : i64, scratch_operands = 0 : i64, tpu.core_type = #tpu.core_type<tc>} {
    %c0 = arith.constant 0 : index
    %c0_0 = arith.constant 0 : index
    %0 = vector.load %arg0[%c0, %c0_0] : memref<512x72xbf16, #tpu.memory_space<vmem>>, vector<512x72xbf16>
    %c0_1 = arith.constant 0 : index
    %c0_2 = arith.constant 0 : index
    %1 = vector.load %arg1[%c0_1, %c0_2] : memref<72x8xbf16, #tpu.memory_space<vmem>>, vector<72x8xbf16>
    %cst = arith.constant dense<0.000000e+00> : vector<512x8xf32>
    %2 = tpu.matmul %0, %1, %cst {dimension_numbers = #tpu.dot_dimension_numbers<[1], [0], [0], [1], [0, 0, 1, 1], [], []>} : vector<512x72xbf16>, vector<72x8xbf16>, vector<512x8xf32> -> vector<512x8xf32>
    %c0_3 = arith.constant 0 : index
    %c0_4 = arith.constant 0 : index
    %3 = vector.load %arg2[%c0_3, %c0_4] : memref<1x8xf32, #tpu.memory_space<vmem>>, vector<1x8xf32>
    %4 = vector.broadcast %3 : vector<1x8xf32> to vector<512x8xf32>
    %5 = arith.addf %2, %4 : vector<512x8xf32>
    %cst_5 = arith.constant dense<0.000000e+00> : vector<8xf32>
    %6 = vector.multi_reduction <add>, %5, %cst_5 [0] : vector<512x8xf32> to vector<8xf32>
    %7 = vector.shape_cast %6 : vector<8xf32> to vector<1x8xf32>
    %cst_6 = arith.constant 0.001953125 : f32
    %8 = vector.broadcast %cst_6 : f32 to vector<1x8xf32>
    %9 = arith.mulf %7, %8 : vector<1x8xf32>
    %10 = vector.broadcast %9 : vector<1x8xf32> to vector<512x8xf32>
    %11 = arith.subf %5, %10 : vector<512x8xf32>
    %12 = arith.mulf %11, %11 : vector<512x8xf32>
    %cst_7 = arith.constant dense<0.000000e+00> : vector<8xf32>
    %13 = vector.multi_reduction <add>, %12, %cst_7 [0] : vector<512x8xf32> to vector<8xf32>
    %14 = vector.shape_cast %13 : vector<8xf32> to vector<1x8xf32>
    %cst_8 = arith.constant 0.001953125 : f32
    %15 = vector.broadcast %cst_8 : f32 to vector<1x8xf32>
    %16 = arith.mulf %14, %15 : vector<1x8xf32>
    %cst_9 = arith.constant 9.99999974E-6 : f32
    %17 = vector.broadcast %cst_9 : f32 to vector<1x8xf32>
    %18 = arith.addf %16, %17 : vector<1x8xf32>
    %19 = math.rsqrt %18 : vector<1x8xf32>
    %20 = vector.broadcast %19 : vector<1x8xf32> to vector<512x8xf32>
    %21 = arith.mulf %11, %20 : vector<512x8xf32>
    %c0_10 = arith.constant 0 : index
    %c0_11 = arith.constant 0 : index
    %22 = vector.load %arg3[%c0_10, %c0_11] : memref<1x8xf32, #tpu.memory_space<vmem>>, vector<1x8xf32>
    %23 = vector.broadcast %22 : vector<1x8xf32> to vector<512x8xf32>
    %24 = arith.mulf %21, %23 : vector<512x8xf32>
    %c0_12 = arith.constant 0 : index
    %c0_13 = arith.constant 0 : index
    %25 = vector.load %arg4[%c0_12, %c0_13] : memref<1x8xf32, #tpu.memory_space<vmem>>, vector<1x8xf32>
    %26 = vector.broadcast %25 : vector<1x8xf32> to vector<512x8xf32>
    %27 = arith.addf %24, %26 : vector<512x8xf32>
    %cst_14 = arith.constant 0.000000e+00 : f32
    %28 = vector.broadcast %cst_14 : f32 to vector<512x8xf32>
    %29 = arith.maximumf %27, %28 : vector<512x8xf32>
    %c0_15 = arith.constant 0 : index
    %c0_16 = arith.constant 0 : index
    %30 = vector.load %arg5[%c0_15, %c0_16] : memref<512x8xf32, #tpu.memory_space<vmem>>, vector<512x8xf32>
    tpu.vector_store %arg5[%c0_15, %c0_16], %29 {strides = array<i32>} : memref<512x8xf32, #tpu.memory_space<vmem>>, vector<512x8xf32>,
    return
  }
}

</mosaic_0001>

<llo_original>
// kernel: daff_forward.5
$region0: #{daff_forward.5}
  #allocation0 [shape = 'u32[]', space=smem, size = 0x4, offset = 0x4, fixed_abs, tag = 'smem constant byte address 0x4 - core index']
  #allocation1 [shape = 'u32[144,128]{1,0:T(1,128)}', space=vmem, size = 0x12000, scoped, tag = 'internal scratch']
  %s0 = inlined_call_operand.vmem [shape: f32[2,4,256], index: 0, kind: input, shape index: {}]
  %s1 = inlined_call_operand.vmem [shape: f32[2,256,4], index: 1, kind: input, shape index: {}]
  %s2 = inlined_call_operand.vmem [shape: f32[2,4,256], index: 2, kind: input, shape index: {}]
  %s3 = inlined_call_operand.vmem [shape: f32[2,4,256], index: 3, kind: output, shape index: {}]
  %s4 = sld [smem:[#allocation0]]
  $region45: #{daff_forward.5} parent=0
    _
  %s6 = ssub.s32 1, %s4
  %s7 = scalar_select 0, %s6, %s4
  loop: start=0, step=1, limit=4
  $region2: #{daff_forward.5} parent=0 // loop_pre_header
    _
  $region3: #{daff_forward.5} parent=0 // loop_header
    %s9 = sphi 0, %s13
    %p10 = scmp.ge.s32.totalorder %s9, 4
    %s19 = sphi 0, %s21
    %s22 = sphi 0, %s19
    %s23 = sphi 0, %s22
    %s39 = sphi 0, %s23
    %s45 = sphi 0, %s47
    %s48 = sphi 0, %s45
    %s49 = sphi 0, %s48
    %s65 = sphi 0, %s49
    %s71 = sphi 0, %s73
    %s74 = sphi 0, %s71
    %s75 = sphi 0, %s74
    %s91 = sphi 0, %s75
    %s97 = sphi 0, %s99
    %s100 = sphi 0, %s97
    %s101 = sphi 0, %s100
    %s117 = sphi 0, %s101
  $region4: #{daff_forward.5} parent=0 // loop_header_branch
    %12 = sbr.rel (%p10) target = $region8
  $region5: #{daff_forward.5} parent=0 // loop_body
    %s14 = ssub.s32 %s9, 1
    %s15 = ssub.s32 %s9, 2
    %s16 = sadd.s32 %s9, 1
    %s17 = ssub.s32 %s9, %s16
    %p18 = scmp.eq.s32.totalorder %s17, 0
    %s20 = sadd.s32 %s19, 1
    %s21 = scalar_select %p18, %s19, %s20
    %p24 = pneg %p18
    %p25 = scmp.eq.s32.totalorder %s9, 1
    %p26 = por %p24, %p25
    %p27 = scmp.ne.s32.totalorder %s19, %s22
    %p28 = scmp.eq.s32.totalorder %s9, 0
    %p29 = por %p27, %p28
    %p30 = scmp.ne.s32.totalorder %s19, %s22
    %p31 = scmp.eq.s32.totalorder %s14, 1
    %p32 = por %p30, %p31
    %p33 = scmp.ne.s32.totalorder %s22, %s23
    %p34 = scmp.eq.s32.totalorder %s14, 0
    %p35 = por %p33, %p34
    %p36 = scmp.ne.s32.totalorder %s22, %s23
    %p37 = scmp.eq.s32.totalorder %s15, 1
    %p38 = por %p36, %p37
    %p40 = scmp.ne.s32.totalorder %s23, %s39
    %p41 = scmp.eq.s32.totalorder %s15, 0
    %p42 = por %p40, %p41
    %s43 = ssub.s32 %s9, %s16
    %p44 = scmp.eq.s32.totalorder %s43, 0
    %s46 = sadd.s32 %s45, 1
    %s47 = scalar_select %p44, %s45, %s46
    %p50 = pneg %p44
    %p51 = scmp.eq.s32.totalorder %s9, 1
    %p52 = por %p50, %p51
    %p53 = scmp.ne.s32.totalorder %s45, %s48
    %p54 = scmp.eq.s32.totalorder %s9, 0
    %p55 = por %p53, %p54
    %p56 = scmp.ne.s32.totalorder %s45, %s48
    %p57 = scmp.eq.s32.totalorder %s14, 1
    %p58 = por %p56, %p57
    %p59 = scmp.ne.s32.totalorder %s48, %s49
    %p60 = scmp.eq.s32.totalorder %s14, 0
    %p61 = por %p59, %p60
    %p62 = scmp.ne.s32.totalorder %s48, %s49
    %p63 = scmp.eq.s32.totalorder %s15, 1
    %p64 = por %p62, %p63
    %p66 = scmp.ne.s32.totalorder %s49, %s65
    %p67 = scmp.eq.s32.totalorder %s15, 0
    %p68 = por %p66, %p67
    %s69 = ssub.s32 %s9, %s16
    %p70 = scmp.eq.s32.totalorder %s69, 0
    %s72 = sadd.s32 %s71, 1
    %s73 = scalar_select %p70, %s71, %s72
    %p76 = pneg %p70
    %p77 = scmp.eq.s32.totalorder %s9, 1
    %p78 = por %p76, %p77
    %p79 = scmp.ne.s32.totalorder %s71, %s74
    %p80 = scmp.eq.s32.totalorder %s9, 0
    %p81 = por %p79, %p80
    %p82 = scmp.ne.s32.totalorder %s71, %s74
    %p83 = scmp.eq.s32.totalorder %s14, 1
    %p84 = por %p82, %p83
    %p85 = scmp.ne.s32.totalorder %s74, %s75
    %p86 = scmp.eq.s32.totalorder %s14, 0
    %p87 = por %p85, %p86
    %p88 = scmp.ne.s32.totalorder %s74, %s75
    %p89 = scmp.eq.s32.totalorder %s15, 1
    %p90 = por %p88, %p89
    %p92 = scmp.ne.s32.totalorder %s75, %s91
    %p93 = scmp.eq.s32.totalorder %s15, 0
    %p94 = por %p92, %p93
    %s95 = ssub.s32 %s9, %s16
    %p96 = scmp.eq.s32.totalorder %s95, 0
    %s98 = sadd.s32 %s97, 1
    %s99 = scalar_select %p96, %s97, %s98
    %p102 = pneg %p96
    %p103 = scmp.eq.s32.totalorder %s9, 1
    %p104 = por %p102, %p103
    %p105 = scmp.ne.s32.totalorder %s97, %s100
    %p106 = scmp.eq.s32.totalorder %s9, 0
    %p107 = por %p105, %p106
    %p108 = scmp.ne.s32.totalorder %s97, %s100
    %p109 = scmp.eq.s32.totalorder %s14, 1
    %p110 = por %p108, %p109
    %p111 = scmp.ne.s32.totalorder %s100, %s101
    %p112 = scmp.eq.s32.totalorder %s14, 0
    %p113 = por %p111, %p112
    %p114 = scmp.ne.s32.totalorder %s100, %s101
    %p115 = scmp.eq.s32.totalorder %s15, 1
    %p116 = por %p114, %p115
    %p118 = scmp.ne.s32.totalorder %s101, %s117
    %p119 = scmp.eq.s32.totalorder %s15, 0
    %p120 = por %p118, %p119
    %p121 = scmp.le.s32.totalorder 1, %s9
    %p122 = scmp.lt.s32.totalorder %s9, 3
    %p123 = pnand %p121, %p122
    %p124 = pneg %p123
    // Predicated region
    $region9: #{daff_forward.5} parent=5 // pred_check
      _
    $region10: #{daff_forward.5} parent=5 // pred_check_branch
      %126 = sbr.rel (%p123) target = $region12
    $region11: #{daff_forward.5} parent=5 // pred_region
      %s127 = ssub.s32 %s9, 1
    $region12: #{daff_forward.5} parent=5 // pred_fallthru
      _
    %p128 = scmp.lt.s32.totalorder %s9, 2
    // Predicated region
    $region13: #{daff_forward.5} parent=5 // pred_check
      %p129 = pneg %p128
    $region14: #{daff_forward.5} parent=5 // pred_check_branch
      %131 = sbr.rel (%p129) target = $region16
    $region15: #{daff_forward.5} parent=5 // pred_region
      // Predicated region
      $region17: #{daff_forward.5} parent=15 // pred_check
        %p132 = pneg %p29
      $region18: #{daff_forward.5} parent=15 // pred_check_branch
        %134 = sbr.rel (%p132) target = $region20
      $region19: #{daff_forward.5} parent=15 // pred_region
        %p135 = scmp.lt.s32.totalorder %s9, 1
        %s136 = scalar_select %p135, %s9, 1
        %s137 = smul.addr %s136, 2
        %s138 = smul.addr %s137, 4
        %s139 = scalar_lea.vmem %s0, %s138
      $region20: #{daff_forward.5} parent=15 // pred_fallthru
        _
      // Predicated region
      $region21: #{daff_forward.5} parent=15 // pred_check
        %p140 = pneg %p55
      $region22: #{daff_forward.5} parent=15 // pred_check_branch
        %142 = sbr.rel (%p140) target = $region24
      $region23: #{daff_forward.5} parent=15 // pred_region
        %p143 = scmp.lt.s32.totalorder %s9, 1
        %s144 = scalar_select %p143, %s9, 1
        %s145 = smul.addr %s144, 32
        %s146 = smul.addr %s145, 8
        %s147 = scalar_lea.vmem %s1, %s146
      $region24: #{daff_forward.5} parent=15 // pred_fallthru
        _
      // Predicated region
      $region25: #{daff_forward.5} parent=15 // pred_check
        %p148 = pneg %p81
      $region26: #{daff_forward.5} parent=15 // pred_check_branch
        %150 = sbr.rel (%p148) target = $region28
      $region27: #{daff_forward.5} parent=15 // pred_region
        %p151 = scmp.lt.s32.totalorder %s9, 1
        %s152 = scalar_select %p151, %s9, 1
        %s153 = smul.addr %s152, 2
        %s154 = smul.addr %s153, 4
        %s155 = scalar_lea.vmem %s2, %s154
      $region28: #{daff_forward.5} parent=15 // pred_fallthru
        _
    $region16: #{daff_forward.5} parent=5 // pred_fallthru
      _
    %p156 = scmp.le.s32.totalorder 1, %s9
    %p157 = scmp.lt.s32.totalorder %s9, 3
    %p158 = pnand %p156, %p157
    %p159 = pneg %p158
    // Predicated region
    $region29: #{daff_forward.5} parent=5 // pred_check
      _
    $region30: #{daff_forward.5} parent=5 // pred_check_branch
      %161 = sbr.rel (%p158) target = $region32
    $region31: #{daff_forward.5} parent=5 // pred_region
      %s162 = ssub.s32 %s9, 1
      %p163 = scmp.lt.s32.totalorder %s14, 1
      %s164 = scalar_select %p163, %s14, 1
      %s165 = smul.addr %s164, 2
      %s166 = smul.addr %s165, 4
      %s167 = scalar_lea.vmem %s0, %s166
      %p168 = pneg %p35
      %p169 = pneg %p32
      %p170 = scmp.lt.s32.totalorder %s14, 1
      %s171 = scalar_select %p170, %s14, 1
      %s172 = smul.addr %s171, 32
      %s173 = smul.addr %s172, 8
      %s174 = scalar_lea.vmem %s1, %s173
      %p175 = pneg %p61
      %p176 = pneg %p58
      %p177 = scmp.lt.s32.totalorder %s14, 1
      %s178 = scalar_select %p177, %s14, 1
      %s179 = smul.addr %s178, 2
      %s180 = smul.addr %s179, 4
      %s181 = scalar_lea.vmem %s2, %s180
      %p182 = pneg %p87
      %p183 = pneg %p84
      %p184 = pneg %p113
      %p185 = pneg %p110
      %p186 = scmp.lt.s32.totalorder %s14, 1
      %s187 = scalar_select %p186, %s14, 1
      %s188 = smul.addr %s187, 2
      %s189 = smul.addr %s188, 4
      %s190 = scalar_lea.vmem %s3, %s189
      %p191 = scmp.lt.s32.totalorder %s14, 1
      %s192 = scalar_select %p191, %s14, 1
      %s193 = smul.addr %s192, 2
      %s194 = smul.addr %s193, 4
      %s195 = scalar_lea.vmem %s0, %s194
      %p196 = scmp.lt.s32.totalorder %s14, 1
      %s197 = scalar_select %p196, %s14, 1
      %s198 = smul.addr %s197, 32
      %s199 = smul.addr %s198, 8
      %s200 = scalar_lea.vmem %s1, %s199
      %p201 = scmp.lt.s32.totalorder %s14, 1
      %s202 = scalar_select %p201, %s14, 1
      %s203 = smul.addr %s202, 2
      %s204 = smul.addr %s203, 4
      %s205 = scalar_lea.vmem %s2, %s204
      %p206 = scmp.lt.s32.totalorder %s14, 1
      %s207 = scalar_select %p206, %s14, 1
      %s208 = smul.addr %s207, 2
      %s209 = smul.addr %s208, 4
      %s210 = scalar_lea.vmem %s3, %s209
      %v211 = vld [vmem:[%s195] sm:$0xff]
      %v212 = vld [vmem:[%s200] sm:$0xff]
      %v213 = vld [vmem:[%s200 + $0x8] sm:$0xff]
      %v214 = vld [vmem:[%s200 + $0x10] sm:$0xff]
      %v215 = vld [vmem:[%s200 + $0x18] sm:$0xff]
      %v216 = vld [vmem:[%s200 + $0x20] sm:$0xff]
      %v217 = vld [vmem:[%s200 + $0x28] sm:$0xff]
      %v218 = vld [vmem:[%s200 + $0x30] sm:$0xff]
      %v219 = vld [vmem:[%s200 + $0x38] sm:$0xff]
      %v220 = vld [vmem:[%s200 + $0x40] sm:$0xff]
      %v221 = vld [vmem:[%s200 + $0x48] sm:$0xff]
      %v222 = vld [vmem:[%s200 + $0x50] sm:$0xff]
      %v223 = vld [vmem:[%s200 + $0x58] sm:$0xff]
      %v224 = vld [vmem:[%s200 + $0x60] sm:$0xff]
      %v225 = vld [vmem:[%s200 + $0x68] sm:$0xff]
      %v226 = vld [vmem:[%s200 + $0x70] sm:$0xff]
      %v227 = vld [vmem:[%s200 + $0x78] sm:$0xff]
      %v228 = vld [vmem:[%s200 + $0x80] sm:$0xff]
      %v229 = vld [vmem:[%s200 + $0x88] sm:$0xff]
      %v230 = vld [vmem:[%s200 + $0x90] sm:$0xff]
      %v231 = vld [vmem:[%s200 + $0x98] sm:$0xff]
      %v232 = vld [vmem:[%s200 + $0xa0] sm:$0xff]
      %v233 = vld [vmem:[%s200 + $0xa8] sm:$0xff]
      %v234 = vld [vmem:[%s200 + $0xb0] sm:$0xff]
      %v235 = vld [vmem:[%s200 + $0xb8] sm:$0xff]
      %v236 = vld [vmem:[%s200 + $0xc0] sm:$0xff]
      %v237 = vld [vmem:[%s200 + $0xc8] sm:$0xff]
      %v238 = vld [vmem:[%s200 + $0xd0] sm:$0xff]
      %v239 = vld [vmem:[%s200 + $0xd8] sm:$0xff]
      %v240 = vld [vmem:[%s200 + $0xe0] sm:$0xff]
      %v241 = vld [vmem:[%s200 + $0xe8] sm:$0xff]
      %v242 = vld [vmem:[%s200 + $0xf0] sm:$0xff]
      %v243 = vld [vmem:[%s200 + $0xf8] sm:$0xff]
      %v244 = vld [vmem:[%s205] sm:$0xff]
      %v246 = vcombine.high %v211, %v211
      %248 = vmatprep.subr.mxu0 0.0
      %249 = vmatpush1.msra.mxu0 %v212
      %250 = vmatprep.subr.mxu0 0.0
      %251 = vmatpush1.msra.mxu0 %v213
      %252 = vmatprep.subr.mxu0 0.0
      %253 = vmatpush1.msra.mxu0 %v214
      %254 = vmatprep.subr.mxu0 0.0
      %255 = vmatpush1.msra.mxu0 %v215
      %256 = vmatprep.subr.mxu0 0.0
      %257 = vmatpush1.msra.mxu0 %v216
      %258 = vmatprep.subr.mxu0 0.0
      %259 = vmatpush1.msra.mxu0 %v217
      %260 = vmatprep.subr.mxu0 0.0
      %261 = vmatpush1.msra.mxu0 %v218
      %262 = vmatprep.subr.mxu0 0.0
      %263 = vmatpush1.msra.mxu0 %v219
      %264 = vmatprep.subr.mxu0 0.0
      %265 = vmatpush1.msra.mxu0 %v220
      %266 = vmatprep.subr.mxu0 0.0
      %267 = vmatpush1.msra.mxu0 %v221
      %268 = vmatprep.subr.mxu0 0.0
      %269 = vmatpush1.msra.mxu0 %v222
      %270 = vmatprep.subr.mxu0 0.0
      %271 = vmatpush1.msra.mxu0 %v223
      %272 = vmatprep.subr.mxu0 0.0
      %273 = vmatpush1.msra.mxu0 %v224
      %274 = vmatprep.subr.mxu0 0.0
      %275 = vmatpush1.msra.mxu0 %v225
      %276 = vmatprep.subr.mxu0 0.0
      %277 = vmatpush1.msra.mxu0 %v226
      %278 = vmatprep.subr.mxu0 0.0
      %279 = vmatpush1.msra.mxu0 %v227
      %280 = vmatprep.subr.mxu0 0.0
      %281 = vmatpush1.msra.mxu0 %v228
      %282 = vmatprep.subr.mxu0 0.0
      %283 = vmatpush1.msra.mxu0 %v229
      %284 = vmatprep.subr.mxu0 0.0
      %285 = vmatpush1.msra.mxu0 %v230
      %286 = vmatprep.subr.mxu0 0.0
      %287 = vmatpush1.msra.mxu0 %v231
      %288 = vmatprep.subr.mxu0 0.0
      %289 = vmatpush1.msra.mxu0 %v232
      %290 = vmatprep.subr.mxu0 0.0
      %291 = vmatpush1.msra.mxu0 %v233
      %292 = vmatprep.subr.mxu0 0.0
      %293 = vmatpush1.msra.mxu0 %v234
      %294 = vmatprep.subr.mxu0 0.0
      %295 = vmatpush1.msra.mxu0 %v235
      %296 = vmatprep.subr.mxu0 0.0
      %297 = vmatpush1.msra.mxu0 %v236
      %298 = vmatprep.subr.mxu0 0.0
      %299 = vmatpush1.msra.mxu0 %v237
      %300 = vmatprep.subr.mxu0 0.0
      %301 = vmatpush1.msra.mxu0 %v238
      %302 = vmatprep.subr.mxu0 0.0
      %303 = vmatpush1.msra.mxu0 %v239
      %304 = vmatprep.subr.mxu0 0.0
      %305 = vmatpush1.msra.mxu0 %v240
      %306 = vmatprep.subr.mxu0 0.0
      %307 = vmatpush1.msra.mxu0 %v241
      %308 = vmatprep.subr.mxu0 0.0
      %309 = vmatpush1.msra.mxu0 %v242
      %310 = vmatprep.subr.mxu0 0.0
      %311 = vmatpush1.msra.mxu0 %v243
      %312 = vmatprep.mubr.f32.mxu0 %v246
      %313 = vmatmul.mubr.f32.gmra.mrb[0].mxu0 %v211
      %v314 = vpop.f32.mrb[0].mxu0
      %v315 = vadd.f32 0.0, %v314
      %v316 = vpop.f32.mrb[0].mxu0
      %317 = vdwg.mxu0
      %vm318 = vcmask 27648
      %v319 = vsel %vm318, %v315, -inf
      %320 = vmax.xlane.f32.xlu0 %v319
      %v321 = vpop.xlane.xlu0 %320
      %v322 = vlaneseq
      %v323 = vand.u32 %v322, 127
      %vm324 = vcmp.eq.f32.partialorder %v315, %v321
      %v325 = vsel %vm324, %v323, 4
      %v326 = vsel %vm318, %v325, 2147483647
      %v327 = vand.u32 %v326, 65535
      %v328 = vshra.s32 %v326, 16
      %v329 = vcvt.s32.f32 %v327
      %v330 = vcvt.s32.f32 %v328
      %331 = vmin.xlane.f32.xlu0 %v330
      %v332 = vpop.xlane.xlu0 %331
      %vm333 = vcmp.eq.f32.partialorder %v330, %v332
      %v334 = vsel %vm333, %v329, inf
      %335 = vmin.xlane.f32.xlu0 %v334
      %v336 = vpop.xlane.xlu0 %335
      %v337 = vcvt.f32.s32 %v336
      %v338 = vcvt.f32.s32 %v332
      %v339 = vshll.u32 %v338, 16
      %v340 = vadd.s32 %v339, %v337
      %vm341 = vcmp.eq.s32.totalorder %v323, %v340
      %v342 = vsel %vm341, 1, 0
      %v343 = vcvt.s32.f32 %v342
      %v345 = vcombine.high %v244, %v244
      %vm346 = vcmask 31744
      %v348 = vsel %vm346, %v343, 0
      %vm350 = vcmask 1043456
      %v351 = vsel %vm350, %v244, 0
      %v353 = vsel %vm350, %v345, 0
      %355 = vmatprep.subr.mxu0 %v353
      %356 = vmatpush1.msra.mxu0 %v351
      %357 = vmatprep.subr.mxu0 0.0
      %358 = vmatpush1.msra.mxu0 0.0
      %359 = vmatprep.subr.mxu0 0.0
      %360 = vmatpush1.msra.mxu0 0.0
      %361 = vmatprep.subr.mxu0 0.0
      %362 = vmatpush1.msra.mxu0 0.0
      %363 = vmatprep.subr.mxu0 0.0
      %364 = vmatpush1.msra.mxu0 0.0
      %365 = vmatprep.subr.mxu0 0.0
      %366 = vmatpush1.msra.mxu0 0.0
      %367 = vmatprep.subr.mxu0 0.0
      %368 = vmatpush1.msra.mxu0 0.0
      %369 = vmatprep.subr.mxu0 0.0
      %370 = vmatpush1.msra.mxu0 0.0
      %371 = vmatprep.subr.mxu0 0.0
      %372 = vmatpush1.msra.mxu0 0.0
      %373 = vmatprep.subr.mxu0 0.0
      %374 = vmatpush1.msra.mxu0 0.0
      %375 = vmatprep.subr.mxu0 0.0
      %376 = vmatpush1.msra.mxu0 0.0
      %377 = vmatprep.subr.mxu0 0.0
      %378 = vmatpush1.msra.mxu0 0.0
      %379 = vmatprep.subr.mxu0 0.0
      %380 = vmatpush1.msra.mxu0 0.0
      %381 = vmatprep.subr.mxu0 0.0
      %382 = vmatpush1.msra.mxu0 0.0
      %383 = vmatprep.subr.mxu0 0.0
      %384 = vmatpush1.msra.mxu0 0.0
      %385 = vmatprep.subr.mxu0 0.0
      %386 = vmatpush1.msra.mxu0 0.0
      %387 = vmatprep.subr.mxu0 0.0
      %388 = vmatpush1.msra.mxu0 0.0
      %389 = vmatprep.subr.mxu0 0.0
      %390 = vmatpush1.msra.mxu0 0.0
      %391 = vmatprep.subr.mxu0 0.0
      %392 = vmatpush1.msra.mxu0 0.0
      %393 = vmatprep.subr.mxu0 0.0
      %394 = vmatpush1.msra.mxu0 0.0
      %395 = vmatprep.subr.mxu0 0.0
      %396 = vmatpush1.msra.mxu0 0.0
      %397 = vmatprep.subr.mxu0 0.0
      %398 = vmatpush1.msra.mxu0 0.0
      %399 = vmatprep.subr.mxu0 0.0
      %400 = vmatpush1.msra.mxu0 0.0
      %401 = vmatprep.subr.mxu0 0.0
      %402 = vmatpush1.msra.mxu0 0.0
      %403 = vmatprep.subr.mxu0 0.0
      %404 = vmatpush1.msra.mxu0 0.0
      %405 = vmatprep.subr.mxu0 0.0
      %406 = vmatpush1.msra.mxu0 0.0
      %407 = vmatprep.subr.mxu0 0.0
      %408 = vmatpush1.msra.mxu0 0.0
      %409 = vmatprep.subr.mxu0 0.0
      %410 = vmatpush1.msra.mxu0 0.0
      %411 = vmatprep.subr.mxu0 0.0
      %412 = vmatpush1.msra.mxu0 0.0
      %413 = vmatprep.subr.mxu0 0.0
      %414 = vmatpush1.msra.mxu0 0.0
      %415 = vmatprep.subr.mxu0 0.0
      %416 = vmatpush1.msra.mxu0 0.0
      %417 = vmatprep.subr.mxu0 0.0
      %418 = vmatpush1.msra.mxu0 0.0
      %419 = vmatprep.mubr.f32.mxu0 0.0
      %420 = vmatmul.mubr.f32.gmra.mrb[0].mxu0 %v348
      %v421 = vpop.f32.mrb[0].mxu0
      %v422 = vadd.f32 0.0, %v421
      %v423 = vpop.f32.mrb[0].mxu0
      %v424 = vadd.f32 0.0, %v423
      %425 = vdwg.mxu0
      %v428 = vcombine.low %v422, %v424
      %v430 = vadd.f32 %v211, %v428
      %431 = vst [vmem:[%s210] sm:$0xff] %v430
      %p432 = scmp.lt.s32.totalorder %s14, 1
      %s433 = scalar_select %p432, %s14, 1
      %s434 = smul.addr %s433, 2
      %s435 = smul.addr %s434, 4
      %s436 = scalar_lea.vmem %s3, %s435
      // Predicated region
      $region33: #{daff_forward.5} parent=31 // pred_check
        %p437 = pneg %p110
      $region34: #{daff_forward.5} parent=31 // pred_check_branch
        %439 = sbr.rel (%p437) target = $region36
      $region35: #{daff_forward.5} parent=31 // pred_region
        _
      $region36: #{daff_forward.5} parent=31 // pred_fallthru
        _
    $region32: #{daff_forward.5} parent=5 // pred_fallthru
      _
    %p440 = scmp.le.s32.totalorder 2, %s9
    // Predicated region
    $region37: #{daff_forward.5} parent=5 // pred_check
      %p441 = pneg %p440
    $region38: #{daff_forward.5} parent=5 // pred_check_branch
      %443 = sbr.rel (%p441) target = $region40
    $region39: #{daff_forward.5} parent=5 // pred_region
      %s444 = ssub.s32 %s9, 2
      // Predicated region
      $region41: #{daff_forward.5} parent=39 // pred_check
        %p445 = pneg %p116
      $region42: #{daff_forward.5} parent=39 // pred_check_branch
        %447 = sbr.rel (%p445) target = $region44
      $region43: #{daff_forward.5} parent=39 // pred_region
        %p448 = scmp.lt.s32.totalorder %s15, 1
        %s449 = scalar_select %p448, %s15, 1
        %s450 = smul.addr %s449, 2
        %s451 = smul.addr %s450, 4
        %s452 = scalar_lea.vmem %s3, %s451
      $region44: #{daff_forward.5} parent=39 // pred_fallthru
        _
    $region40: #{daff_forward.5} parent=5 // pred_fallthru
      _
  $region6: #{daff_forward.5} parent=0 // loop_footer
    %s13 = sadd.s32 1, %s9
  $region7: #{daff_forward.5} parent=0 // loop_footer_branch
    %8 = sbr.rel target = $region3
  $region8: #{daff_forward.5} parent=0 // loop_exit
    _

// kernel: daff_forward.4
$region0: #{daff_forward.4}
  #allocation0 [shape = 'u32[]', space=smem, size = 0x4, offset = 0x4, fixed_abs, tag = 'smem constant byte address 0x4 - core index']
  #allocation1 [shape = 'u32[144,128]{1,0:T(1,128)}', space=vmem, size = 0x12000, scoped, tag = 'internal scratch']
  #allocation2 [shape = 'f32[1,1]{1,0:T(1,128)S(1)}', space=vmem, size = 0x200, scoped, tag = 'scoped memory for daff_forward.4']
  %s0 = inlined_call_operand.vmem [shape: f32[4,512], index: 0, kind: input, shape index: {}]
  %s1 = inlined_call_operand.vmem [shape: f32[4,512], index: 1, kind: input, shape index: {}]
  %s2 = inlined_call_operand.vmem [shape: f32[9,512], index: 2, kind: input, shape index: {}]
  %s3 = inlined_call_operand.vmem [shape: bf16[32,4], index: 3, kind: input, shape index: {}]
  %s4 = inlined_call_operand.vmem [shape: bf16[32,4], index: 4, kind: input, shape index: {}]
  %s5 = inlined_call_operand.vmem [shape: f32[64,1], index: 5, kind: input, shape index: {}]
  %s6 = inlined_call_operand.vmem [shape: bf16[9,32,64], index: 6, kind: input, shape index: {}]
  %s7 = inlined_call_operand.vmem [shape: f32[32,1], index: 7, kind: input, shape index: {}]
  %s8 = inlined_call_operand.vmem [shape: bf16[9,1,32], index: 8, kind: input, shape index: {}]
  %s9 = inlined_call_operand.<no memory space> [shape: f32[1,1], index: 9, kind: input, shape index: {}]
  %s10 = inlined_call_operand.vmem [shape: f32[4,512], index: 10, kind: output, shape index: {}]
  %s11 = sld [smem:[#allocation0]]
  $region50: #{daff_forward.4} parent=0
    _
  %s13 = ssub.s32 1, %s11
  %s14 = scalar_select 0, %s13, %s11
  %v15 = vstv %s9
  %16 = vst [vmem:[#allocation2] sm:$0x1] %v15
  // Predicated region
  $region2: #{daff_forward.4} parent=0 // pred_check
    _
  $region3: #{daff_forward.4} parent=0 // pred_check_branch
    %18 = sbr.rel (0) target = $region5
  $region4: #{daff_forward.4} parent=0 // pred_region
    _
  $region5: #{daff_forward.4} parent=0 // pred_fallthru
    _
  // Predicated region
  $region6: #{daff_forward.4} parent=0 // pred_check
    _
  $region7: #{daff_forward.4} parent=0 // pred_check_branch
    %20 = sbr.rel (0) target = $region9
  $region8: #{daff_forward.4} parent=0 // pred_region
    _
  $region9: #{daff_forward.4} parent=0 // pred_fallthru
    _
  // Predicated region
  $region10: #{daff_forward.4} parent=0 // pred_check
    _
  $region11: #{daff_forward.4} parent=0 // pred_check_branch
    %22 = sbr.rel (0) target = $region13
  $region12: #{daff_forward.4} parent=0 // pred_region
    _
  $region13: #{daff_forward.4} parent=0 // pred_fallthru
    _
  // Predicated region
  $region14: #{daff_forward.4} parent=0 // pred_check
    _
  $region15: #{daff_forward.4} parent=0 // pred_check_branch
    %24 = sbr.rel (0) target = $region17
  $region16: #{daff_forward.4} parent=0 // pred_region
    _
  $region17: #{daff_forward.4} parent=0 // pred_fallthru
    _
  // Predicated region
  $region18: #{daff_forward.4} parent=0 // pred_check
    _
  $region19: #{daff_forward.4} parent=0 // pred_check_branch
    %26 = sbr.rel (0) target = $region21
  $region20: #{daff_forward.4} parent=0 // pred_region
    _
  $region21: #{daff_forward.4} parent=0 // pred_fallthru
    _
  // Predicated region
  $region22: #{daff_forward.4} parent=0 // pred_check
    _
  $region23: #{daff_forward.4} parent=0 // pred_check_branch
    %28 = sbr.rel (0) target = $region25
  $region24: #{daff_forward.4} parent=0 // pred_region
    _
  $region25: #{daff_forward.4} parent=0 // pred_fallthru
    _
  // Predicated region
  $region26: #{daff_forward.4} parent=0 // pred_check
    _
  $region27: #{daff_forward.4} parent=0 // pred_check_branch
    %30 = sbr.rel (0) target = $region29
  $region28: #{daff_forward.4} parent=0 // pred_region
    _
  $region29: #{daff_forward.4} parent=0 // pred_fallthru
    _
  // Predicated region
  $region30: #{daff_forward.4} parent=0 // pred_check
    _
  $region31: #{daff_forward.4} parent=0 // pred_check_branch
    %32 = sbr.rel (0) target = $region33
  $region32: #{daff_forward.4} parent=0 // pred_region
    _
  $region33: #{daff_forward.4} parent=0 // pred_fallthru
    _
  // Predicated region
  $region34: #{daff_forward.4} parent=0 // pred_check
    _
  $region35: #{daff_forward.4} parent=0 // pred_check_branch
    %34 = sbr.rel (0) target = $region37
  $region36: #{daff_forward.4} parent=0 // pred_region
    _
  $region37: #{daff_forward.4} parent=0 // pred_fallthru
    _
  // Predicated region
  $region38: #{daff_forward.4} parent=0 // pred_check
    _
  $region39: #{daff_forward.4} parent=0 // pred_check_branch
    %36 = sbr.rel (0) target = $region41
  $region40: #{daff_forward.4} parent=0 // pred_region
    _
  $region41: #{daff_forward.4} parent=0 // pred_fallthru
    _
  %v38 = vld [vmem:[%s1] sm:$0xff]
  %v39 = vld [vmem:[%s1 + $0x8] sm:$0xff]
  %v40 = vld [vmem:[%s3] sm:$0xf]
  %v41 = vld [vmem:[%s3 + $0x4] sm:$0xf]
  %v42 = vld [vmem:[%s3 + $0x8] sm:$0xf]
  %v43 = vld [vmem:[%s3 + $0xc] sm:$0xf]
  %v44 = vld [vmem:[%s0] sm:$0xff]
  %v45 = vld [vmem:[%s0 + $0x8] sm:$0xff]
  %v48 = vcombine.high %v44, %v44
  %v49 = vcombine.high %v45, %v45
  %v52 = vpack.c.bf16 %v44, %v44
  %v53 = vpack.c.bf16 %v48, %v48
  %v54 = vpack.c.bf16 %v45, %v45
  %v55 = vpack.c.bf16 %v49, %v49
  %v60 = vunpack.c.l.b16 %v40
  %v61 = vunpack.c.l.b16 %v41
  %v62 = vunpack.c.l.b16 %v42
  %v63 = vunpack.c.l.b16 %v43
  %v64 = vpack.c.b16 %v61, %v60
  %v65 = vpack.c.b16 %v63, %v62
  %vm66 = vcmask 31744
  %v68 = vsel %vm66, %v64, 0
  %v71 = vsel %vm66, %v65, 0
  %vm73 = vcmask 1041408
  %v75 = vsel %vm73, %v52, 0
  %v78 = vsel %vm73, %v53, 0
  %v81 = vsel %vm73, %v54, 0
  %v84 = vsel %vm73, %v55, 0
  %86 = vmatprep.subr.bf16.mxu0 %v78
  %87 = vmatpush1.bf16.msra.mxu0 %v75
  %88 = vmatprep.subr.bf16.mxu0 0
  %89 = vmatpush1.bf16.msra.mxu0 0
  %90 = vmatprep.subr.bf16.mxu0 0
  %91 = vmatpush1.bf16.msra.mxu0 0
  %92 = vmatprep.subr.bf16.mxu0 0
  %93 = vmatpush1.bf16.msra.mxu0 0
  %94 = vmatprep.subr.bf16.mxu0 0
  %95 = vmatpush1.bf16.msra.mxu0 0
  %96 = vmatprep.subr.bf16.mxu0 0
  %97 = vmatpush1.bf16.msra.mxu0 0
  %98 = vmatprep.subr.bf16.mxu0 0
  %99 = vmatpush1.bf16.msra.mxu0 0
  %100 = vmatprep.subr.bf16.mxu0 0
  %101 = vmatpush1.bf16.msra.mxu0 0
  %102 = vmatprep.subr.bf16.mxu0 0
  %103 = vmatpush1.bf16.msra.mxu0 0
  %104 = vmatprep.subr.bf16.mxu0 0
  %105 = vmatpush1.bf16.msra.mxu0 0
  %106 = vmatprep.subr.bf16.mxu0 0
  %107 = vmatpush1.bf16.msra.mxu0 0
  %108 = vmatprep.subr.bf16.mxu0 0
  %109 = vmatpush1.bf16.msra.mxu0 0
  %110 = vmatprep.subr.bf16.mxu0 0
  %111 = vmatpush1.bf16.msra.mxu0 0
  %112 = vmatprep.subr.bf16.mxu0 0
  %113 = vmatpush1.bf16.msra.mxu0 0
  %114 = vmatprep.subr.bf16.mxu0 0
  %115 = vmatpush1.bf16.msra.mxu0 0
  %116 = vmatprep.subr.bf16.mxu0 0
  %117 = vmatpush1.bf16.msra.mxu0 0
  %118 = vmatprep.mubr.bf16.mxu0 0
  %119 = vmatmul.mubr.bf16.gmra.mrb[0].mxu0 %v68
  %v120 = vpop.f32.mrb[0].mxu0
  %v121 = vadd.f32 0.0, %v120
  %v122 = vpop.f32.mrb[0].mxu0
  %v123 = vadd.f32 0.0, %v122
  %v124 = vpop.f32.mrb[0].mxu0
  %v125 = vadd.f32 0.0, %v124
  %v126 = vpop.f32.mrb[0].mxu0
  %v127 = vadd.f32 0.0, %v126
  %128 = vmatprep.mubr.bf16.mxu0 0
  %129 = vmatmul.mubr.bf16.gmra.mrb[0].mxu0 %v71
  %v130 = vpop.f32.mrb[0].mxu0
  %v131 = vadd.f32 0.0, %v130
  %v132 = vpop.f32.mrb[0].mxu0
  %v133 = vadd.f32 0.0, %v132
  %v134 = vpop.f32.mrb[0].mxu0
  %v135 = vadd.f32 0.0, %v134
  %v136 = vpop.f32.mrb[0].mxu0
  %v137 = vadd.f32 0.0, %v136
  %138 = vdwg.mxu0
  %139 = vmatprep.subr.bf16.mxu0 %v84
  %140 = vmatpush1.bf16.msra.mxu0 %v81
  %141 = vmatprep.subr.bf16.mxu0 0
  %142 = vmatpush1.bf16.msra.mxu0 0
  %143 = vmatprep.subr.bf16.mxu0 0
  %144 = vmatpush1.bf16.msra.mxu0 0
  %145 = vmatprep.subr.bf16.mxu0 0
  %146 = vmatpush1.bf16.msra.mxu0 0
  %147 = vmatprep.subr.bf16.mxu0 0
  %148 = vmatpush1.bf16.msra.mxu0 0
  %149 = vmatprep.subr.bf16.mxu0 0
  %150 = vmatpush1.bf16.msra.mxu0 0
  %151 = vmatprep.subr.bf16.mxu0 0
  %152 = vmatpush1.bf16.msra.mxu0 0
  %153 = vmatprep.subr.bf16.mxu0 0
  %154 = vmatpush1.bf16.msra.mxu0 0
  %155 = vmatprep.subr.bf16.mxu0 0
  %156 = vmatpush1.bf16.msra.mxu0 0
  %157 = vmatprep.subr.bf16.mxu0 0
  %158 = vmatpush1.bf16.msra.mxu0 0
  %159 = vmatprep.subr.bf16.mxu0 0
  %160 = vmatpush1.bf16.msra.mxu0 0
  %161 = vmatprep.subr.bf16.mxu0 0
  %162 = vmatpush1.bf16.msra.mxu0 0
  %163 = vmatprep.subr.bf16.mxu0 0
  %164 = vmatpush1.bf16.msra.mxu0 0
  %165 = vmatprep.subr.bf16.mxu0 0
  %166 = vmatpush1.bf16.msra.mxu0 0
  %167 = vmatprep.subr.bf16.mxu0 0
  %168 = vmatpush1.bf16.msra.mxu0 0
  %169 = vmatprep.subr.bf16.mxu0 0
  %170 = vmatpush1.bf16.msra.mxu0 0
  %171 = vmatprep.mubr.bf16.mxu0 0
  %172 = vmatmul.mubr.bf16.gmra.mrb[0].mxu0 %v68
  %v173 = vpop.f32.mrb[0].mxu0
  %v174 = vadd.f32 0.0, %v173
  %v175 = vpop.f32.mrb[0].mxu0
  %v176 = vadd.f32 0.0, %v175
  %v177 = vpop.f32.mrb[0].mxu0
  %v178 = vadd.f32 0.0, %v177
  %v179 = vpop.f32.mrb[0].mxu0
  %v180 = vadd.f32 0.0, %v179
  %181 = vmatprep.mubr.bf16.mxu0 0
  %182 = vmatmul.mubr.bf16.gmra.mrb[0].mxu0 %v71
  %v183 = vpop.f32.mrb[0].mxu0
  %v184 = vadd.f32 0.0, %v183
  %v185 = vpop.f32.mrb[0].mxu0
  %v186 = vadd.f32 0.0, %v185
  %v187 = vpop.f32.mrb[0].mxu0
  %v188 = vadd.f32 0.0, %v187
  %v189 = vpop.f32.mrb[0].mxu0
  %v190 = vadd.f32 0.0, %v189
  %191 = vdwg.mxu0
  %v192 = vld [vmem:[%s4] sm:$0xf]
  %v193 = vld [vmem:[%s4 + $0x4] sm:$0xf]
  %v194 = vld [vmem:[%s4 + $0x8] sm:$0xf]
  %v195 = vld [vmem:[%s4 + $0xc] sm:$0xf]
  %v198 = vcombine.high %v38, %v38
  %v199 = vcombine.high %v39, %v39
  %v202 = vpack.c.bf16 %v38, %v38
  %v203 = vpack.c.bf16 %v198, %v198
  %v204 = vpack.c.bf16 %v39, %v39
  %v205 = vpack.c.bf16 %v199, %v199
  %v210 = vunpack.c.l.b16 %v192
  %v211 = vunpack.c.l.b16 %v193
  %v212 = vunpack.c.l.b16 %v194
  %v213 = vunpack.c.l.b16 %v195
  %v214 = vpack.c.b16 %v211, %v210
  %v215 = vpack.c.b16 %v213, %v212
  %v217 = vsel %vm66, %v214, 0
  %v220 = vsel %vm66, %v215, 0
  %v223 = vsel %vm73, %v202, 0
  %v226 = vsel %vm73, %v203, 0
  %v229 = vsel %vm73, %v204, 0
  %v232 = vsel %vm73, %v205, 0
  %234 = vmatprep.subr.bf16.mxu0 %v226
  %235 = vmatpush1.bf16.msra.mxu0 %v223
  %236 = vmatprep.subr.bf16.mxu0 0
  %237 = vmatpush1.bf16.msra.mxu0 0
  %238 = vmatprep.subr.bf16.mxu0 0
  %239 = vmatpush1.bf16.msra.mxu0 0
  %240 = vmatprep.subr.bf16.mxu0 0
  %241 = vmatpush1.bf16.msra.mxu0 0
  %242 = vmatprep.subr.bf16.mxu0 0
  %243 = vmatpush1.bf16.msra.mxu0 0
  %244 = vmatprep.subr.bf16.mxu0 0
  %245 = vmatpush1.bf16.msra.mxu0 0
  %246 = vmatprep.subr.bf16.mxu0 0
  %247 = vmatpush1.bf16.msra.mxu0 0
  %248 = vmatprep.subr.bf16.mxu0 0
  %249 = vmatpush1.bf16.msra.mxu0 0
  %250 = vmatprep.subr.bf16.mxu0 0
  %251 = vmatpush1.bf16.msra.mxu0 0
  %252 = vmatprep.subr.bf16.mxu0 0
  %253 = vmatpush1.bf16.msra.mxu0 0
  %254 = vmatprep.subr.bf16.mxu0 0
  %255 = vmatpush1.bf16.msra.mxu0 0
  %256 = vmatprep.subr.bf16.mxu0 0
  %257 = vmatpush1.bf16.msra.mxu0 0
  %258 = vmatprep.subr.bf16.mxu0 0
  %259 = vmatpush1.bf16.msra.mxu0 0
  %260 = vmatprep.subr.bf16.mxu0 0
  %261 = vmatpush1.bf16.msra.mxu0 0
  %262 = vmatprep.subr.bf16.mxu0 0
  %263 = vmatpush1.bf16.msra.mxu0 0
  %264 = vmatprep.subr.bf16.mxu0 0
  %265 = vmatpush1.bf16.msra.mxu0 0
  %266 = vmatprep.mubr.bf16.mxu0 0
  %267 = vmatmul.mubr.bf16.gmra.mrb[0].mxu0 %v217
  %v268 = vpop.f32.mrb[0].mxu0
  %v269 = vadd.f32 0.0, %v268
  %v270 = vpop.f32.mrb[0].mxu0
  %v271 = vadd.f32 0.0, %v270
  %v272 = vpop.f32.mrb[0].mxu0
  %v273 = vadd.f32 0.0, %v272
  %v274 = vpop.f32.mrb[0].mxu0
  %v275 = vadd.f32 0.0, %v274
  %276 = vmatprep.mubr.bf16.mxu0 0
  %277 = vmatmul.mubr.bf16.gmra.mrb[0].mxu0 %v220
  %v278 = vpop.f32.mrb[0].mxu0
  %v279 = vadd.f32 0.0, %v278
  %v280 = vpop.f32.mrb[0].mxu0
  %v281 = vadd.f32 0.0, %v280
  %v282 = vpop.f32.mrb[0].mxu0
  %v283 = vadd.f32 0.0, %v282
  %v284 = vpop.f32.mrb[0].mxu0
  %v285 = vadd.f32 0.0, %v284
  %286 = vdwg.mxu0
  %287 = vmatprep.subr.bf16.mxu0 %v232
  %288 = vmatpush1.bf16.msra.mxu0 %v229
  %289 = vmatprep.subr.bf16.mxu0 0
  %290 = vmatpush1.bf16.msra.mxu0 0
  %291 = vmatprep.subr.bf16.mxu0 0
  %292 = vmatpush1.bf16.msra.mxu0 0
  %293 = vmatprep.subr.bf16.mxu0 0
  %294 = vmatpush1.bf16.msra.mxu0 0
  %295 = vmatprep.subr.bf16.mxu0 0
  %296 = vmatpush1.bf16.msra.mxu0 0
  %297 = vmatprep.subr.bf16.mxu0 0
  %298 = vmatpush1.bf16.msra.mxu0 0
  %299 = vmatprep.subr.bf16.mxu0 0
  %300 = vmatpush1.bf16.msra.mxu0 0
  %301 = vmatprep.subr.bf16.mxu0 0
  %302 = vmatpush1.bf16.msra.mxu0 0
  %303 = vmatprep.subr.bf16.mxu0 0
  %304 = vmatpush1.bf16.msra.mxu0 0
  %305 = vmatprep.subr.bf16.mxu0 0
  %306 = vmatpush1.bf16.msra.mxu0 0
  %307 = vmatprep.subr.bf16.mxu0 0
  %308 = vmatpush1.bf16.msra.mxu0 0
  %309 = vmatprep.subr.bf16.mxu0 0
  %310 = vmatpush1.bf16.msra.mxu0 0
  %311 = vmatprep.subr.bf16.mxu0 0
  %312 = vmatpush1.bf16.msra.mxu0 0
  %313 = vmatprep.subr.bf16.mxu0 0
  %314 = vmatpush1.bf16.msra.mxu0 0
  %315 = vmatprep.subr.bf16.mxu0 0
  %316 = vmatpush1.bf16.msra.mxu0 0
  %317 = vmatprep.subr.bf16.mxu0 0
  %318 = vmatpush1.bf16.msra.mxu0 0
  %319 = vmatprep.mubr.bf16.mxu0 0
  %320 = vmatmul.mubr.bf16.gmra.mrb[0].mxu0 %v217
  %v321 = vpop.f32.mrb[0].mxu0
  %v322 = vadd.f32 0.0, %v321
  %v323 = vpop.f32.mrb[0].mxu0
  %v324 = vadd.f32 0.0, %v323
  %v325 = vpop.f32.mrb[0].mxu0
  %v326 = vadd.f32 0.0, %v325
  %v327 = vpop.f32.mrb[0].mxu0
  %v328 = vadd.f32 0.0, %v327
  %329 = vmatprep.mubr.bf16.mxu0 0
  %330 = vmatmul.mubr.bf16.gmra.mrb[0].mxu0 %v220
  %v331 = vpop.f32.mrb[0].mxu0
  %v332 = vadd.f32 0.0, %v331
  %v333 = vpop.f32.mrb[0].mxu0
  %v334 = vadd.f32 0.0, %v333
  %v335 = vpop.f32.mrb[0].mxu0
  %v336 = vadd.f32 0.0, %v335
  %v337 = vpop.f32.mrb[0].mxu0
  %v338 = vadd.f32 0.0, %v337
  %339 = vdwg.mxu0
  %v340 = vld [vmem:[%s5] sm:$0xff]
  %v341 = vld [vmem:[%s5 + $0x8] sm:$0xff]
  %v342 = vld [vmem:[%s5 + $0x10] sm:$0xff]
  %v343 = vld [vmem:[%s5 + $0x18] sm:$0xff]
  %v344 = vld [vmem:[%s5 + $0x20] sm:$0xff]
  %v345 = vld [vmem:[%s5 + $0x28] sm:$0xff]
  %v346 = vld [vmem:[%s5 + $0x30] sm:$0xff]
  %v347 = vld [vmem:[%s5 + $0x38] sm:$0xff]
  %349 = vset.pattern.permute.xlu0 0
  %350 = vperm.xlu0 %349, %v340
  %v351 = vpop.permute.xlu0 %350
  %354 = vset.pattern.permute.xlu0 0
  %355 = vperm.xlu0 %354, %v341
  %v356 = vpop.permute.xlu0 %355
  %359 = vset.pattern.permute.xlu0 0
  %360 = vperm.xlu0 %359, %v342
  %v361 = vpop.permute.xlu0 %360
  %364 = vset.pattern.permute.xlu0 0
  %365 = vperm.xlu0 %364, %v343
  %v366 = vpop.permute.xlu0 %365
  %369 = vset.pattern.permute.xlu0 0
  %370 = vperm.xlu0 %369, %v344
  %v371 = vpop.permute.xlu0 %370
  %374 = vset.pattern.permute.xlu0 0
  %375 = vperm.xlu0 %374, %v345
  %v376 = vpop.permute.xlu0 %375
  %379 = vset.pattern.permute.xlu0 0
  %380 = vperm.xlu0 %379, %v346
  %v381 = vpop.permute.xlu0 %380
  %384 = vset.pattern.permute.xlu0 0
  %385 = vperm.xlu0 %384, %v347
  %v386 = vpop.permute.xlu0 %385
  %v388 = vadd.f32 %v121, %v351
  %v389 = vadd.f32 %v123, %v351
  %v390 = vadd.f32 %v174, %v351
  %v391 = vadd.f32 %v176, %v351
  %v392 = vadd.f32 %v125, %v356
  %v393 = vadd.f32 %v127, %v356
  %v394 = vadd.f32 %v178, %v356
  %v395 = vadd.f32 %v180, %v356
  %v396 = vadd.f32 %v131, %v361
  %v397 = vadd.f32 %v133, %v361
  %v398 = vadd.f32 %v184, %v361
  %v399 = vadd.f32 %v186, %v361
  %v400 = vadd.f32 %v135, %v366
  %v401 = vadd.f32 %v137, %v366
  %v402 = vadd.f32 %v188, %v366
  %v403 = vadd.f32 %v190, %v366
  %v404 = vadd.f32 %v269, %v371
  %v405 = vadd.f32 %v271, %v371
  %v406 = vadd.f32 %v322, %v371
  %v407 = vadd.f32 %v324, %v371
  %v408 = vadd.f32 %v273, %v376
  %v409 = vadd.f32 %v275, %v376
  %v410 = vadd.f32 %v326, %v376
  %v411 = vadd.f32 %v328, %v376
  %v412 = vadd.f32 %v279, %v381
  %v413 = vadd.f32 %v281, %v381
  %v414 = vadd.f32 %v332, %v381
  %v415 = vadd.f32 %v334, %v381
  %v416 = vadd.f32 %v283, %v386
  %v417 = vadd.f32 %v285, %v386
  %v418 = vadd.f32 %v336, %v386
  %v419 = vadd.f32 %v338, %v386
  %420 = vrot.lane.b32.xlu0 %v388, 17
  %v421 = vpop.permute.xlu0 %420
  %422 = vrot.lane.b32.xlu0 %v392, 17
  %v423 = vpop.permute.xlu0 %422
  %424 = vrot.lane.b32.xlu0 %v396, 17
  %v425 = vpop.permute.xlu0 %424
  %426 = vrot.lane.b32.xlu0 %v400, 17
  %v427 = vpop.permute.xlu0 %426
  %428 = vrot.lane.b32.xlu0 %v404, 17
  %v429 = vpop.permute.xlu0 %428
  %430 = vrot.lane.b32.xlu0 %v408, 17
  %v431 = vpop.permute.xlu0 %430
  %432 = vrot.lane.b32.xlu0 %v412, 17
  %v433 = vpop.permute.xlu0 %432
  %434 = vrot.lane.b32.xlu0 %v416, 17
  %v435 = vpop.permute.xlu0 %434
  %436 = vrot.lane.b32.xlu0 %v389, 17
  %v437 = vpop.permute.xlu0 %436
  %438 = vrot.lane.b32.xlu0 %v393, 17
  %v439 = vpop.permute.xlu0 %438
  %440 = vrot.lane.b32.xlu0 %v397, 17
  %v441 = vpop.permute.xlu0 %440
  %442 = vrot.lane.b32.xlu0 %v401, 17
  %v443 = vpop.permute.xlu0 %442
  %444 = vrot.lane.b32.xlu0 %v405, 17
  %v445 = vpop.permute.xlu0 %444
  %446 = vrot.lane.b32.xlu0 %v409, 17
  %v447 = vpop.permute.xlu0 %446
  %448 = vrot.lane.b32.xlu0 %v413, 17
  %v449 = vpop.permute.xlu0 %448
  %450 = vrot.lane.b32.xlu0 %v417, 17
  %v451 = vpop.permute.xlu0 %450
  %452 = vrot.lane.b32.xlu0 %v390, 17
  %v453 = vpop.permute.xlu0 %452
  %454 = vrot.lane.b32.xlu0 %v394, 17
  %v455 = vpop.permute.xlu0 %454
  %456 = vrot.lane.b32.xlu0 %v398, 17
  %v457 = vpop.permute.xlu0 %456
  %458 = vrot.lane.b32.xlu0 %v402, 17
  %v459 = vpop.permute.xlu0 %458
  %460 = vrot.lane.b32.xlu0 %v406, 17
  %v461 = vpop.permute.xlu0 %460
  %462 = vrot.lane.b32.xlu0 %v410, 17
  %v463 = vpop.permute.xlu0 %462
  %464 = vrot.lane.b32.xlu0 %v414, 17
  %v465 = vpop.permute.xlu0 %464
  %466 = vrot.lane.b32.xlu0 %v418, 17
  %v467 = vpop.permute.xlu0 %466
  %468 = vrot.lane.b32.xlu0 %v391, 17
  %v469 = vpop.permute.xlu0 %468
  %470 = vrot.lane.b32.xlu0 %v395, 17
  %v471 = vpop.permute.xlu0 %470
  %472 = vrot.lane.b32.xlu0 %v399, 17
  %v473 = vpop.permute.xlu0 %472
  %474 = vrot.lane.b32.xlu0 %v403, 17
  %v475 = vpop.permute.xlu0 %474
  %476 = vrot.lane.b32.xlu0 %v407, 17
  %v477 = vpop.permute.xlu0 %476
  %478 = vrot.lane.b32.xlu0 %v411, 17
  %v479 = vpop.permute.xlu0 %478
  %480 = vrot.lane.b32.xlu0 %v415, 17
  %v481 = vpop.permute.xlu0 %480
  %482 = vrot.lane.b32.xlu0 %v419, 17
  %v483 = vpop.permute.xlu0 %482
  %v484 = vlaneseq
  %v485 = vand.u32 %v484, 127
  %vm486 = vcmp.lt.s32.totalorder %v485, 17
  %v487 = vsel %vm486, %v453, %v469
  %v488 = vsel %vm486, %v455, %v471
  %v489 = vsel %vm486, %v457, %v473
  %v490 = vsel %vm486, %v459, %v475
  %v491 = vsel %vm486, %v461, %v477
  %v492 = vsel %vm486, %v463, %v479
  %v493 = vsel %vm486, %v465, %v481
  %v494 = vsel %vm486, %v467, %v483
  %v495 = vsel %vm486, %v437, %v453
  %v496 = vsel %vm486, %v439, %v455
  %v497 = vsel %vm486, %v441, %v457
  %v498 = vsel %vm486, %v443, %v459
  %v499 = vsel %vm486, %v445, %v461
  %v500 = vsel %vm486, %v447, %v463
  %v501 = vsel %vm486, %v449, %v465
  %v502 = vsel %vm486, %v451, %v467
  %v503 = vsel %vm486, %v421, %v437
  %v504 = vsel %vm486, %v423, %v439
  %v505 = vsel %vm486, %v425, %v441
  %v506 = vsel %vm486, %v427, %v443
  %v507 = vsel %vm486, %v429, %v445
  %v508 = vsel %vm486, %v431, %v447
  %v509 = vsel %vm486, %v433, %v449
  %v510 = vsel %vm486, %v435, %v451
  %v511 = vsel %vm486, %v469, %v421
  %v512 = vsel %vm486, %v471, %v423
  %v513 = vsel %vm486, %v473, %v425
  %v514 = vsel %vm486, %v475, %v427
  %v515 = vsel %vm486, %v477, %v429
  %v516 = vsel %vm486, %v479, %v431
  %v517 = vsel %vm486, %v481, %v433
  %v518 = vsel %vm486, %v483, %v435
  %v519 = vld [vmem:[%s2] ss:$8 sm:$0xf]
  %v521 = vlaneseq
  %v522 = vshrl.u32 %v521, 7
  %v523 = vsub.s32 0, %v522
  %v524 = vrot.slane %v519, %v523
  %v525 = vlaneseq
  %v526 = vshrl.u32 %v525, 7
  %v527 = vsub.s32 1, %v526
  %v528 = vrot.slane %v519, %v527
  %v529 = vlaneseq
  %v530 = vshrl.u32 %v529, 7
  %v531 = vsub.s32 2, %v530
  %v532 = vrot.slane %v519, %v531
  %v533 = vlaneseq
  %v534 = vshrl.u32 %v533, 7
  %v535 = vsub.s32 3, %v534
  %v536 = vrot.slane %v519, %v535
  %v541 = vmul.f32 %v511, %v524
  %v542 = vmul.f32 %v503, %v528
  %v543 = vmul.f32 %v495, %v532
  %v544 = vmul.f32 %v487, %v536
  %v545 = vmul.f32 %v512, %v524
  %v546 = vmul.f32 %v504, %v528
  %v547 = vmul.f32 %v496, %v532
  %v548 = vmul.f32 %v488, %v536
  %v549 = vmul.f32 %v513, %v524
  %v550 = vmul.f32 %v505, %v528
  %v551 = vmul.f32 %v497, %v532
  %v552 = vmul.f32 %v489, %v536
  %v553 = vmul.f32 %v514, %v524
  %v554 = vmul.f32 %v506, %v528
  %v555 = vmul.f32 %v498, %v532
  %v556 = vmul.f32 %v490, %v536
  %v557 = vmul.f32 %v515, %v524
  %v558 = vmul.f32 %v507, %v528
  %v559 = vmul.f32 %v499, %v532
  %v560 = vmul.f32 %v491, %v536
  %v561 = vmul.f32 %v516, %v524
  %v562 = vmul.f32 %v508, %v528
  %v563 = vmul.f32 %v500, %v532
  %v564 = vmul.f32 %v492, %v536
  %v565 = vmul.f32 %v517, %v524
  %v566 = vmul.f32 %v509, %v528
  %v567 = vmul.f32 %v501, %v532
  %v568 = vmul.f32 %v493, %v536
  %v569 = vmul.f32 %v518, %v524
  %v570 = vmul.f32 %v510, %v528
  %v571 = vmul.f32 %v502, %v532
  %v572 = vmul.f32 %v494, %v536
  %v573 = vld [vmem:[%s6] sm:$0xf]
  %v574 = vld [vmem:[%s6 + $0x4] sm:$0xf]
  %v575 = vld [vmem:[%s6 + $0x8] sm:$0xf]
  %v576 = vld [vmem:[%s6 + $0xc] sm:$0xf]
  %v577 = vpack.c.bf16 %v545, %v541
  %v578 = vpack.c.bf16 %v546, %v542
  %v579 = vpack.c.bf16 %v547, %v543
  %v580 = vpack.c.bf16 %v548, %v544
  %v581 = vpack.c.bf16 %v553, %v549
  %v582 = vpack.c.bf16 %v554, %v550
  %v583 = vpack.c.bf16 %v555, %v551
  %v584 = vpack.c.bf16 %v556, %v552
  %v585 = vpack.c.bf16 %v561, %v557
  %v586 = vpack.c.bf16 %v562, %v558
  %v587 = vpack.c.bf16 %v563, %v559
  %v588 = vpack.c.bf16 %v564, %v560
  %v589 = vpack.c.bf16 %v569, %v565
  %v590 = vpack.c.bf16 %v570, %v566
  %v591 = vpack.c.bf16 %v571, %v567
  %v592 = vpack.c.bf16 %v572, %v568
  %593 = vrot.lane.b32.xlu0 %v388, 16
  %v594 = vpop.permute.xlu0 %593
  %595 = vrot.lane.b32.xlu0 %v392, 16
  %v596 = vpop.permute.xlu0 %595
  %597 = vrot.lane.b32.xlu0 %v396, 16
  %v598 = vpop.permute.xlu0 %597
  %599 = vrot.lane.b32.xlu0 %v400, 16
  %v600 = vpop.permute.xlu0 %599
  %601 = vrot.lane.b32.xlu0 %v404, 16
  %v602 = vpop.permute.xlu0 %601
  %603 = vrot.lane.b32.xlu0 %v408, 16
  %v604 = vpop.permute.xlu0 %603
  %605 = vrot.lane.b32.xlu0 %v412, 16
  %v606 = vpop.permute.xlu0 %605
  %607 = vrot.lane.b32.xlu0 %v416, 16
  %v608 = vpop.permute.xlu0 %607
  %609 = vrot.lane.b32.xlu0 %v389, 16
  %v610 = vpop.permute.xlu0 %609
  %611 = vrot.lane.b32.xlu0 %v393, 16
  %v612 = vpop.permute.xlu0 %611
  %613 = vrot.lane.b32.xlu0 %v397, 16
  %v614 = vpop.permute.xlu0 %613
  %615 = vrot.lane.b32.xlu0 %v401, 16
  %v616 = vpop.permute.xlu0 %615
  %617 = vrot.lane.b32.xlu0 %v405, 16
  %v618 = vpop.permute.xlu0 %617
  %619 = vrot.lane.b32.xlu0 %v409, 16
  %v620 = vpop.permute.xlu0 %619
  %621 = vrot.lane.b32.xlu0 %v413, 16
  %v622 = vpop.permute.xlu0 %621
  %623 = vrot.lane.b32.xlu0 %v417, 16
  %v624 = vpop.permute.xlu0 %623
  %625 = vrot.lane.b32.xlu0 %v390, 16
  %v626 = vpop.permute.xlu0 %625
  %627 = vrot.lane.b32.xlu0 %v394, 16
  %v628 = vpop.permute.xlu0 %627
  %629 = vrot.lane.b32.xlu0 %v398, 16
  %v630 = vpop.permute.xlu0 %629
  %631 = vrot.lane.b32.xlu0 %v402, 16
  %v632 = vpop.permute.xlu0 %631
  %633 = vrot.lane.b32.xlu0 %v406, 16
  %v634 = vpop.permute.xlu0 %633
  %635 = vrot.lane.b32.xlu0 %v410, 16
  %v636 = vpop.permute.xlu0 %635
  %637 = vrot.lane.b32.xlu0 %v414, 16
  %v638 = vpop.permute.xlu0 %637
  %639 = vrot.lane.b32.xlu0 %v418, 16
  %v640 = vpop.permute.xlu0 %639
  %641 = vrot.lane.b32.xlu0 %v391, 16
  %v642 = vpop.permute.xlu0 %641
  %643 = vrot.lane.b32.xlu0 %v395, 16
  %v644 = vpop.permute.xlu0 %643
  %645 = vrot.lane.b32.xlu0 %v399, 16
  %v646 = vpop.permute.xlu0 %645
  %647 = vrot.lane.b32.xlu0 %v403, 16
  %v648 = vpop.permute.xlu0 %647
  %649 = vrot.lane.b32.xlu0 %v407, 16
  %v650 = vpop.permute.xlu0 %649
  %651 = vrot.lane.b32.xlu0 %v411, 16
  %v652 = vpop.permute.xlu0 %651
  %653 = vrot.lane.b32.xlu0 %v415, 16
  %v654 = vpop.permute.xlu0 %653
  %655 = vrot.lane.b32.xlu0 %v419, 16
  %v656 = vpop.permute.xlu0 %655
  %vm657 = vcmp.lt.s32.totalorder %v485, 16
  %v658 = vsel %vm657, %v626, %v642
  %v659 = vsel %vm657, %v628, %v644
  %v660 = vsel %vm657, %v630, %v646
  %v661 = vsel %vm657, %v632, %v648
  %v662 = vsel %vm657, %v634, %v650
  %v663 = vsel %vm657, %v636, %v652
  %v664 = vsel %vm657, %v638, %v654
  %v665 = vsel %vm657, %v640, %v656
  %v666 = vsel %vm657, %v610, %v626
  %v667 = vsel %vm657, %v612, %v628
  %v668 = vsel %vm657, %v614, %v630
  %v669 = vsel %vm657, %v616, %v632
  %v670 = vsel %vm657, %v618, %v634
  %v671 = vsel %vm657, %v620, %v636
  %v672 = vsel %vm657, %v622, %v638
  %v673 = vsel %vm657, %v624, %v640
  %v674 = vsel %vm657, %v594, %v610
  %v675 = vsel %vm657, %v596, %v612
  %v676 = vsel %vm657, %v598, %v614
  %v677 = vsel %vm657, %v600, %v616
  %v678 = vsel %vm657, %v602, %v618
  %v679 = vsel %vm657, %v604, %v620
  %v680 = vsel %vm657, %v606, %v622
  %v681 = vsel %vm657, %v608, %v624
  %v682 = vsel %vm657, %v642, %v594
  %v683 = vsel %vm657, %v644, %v596
  %v684 = vsel %vm657, %v646, %v598
  %v685 = vsel %vm657, %v648, %v600
  %v686 = vsel %vm657, %v650, %v602
  %v687 = vsel %vm657, %v652, %v604
  %v688 = vsel %vm657, %v654, %v606
  %v689 = vsel %vm657, %v656, %v608
  %s690 = scalar_lea.vmem %s2, 1
  %v691 = vld [vmem:[%s690] ss:$8 sm:$0xf]
  %v693 = vlaneseq
  %v694 = vshrl.u32 %v693, 7
  %v695 = vsub.s32 0, %v694
  %v696 = vrot.slane %v691, %v695
  %v697 = vlaneseq
  %v698 = vshrl.u32 %v697, 7
  %v699 = vsub.s32 1, %v698
  %v700 = vrot.slane %v691, %v699
  %v701 = vlaneseq
  %v702 = vshrl.u32 %v701, 7
  %v703 = vsub.s32 2, %v702
  %v704 = vrot.slane %v691, %v703
  %v705 = vlaneseq
  %v706 = vshrl.u32 %v705, 7
  %v707 = vsub.s32 3, %v706
  %v708 = vrot.slane %v691, %v707
  %v713 = vmul.f32 %v682, %v696
  %v714 = vmul.f32 %v674, %v700
  %v715 = vmul.f32 %v666, %v704
  %v716 = vmul.f32 %v658, %v708
  %v717 = vmul.f32 %v683, %v696
  %v718 = vmul.f32 %v675, %v700
  %v719 = vmul.f32 %v667, %v704
  %v720 = vmul.f32 %v659, %v708
  %v721 = vmul.f32 %v684, %v696
  %v722 = vmul.f32 %v676, %v700
  %v723 = vmul.f32 %v668, %v704
  %v724 = vmul.f32 %v660, %v708
  %v725 = vmul.f32 %v685, %v696
  %v726 = vmul.f32 %v677, %v700
  %v727 = vmul.f32 %v669, %v704
  %v728 = vmul.f32 %v661, %v708
  %v729 = vmul.f32 %v686, %v696
  %v730 = vmul.f32 %v678, %v700
  %v731 = vmul.f32 %v670, %v704
  %v732 = vmul.f32 %v662, %v708
  %v733 = vmul.f32 %v687, %v696
  %v734 = vmul.f32 %v679, %v700
  %v735 = vmul.f32 %v671, %v704
  %v736 = vmul.f32 %v663, %v708
  %v737 = vmul.f32 %v688, %v696
  %v738 = vmul.f32 %v680, %v700
  %v739 = vmul.f32 %v672, %v704
  %v740 = vmul.f32 %v664, %v708
  %v741 = vmul.f32 %v689, %v696
  %v742 = vmul.f32 %v681, %v700
  %v743 = vmul.f32 %v673, %v704
  %v744 = vmul.f32 %v665, %v708
  %s745 = scalar_lea.vmem %s6, 16
  %v746 = vld [vmem:[%s745] sm:$0xf]
  %v747 = vld [vmem:[%s745 + $0x4] sm:$0xf]
  %v748 = vld [vmem:[%s745 + $0x8] sm:$0xf]
  %v749 = vld [vmem:[%s745 + $0xc] sm:$0xf]
  %v750 = vpack.c.bf16 %v717, %v713
  %v751 = vpack.c.bf16 %v718, %v714
  %v752 = vpack.c.bf16 %v719, %v715
  %v753 = vpack.c.bf16 %v720, %v716
  %v754 = vpack.c.bf16 %v725, %v721
  %v755 = vpack.c.bf16 %v726, %v722
  %v756 = vpack.c.bf16 %v727, %v723
  %v757 = vpack.c.bf16 %v728, %v724
  %v758 = vpack.c.bf16 %v733, %v729
  %v759 = vpack.c.bf16 %v734, %v730
  %v760 = vpack.c.bf16 %v735, %v731
  %v761 = vpack.c.bf16 %v736, %v732
  %v762 = vpack.c.bf16 %v741, %v737
  %v763 = vpack.c.bf16 %v742, %v738
  %v764 = vpack.c.bf16 %v743, %v739
  %v765 = vpack.c.bf16 %v744, %v740
  %v770 = vunpack.c.l.b16 %v746
  %v771 = vunpack.c.l.b16 %v747
  %v772 = vunpack.c.l.b16 %v748
  %v773 = vunpack.c.l.b16 %v749
  %v774 = vpack.c.b16 %v771, %v770
  %v775 = vpack.c.b16 %v773, %v772
  %vm776 = vcmask 523264
  %v778 = vsel %vm776, %v774, 0
  %v781 = vsel %vm776, %v775, 0
  %783 = vmatprep.subr.bf16.mxu0 %v751
  %784 = vmatpush1.bf16.msra.mxu0 %v750
  %785 = vmatprep.subr.bf16.mxu0 %v755
  %786 = vmatpush1.bf16.msra.mxu0 %v754
  %787 = vmatprep.subr.bf16.mxu0 %v759
  %788 = vmatpush1.bf16.msra.mxu0 %v758
  %789 = vmatprep.subr.bf16.mxu0 %v763
  %790 = vmatpush1.bf16.msra.mxu0 %v762
  %791 = vmatprep.subr.bf16.mxu0 0
  %792 = vmatpush1.bf16.msra.mxu0 0
  %793 = vmatprep.subr.bf16.mxu0 0
  %794 = vmatpush1.bf16.msra.mxu0 0
  %795 = vmatprep.subr.bf16.mxu0 0
  %796 = vmatpush1.bf16.msra.mxu0 0
  %797 = vmatprep.subr.bf16.mxu0 0
  %798 = vmatpush1.bf16.msra.mxu0 0
  %799 = vmatprep.subr.bf16.mxu0 0
  %800 = vmatpush1.bf16.msra.mxu0 0
  %801 = vmatprep.subr.bf16.mxu0 0
  %802 = vmatpush1.bf16.msra.mxu0 0
  %803 = vmatprep.subr.bf16.mxu0 0
  %804 = vmatpush1.bf16.msra.mxu0 0
  %805 = vmatprep.subr.bf16.mxu0 0
  %806 = vmatpush1.bf16.msra.mxu0 0
  %807 = vmatprep.subr.bf16.mxu0 0
  %808 = vmatpush1.bf16.msra.mxu0 0
  %809 = vmatprep.subr.bf16.mxu0 0
  %810 = vmatpush1.bf16.msra.mxu0 0
  %811 = vmatprep.subr.bf16.mxu0 0
  %812 = vmatpush1.bf16.msra.mxu0 0
  %813 = vmatprep.subr.bf16.mxu0 0
  %814 = vmatpush1.bf16.msra.mxu0 0
  %815 = vmatprep.mubr.bf16.mxu0 0
  %816 = vmatmul.mubr.bf16.gmra.mrb[0].mxu0 %v778
  %v817 = vpop.f32.mrb[0].mxu0
  %v818 = vadd.f32 0.0, %v817
  %v819 = vpop.f32.mrb[0].mxu0
  %v820 = vadd.f32 0.0, %v819
  %v821 = vpop.f32.mrb[0].mxu0
  %v822 = vadd.f32 0.0, %v821
  %v823 = vpop.f32.mrb[0].mxu0
  %v824 = vadd.f32 0.0, %v823
  %825 = vmatprep.mubr.bf16.mxu0 0
  %826 = vmatmul.mubr.bf16.gmra.mrb[0].mxu0 %v781
  %v827 = vpop.f32.mrb[0].mxu0
  %v828 = vadd.f32 0.0, %v827
  %v829 = vpop.f32.mrb[0].mxu0
  %v830 = vadd.f32 0.0, %v829
  %v831 = vpop.f32.mrb[0].mxu0
  %v832 = vadd.f32 0.0, %v831
  %v833 = vpop.f32.mrb[0].mxu0
  %v834 = vadd.f32 0.0, %v833
  %835 = vdwg.mxu0
  %836 = vmatprep.subr.bf16.mxu0 %v753
  %837 = vmatpush1.bf16.msra.mxu0 %v752
  %838 = vmatprep.subr.bf16.mxu0 %v757
  %839 = vmatpush1.bf16.msra.mxu0 %v756
  %840 = vmatprep.subr.bf16.mxu0 %v761
  %841 = vmatpush1.bf16.msra.mxu0 %v760
  %842 = vmatprep.subr.bf16.mxu0 %v765
  %843 = vmatpush1.bf16.msra.mxu0 %v764
  %844 = vmatprep.subr.bf16.mxu0 0
  %845 = vmatpush1.bf16.msra.mxu0 0
  %846 = vmatprep.subr.bf16.mxu0 0
  %847 = vmatpush1.bf16.msra.mxu0 0
  %848 = vmatprep.subr.bf16.mxu0 0
  %849 = vmatpush1.bf16.msra.mxu0 0
  %850 = vmatprep.subr.bf16.mxu0 0
  %851 = vmatpush1.bf16.msra.mxu0 0
  %852 = vmatprep.subr.bf16.mxu0 0
  %853 = vmatpush1.bf16.msra.mxu0 0
  %854 = vmatprep.subr.bf16.mxu0 0
  %855 = vmatpush1.bf16.msra.mxu0 0
  %856 = vmatprep.subr.bf16.mxu0 0
  %857 = vmatpush1.bf16.msra.mxu0 0
  %858 = vmatprep.subr.bf16.mxu0 0
  %859 = vmatpush1.bf16.msra.mxu0 0
  %860 = vmatprep.subr.bf16.mxu0 0
  %861 = vmatpush1.bf16.msra.mxu0 0
  %862 = vmatprep.subr.bf16.mxu0 0
  %863 = vmatpush1.bf16.msra.mxu0 0
  %864 = vmatprep.subr.bf16.mxu0 0
  %865 = vmatpush1.bf16.msra.mxu0 0
  %866 = vmatprep.subr.bf16.mxu0 0
  %867 = vmatpush1.bf16.msra.mxu0 0
  %868 = vmatprep.mubr.bf16.mxu0 0
  %869 = vmatmul.mubr.bf16.gmra.mrb[0].mxu0 %v778
  %v870 = vpop.f32.mrb[0].mxu0
  %v871 = vadd.f32 0.0, %v870
  %v872 = vpop.f32.mrb[0].mxu0
  %v873 = vadd.f32 0.0, %v872
  %v874 = vpop.f32.mrb[0].mxu0
  %v875 = vadd.f32 0.0, %v874
  %v876 = vpop.f32.mrb[0].mxu0
  %v877 = vadd.f32 0.0, %v876
  %878 = vmatprep.mubr.bf16.mxu0 0
  %879 = vmatmul.mubr.bf16.gmra.mrb[0].mxu0 %v781
  %v880 = vpop.f32.mrb[0].mxu0
  %v881 = vadd.f32 0.0, %v880
  %v882 = vpop.f32.mrb[0].mxu0
  %v883 = vadd.f32 0.0, %v882
  %v884 = vpop.f32.mrb[0].mxu0
  %v885 = vadd.f32 0.0, %v884
  %v886 = vpop.f32.mrb[0].mxu0
  %v887 = vadd.f32 0.0, %v886
  %888 = vdwg.mxu0
  %v893 = vunpack.c.l.b16 %v573
  %v894 = vunpack.c.l.b16 %v574
  %v895 = vunpack.c.l.b16 %v575
  %v896 = vunpack.c.l.b16 %v576
  %v897 = vpack.c.b16 %v894, %v893
  %v898 = vpack.c.b16 %v896, %v895
  %v900 = vsel %vm776, %v897, 0
  %v903 = vsel %vm776, %v898, 0
  %905 = vmatprep.subr.bf16.mxu0 %v578
  %906 = vmatpush1.bf16.msra.mxu0 %v577
  %907 = vmatprep.subr.bf16.mxu0 %v582
  %908 = vmatpush1.bf16.msra.mxu0 %v581
  %909 = vmatprep.subr.bf16.mxu0 %v586
  %910 = vmatpush1.bf16.msra.mxu0 %v585
  %911 = vmatprep.subr.bf16.mxu0 %v590
  %912 = vmatpush1.bf16.msra.mxu0 %v589
  %913 = vmatprep.subr.bf16.mxu0 0
  %914 = vmatpush1.bf16.msra.mxu0 0
  %915 = vmatprep.subr.bf16.mxu0 0
  %916 = vmatpush1.bf16.msra.mxu0 0
  %917 = vmatprep.subr.bf16.mxu0 0
  %918 = vmatpush1.bf16.msra.mxu0 0
  %919 = vmatprep.subr.bf16.mxu0 0
  %920 = vmatpush1.bf16.msra.mxu0 0
  %921 = vmatprep.subr.bf16.mxu0 0
  %922 = vmatpush1.bf16.msra.mxu0 0
  %923 = vmatprep.subr.bf16.mxu0 0
  %924 = vmatpush1.bf16.msra.mxu0 0
  %925 = vmatprep.subr.bf16.mxu0 0
  %926 = vmatpush1.bf16.msra.mxu0 0
  %927 = vmatprep.subr.bf16.mxu0 0
  %928 = vmatpush1.bf16.msra.mxu0 0
  %929 = vmatprep.subr.bf16.mxu0 0
  %930 = vmatpush1.bf16.msra.mxu0 0
  %931 = vmatprep.subr.bf16.mxu0 0
  %932 = vmatpush1.bf16.msra.mxu0 0
  %933 = vmatprep.subr.bf16.mxu0 0
  %934 = vmatpush1.bf16.msra.mxu0 0
  %935 = vmatprep.subr.bf16.mxu0 0
  %936 = vmatpush1.bf16.msra.mxu0 0
  %937 = vmatprep.mubr.bf16.mxu0 0
  %938 = vmatmul.mubr.bf16.gmra.mrb[0].mxu0 %v900
  %v939 = vpop.f32.mrb[0].mxu0
  %v940 = vadd.f32 %v818, %v939
  %v941 = vpop.f32.mrb[0].mxu0
  %v942 = vadd.f32 %v820, %v941
  %v943 = vpop.f32.mrb[0].mxu0
  %v944 = vadd.f32 %v822, %v943
  %v945 = vpop.f32.mrb[0].mxu0
  %v946 = vadd.f32 %v824, %v945
  %947 = vmatprep.mubr.bf16.mxu0 0
  %948 = vmatmul.mubr.bf16.gmra.mrb[0].mxu0 %v903
  %v949 = vpop.f32.mrb[0].mxu0
  %v950 = vadd.f32 %v828, %v949
  %v951 = vpop.f32.mrb[0].mxu0
  %v952 = vadd.f32 %v830, %v951
  %v953 = vpop.f32.mrb[0].mxu0
  %v954 = vadd.f32 %v832, %v953
  %v955 = vpop.f32.mrb[0].mxu0
  %v956 = vadd.f32 %v834, %v955
  %957 = vdwg.mxu0
  %958 = vmatprep.subr.bf16.mxu0 %v580
  %959 = vmatpush1.bf16.msra.mxu0 %v579
  %960 = vmatprep.subr.bf16.mxu0 %v584
  %961 = vmatpush1.bf16.msra.mxu0 %v583
  %962 = vmatprep.subr.bf16.mxu0 %v588
  %963 = vmatpush1.bf16.msra.mxu0 %v587
  %964 = vmatprep.subr.bf16.mxu0 %v592
  %965 = vmatpush1.bf16.msra.mxu0 %v591
  %966 = vmatprep.subr.bf16.mxu0 0
  %967 = vmatpush1.bf16.msra.mxu0 0
  %968 = vmatprep.subr.bf16.mxu0 0
  %969 = vmatpush1.bf16.msra.mxu0 0
  %970 = vmatprep.subr.bf16.mxu0 0
  %971 = vmatpush1.bf16.msra.mxu0 0
  %972 = vmatprep.subr.bf16.mxu0 0
  %973 = vmatpush1.bf16.msra.mxu0 0
  %974 = vmatprep.subr.bf16.mxu0 0
  %975 = vmatpush1.bf16.msra.mxu0 0
  %976 = vmatprep.subr.bf16.mxu0 0
  %977 = vmatpush1.bf16.msra.mxu0 0
  %978 = vmatprep.subr.bf16.mxu0 0
  %979 = vmatpush1.bf16.msra.mxu0 0
  %980 = vmatprep.subr.bf16.mxu0 0
  %981 = vmatpush1.bf16.msra.mxu0 0
  %982 = vmatprep.subr.bf16.mxu0 0
  %983 = vmatpush1.bf16.msra.mxu0 0
  %984 = vmatprep.subr.bf16.mxu0 0
  %985 = vmatpush1.bf16.msra.mxu0 0
  %986 = vmatprep.subr.bf16.mxu0 0
  %987 = vmatpush1.bf16.msra.mxu0 0
  %988 = vmatprep.subr.bf16.mxu0 0
  %989 = vmatpush1.bf16.msra.mxu0 0
  %990 = vmatprep.mubr.bf16.mxu0 0
  %991 = vmatmul.mubr.bf16.gmra.mrb[0].mxu0 %v900
  %v992 = vpop.f32.mrb[0].mxu0
  %v993 = vadd.f32 %v871, %v992
  %v994 = vpop.f32.mrb[0].mxu0
  %v995 = vadd.f32 %v873, %v994
  %v996 = vpop.f32.mrb[0].mxu0
  %v997 = vadd.f32 %v875, %v996
  %v998 = vpop.f32.mrb[0].mxu0
  %v999 = vadd.f32 %v877, %v998
  %1000 = vmatprep.mubr.bf16.mxu0 0
  %1001 = vmatmul.mubr.bf16.gmra.mrb[0].mxu0 %v903
  %v1002 = vpop.f32.mrb[0].mxu0
  %v1003 = vadd.f32 %v881, %v1002
  %v1004 = vpop.f32.mrb[0].mxu0
  %v1005 = vadd.f32 %v883, %v1004
  %v1006 = vpop.f32.mrb[0].mxu0
  %v1007 = vadd.f32 %v885, %v1006
  %v1008 = vpop.f32.mrb[0].mxu0
  %v1009 = vadd.f32 %v887, %v1008
  %1010 = vdwg.mxu0
  %1011 = vrot.lane.b32.xlu0 %v388, 15
  %v1012 = vpop.permute.xlu0 %1011
  %1013 = vrot.lane.b32.xlu0 %v392, 15
  %v1014 = vpop.permute.xlu0 %1013
  %1015 = vrot.lane.b32.xlu0 %v396, 15
  %v1016 = vpop.permute.xlu0 %1015
  %1017 = vrot.lane.b32.xlu0 %v400, 15
  %v1018 = vpop.permute.xlu0 %1017
  %1019 = vrot.lane.b32.xlu0 %v404, 15
  %v1020 = vpop.permute.xlu0 %1019
  %1021 = vrot.lane.b32.xlu0 %v408, 15
  %v1022 = vpop.permute.xlu0 %1021
  %1023 = vrot.lane.b32.xlu0 %v412, 15
  %v1024 = vpop.permute.xlu0 %1023
  %1025 = vrot.lane.b32.xlu0 %v416, 15
  %v1026 = vpop.permute.xlu0 %1025
  %1027 = vrot.lane.b32.xlu0 %v389, 15
  %v1028 = vpop.permute.xlu0 %1027
  %1029 = vrot.lane.b32.xlu0 %v393, 15
  %v1030 = vpop.permute.xlu0 %1029
  %1031 = vrot.lane.b32.xlu0 %v397, 15
  %v1032 = vpop.permute.xlu0 %1031
  %1033 = vrot.lane.b32.xlu0 %v401, 15
  %v1034 = vpop.permute.xlu0 %1033
  %1035 = vrot.lane.b32.xlu0 %v405, 15
  %v1036 = vpop.permute.xlu0 %1035
  %1037 = vrot.lane.b32.xlu0 %v409, 15
  %v1038 = vpop.permute.xlu0 %1037
  %1039 = vrot.lane.b32.xlu0 %v413, 15
  %v1040 = vpop.permute.xlu0 %1039
  %1041 = vrot.lane.b32.xlu0 %v417, 15
  %v1042 = vpop.permute.xlu0 %1041
  %1043 = vrot.lane.b32.xlu0 %v390, 15
  %v1044 = vpop.permute.xlu0 %1043
  %1045 = vrot.lane.b32.xlu0 %v394, 15
  %v1046 = vpop.permute.xlu0 %1045
  %1047 = vrot.lane.b32.xlu0 %v398, 15
  %v1048 = vpop.permute.xlu0 %1047
  %1049 = vrot.lane.b32.xlu0 %v402, 15
  %v1050 = vpop.permute.xlu0 %1049
  %1051 = vrot.lane.b32.xlu0 %v406, 15
  %v1052 = vpop.permute.xlu0 %1051
  %1053 = vrot.lane.b32.xlu0 %v410, 15
  %v1054 = vpop.permute.xlu0 %1053
  %1055 = vrot.lane.b32.xlu0 %v414, 15
  %v1056 = vpop.permute.xlu0 %1055
  %1057 = vrot.lane.b32.xlu0 %v418, 15
  %v1058 = vpop.permute.xlu0 %1057
  %1059 = vrot.lane.b32.xlu0 %v391, 15
  %v1060 = vpop.permute.xlu0 %1059
  %1061 = vrot.lane.b32.xlu0 %v395, 15
  %v1062 = vpop.permute.xlu0 %1061
  %1063 = vrot.lane.b32.xlu0 %v399, 15
  %v1064 = vpop.permute.xlu0 %1063
  %1065 = vrot.lane.b32.xlu0 %v403, 15
  %v1066 = vpop.permute.xlu0 %1065
  %1067 = vrot.lane.b32.xlu0 %v407, 15
  %v1068 = vpop.permute.xlu0 %1067
  %1069 = vrot.lane.b32.xlu0 %v411, 15
  %v1070 = vpop.permute.xlu0 %1069
  %1071 = vrot.lane.b32.xlu0 %v415, 15
  %v1072 = vpop.permute.xlu0 %1071
  %1073 = vrot.lane.b32.xlu0 %v419, 15
  %v1074 = vpop.permute.xlu0 %1073
  %vm1075 = vcmp.lt.s32.totalorder %v485, 15
  %v1076 = vsel %vm1075, %v1044, %v1060
  %v1077 = vsel %vm1075, %v1046, %v1062
  %v1078 = vsel %vm1075, %v1048, %v1064
  %v1079 = vsel %vm1075, %v1050, %v1066
  %v1080 = vsel %vm1075, %v1052, %v1068
  %v1081 = vsel %vm1075, %v1054, %v1070
  %v1082 = vsel %vm1075, %v1056, %v1072
  %v1083 = vsel %vm1075, %v1058, %v1074
  %v1084 = vsel %vm1075, %v1028, %v1044
  %v1085 = vsel %vm1075, %v1030, %v1046
  %v1086 = vsel %vm1075, %v1032, %v1048
  %v1087 = vsel %vm1075, %v1034, %v1050
  %v1088 = vsel %vm1075, %v1036, %v1052
  %v1089 = vsel %vm1075, %v1038, %v1054
  %v1090 = vsel %vm1075, %v1040, %v1056
  %v1091 = vsel %vm1075, %v1042, %v1058
  %v1092 = vsel %vm1075, %v1012, %v1028
  %v1093 = vsel %vm1075, %v1014, %v1030
  %v1094 = vsel %vm1075, %v1016, %v1032
  %v1095 = vsel %vm1075, %v1018, %v1034
  %v1096 = vsel %vm1075, %v1020, %v1036
  %v1097 = vsel %vm1075, %v1022, %v1038
  %v1098 = vsel %vm1075, %v1024, %v1040
  %v1099 = vsel %vm1075, %v1026, %v1042
  %v1100 = vsel %vm1075, %v1060, %v1012
  %v1101 = vsel %vm1075, %v1062, %v1014
  %v1102 = vsel %vm1075, %v1064, %v1016
  %v1103 = vsel %vm1075, %v1066, %v1018
  %v1104 = vsel %vm1075, %v1068, %v1020
  %v1105 = vsel %vm1075, %v1070, %v1022
  %v1106 = vsel %vm1075, %v1072, %v1024
  %v1107 = vsel %vm1075, %v1074, %v1026
  %s1108 = scalar_lea.vmem %s2, 2
  %v1109 = vld [vmem:[%s1108] ss:$8 sm:$0xf]
  %v1111 = vlaneseq
  %v1112 = vshrl.u32 %v1111, 7
  %v1113 = vsub.s32 0, %v1112
  %v1114 = vrot.slane %v1109, %v1113
  %v1115 = vlaneseq
  %v1116 = vshrl.u32 %v1115, 7
  %v1117 = vsub.s32 1, %v1116
  %v1118 = vrot.slane %v1109, %v1117
  %v1119 = vlaneseq
  %v1120 = vshrl.u32 %v1119, 7
  %v1121 = vsub.s32 2, %v1120
  %v1122 = vrot.slane %v1109, %v1121
  %v1123 = vlaneseq
  %v1124 = vshrl.u32 %v1123, 7
  %v1125 = vsub.s32 3, %v1124
  %v1126 = vrot.slane %v1109, %v1125
  %v1131 = vmul.f32 %v1100, %v1114
  %v1132 = vmul.f32 %v1092, %v1118
  %v1133 = vmul.f32 %v1084, %v1122
  %v1134 = vmul.f32 %v1076, %v1126
  %v1135 = vmul.f32 %v1101, %v1114
  %v1136 = vmul.f32 %v1093, %v1118
  %v1137 = vmul.f32 %v1085, %v1122
  %v1138 = vmul.f32 %v1077, %v1126
  %v1139 = vmul.f32 %v1102, %v1114
  %v1140 = vmul.f32 %v1094, %v1118
  %v1141 = vmul.f32 %v1086, %v1122
  %v1142 = vmul.f32 %v1078, %v1126
  %v1143 = vmul.f32 %v1103, %v1114
  %v1144 = vmul.f32 %v1095, %v1118
  %v1145 = vmul.f32 %v1087, %v1122
  %v1146 = vmul.f32 %v1079, %v1126
  %v1147 = vmul.f32 %v1104, %v1114
  %v1148 = vmul.f32 %v1096, %v1118
  %v1149 = vmul.f32 %v1088, %v1122
  %v1150 = vmul.f32 %v1080, %v1126
  %v1151 = vmul.f32 %v1105, %v1114
  %v1152 = vmul.f32 %v1097, %v1118
  %v1153 = vmul.f32 %v1089, %v1122
  %v1154 = vmul.f32 %v1081, %v1126
  %v1155 = vmul.f32 %v1106, %v1114
  %v1156 = vmul.f32 %v1098, %v1118
  %v1157 = vmul.f32 %v1090, %v1122
  %v1158 = vmul.f32 %v1082, %v1126
  %v1159 = vmul.f32 %v1107, %v1114
  %v1160 = vmul.f32 %v1099, %v1118
  %v1161 = vmul.f32 %v1091, %v1122
  %v1162 = vmul.f32 %v1083, %v1126
  %s1163 = scalar_lea.vmem %s6, 32
  %v1164 = vld [vmem:[%s1163] sm:$0xf]
  %v1165 = vld [vmem:[%s1163 + $0x4] sm:$0xf]
  %v1166 = vld [vmem:[%s1163 + $0x8] sm:$0xf]
  %v1167 = vld [vmem:[%s1163 + $0xc] sm:$0xf]
  %v1168 = vpack.c.bf16 %v1135, %v1131
  %v1169 = vpack.c.bf16 %v1136, %v1132
  %v1170 = vpack.c.bf16 %v1137, %v1133
  %v1171 = vpack.c.bf16 %v1138, %v1134
  %v1172 = vpack.c.bf16 %v1143, %v1139
  %v1173 = vpack.c.bf16 %v1144, %v1140
  %v1174 = vpack.c.bf16 %v1145, %v1141
  %v1175 = vpack.c.bf16 %v1146, %v1142
  %v1176 = vpack.c.bf16 %v1151, %v1147
  %v1177 = vpack.c.bf16 %v1152, %v1148
  %v1178 = vpack.c.bf16 %v1153, %v1149
  %v1179 = vpack.c.bf16 %v1154, %v1150
  %v1180 = vpack.c.bf16 %v1159, %v1155
  %v1181 = vpack.c.bf16 %v1160, %v1156
  %v1182 = vpack.c.bf16 %v1161, %v1157
  %v1183 = vpack.c.bf16 %v1162, %v1158
  %v1188 = vunpack.c.l.b16 %v1164
  %v1189 = vunpack.c.l.b16 %v1165
  %v1190 = vunpack.c.l.b16 %v1166
  %v1191 = vunpack.c.l.b16 %v1167
  %v1192 = vpack.c.b16 %v1189, %v1188
  %v1193 = vpack.c.b16 %v1191, %v1190
  %v1195 = vsel %vm776, %v1192, 0
  %v1198 = vsel %vm776, %v1193, 0
  %1200 = vmatprep.subr.bf16.mxu0 %v1169
  %1201 = vmatpush1.bf16.msra.mxu0 %v1168
  %1202 = vmatprep.subr.bf16.mxu0 %v1173
  %1203 = vmatpush1.bf16.msra.mxu0 %v1172
  %1204 = vmatprep.subr.bf16.mxu0 %v1177
  %1205 = vmatpush1.bf16.msra.mxu0 %v1176
  %1206 = vmatprep.subr.bf16.mxu0 %v1181
  %1207 = vmatpush1.bf16.msra.mxu0 %v1180
  %1208 = vmatprep.subr.bf16.mxu0 0
  %1209 = vmatpush1.bf16.msra.mxu0 0
  %1210 = vmatprep.subr.bf16.mxu0 0
  %1211 = vmatpush1.bf16.msra.mxu0 0
  %1212 = vmatprep.subr.bf16.mxu0 0
  %1213 = vmatpush1.bf16.msra.mxu0 0
  %1214 = vmatprep.subr.bf16.mxu0 0
  %1215 = vmatpush1.bf16.msra.mxu0 0
  %1216 = vmatprep.subr.bf16.mxu0 0
  %1217 = vmatpush1.bf16.msra.mxu0 0
  %1218 = vmatprep.subr.bf16.mxu0 0
  %1219 = vmatpush1.bf16.msra.mxu0 0
  %1220 = vmatprep.subr.bf16.mxu0 0
  %1221 = vmatpush1.bf16.msra.mxu0 0
  %1222 = vmatprep.subr.bf16.mxu0 0
  %1223 = vmatpush1.bf16.msra.mxu0 0
  %1224 = vmatprep.subr.bf16.mxu0 0
  %1225 = vmatpush1.bf16.msra.mxu0 0
  %1226 = vmatprep.subr.bf16.mxu0 0
  %1227 = vmatpush1.bf16.msra.mxu0 0
  %1228 = vmatprep.subr.bf16.mxu0 0
  %1229 = vmatpush1.bf16.msra.mxu0 0
  %1230 = vmatprep.subr.bf16.mxu0 0
  %1231 = vmatpush1.bf16.msra.mxu0 0
  %1232 = vmatprep.mubr.bf16.mxu0 0
  %1233 = vmatmul.mubr.bf16.gmra.mrb[0].mxu0 %v1195
  %v1234 = vpop.f32.mrb[0].mxu0
  %v1235 = vadd.f32 0.0, %v1234
  %v1236 = vpop.f32.mrb[0].mxu0
  %v1237 = vadd.f32 0.0, %v1236
  %v1238 = vpop.f32.mrb[0].mxu0
  %v1239 = vadd.f32 0.0, %v1238
  %v1240 = vpop.f32.mrb[0].mxu0
  %v1241 = vadd.f32 0.0, %v1240
  %1242 = vmatprep.mubr.bf16.mxu0 0
  %1243 = vmatmul.mubr.bf16.gmra.mrb[0].mxu0 %v1198
  %v1244 = vpop.f32.mrb[0].mxu0
  %v1245 = vadd.f32 0.0, %v1244
  %v1246 = vpop.f32.mrb[0].mxu0
  %v1247 = vadd.f32 0.0, %v1246
  %v1248 = vpop.f32.mrb[0].mxu0
  %v1249 = vadd.f32 0.0, %v1248
  %v1250 = vpop.f32.mrb[0].mxu0
  %v1251 = vadd.f32 0.0, %v1250
  %1252 = vdwg.mxu0
  %1253 = vmatprep.subr.bf16.mxu0 %v1171
  %1254 = vmatpush1.bf16.msra.mxu0 %v1170
  %1255 = vmatprep.subr.bf16.mxu0 %v1175
  %1256 = vmatpush1.bf16.msra.mxu0 %v1174
  %1257 = vmatprep.subr.bf16.mxu0 %v1179
  %1258 = vmatpush1.bf16.msra.mxu0 %v1178
  %1259 = vmatprep.subr.bf16.mxu0 %v1183
  %1260 = vmatpush1.bf16.msra.mxu0 %v1182
  %1261 = vmatprep.subr.bf16.mxu0 0
  %1262 = vmatpush1.bf16.msra.mxu0 0
  %1263 = vmatprep.subr.bf16.mxu0 0
  %1264 = vmatpush1.bf16.msra.mxu0 0
  %1265 = vmatprep.subr.bf16.mxu0 0
  %1266 = vmatpush1.bf16.msra.mxu0 0
  %1267 = vmatprep.subr.bf16.mxu0 0
  %1268 = vmatpush1.bf16.msra.mxu0 0
  %1269 = vmatprep.subr.bf16.mxu0 0
  %1270 = vmatpush1.bf16.msra.mxu0 0
  %1271 = vmatprep.subr.bf16.mxu0 0
  %1272 = vmatpush1.bf16.msra.mxu0 0
  %1273 = vmatprep.subr.bf16.mxu0 0
  %1274 = vmatpush1.bf16.msra.mxu0 0
  %1275 = vmatprep.subr.bf16.mxu0 0
  %1276 = vmatpush1.bf16.msra.mxu0 0
  %1277 = vmatprep.subr.bf16.mxu0 0
  %1278 = vmatpush1.bf16.msra.mxu0 0
  %1279 = vmatprep.subr.bf16.mxu0 0
  %1280 = vmatpush1.bf16.msra.mxu0 0
  %1281 = vmatprep.subr.bf16.mxu0 0
  %1282 = vmatpush1.bf16.msra.mxu0 0
  %1283 = vmatprep.subr.bf16.mxu0 0
  %1284 = vmatpush1.bf16.msra.mxu0 0
  %1285 = vmatprep.mubr.bf16.mxu0 0
  %1286 = vmatmul.mubr.bf16.gmra.mrb[0].mxu0 %v1195
  %v1287 = vpop.f32.mrb[0].mxu0
  %v1288 = vadd.f32 0.0, %v1287
  %v1289 = vpop.f32.mrb[0].mxu0
  %v1290 = vadd.f32 0.0, %v1289
  %v1291 = vpop.f32.mrb[0].mxu0
  %v1292 = vadd.f32 0.0, %v1291
  %v1293 = vpop.f32.mrb[0].mxu0
  %v1294 = vadd.f32 0.0, %v1293
  %1295 = vmatprep.mubr.bf16.mxu0 0
  %1296 = vmatmul.mubr.bf16.gmra.mrb[0].mxu0 %v1198
  %v1297 = vpop.f32.mrb[0].mxu0
  %v1298 = vadd.f32 0.0, %v1297
  %v1299 = vpop.f32.mrb[0].mxu0
  %v1300 = vadd.f32 0.0, %v1299
  %v1301 = vpop.f32.mrb[0].mxu0
  %v1302 = vadd.f32 0.0, %v1301
  %v1303 = vpop.f32.mrb[0].mxu0
  %v1304 = vadd.f32 0.0, %v1303
  %1305 = vdwg.mxu0
  %v1306 = vadd.f32 %v940, %v1235
  %v1307 = vadd.f32 %v942, %v1237
  %v1308 = vadd.f32 %v993, %v1288
  %v1309 = vadd.f32 %v995, %v1290
  %v1310 = vadd.f32 %v944, %v1239
  %v1311 = vadd.f32 %v946, %v1241
  %v1312 = vadd.f32 %v997, %v1292
  %v1313 = vadd.f32 %v999, %v1294
  %v1314 = vadd.f32 %v950, %v1245
  %v1315 = vadd.f32 %v952, %v1247
  %v1316 = vadd.f32 %v1003, %v1298
  %v1317 = vadd.f32 %v1005, %v1300
  %v1318 = vadd.f32 %v954, %v1249
  %v1319 = vadd.f32 %v956, %v1251
  %v1320 = vadd.f32 %v1007, %v1302
  %v1321 = vadd.f32 %v1009, %v1304
  %1322 = vrot.lane.b32.xlu0 %v388, 1
  %v1323 = vpop.permute.xlu0 %1322
  %1324 = vrot.lane.b32.xlu0 %v392, 1
  %v1325 = vpop.permute.xlu0 %1324
  %1326 = vrot.lane.b32.xlu0 %v396, 1
  %v1327 = vpop.permute.xlu0 %1326
  %1328 = vrot.lane.b32.xlu0 %v400, 1
  %v1329 = vpop.permute.xlu0 %1328
  %1330 = vrot.lane.b32.xlu0 %v404, 1
  %v1331 = vpop.permute.xlu0 %1330
  %1332 = vrot.lane.b32.xlu0 %v408, 1
  %v1333 = vpop.permute.xlu0 %1332
  %1334 = vrot.lane.b32.xlu0 %v412, 1
  %v1335 = vpop.permute.xlu0 %1334
  %1336 = vrot.lane.b32.xlu0 %v416, 1
  %v1337 = vpop.permute.xlu0 %1336
  %1338 = vrot.lane.b32.xlu0 %v389, 1
  %v1339 = vpop.permute.xlu0 %1338
  %1340 = vrot.lane.b32.xlu0 %v393, 1
  %v1341 = vpop.permute.xlu0 %1340
  %1342 = vrot.lane.b32.xlu0 %v397, 1
  %v1343 = vpop.permute.xlu0 %1342
  %1344 = vrot.lane.b32.xlu0 %v401, 1
  %v1345 = vpop.permute.xlu0 %1344
  %1346 = vrot.lane.b32.xlu0 %v405, 1
  %v1347 = vpop.permute.xlu0 %1346
  %1348 = vrot.lane.b32.xlu0 %v409, 1
  %v1349 = vpop.permute.xlu0 %1348
  %1350 = vrot.lane.b32.xlu0 %v413, 1
  %v1351 = vpop.permute.xlu0 %1350
  %1352 = vrot.lane.b32.xlu0 %v417, 1
  %v1353 = vpop.permute.xlu0 %1352
  %1354 = vrot.lane.b32.xlu0 %v390, 1
  %v1355 = vpop.permute.xlu0 %1354
  %1356 = vrot.lane.b32.xlu0 %v394, 1
  %v1357 = vpop.permute.xlu0 %1356
  %1358 = vrot.lane.b32.xlu0 %v398, 1
  %v1359 = vpop.permute.xlu0 %1358
  %1360 = vrot.lane.b32.xlu0 %v402, 1
  %v1361 = vpop.permute.xlu0 %1360
  %1362 = vrot.lane.b32.xlu0 %v406, 1
  %v1363 = vpop.permute.xlu0 %1362
  %1364 = vrot.lane.b32.xlu0 %v410, 1
  %v1365 = vpop.permute.xlu0 %1364
  %1366 = vrot.lane.b32.xlu0 %v414, 1
  %v1367 = vpop.permute.xlu0 %1366
  %1368 = vrot.lane.b32.xlu0 %v418, 1
  %v1369 = vpop.permute.xlu0 %1368
  %1370 = vrot.lane.b32.xlu0 %v391, 1
  %v1371 = vpop.permute.xlu0 %1370
  %1372 = vrot.lane.b32.xlu0 %v395, 1
  %v1373 = vpop.permute.xlu0 %1372
  %1374 = vrot.lane.b32.xlu0 %v399, 1
  %v1375 = vpop.permute.xlu0 %1374
  %1376 = vrot.lane.b32.xlu0 %v403, 1
  %v1377 = vpop.permute.xlu0 %1376
  %1378 = vrot.lane.b32.xlu0 %v407, 1
  %v1379 = vpop.permute.xlu0 %1378
  %1380 = vrot.lane.b32.xlu0 %v411, 1
  %v1381 = vpop.permute.xlu0 %1380
  %1382 = vrot.lane.b32.xlu0 %v415, 1
  %v1383 = vpop.permute.xlu0 %1382
  %1384 = vrot.lane.b32.xlu0 %v419, 1
  %v1385 = vpop.permute.xlu0 %1384
  %vm1386 = vcmp.lt.s32.totalorder %v485, 1
  %v1387 = vsel %vm1386, %v1355, %v1371
  %v1388 = vsel %vm1386, %v1357, %v1373
  %v1389 = vsel %vm1386, %v1359, %v1375
  %v1390 = vsel %vm1386, %v1361, %v1377
  %v1391 = vsel %vm1386, %v1363, %v1379
  %v1392 = vsel %vm1386, %v1365, %v1381
  %v1393 = vsel %vm1386, %v1367, %v1383
  %v1394 = vsel %vm1386, %v1369, %v1385
  %v1395 = vsel %vm1386, %v1339, %v1355
  %v1396 = vsel %vm1386, %v1341, %v1357
  %v1397 = vsel %vm1386, %v1343, %v1359
  %v1398 = vsel %vm1386, %v1345, %v1361
  %v1399 = vsel %vm1386, %v1347, %v1363
  %v1400 = vsel %vm1386, %v1349, %v1365
  %v1401 = vsel %vm1386, %v1351, %v1367
  %v1402 = vsel %vm1386, %v1353, %v1369
  %v1403 = vsel %vm1386, %v1323, %v1339
  %v1404 = vsel %vm1386, %v1325, %v1341
  %v1405 = vsel %vm1386, %v1327, %v1343
  %v1406 = vsel %vm1386, %v1329, %v1345
  %v1407 = vsel %vm1386, %v1331, %v1347
  %v1408 = vsel %vm1386, %v1333, %v1349
  %v1409 = vsel %vm1386, %v1335, %v1351
  %v1410 = vsel %vm1386, %v1337, %v1353
  %v1411 = vsel %vm1386, %v1371, %v1323
  %v1412 = vsel %vm1386, %v1373, %v1325
  %v1413 = vsel %vm1386, %v1375, %v1327
  %v1414 = vsel %vm1386, %v1377, %v1329
  %v1415 = vsel %vm1386, %v1379, %v1331
  %v1416 = vsel %vm1386, %v1381, %v1333
  %v1417 = vsel %vm1386, %v1383, %v1335
  %v1418 = vsel %vm1386, %v1385, %v1337
  %s1419 = scalar_lea.vmem %s2, 3
  %v1420 = vld [vmem:[%s1419] ss:$8 sm:$0xf]
  %v1422 = vlaneseq
  %v1423 = vshrl.u32 %v1422, 7
  %v1424 = vsub.s32 0, %v1423
  %v1425 = vrot.slane %v1420, %v1424
  %v1426 = vlaneseq
  %v1427 = vshrl.u32 %v1426, 7
  %v1428 = vsub.s32 1, %v1427
  %v1429 = vrot.slane %v1420, %v1428
  %v1430 = vlaneseq
  %v1431 = vshrl.u32 %v1430, 7
  %v1432 = vsub.s32 2, %v1431
  %v1433 = vrot.slane %v1420, %v1432
  %v1434 = vlaneseq
  %v1435 = vshrl.u32 %v1434, 7
  %v1436 = vsub.s32 3, %v1435
  %v1437 = vrot.slane %v1420, %v1436
  %v1442 = vmul.f32 %v1411, %v1425
  %v1443 = vmul.f32 %v1403, %v1429
  %v1444 = vmul.f32 %v1395, %v1433
  %v1445 = vmul.f32 %v1387, %v1437
  %v1446 = vmul.f32 %v1412, %v1425
  %v1447 = vmul.f32 %v1404, %v1429
  %v1448 = vmul.f32 %v1396, %v1433
  %v1449 = vmul.f32 %v1388, %v1437
  %v1450 = vmul.f32 %v1413, %v1425
  %v1451 = vmul.f32 %v1405, %v1429
  %v1452 = vmul.f32 %v1397, %v1433
  %v1453 = vmul.f32 %v1389, %v1437
  %v1454 = vmul.f32 %v1414, %v1425
  %v1455 = vmul.f32 %v1406, %v1429
  %v1456 = vmul.f32 %v1398, %v1433
  %v1457 = vmul.f32 %v1390, %v1437
  %v1458 = vmul.f32 %v1415, %v1425
  %v1459 = vmul.f32 %v1407, %v1429
  %v1460 = vmul.f32 %v1399, %v1433
  %v1461 = vmul.f32 %v1391, %v1437
  %v1462 = vmul.f32 %v1416, %v1425
  %v1463 = vmul.f32 %v1408, %v1429
  %v1464 = vmul.f32 %v1400, %v1433
  %v1465 = vmul.f32 %v1392, %v1437
  %v1466 = vmul.f32 %v1417, %v1425
  %v1467 = vmul.f32 %v1409, %v1429
  %v1468 = vmul.f32 %v1401, %v1433
  %v1469 = vmul.f32 %v1393, %v1437
  %v1470 = vmul.f32 %v1418, %v1425
  %v1471 = vmul.f32 %v1410, %v1429
  %v1472 = vmul.f32 %v1402, %v1433
  %v1473 = vmul.f32 %v1394, %v1437
  %s1474 = scalar_lea.vmem %s6, 48
  %v1475 = vld [vmem:[%s1474] sm:$0xf]
  %v1476 = vld [vmem:[%s1474 + $0x4] sm:$0xf]
  %v1477 = vld [vmem:[%s1474 + $0x8] sm:$0xf]
  %v1478 = vld [vmem:[%s1474 + $0xc] sm:$0xf]
  %v1479 = vpack.c.bf16 %v1446, %v1442
  %v1480 = vpack.c.bf16 %v1447, %v1443
  %v1481 = vpack.c.bf16 %v1448, %v1444
  %v1482 = vpack.c.bf16 %v1449, %v1445
  %v1483 = vpack.c.bf16 %v1454, %v1450
  %v1484 = vpack.c.bf16 %v1455, %v1451
  %v1485 = vpack.c.bf16 %v1456, %v1452
  %v1486 = vpack.c.bf16 %v1457, %v1453
  %v1487 = vpack.c.bf16 %v1462, %v1458
  %v1488 = vpack.c.bf16 %v1463, %v1459
  %v1489 = vpack.c.bf16 %v1464, %v1460
  %v1490 = vpack.c.bf16 %v1465, %v1461
  %v1491 = vpack.c.bf16 %v1470, %v1466
  %v1492 = vpack.c.bf16 %v1471, %v1467
  %v1493 = vpack.c.bf16 %v1472, %v1468
  %v1494 = vpack.c.bf16 %v1473, %v1469
  %v1499 = vunpack.c.l.b16 %v1475
  %v1500 = vunpack.c.l.b16 %v1476
  %v1501 = vunpack.c.l.b16 %v1477
  %v1502 = vunpack.c.l.b16 %v1478
  %v1503 = vpack.c.b16 %v1500, %v1499
  %v1504 = vpack.c.b16 %v1502, %v1501
  %v1506 = vsel %vm776, %v1503, 0
  %v1509 = vsel %vm776, %v1504, 0
  %1511 = vmatprep.subr.bf16.mxu0 %v1480
  %1512 = vmatpush1.bf16.msra.mxu0 %v1479
  %1513 = vmatprep.subr.bf16.mxu0 %v1484
  %1514 = vmatpush1.bf16.msra.mxu0 %v1483
  %1515 = vmatprep.subr.bf16.mxu0 %v1488
  %1516 = vmatpush1.bf16.msra.mxu0 %v1487
  %1517 = vmatprep.subr.bf16.mxu0 %v1492
  %1518 = vmatpush1.bf16.msra.mxu0 %v1491
  %1519 = vmatprep.subr.bf16.mxu0 0
  %1520 = vmatpush1.bf16.msra.mxu0 0
  %1521 = vmatprep.subr.bf16.mxu0 0
  %1522 = vmatpush1.bf16.msra.mxu0 0
  %1523 = vmatprep.subr.bf16.mxu0 0
  %1524 = vmatpush1.bf16.msra.mxu0 0
  %1525 = vmatprep.subr.bf16.mxu0 0
  %1526 = vmatpush1.bf16.msra.mxu0 0
  %1527 = vmatprep.subr.bf16.mxu0 0
  %1528 = vmatpush1.bf16.msra.mxu0 0
  %1529 = vmatprep.subr.bf16.mxu0 0
  %1530 = vmatpush1.bf16.msra.mxu0 0
  %1531 = vmatprep.subr.bf16.mxu0 0
  %1532 = vmatpush1.bf16.msra.mxu0 0
  %1533 = vmatprep.subr.bf16.mxu0 0
  %1534 = vmatpush1.bf16.msra.mxu0 0
  %1535 = vmatprep.subr.bf16.mxu0 0
  %1536 = vmatpush1.bf16.msra.mxu0 0
  %1537 = vmatprep.subr.bf16.mxu0 0
  %1538 = vmatpush1.bf16.msra.mxu0 0
  %1539 = vmatprep.subr.bf16.mxu0 0
  %1540 = vmatpush1.bf16.msra.mxu0 0
  %1541 = vmatprep.subr.bf16.mxu0 0
  %1542 = vmatpush1.bf16.msra.mxu0 0
  %1543 = vmatprep.mubr.bf16.mxu0 0
  %1544 = vmatmul.mubr.bf16.gmra.mrb[0].mxu0 %v1506
  %v1545 = vpop.f32.mrb[0].mxu0
  %v1546 = vadd.f32 0.0, %v1545
  %v1547 = vpop.f32.mrb[0].mxu0
  %v1548 = vadd.f32 0.0, %v1547
  %v1549 = vpop.f32.mrb[0].mxu0
  %v1550 = vadd.f32 0.0, %v1549
  %v1551 = vpop.f32.mrb[0].mxu0
  %v1552 = vadd.f32 0.0, %v1551
  %1553 = vmatprep.mubr.bf16.mxu0 0
  %1554 = vmatmul.mubr.bf16.gmra.mrb[0].mxu0 %v1509
  %v1555 = vpop.f32.mrb[0].mxu0
  %v1556 = vadd.f32 0.0, %v1555
  %v1557 = vpop.f32.mrb[0].mxu0
  %v1558 = vadd.f32 0.0, %v1557
  %v1559 = vpop.f32.mrb[0].mxu0
  %v1560 = vadd.f32 0.0, %v1559
  %v1561 = vpop.f32.mrb[0].mxu0
  %v1562 = vadd.f32 0.0, %v1561
  %1563 = vdwg.mxu0
  %1564 = vmatprep.subr.bf16.mxu0 %v1482
  %1565 = vmatpush1.bf16.msra.mxu0 %v1481
  %1566 = vmatprep.subr.bf16.mxu0 %v1486
  %1567 = vmatpush1.bf16.msra.mxu0 %v1485
  %1568 = vmatprep.subr.bf16.mxu0 %v1490
  %1569 = vmatpush1.bf16.msra.mxu0 %v1489
  %1570 = vmatprep.subr.bf16.mxu0 %v1494
  %1571 = vmatpush1.bf16.msra.mxu0 %v1493
  %1572 = vmatprep.subr.bf16.mxu0 0
  %1573 = vmatpush1.bf16.msra.mxu0 0
  %1574 = vmatprep.subr.bf16.mxu0 0
  %1575 = vmatpush1.bf16.msra.mxu0 0
  %1576 = vmatprep.subr.bf16.mxu0 0
  %1577 = vmatpush1.bf16.msra.mxu0 0
  %1578 = vmatprep.subr.bf16.mxu0 0
  %1579 = vmatpush1.bf16.msra.mxu0 0
  %1580 = vmatprep.subr.bf16.mxu0 0
  %1581 = vmatpush1.bf16.msra.mxu0 0
  %1582 = vmatprep.subr.bf16.mxu0 0
  %1583 = vmatpush1.bf16.msra.mxu0 0
  %1584 = vmatprep.subr.bf16.mxu0 0
  %1585 = vmatpush1.bf16.msra.mxu0 0
  %1586 = vmatprep.subr.bf16.mxu0 0
  %1587 = vmatpush1.bf16.msra.mxu0 0
  %1588 = vmatprep.subr.bf16.mxu0 0
  %1589 = vmatpush1.bf16.msra.mxu0 0
  %1590 = vmatprep.subr.bf16.mxu0 0
  %1591 = vmatpush1.bf16.msra.mxu0 0
  %1592 = vmatprep.subr.bf16.mxu0 0
  %1593 = vmatpush1.bf16.msra.mxu0 0
  %1594 = vmatprep.subr.bf16.mxu0 0
  %1595 = vmatpush1.bf16.msra.mxu0 0
  %1596 = vmatprep.mubr.bf16.mxu0 0
  %1597 = vmatmul.mubr.bf16.gmra.mrb[0].mxu0 %v1506
  %v1598 = vpop.f32.mrb[0].mxu0
  %v1599 = vadd.f32 0.0, %v1598
  %v1600 = vpop.f32.mrb[0].mxu0
  %v1601 = vadd.f32 0.0, %v1600
  %v1602 = vpop.f32.mrb[0].mxu0
  %v1603 = vadd.f32 0.0, %v1602
  %v1604 = vpop.f32.mrb[0].mxu0
  %v1605 = vadd.f32 0.0, %v1604
  %1606 = vmatprep.mubr.bf16.mxu0 0
  %1607 = vmatmul.mubr.bf16.gmra.mrb[0].mxu0 %v1509
  %v1608 = vpop.f32.mrb[0].mxu0
  %v1609 = vadd.f32 0.0, %v1608
  %v1610 = vpop.f32.mrb[0].mxu0
  %v1611 = vadd.f32 0.0, %v1610
  %v1612 = vpop.f32.mrb[0].mxu0
  %v1613 = vadd.f32 0.0, %v1612
  %v1614 = vpop.f32.mrb[0].mxu0
  %v1615 = vadd.f32 0.0, %v1614
  %1616 = vdwg.mxu0
  %v1617 = vadd.f32 %v1306, %v1546
  %v1618 = vadd.f32 %v1307, %v1548
  %v1619 = vadd.f32 %v1308, %v1599
  %v1620 = vadd.f32 %v1309, %v1601
  %v1621 = vadd.f32 %v1310, %v1550
  %v1622 = vadd.f32 %v1311, %v1552
  %v1623 = vadd.f32 %v1312, %v1603
  %v1624 = vadd.f32 %v1313, %v1605
  %v1625 = vadd.f32 %v1314, %v1556
  %v1626 = vadd.f32 %v1315, %v1558
  %v1627 = vadd.f32 %v1316, %v1609
  %v1628 = vadd.f32 %v1317, %v1611
  %v1629 = vadd.f32 %v1318, %v1560
  %v1630 = vadd.f32 %v1319, %v1562
  %v1631 = vadd.f32 %v1320, %v1613
  %v1632 = vadd.f32 %v1321, %v1615
  %s1633 = scalar_lea.vmem %s6, 64
  %v1634 = vld [vmem:[%s1633] sm:$0xf]
  %v1635 = vld [vmem:[%s1633 + $0x4] sm:$0xf]
  %v1636 = vld [vmem:[%s1633 + $0x8] sm:$0xf]
  %v1637 = vld [vmem:[%s1633 + $0xc] sm:$0xf]
  %v1638 = vpack.c.bf16 %v392, %v388
  %v1639 = vpack.c.bf16 %v393, %v389
  %v1640 = vpack.c.bf16 %v394, %v390
  %v1641 = vpack.c.bf16 %v395, %v391
  %v1642 = vpack.c.bf16 %v400, %v396
  %v1643 = vpack.c.bf16 %v401, %v397
  %v1644 = vpack.c.bf16 %v402, %v398
  %v1645 = vpack.c.bf16 %v403, %v399
  %v1646 = vpack.c.bf16 %v408, %v404
  %v1647 = vpack.c.bf16 %v409, %v405
  %v1648 = vpack.c.bf16 %v410, %v406
  %v1649 = vpack.c.bf16 %v411, %v407
  %v1650 = vpack.c.bf16 %v416, %v412
  %v1651 = vpack.c.bf16 %v417, %v413
  %v1652 = vpack.c.bf16 %v418, %v414
  %v1653 = vpack.c.bf16 %v419, %v415
  %v1658 = vunpack.c.l.b16 %v1634
  %v1659 = vunpack.c.l.b16 %v1635
  %v1660 = vunpack.c.l.b16 %v1636
  %v1661 = vunpack.c.l.b16 %v1637
  %v1662 = vpack.c.b16 %v1659, %v1658
  %v1663 = vpack.c.b16 %v1661, %v1660
  %v1665 = vsel %vm776, %v1662, 0
  %v1668 = vsel %vm776, %v1663, 0
  %1670 = vmatprep.subr.bf16.mxu0 %v1639
  %1671 = vmatpush1.bf16.msra.mxu0 %v1638
  %1672 = vmatprep.subr.bf16.mxu0 %v1643
  %1673 = vmatpush1.bf16.msra.mxu0 %v1642
  %1674 = vmatprep.subr.bf16.mxu0 %v1647
  %1675 = vmatpush1.bf16.msra.mxu0 %v1646
  %1676 = vmatprep.subr.bf16.mxu0 %v1651
  %1677 = vmatpush1.bf16.msra.mxu0 %v1650
  %1678 = vmatprep.subr.bf16.mxu0 0
  %1679 = vmatpush1.bf16.msra.mxu0 0
  %1680 = vmatprep.subr.bf16.mxu0 0
  %1681 = vmatpush1.bf16.msra.mxu0 0
  %1682 = vmatprep.subr.bf16.mxu0 0
  %1683 = vmatpush1.bf16.msra.mxu0 0
  %1684 = vmatprep.subr.bf16.mxu0 0
  %1685 = vmatpush1.bf16.msra.mxu0 0
  %1686 = vmatprep.subr.bf16.mxu0 0
  %1687 = vmatpush1.bf16.msra.mxu0 0
  %1688 = vmatprep.subr.bf16.mxu0 0
  %1689 = vmatpush1.bf16.msra.mxu0 0
  %1690 = vmatprep.subr.bf16.mxu0 0
  %1691 = vmatpush1.bf16.msra.mxu0 0
  %1692 = vmatprep.subr.bf16.mxu0 0
  %1693 = vmatpush1.bf16.msra.mxu0 0
  %1694 = vmatprep.subr.bf16.mxu0 0
  %1695 = vmatpush1.bf16.msra.mxu0 0
  %1696 = vmatprep.subr.bf16.mxu0 0
  %1697 = vmatpush1.bf16.msra.mxu0 0
  %1698 = vmatprep.subr.bf16.mxu0 0
  %1699 = vmatpush1.bf16.msra.mxu0 0
  %1700 = vmatprep.subr.bf16.mxu0 0
  %1701 = vmatpush1.bf16.msra.mxu0 0
  %1702 = vmatprep.mubr.bf16.mxu0 0
  %1703 = vmatmul.mubr.bf16.gmra.mrb[0].mxu0 %v1665
  %v1704 = vpop.f32.mrb[0].mxu0
  %v1705 = vadd.f32 0.0, %v1704
  %v1706 = vpop.f32.mrb[0].mxu0
  %v1707 = vadd.f32 0.0, %v1706
  %v1708 = vpop.f32.mrb[0].mxu0
  %v1709 = vadd.f32 0.0, %v1708
  %v1710 = vpop.f32.mrb[0].mxu0
  %v1711 = vadd.f32 0.0, %v1710
  %1712 = vmatprep.mubr.bf16.mxu0 0
  %1713 = vmatmul.mubr.bf16.gmra.mrb[0].mxu0 %v1668
  %v1714 = vpop.f32.mrb[0].mxu0
  %v1715 = vadd.f32 0.0, %v1714
  %v1716 = vpop.f32.mrb[0].mxu0
  %v1717 = vadd.f32 0.0, %v1716
  %v1718 = vpop.f32.mrb[0].mxu0
  %v1719 = vadd.f32 0.0, %v1718
  %v1720 = vpop.f32.mrb[0].mxu0
  %v1721 = vadd.f32 0.0, %v1720
  %1722 = vdwg.mxu0
  %1723 = vmatprep.subr.bf16.mxu0 %v1641
  %1724 = vmatpush1.bf16.msra.mxu0 %v1640
  %1725 = vmatprep.subr.bf16.mxu0 %v1645
  %1726 = vmatpush1.bf16.msra.mxu0 %v1644
  %1727 = vmatprep.subr.bf16.mxu0 %v1649
  %1728 = vmatpush1.bf16.msra.mxu0 %v1648
  %1729 = vmatprep.subr.bf16.mxu0 %v1653
  %1730 = vmatpush1.bf16.msra.mxu0 %v1652
  %1731 = vmatprep.subr.bf16.mxu0 0
  %1732 = vmatpush1.bf16.msra.mxu0 0
  %1733 = vmatprep.subr.bf16.mxu0 0
  %1734 = vmatpush1.bf16.msra.mxu0 0
  %1735 = vmatprep.subr.bf16.mxu0 0
  %1736 = vmatpush1.bf16.msra.mxu0 0
  %1737 = vmatprep.subr.bf16.mxu0 0
  %1738 = vmatpush1.bf16.msra.mxu0 0
  %1739 = vmatprep.subr.bf16.mxu0 0
  %1740 = vmatpush1.bf16.msra.mxu0 0
  %1741 = vmatprep.subr.bf16.mxu0 0
  %1742 = vmatpush1.bf16.msra.mxu0 0
  %1743 = vmatprep.subr.bf16.mxu0 0
  %1744 = vmatpush1.bf16.msra.mxu0 0
  %1745 = vmatprep.subr.bf16.mxu0 0
  %1746 = vmatpush1.bf16.msra.mxu0 0
  %1747 = vmatprep.subr.bf16.mxu0 0
  %1748 = vmatpush1.bf16.msra.mxu0 0
  %1749 = vmatprep.subr.bf16.mxu0 0
  %1750 = vmatpush1.bf16.msra.mxu0 0
  %1751 = vmatprep.subr.bf16.mxu0 0
  %1752 = vmatpush1.bf16.msra.mxu0 0
  %1753 = vmatprep.subr.bf16.mxu0 0
  %1754 = vmatpush1.bf16.msra.mxu0 0
  %1755 = vmatprep.mubr.bf16.mxu0 0
  %1756 = vmatmul.mubr.bf16.gmra.mrb[0].mxu0 %v1665
  %v1757 = vpop.f32.mrb[0].mxu0
  %v1758 = vadd.f32 0.0, %v1757
  %v1759 = vpop.f32.mrb[0].mxu0
  %v1760 = vadd.f32 0.0, %v1759
  %v1761 = vpop.f32.mrb[0].mxu0
  %v1762 = vadd.f32 0.0, %v1761
  %v1763 = vpop.f32.mrb[0].mxu0
  %v1764 = vadd.f32 0.0, %v1763
  %1765 = vmatprep.mubr.bf16.mxu0 0
  %1766 = vmatmul.mubr.bf16.gmra.mrb[0].mxu0 %v1668
  %v1767 = vpop.f32.mrb[0].mxu0
  %v1768 = vadd.f32 0.0, %v1767
  %v1769 = vpop.f32.mrb[0].mxu0
  %v1770 = vadd.f32 0.0, %v1769
  %v1771 = vpop.f32.mrb[0].mxu0
  %v1772 = vadd.f32 0.0, %v1771
  %v1773 = vpop.f32.mrb[0].mxu0
  %v1774 = vadd.f32 0.0, %v1773
  %1775 = vdwg.mxu0
  %v1776 = vadd.f32 %v1617, %v1705
  %v1777 = vadd.f32 %v1618, %v1707
  %v1778 = vadd.f32 %v1619, %v1758
  %v1779 = vadd.f32 %v1620, %v1760
  %v1780 = vadd.f32 %v1621, %v1709
  %v1781 = vadd.f32 %v1622, %v1711
  %v1782 = vadd.f32 %v1623, %v1762
  %v1783 = vadd.f32 %v1624, %v1764
  %v1784 = vadd.f32 %v1625, %v1715
  %v1785 = vadd.f32 %v1626, %v1717
  %v1786 = vadd.f32 %v1627, %v1768
  %v1787 = vadd.f32 %v1628, %v1770
  %v1788 = vadd.f32 %v1629, %v1719
  %v1789 = vadd.f32 %v1630, %v1721
  %v1790 = vadd.f32 %v1631, %v1772
  %v1791 = vadd.f32 %v1632, %v1774
  %1792 = vrot.lane.b32.xlu0 %v388, 127
  %v1793 = vpop.permute.xlu0 %1792
  %1794 = vrot.lane.b32.xlu0 %v392, 127
  %v1795 = vpop.permute.xlu0 %1794
  %1796 = vrot.lane.b32.xlu0 %v396, 127
  %v1797 = vpop.permute.xlu0 %1796
  %1798 = vrot.lane.b32.xlu0 %v400, 127
  %v1799 = vpop.permute.xlu0 %1798
  %1800 = vrot.lane.b32.xlu0 %v404, 127
  %v1801 = vpop.permute.xlu0 %1800
  %1802 = vrot.lane.b32.xlu0 %v408, 127
  %v1803 = vpop.permute.xlu0 %1802
  %1804 = vrot.lane.b32.xlu0 %v412, 127
  %v1805 = vpop.permute.xlu0 %1804
  %1806 = vrot.lane.b32.xlu0 %v416, 127
  %v1807 = vpop.permute.xlu0 %1806
  %1808 = vrot.lane.b32.xlu0 %v389, 127
  %v1809 = vpop.permute.xlu0 %1808
  %1810 = vrot.lane.b32.xlu0 %v393, 127
  %v1811 = vpop.permute.xlu0 %1810
  %1812 = vrot.lane.b32.xlu0 %v397, 127
  %v1813 = vpop.permute.xlu0 %1812
  %1814 = vrot.lane.b32.xlu0 %v401, 127
  %v1815 = vpop.permute.xlu0 %1814
  %1816 = vrot.lane.b32.xlu0 %v405, 127
  %v1817 = vpop.permute.xlu0 %1816
  %1818 = vrot.lane.b32.xlu0 %v409, 127
  %v1819 = vpop.permute.xlu0 %1818
  %1820 = vrot.lane.b32.xlu0 %v413, 127
  %v1821 = vpop.permute.xlu0 %1820
  %1822 = vrot.lane.b32.xlu0 %v417, 127
  %v1823 = vpop.permute.xlu0 %1822
  %1824 = vrot.lane.b32.xlu0 %v390, 127
  %v1825 = vpop.permute.xlu0 %1824
  %1826 = vrot.lane.b32.xlu0 %v394, 127
  %v1827 = vpop.permute.xlu0 %1826
  %1828 = vrot.lane.b32.xlu0 %v398, 127
  %v1829 = vpop.permute.xlu0 %1828
  %1830 = vrot.lane.b32.xlu0 %v402, 127
  %v1831 = vpop.permute.xlu0 %1830
  %1832 = vrot.lane.b32.xlu0 %v406, 127
  %v1833 = vpop.permute.xlu0 %1832
  %1834 = vrot.lane.b32.xlu0 %v410, 127
  %v1835 = vpop.permute.xlu0 %1834
  %1836 = vrot.lane.b32.xlu0 %v414, 127
  %v1837 = vpop.permute.xlu0 %1836
  %1838 = vrot.lane.b32.xlu0 %v418, 127
  %v1839 = vpop.permute.xlu0 %1838
  %1840 = vrot.lane.b32.xlu0 %v391, 127
  %v1841 = vpop.permute.xlu0 %1840
  %1842 = vrot.lane.b32.xlu0 %v395, 127
  %v1843 = vpop.permute.xlu0 %1842
  %1844 = vrot.lane.b32.xlu0 %v399, 127
  %v1845 = vpop.permute.xlu0 %1844
  %1846 = vrot.lane.b32.xlu0 %v403, 127
  %v1847 = vpop.permute.xlu0 %1846
  %1848 = vrot.lane.b32.xlu0 %v407, 127
  %v1849 = vpop.permute.xlu0 %1848
  %1850 = vrot.lane.b32.xlu0 %v411, 127
  %v1851 = vpop.permute.xlu0 %1850
  %1852 = vrot.lane.b32.xlu0 %v415, 127
  %v1853 = vpop.permute.xlu0 %1852
  %1854 = vrot.lane.b32.xlu0 %v419, 127
  %v1855 = vpop.permute.xlu0 %1854
  %vm1856 = vcmp.lt.s32.totalorder %v485, 127
  %v1857 = vsel %vm1856, %v1825, %v1841
  %v1858 = vsel %vm1856, %v1827, %v1843
  %v1859 = vsel %vm1856, %v1829, %v1845
  %v1860 = vsel %vm1856, %v1831, %v1847
  %v1861 = vsel %vm1856, %v1833, %v1849
  %v1862 = vsel %vm1856, %v1835, %v1851
  %v1863 = vsel %vm1856, %v1837, %v1853
  %v1864 = vsel %vm1856, %v1839, %v1855
  %v1865 = vsel %vm1856, %v1809, %v1825
  %v1866 = vsel %vm1856, %v1811, %v1827
  %v1867 = vsel %vm1856, %v1813, %v1829
  %v1868 = vsel %vm1856, %v1815, %v1831
  %v1869 = vsel %vm1856, %v1817, %v1833
  %v1870 = vsel %vm1856, %v1819, %v1835
  %v1871 = vsel %vm1856, %v1821, %v1837
  %v1872 = vsel %vm1856, %v1823, %v1839
  %v1873 = vsel %vm1856, %v1793, %v1809
  %v1874 = vsel %vm1856, %v1795, %v1811
  %v1875 = vsel %vm1856, %v1797, %v1813
  %v1876 = vsel %vm1856, %v1799, %v1815
  %v1877 = vsel %vm1856, %v1801, %v1817
  %v1878 = vsel %vm1856, %v1803, %v1819
  %v1879 = vsel %vm1856, %v1805, %v1821
  %v1880 = vsel %vm1856, %v1807, %v1823
  %v1881 = vsel %vm1856, %v1841, %v1793
  %v1882 = vsel %vm1856, %v1843, %v1795
  %v1883 = vsel %vm1856, %v1845, %v1797
  %v1884 = vsel %vm1856, %v1847, %v1799
  %v1885 = vsel %vm1856, %v1849, %v1801
  %v1886 = vsel %vm1856, %v1851, %v1803
  %v1887 = vsel %vm1856, %v1853, %v1805
  %v1888 = vsel %vm1856, %v1855, %v1807
  %s1889 = scalar_lea.vmem %s2, 5
  %v1890 = vld [vmem:[%s1889] ss:$8 sm:$0xf]
  %v1892 = vlaneseq
  %v1893 = vshrl.u32 %v1892, 7
  %v1894 = vsub.s32 0, %v1893
  %v1895 = vrot.slane %v1890, %v1894
  %v1896 = vlaneseq
  %v1897 = vshrl.u32 %v1896, 7
  %v1898 = vsub.s32 1, %v1897
  %v1899 = vrot.slane %v1890, %v1898
  %v1900 = vlaneseq
  %v1901 = vshrl.u32 %v1900, 7
  %v1902 = vsub.s32 2, %v1901
  %v1903 = vrot.slane %v1890, %v1902
  %v1904 = vlaneseq
  %v1905 = vshrl.u32 %v1904, 7
  %v1906 = vsub.s32 3, %v1905
  %v1907 = vrot.slane %v1890, %v1906
  %v1912 = vmul.f32 %v1873, %v1895
  %v1913 = vmul.f32 %v1865, %v1899
  %v1914 = vmul.f32 %v1857, %v1903
  %v1915 = vmul.f32 %v1881, %v1907
  %v1916 = vmul.f32 %v1874, %v1895
  %v1917 = vmul.f32 %v1866, %v1899
  %v1918 = vmul.f32 %v1858, %v1903
  %v1919 = vmul.f32 %v1882, %v1907
  %v1920 = vmul.f32 %v1875, %v1895
  %v1921 = vmul.f32 %v1867, %v1899
  %v1922 = vmul.f32 %v1859, %v1903
  %v1923 = vmul.f32 %v1883, %v1907
  %v1924 = vmul.f32 %v1876, %v1895
  %v1925 = vmul.f32 %v1868, %v1899
  %v1926 = vmul.f32 %v1860, %v1903
  %v1927 = vmul.f32 %v1884, %v1907
  %v1928 = vmul.f32 %v1877, %v1895
  %v1929 = vmul.f32 %v1869, %v1899
  %v1930 = vmul.f32 %v1861, %v1903
  %v1931 = vmul.f32 %v1885, %v1907
  %v1932 = vmul.f32 %v1878, %v1895
  %v1933 = vmul.f32 %v1870, %v1899
  %v1934 = vmul.f32 %v1862, %v1903
  %v1935 = vmul.f32 %v1886, %v1907
  %v1936 = vmul.f32 %v1879, %v1895
  %v1937 = vmul.f32 %v1871, %v1899
  %v1938 = vmul.f32 %v1863, %v1903
  %v1939 = vmul.f32 %v1887, %v1907
  %v1940 = vmul.f32 %v1880, %v1895
  %v1941 = vmul.f32 %v1872, %v1899
  %v1942 = vmul.f32 %v1864, %v1903
  %v1943 = vmul.f32 %v1888, %v1907
  %s1944 = scalar_lea.vmem %s6, 80
  %v1945 = vld [vmem:[%s1944] sm:$0xf]
  %v1946 = vld [vmem:[%s1944 + $0x4] sm:$0xf]
  %v1947 = vld [vmem:[%s1944 + $0x8] sm:$0xf]
  %v1948 = vld [vmem:[%s1944 + $0xc] sm:$0xf]
  %v1949 = vpack.c.bf16 %v1916, %v1912
  %v1950 = vpack.c.bf16 %v1917, %v1913
  %v1951 = vpack.c.bf16 %v1918, %v1914
  %v1952 = vpack.c.bf16 %v1919, %v1915
  %v1953 = vpack.c.bf16 %v1924, %v1920
  %v1954 = vpack.c.bf16 %v1925, %v1921
  %v1955 = vpack.c.bf16 %v1926, %v1922
  %v1956 = vpack.c.bf16 %v1927, %v1923
  %v1957 = vpack.c.bf16 %v1932, %v1928
  %v1958 = vpack.c.bf16 %v1933, %v1929
  %v1959 = vpack.c.bf16 %v1934, %v1930
  %v1960 = vpack.c.bf16 %v1935, %v1931
  %v1961 = vpack.c.bf16 %v1940, %v1936
  %v1962 = vpack.c.bf16 %v1941, %v1937
  %v1963 = vpack.c.bf16 %v1942, %v1938
  %v1964 = vpack.c.bf16 %v1943, %v1939
  %v1969 = vunpack.c.l.b16 %v1945
  %v1970 = vunpack.c.l.b16 %v1946
  %v1971 = vunpack.c.l.b16 %v1947
  %v1972 = vunpack.c.l.b16 %v1948
  %v1973 = vpack.c.b16 %v1970, %v1969
  %v1974 = vpack.c.b16 %v1972, %v1971
  %v1976 = vsel %vm776, %v1973, 0
  %v1979 = vsel %vm776, %v1974, 0
  %1981 = vmatprep.subr.bf16.mxu0 %v1950
  %1982 = vmatpush1.bf16.msra.mxu0 %v1949
  %1983 = vmatprep.subr.bf16.mxu0 %v1954
  %1984 = vmatpush1.bf16.msra.mxu0 %v1953
  %1985 = vmatprep.subr.bf16.mxu0 %v1958
  %1986 = vmatpush1.bf16.msra.mxu0 %v1957
  %1987 = vmatprep.subr.bf16.mxu0 %v1962
  %1988 = vmatpush1.bf16.msra.mxu0 %v1961
  %1989 = vmatprep.subr.bf16.mxu0 0
  %1990 = vmatpush1.bf16.msra.mxu0 0
  %1991 = vmatprep.subr.bf16.mxu0 0
  %1992 = vmatpush1.bf16.msra.mxu0 0
  %1993 = vmatprep.subr.bf16.mxu0 0
  %1994 = vmatpush1.bf16.msra.mxu0 0
  %1995 = vmatprep.subr.bf16.mxu0 0
  %1996 = vmatpush1.bf16.msra.mxu0 0
  %1997 = vmatprep.subr.bf16.mxu0 0
  %1998 = vmatpush1.bf16.msra.mxu0 0
  %1999 = vmatprep.subr.bf16.mxu0 0
  %2000 = vmatpush1.bf16.msra.mxu0 0
  %2001 = vmatprep.subr.bf16.mxu0 0
  %2002 = vmatpush1.bf16.msra.mxu0 0
  %2003 = vmatprep.subr.bf16.mxu0 0
  %2004 = vmatpush1.bf16.msra.mxu0 0
  %2005 = vmatprep.subr.bf16.mxu0 0
  %2006 = vmatpush1.bf16.msra.mxu0 0
  %2007 = vmatprep.subr.bf16.mxu0 0
  %2008 = vmatpush1.bf16.msra.mxu0 0
  %2009 = vmatprep.subr.bf16.mxu0 0
  %2010 = vmatpush1.bf16.msra.mxu0 0
  %2011 = vmatprep.subr.bf16.mxu0 0
  %2012 = vmatpush1.bf16.msra.mxu0 0
  %2013 = vmatprep.mubr.bf16.mxu0 0
  %2014 = vmatmul.mubr.bf16.gmra.mrb[0].mxu0 %v1976
  %v2015 = vpop.f32.mrb[0].mxu0
  %v2016 = vadd.f32 0.0, %v2015
  %v2017 = vpop.f32.mrb[0].mxu0
  %v2018 = vadd.f32 0.0, %v2017
  %v2019 = vpop.f32.mrb[0].mxu0
  %v2020 = vadd.f32 0.0, %v2019
  %v2021 = vpop.f32.mrb[0].mxu0
  %v2022 = vadd.f32 0.0, %v2021
  %2023 = vmatprep.mubr.bf16.mxu0 0
  %2024 = vmatmul.mubr.bf16.gmra.mrb[0].mxu0 %v1979
  %v2025 = vpop.f32.mrb[0].mxu0
  %v2026 = vadd.f32 0.0, %v2025
  %v2027 = vpop.f32.mrb[0].mxu0
  %v2028 = vadd.f32 0.0, %v2027
  %v2029 = vpop.f32.mrb[0].mxu0
  %v2030 = vadd.f32 0.0, %v2029
  %v2031 = vpop.f32.mrb[0].mxu0
  %v2032 = vadd.f32 0.0, %v2031
  %2033 = vdwg.mxu0
  %2034 = vmatprep.subr.bf16.mxu0 %v1952
  %2035 = vmatpush1.bf16.msra.mxu0 %v1951
  %2036 = vmatprep.subr.bf16.mxu0 %v1956
  %2037 = vmatpush1.bf16.msra.mxu0 %v1955
  %2038 = vmatprep.subr.bf16.mxu0 %v1960
  %2039 = vmatpush1.bf16.msra.mxu0 %v1959
  %2040 = vmatprep.subr.bf16.mxu0 %v1964
  %2041 = vmatpush1.bf16.msra.mxu0 %v1963
  %2042 = vmatprep.subr.bf16.mxu0 0
  %2043 = vmatpush1.bf16.msra.mxu0 0
  %2044 = vmatprep.subr.bf16.mxu0 0
  %2045 = vmatpush1.bf16.msra.mxu0 0
  %2046 = vmatprep.subr.bf16.mxu0 0
  %2047 = vmatpush1.bf16.msra.mxu0 0
  %2048 = vmatprep.subr.bf16.mxu0 0
  %2049 = vmatpush1.bf16.msra.mxu0 0
  %2050 = vmatprep.subr.bf16.mxu0 0
  %2051 = vmatpush1.bf16.msra.mxu0 0
  %2052 = vmatprep.subr.bf16.mxu0 0
  %2053 = vmatpush1.bf16.msra.mxu0 0
  %2054 = vmatprep.subr.bf16.mxu0 0
  %2055 = vmatpush1.bf16.msra.mxu0 0
  %2056 = vmatprep.subr.bf16.mxu0 0
  %2057 = vmatpush1.bf16.msra.mxu0 0
  %2058 = vmatprep.subr.bf16.mxu0 0
  %2059 = vmatpush1.bf16.msra.mxu0 0
  %2060 = vmatprep.subr.bf16.mxu0 0
  %2061 = vmatpush1.bf16.msra.mxu0 0
  %2062 = vmatprep.subr.bf16.mxu0 0
  %2063 = vmatpush1.bf16.msra.mxu0 0
  %2064 = vmatprep.subr.bf16.mxu0 0
  %2065 = vmatpush1.bf16.msra.mxu0 0
  %2066 = vmatprep.mubr.bf16.mxu0 0
  %2067 = vmatmul.mubr.bf16.gmra.mrb[0].mxu0 %v1976
  %v2068 = vpop.f32.mrb[0].mxu0
  %v2069 = vadd.f32 0.0, %v2068
  %v2070 = vpop.f32.mrb[0].mxu0
  %v2071 = vadd.f32 0.0, %v2070
  %v2072 = vpop.f32.mrb[0].mxu0
  %v2073 = vadd.f32 0.0, %v2072
  %v2074 = vpop.f32.mrb[0].mxu0
  %v2075 = vadd.f32 0.0, %v2074
  %2076 = vmatprep.mubr.bf16.mxu0 0
  %2077 = vmatmul.mubr.bf16.gmra.mrb[0].mxu0 %v1979
  %v2078 = vpop.f32.mrb[0].mxu0
  %v2079 = vadd.f32 0.0, %v2078
  %v2080 = vpop.f32.mrb[0].mxu0
  %v2081 = vadd.f32 0.0, %v2080
  %v2082 = vpop.f32.mrb[0].mxu0
  %v2083 = vadd.f32 0.0, %v2082
  %v2084 = vpop.f32.mrb[0].mxu0
  %v2085 = vadd.f32 0.0, %v2084
  %2086 = vdwg.mxu0
  %v2087 = vadd.f32 %v1776, %v2016
  %v2088 = vadd.f32 %v1777, %v2018
  %v2089 = vadd.f32 %v1778, %v2069
  %v2090 = vadd.f32 %v1779, %v2071
  %v2091 = vadd.f32 %v1780, %v2020
  %v2092 = vadd.f32 %v1781, %v2022
  %v2093 = vadd.f32 %v1782, %v2073
  %v2094 = vadd.f32 %v1783, %v2075
  %v2095 = vadd.f32 %v1784, %v2026
  %v2096 = vadd.f32 %v1785, %v2028
  %v2097 = vadd.f32 %v1786, %v2079
  %v2098 = vadd.f32 %v1787, %v2081
  %v2099 = vadd.f32 %v1788, %v2030
  %v2100 = vadd.f32 %v1789, %v2032
  %v2101 = vadd.f32 %v1790, %v2083
  %v2102 = vadd.f32 %v1791, %v2085
  %2103 = vrot.lane.b32.xlu0 %v388, 113
  %v2104 = vpop.permute.xlu0 %2103
  %2105 = vrot.lane.b32.xlu0 %v392, 113
  %v2106 = vpop.permute.xlu0 %2105
  %2107 = vrot.lane.b32.xlu0 %v396, 113
  %v2108 = vpop.permute.xlu0 %2107
  %2109 = vrot.lane.b32.xlu0 %v400, 113
  %v2110 = vpop.permute.xlu0 %2109
  %2111 = vrot.lane.b32.xlu0 %v404, 113
  %v2112 = vpop.permute.xlu0 %2111
  %2113 = vrot.lane.b32.xlu0 %v408, 113
  %v2114 = vpop.permute.xlu0 %2113
  %2115 = vrot.lane.b32.xlu0 %v412, 113
  %v2116 = vpop.permute.xlu0 %2115
  %2117 = vrot.lane.b32.xlu0 %v416, 113
  %v2118 = vpop.permute.xlu0 %2117
  %2119 = vrot.lane.b32.xlu0 %v389, 113
  %v2120 = vpop.permute.xlu0 %2119
  %2121 = vrot.lane.b32.xlu0 %v393, 113
  %v2122 = vpop.permute.xlu0 %2121
  %2123 = vrot.lane.b32.xlu0 %v397, 113
  %v2124 = vpop.permute.xlu0 %2123
  %2125 = vrot.lane.b32.xlu0 %v401, 113
  %v2126 = vpop.permute.xlu0 %2125
  %2127 = vrot.lane.b32.xlu0 %v405, 113
  %v2128 = vpop.permute.xlu0 %2127
  %2129 = vrot.lane.b32.xlu0 %v409, 113
  %v2130 = vpop.permute.xlu0 %2129
  %2131 = vrot.lane.b32.xlu0 %v413, 113
  %v2132 = vpop.permute.xlu0 %2131
  %2133 = vrot.lane.b32.xlu0 %v417, 113
  %v2134 = vpop.permute.xlu0 %2133
  %2135 = vrot.lane.b32.xlu0 %v390, 113
  %v2136 = vpop.permute.xlu0 %2135
  %2137 = vrot.lane.b32.xlu0 %v394, 113
  %v2138 = vpop.permute.xlu0 %2137
  %2139 = vrot.lane.b32.xlu0 %v398, 113
  %v2140 = vpop.permute.xlu0 %2139
  %2141 = vrot.lane.b32.xlu0 %v402, 113
  %v2142 = vpop.permute.xlu0 %2141
  %2143 = vrot.lane.b32.xlu0 %v406, 113
  %v2144 = vpop.permute.xlu0 %2143
  %2145 = vrot.lane.b32.xlu0 %v410, 113
  %v2146 = vpop.permute.xlu0 %2145
  %2147 = vrot.lane.b32.xlu0 %v414, 113
  %v2148 = vpop.permute.xlu0 %2147
  %2149 = vrot.lane.b32.xlu0 %v418, 113
  %v2150 = vpop.permute.xlu0 %2149
  %2151 = vrot.lane.b32.xlu0 %v391, 113
  %v2152 = vpop.permute.xlu0 %2151
  %2153 = vrot.lane.b32.xlu0 %v395, 113
  %v2154 = vpop.permute.xlu0 %2153
  %2155 = vrot.lane.b32.xlu0 %v399, 113
  %v2156 = vpop.permute.xlu0 %2155
  %2157 = vrot.lane.b32.xlu0 %v403, 113
  %v2158 = vpop.permute.xlu0 %2157
  %2159 = vrot.lane.b32.xlu0 %v407, 113
  %v2160 = vpop.permute.xlu0 %2159
  %2161 = vrot.lane.b32.xlu0 %v411, 113
  %v2162 = vpop.permute.xlu0 %2161
  %2163 = vrot.lane.b32.xlu0 %v415, 113
  %v2164 = vpop.permute.xlu0 %2163
  %2165 = vrot.lane.b32.xlu0 %v419, 113
  %v2166 = vpop.permute.xlu0 %2165
  %vm2167 = vcmp.lt.s32.totalorder %v485, 113
  %v2168 = vsel %vm2167, %v2136, %v2152
  %v2169 = vsel %vm2167, %v2138, %v2154
  %v2170 = vsel %vm2167, %v2140, %v2156
  %v2171 = vsel %vm2167, %v2142, %v2158
  %v2172 = vsel %vm2167, %v2144, %v2160
  %v2173 = vsel %vm2167, %v2146, %v2162
  %v2174 = vsel %vm2167, %v2148, %v2164
  %v2175 = vsel %vm2167, %v2150, %v2166
  %v2176 = vsel %vm2167, %v2120, %v2136
  %v2177 = vsel %vm2167, %v2122, %v2138
  %v2178 = vsel %vm2167, %v2124, %v2140
  %v2179 = vsel %vm2167, %v2126, %v2142
  %v2180 = vsel %vm2167, %v2128, %v2144
  %v2181 = vsel %vm2167, %v2130, %v2146
  %v2182 = vsel %vm2167, %v2132, %v2148
  %v2183 = vsel %vm2167, %v2134, %v2150
  %v2184 = vsel %vm2167, %v2104, %v2120
  %v2185 = vsel %vm2167, %v2106, %v2122
  %v2186 = vsel %vm2167, %v2108, %v2124
  %v2187 = vsel %vm2167, %v2110, %v2126
  %v2188 = vsel %vm2167, %v2112, %v2128
  %v2189 = vsel %vm2167, %v2114, %v2130
  %v2190 = vsel %vm2167, %v2116, %v2132
  %v2191 = vsel %vm2167, %v2118, %v2134
  %v2192 = vsel %vm2167, %v2152, %v2104
  %v2193 = vsel %vm2167, %v2154, %v2106
  %v2194 = vsel %vm2167, %v2156, %v2108
  %v2195 = vsel %vm2167, %v2158, %v2110
  %v2196 = vsel %vm2167, %v2160, %v2112
  %v2197 = vsel %vm2167, %v2162, %v2114
  %v2198 = vsel %vm2167, %v2164, %v2116
  %v2199 = vsel %vm2167, %v2166, %v2118
  %s2200 = scalar_lea.vmem %s2, 6
  %v2201 = vld [vmem:[%s2200] ss:$8 sm:$0xf]
  %v2203 = vlaneseq
  %v2204 = vshrl.u32 %v2203, 7
  %v2205 = vsub.s32 0, %v2204
  %v2206 = vrot.slane %v2201, %v2205
  %v2207 = vlaneseq
  %v2208 = vshrl.u32 %v2207, 7
  %v2209 = vsub.s32 1, %v2208
  %v2210 = vrot.slane %v2201, %v2209
  %v2211 = vlaneseq
  %v2212 = vshrl.u32 %v2211, 7
  %v2213 = vsub.s32 2, %v2212
  %v2214 = vrot.slane %v2201, %v2213
  %v2215 = vlaneseq
  %v2216 = vshrl.u32 %v2215, 7
  %v2217 = vsub.s32 3, %v2216
  %v2218 = vrot.slane %v2201, %v2217
  %v2223 = vmul.f32 %v2184, %v2206
  %v2224 = vmul.f32 %v2176, %v2210
  %v2225 = vmul.f32 %v2168, %v2214
  %v2226 = vmul.f32 %v2192, %v2218
  %v2227 = vmul.f32 %v2185, %v2206
  %v2228 = vmul.f32 %v2177, %v2210
  %v2229 = vmul.f32 %v2169, %v2214
  %v2230 = vmul.f32 %v2193, %v2218
  %v2231 = vmul.f32 %v2186, %v2206
  %v2232 = vmul.f32 %v2178, %v2210
  %v2233 = vmul.f32 %v2170, %v2214
  %v2234 = vmul.f32 %v2194, %v2218
  %v2235 = vmul.f32 %v2187, %v2206
  %v2236 = vmul.f32 %v2179, %v2210
  %v2237 = vmul.f32 %v2171, %v2214
  %v2238 = vmul.f32 %v2195, %v2218
  %v2239 = vmul.f32 %v2188, %v2206
  %v2240 = vmul.f32 %v2180, %v2210
  %v2241 = vmul.f32 %v2172, %v2214
  %v2242 = vmul.f32 %v2196, %v2218
  %v2243 = vmul.f32 %v2189, %v2206
  %v2244 = vmul.f32 %v2181, %v2210
  %v2245 = vmul.f32 %v2173, %v2214
  %v2246 = vmul.f32 %v2197, %v2218
  %v2247 = vmul.f32 %v2190, %v2206
  %v2248 = vmul.f32 %v2182, %v2210
  %v2249 = vmul.f32 %v2174, %v2214
  %v2250 = vmul.f32 %v2198, %v2218
  %v2251 = vmul.f32 %v2191, %v2206
  %v2252 = vmul.f32 %v2183, %v2210
  %v2253 = vmul.f32 %v2175, %v2214
  %v2254 = vmul.f32 %v2199, %v2218
  %s2255 = scalar_lea.vmem %s6, 96
  %v2256 = vld [vmem:[%s2255] sm:$0xf]
  %v2257 = vld [vmem:[%s2255 + $0x4] sm:$0xf]
  %v2258 = vld [vmem:[%s2255 + $0x8] sm:$0xf]
  %v2259 = vld [vmem:[%s2255 + $0xc] sm:$0xf]
  %v2260 = vpack.c.bf16 %v2227, %v2223
  %v2261 = vpack.c.bf16 %v2228, %v2224
  %v2262 = vpack.c.bf16 %v2229, %v2225
  %v2263 = vpack.c.bf16 %v2230, %v2226
  %v2264 = vpack.c.bf16 %v2235, %v2231
  %v2265 = vpack.c.bf16 %v2236, %v2232
  %v2266 = vpack.c.bf16 %v2237, %v2233
  %v2267 = vpack.c.bf16 %v2238, %v2234
  %v2268 = vpack.c.bf16 %v2243, %v2239
  %v2269 = vpack.c.bf16 %v2244, %v2240
  %v2270 = vpack.c.bf16 %v2245, %v2241
  %v2271 = vpack.c.bf16 %v2246, %v2242
  %v2272 = vpack.c.bf16 %v2251, %v2247
  %v2273 = vpack.c.bf16 %v2252, %v2248
  %v2274 = vpack.c.bf16 %v2253, %v2249
  %v2275 = vpack.c.bf16 %v2254, %v2250
  %v2280 = vunpack.c.l.b16 %v2256
  %v2281 = vunpack.c.l.b16 %v2257
  %v2282 = vunpack.c.l.b16 %v2258
  %v2283 = vunpack.c.l.b16 %v2259
  %v2284 = vpack.c.b16 %v2281, %v2280
  %v2285 = vpack.c.b16 %v2283, %v2282
  %v2287 = vsel %vm776, %v2284, 0
  %v2290 = vsel %vm776, %v2285, 0
  %2292 = vmatprep.subr.bf16.mxu0 %v2261
  %2293 = vmatpush1.bf16.msra.mxu0 %v2260
  %2294 = vmatprep.subr.bf16.mxu0 %v2265
  %2295 = vmatpush1.bf16.msra.mxu0 %v2264
  %2296 = vmatprep.subr.bf16.mxu0 %v2269
  %2297 = vmatpush1.bf16.msra.mxu0 %v2268
  %2298 = vmatprep.subr.bf16.mxu0 %v2273
  %2299 = vmatpush1.bf16.msra.mxu0 %v2272
  %2300 = vmatprep.subr.bf16.mxu0 0
  %2301 = vmatpush1.bf16.msra.mxu0 0
  %2302 = vmatprep.subr.bf16.mxu0 0
  %2303 = vmatpush1.bf16.msra.mxu0 0
  %2304 = vmatprep.subr.bf16.mxu0 0
  %2305 = vmatpush1.bf16.msra.mxu0 0
  %2306 = vmatprep.subr.bf16.mxu0 0
  %2307 = vmatpush1.bf16.msra.mxu0 0
  %2308 = vmatprep.subr.bf16.mxu0 0
  %2309 = vmatpush1.bf16.msra.mxu0 0
  %2310 = vmatprep.subr.bf16.mxu0 0
  %2311 = vmatpush1.bf16.msra.mxu0 0
  %2312 = vmatprep.subr.bf16.mxu0 0
  %2313 = vmatpush1.bf16.msra.mxu0 0
  %2314 = vmatprep.subr.bf16.mxu0 0
  %2315 = vmatpush1.bf16.msra.mxu0 0
  %2316 = vmatprep.subr.bf16.mxu0 0
  %2317 = vmatpush1.bf16.msra.mxu0 0
  %2318 = vmatprep.subr.bf16.mxu0 0
  %2319 = vmatpush1.bf16.msra.mxu0 0
  %2320 = vmatprep.subr.bf16.mxu0 0
  %2321 = vmatpush1.bf16.msra.mxu0 0
  %2322 = vmatprep.subr.bf16.mxu0 0
  %2323 = vmatpush1.bf16.msra.mxu0 0
  %2324 = vmatprep.mubr.bf16.mxu0 0
  %2325 = vmatmul.mubr.bf16.gmra.mrb[0].mxu0 %v2287
  %v2326 = vpop.f32.mrb[0].mxu0
  %v2327 = vadd.f32 0.0, %v2326
  %v2328 = vpop.f32.mrb[0].mxu0
  %v2329 = vadd.f32 0.0, %v2328
  %v2330 = vpop.f32.mrb[0].mxu0
  %v2331 = vadd.f32 0.0, %v2330
  %v2332 = vpop.f32.mrb[0].mxu0
  %v2333 = vadd.f32 0.0, %v2332
  %2334 = vmatprep.mubr.bf16.mxu0 0
  %2335 = vmatmul.mubr.bf16.gmra.mrb[0].mxu0 %v2290
  %v2336 = vpop.f32.mrb[0].mxu0
  %v2337 = vadd.f32 0.0, %v2336
  %v2338 = vpop.f32.mrb[0].mxu0
  %v2339 = vadd.f32 0.0, %v2338
  %v2340 = vpop.f32.mrb[0].mxu0
  %v2341 = vadd.f32 0.0, %v2340
  %v2342 = vpop.f32.mrb[0].mxu0
  %v2343 = vadd.f32 0.0, %v2342
  %2344 = vdwg.mxu0
  %2345 = vmatprep.subr.bf16.mxu0 %v2263
  %2346 = vmatpush1.bf16.msra.mxu0 %v2262
  %2347 = vmatprep.subr.bf16.mxu0 %v2267
  %2348 = vmatpush1.bf16.msra.mxu0 %v2266
  %2349 = vmatprep.subr.bf16.mxu0 %v2271
  %2350 = vmatpush1.bf16.msra.mxu0 %v2270
  %2351 = vmatprep.subr.bf16.mxu0 %v2275
  %2352 = vmatpush1.bf16.msra.mxu0 %v2274
  %2353 = vmatprep.subr.bf16.mxu0 0
  %2354 = vmatpush1.bf16.msra.mxu0 0
  %2355 = vmatprep.subr.bf16.mxu0 0
  %2356 = vmatpush1.bf16.msra.mxu0 0
  %2357 = vmatprep.subr.bf16.mxu0 0
  %2358 = vmatpush1.bf16.msra.mxu0 0
  %2359 = vmatprep.subr.bf16.mxu0 0
  %2360 = vmatpush1.bf16.msra.mxu0 0
  %2361 = vmatprep.subr.bf16.mxu0 0
  %2362 = vmatpush1.bf16.msra.mxu0 0
  %2363 = vmatprep.subr.bf16.mxu0 0
  %2364 = vmatpush1.bf16.msra.mxu0 0
  %2365 = vmatprep.subr.bf16.mxu0 0
  %2366 = vmatpush1.bf16.msra.mxu0 0
  %2367 = vmatprep.subr.bf16.mxu0 0
  %2368 = vmatpush1.bf16.msra.mxu0 0
  %2369 = vmatprep.subr.bf16.mxu0 0
  %2370 = vmatpush1.bf16.msra.mxu0 0
  %2371 = vmatprep.subr.bf16.mxu0 0
  %2372 = vmatpush1.bf16.msra.mxu0 0
  %2373 = vmatprep.subr.bf16.mxu0 0
  %2374 = vmatpush1.bf16.msra.mxu0 0
  %2375 = vmatprep.subr.bf16.mxu0 0
  %2376 = vmatpush1.bf16.msra.mxu0 0
  %2377 = vmatprep.mubr.bf16.mxu0 0
  %2378 = vmatmul.mubr.bf16.gmra.mrb[0].mxu0 %v2287
  %v2379 = vpop.f32.mrb[0].mxu0
  %v2380 = vadd.f32 0.0, %v2379
  %v2381 = vpop.f32.mrb[0].mxu0
  %v2382 = vadd.f32 0.0, %v2381
  %v2383 = vpop.f32.mrb[0].mxu0
  %v2384 = vadd.f32 0.0, %v2383
  %v2385 = vpop.f32.mrb[0].mxu0
  %v2386 = vadd.f32 0.0, %v2385
  %2387 = vmatprep.mubr.bf16.mxu0 0
  %2388 = vmatmul.mubr.bf16.gmra.mrb[0].mxu0 %v2290
  %v2389 = vpop.f32.mrb[0].mxu0
  %v2390 = vadd.f32 0.0, %v2389
  %v2391 = vpop.f32.mrb[0].mxu0
  %v2392 = vadd.f32 0.0, %v2391
  %v2393 = vpop.f32.mrb[0].mxu0
  %v2394 = vadd.f32 0.0, %v2393
  %v2395 = vpop.f32.mrb[0].mxu0
  %v2396 = vadd.f32 0.0, %v2395
  %2397 = vdwg.mxu0
  %v2398 = vadd.f32 %v2087, %v2327
  %v2399 = vadd.f32 %v2088, %v2329
  %v2400 = vadd.f32 %v2089, %v2380
  %v2401 = vadd.f32 %v2090, %v2382
  %v2402 = vadd.f32 %v2091, %v2331
  %v2403 = vadd.f32 %v2092, %v2333
  %v2404 = vadd.f32 %v2093, %v2384
  %v2405 = vadd.f32 %v2094, %v2386
  %v2406 = vadd.f32 %v2095, %v2337
  %v2407 = vadd.f32 %v2096, %v2339
  %v2408 = vadd.f32 %v2097, %v2390
  %v2409 = vadd.f32 %v2098, %v2392
  %v2410 = vadd.f32 %v2099, %v2341
  %v2411 = vadd.f32 %v2100, %v2343
  %v2412 = vadd.f32 %v2101, %v2394
  %v2413 = vadd.f32 %v2102, %v2396
  %2414 = vrot.lane.b32.xlu0 %v388, 112
  %v2415 = vpop.permute.xlu0 %2414
  %2416 = vrot.lane.b32.xlu0 %v392, 112
  %v2417 = vpop.permute.xlu0 %2416
  %2418 = vrot.lane.b32.xlu0 %v396, 112
  %v2419 = vpop.permute.xlu0 %2418
  %2420 = vrot.lane.b32.xlu0 %v400, 112
  %v2421 = vpop.permute.xlu0 %2420
  %2422 = vrot.lane.b32.xlu0 %v404, 112
  %v2423 = vpop.permute.xlu0 %2422
  %2424 = vrot.lane.b32.xlu0 %v408, 112
  %v2425 = vpop.permute.xlu0 %2424
  %2426 = vrot.lane.b32.xlu0 %v412, 112
  %v2427 = vpop.permute.xlu0 %2426
  %2428 = vrot.lane.b32.xlu0 %v416, 112
  %v2429 = vpop.permute.xlu0 %2428
  %2430 = vrot.lane.b32.xlu0 %v389, 112
  %v2431 = vpop.permute.xlu0 %2430
  %2432 = vrot.lane.b32.xlu0 %v393, 112
  %v2433 = vpop.permute.xlu0 %2432
  %2434 = vrot.lane.b32.xlu0 %v397, 112
  %v2435 = vpop.permute.xlu0 %2434
  %2436 = vrot.lane.b32.xlu0 %v401, 112
  %v2437 = vpop.permute.xlu0 %2436
  %2438 = vrot.lane.b32.xlu0 %v405, 112
  %v2439 = vpop.permute.xlu0 %2438
  %2440 = vrot.lane.b32.xlu0 %v409, 112
  %v2441 = vpop.permute.xlu0 %2440
  %2442 = vrot.lane.b32.xlu0 %v413, 112
  %v2443 = vpop.permute.xlu0 %2442
  %2444 = vrot.lane.b32.xlu0 %v417, 112
  %v2445 = vpop.permute.xlu0 %2444
  %2446 = vrot.lane.b32.xlu0 %v390, 112
  %v2447 = vpop.permute.xlu0 %2446
  %2448 = vrot.lane.b32.xlu0 %v394, 112
  %v2449 = vpop.permute.xlu0 %2448
  %2450 = vrot.lane.b32.xlu0 %v398, 112
  %v2451 = vpop.permute.xlu0 %2450
  %2452 = vrot.lane.b32.xlu0 %v402, 112
  %v2453 = vpop.permute.xlu0 %2452
  %2454 = vrot.lane.b32.xlu0 %v406, 112
  %v2455 = vpop.permute.xlu0 %2454
  %2456 = vrot.lane.b32.xlu0 %v410, 112
  %v2457 = vpop.permute.xlu0 %2456
  %2458 = vrot.lane.b32.xlu0 %v414, 112
  %v2459 = vpop.permute.xlu0 %2458
  %2460 = vrot.lane.b32.xlu0 %v418, 112
  %v2461 = vpop.permute.xlu0 %2460
  %2462 = vrot.lane.b32.xlu0 %v391, 112
  %v2463 = vpop.permute.xlu0 %2462
  %2464 = vrot.lane.b32.xlu0 %v395, 112
  %v2465 = vpop.permute.xlu0 %2464
  %2466 = vrot.lane.b32.xlu0 %v399, 112
  %v2467 = vpop.permute.xlu0 %2466
  %2468 = vrot.lane.b32.xlu0 %v403, 112
  %v2469 = vpop.permute.xlu0 %2468
  %2470 = vrot.lane.b32.xlu0 %v407, 112
  %v2471 = vpop.permute.xlu0 %2470
  %2472 = vrot.lane.b32.xlu0 %v411, 112
  %v2473 = vpop.permute.xlu0 %2472
  %2474 = vrot.lane.b32.xlu0 %v415, 112
  %v2475 = vpop.permute.xlu0 %2474
  %2476 = vrot.lane.b32.xlu0 %v419, 112
  %v2477 = vpop.permute.xlu0 %2476
  %vm2478 = vcmp.lt.s32.totalorder %v485, 112
  %v2479 = vsel %vm2478, %v2447, %v2463
  %v2480 = vsel %vm2478, %v2449, %v2465
  %v2481 = vsel %vm2478, %v2451, %v2467
  %v2482 = vsel %vm2478, %v2453, %v2469
  %v2483 = vsel %vm2478, %v2455, %v2471
  %v2484 = vsel %vm2478, %v2457, %v2473
  %v2485 = vsel %vm2478, %v2459, %v2475
  %v2486 = vsel %vm2478, %v2461, %v2477
  %v2487 = vsel %vm2478, %v2431, %v2447
  %v2488 = vsel %vm2478, %v2433, %v2449
  %v2489 = vsel %vm2478, %v2435, %v2451
  %v2490 = vsel %vm2478, %v2437, %v2453
  %v2491 = vsel %vm2478, %v2439, %v2455
  %v2492 = vsel %vm2478, %v2441, %v2457
  %v2493 = vsel %vm2478, %v2443, %v2459
  %v2494 = vsel %vm2478, %v2445, %v2461
  %v2495 = vsel %vm2478, %v2415, %v2431
  %v2496 = vsel %vm2478, %v2417, %v2433
  %v2497 = vsel %vm2478, %v2419, %v2435
  %v2498 = vsel %vm2478, %v2421, %v2437
  %v2499 = vsel %vm2478, %v2423, %v2439
  %v2500 = vsel %vm2478, %v2425, %v2441
  %v2501 = vsel %vm2478, %v2427, %v2443
  %v2502 = vsel %vm2478, %v2429, %v2445
  %v2503 = vsel %vm2478, %v2463, %v2415
  %v2504 = vsel %vm2478, %v2465, %v2417
  %v2505 = vsel %vm2478, %v2467, %v2419
  %v2506 = vsel %vm2478, %v2469, %v2421
  %v2507 = vsel %vm2478, %v2471, %v2423
  %v2508 = vsel %vm2478, %v2473, %v2425
  %v2509 = vsel %vm2478, %v2475, %v2427
  %v2510 = vsel %vm2478, %v2477, %v2429
  %s2511 = scalar_lea.vmem %s2, 7
  %v2512 = vld [vmem:[%s2511] ss:$8 sm:$0xf]
  %v2514 = vlaneseq
  %v2515 = vshrl.u32 %v2514, 7
  %v2516 = vsub.s32 0, %v2515
  %v2517 = vrot.slane %v2512, %v2516
  %v2518 = vlaneseq
  %v2519 = vshrl.u32 %v2518, 7
  %v2520 = vsub.s32 1, %v2519
  %v2521 = vrot.slane %v2512, %v2520
  %v2522 = vlaneseq
  %v2523 = vshrl.u32 %v2522, 7
  %v2524 = vsub.s32 2, %v2523
  %v2525 = vrot.slane %v2512, %v2524
  %v2526 = vlaneseq
  %v2527 = vshrl.u32 %v2526, 7
  %v2528 = vsub.s32 3, %v2527
  %v2529 = vrot.slane %v2512, %v2528
  %v2534 = vmul.f32 %v2495, %v2517
  %v2535 = vmul.f32 %v2487, %v2521
  %v2536 = vmul.f32 %v2479, %v2525
  %v2537 = vmul.f32 %v2503, %v2529
  %v2538 = vmul.f32 %v2496, %v2517
  %v2539 = vmul.f32 %v2488, %v2521
  %v2540 = vmul.f32 %v2480, %v2525
  %v2541 = vmul.f32 %v2504, %v2529
  %v2542 = vmul.f32 %v2497, %v2517
  %v2543 = vmul.f32 %v2489, %v2521
  %v2544 = vmul.f32 %v2481, %v2525
  %v2545 = vmul.f32 %v2505, %v2529
  %v2546 = vmul.f32 %v2498, %v2517
  %v2547 = vmul.f32 %v2490, %v2521
  %v2548 = vmul.f32 %v2482, %v2525
  %v2549 = vmul.f32 %v2506, %v2529
  %v2550 = vmul.f32 %v2499, %v2517
  %v2551 = vmul.f32 %v2491, %v2521
  %v2552 = vmul.f32 %v2483, %v2525
  %v2553 = vmul.f32 %v2507, %v2529
  %v2554 = vmul.f32 %v2500, %v2517
  %v2555 = vmul.f32 %v2492, %v2521
  %v2556 = vmul.f32 %v2484, %v2525
  %v2557 = vmul.f32 %v2508, %v2529
  %v2558 = vmul.f32 %v2501, %v2517
  %v2559 = vmul.f32 %v2493, %v2521
  %v2560 = vmul.f32 %v2485, %v2525
  %v2561 = vmul.f32 %v2509, %v2529
  %v2562 = vmul.f32 %v2502, %v2517
  %v2563 = vmul.f32 %v2494, %v2521
  %v2564 = vmul.f32 %v2486, %v2525
  %v2565 = vmul.f32 %v2510, %v2529
  %s2566 = scalar_lea.vmem %s6, 112
  %v2567 = vld [vmem:[%s2566] sm:$0xf]
  %v2568 = vld [vmem:[%s2566 + $0x4] sm:$0xf]
  %v2569 = vld [vmem:[%s2566 + $0x8] sm:$0xf]
  %v2570 = vld [vmem:[%s2566 + $0xc] sm:$0xf]
  %v2571 = vpack.c.bf16 %v2538, %v2534
  %v2572 = vpack.c.bf16 %v2539, %v2535
  %v2573 = vpack.c.bf16 %v2540, %v2536
  %v2574 = vpack.c.bf16 %v2541, %v2537
  %v2575 = vpack.c.bf16 %v2546, %v2542
  %v2576 = vpack.c.bf16 %v2547, %v2543
  %v2577 = vpack.c.bf16 %v2548, %v2544
  %v2578 = vpack.c.bf16 %v2549, %v2545
  %v2579 = vpack.c.bf16 %v2554, %v2550
  %v2580 = vpack.c.bf16 %v2555, %v2551
  %v2581 = vpack.c.bf16 %v2556, %v2552
  %v2582 = vpack.c.bf16 %v2557, %v2553
  %v2583 = vpack.c.bf16 %v2562, %v2558
  %v2584 = vpack.c.bf16 %v2563, %v2559
  %v2585 = vpack.c.bf16 %v2564, %v2560
  %v2586 = vpack.c.bf16 %v2565, %v2561
  %v2591 = vunpack.c.l.b16 %v2567
  %v2592 = vunpack.c.l.b16 %v2568
  %v2593 = vunpack.c.l.b16 %v2569
  %v2594 = vunpack.c.l.b16 %v2570
  %v2595 = vpack.c.b16 %v2592, %v2591
  %v2596 = vpack.c.b16 %v2594, %v2593
  %v2598 = vsel %vm776, %v2595, 0
  %v2601 = vsel %vm776, %v2596, 0
  %2603 = vmatprep.subr.bf16.mxu0 %v2572
  %2604 = vmatpush1.bf16.msra.mxu0 %v2571
  %2605 = vmatprep.subr.bf16.mxu0 %v2576
  %2606 = vmatpush1.bf16.msra.mxu0 %v2575
  %2607 = vmatprep.subr.bf16.mxu0 %v2580
  %2608 = vmatpush1.bf16.msra.mxu0 %v2579
  %2609 = vmatprep.subr.bf16.mxu0 %v2584
  %2610 = vmatpush1.bf16.msra.mxu0 %v2583
  %2611 = vmatprep.subr.bf16.mxu0 0
  %2612 = vmatpush1.bf16.msra.mxu0 0
  %2613 = vmatprep.subr.bf16.mxu0 0
  %2614 = vmatpush1.bf16.msra.mxu0 0
  %2615 = vmatprep.subr.bf16.mxu0 0
  %2616 = vmatpush1.bf16.msra.mxu0 0
  %2617 = vmatprep.subr.bf16.mxu0 0
  %2618 = vmatpush1.bf16.msra.mxu0 0
  %2619 = vmatprep.subr.bf16.mxu0 0
  %2620 = vmatpush1.bf16.msra.mxu0 0
  %2621 = vmatprep.subr.bf16.mxu0 0
  %2622 = vmatpush1.bf16.msra.mxu0 0
  %2623 = vmatprep.subr.bf16.mxu0 0
  %2624 = vmatpush1.bf16.msra.mxu0 0
  %2625 = vmatprep.subr.bf16.mxu0 0
  %2626 = vmatpush1.bf16.msra.mxu0 0
  %2627 = vmatprep.subr.bf16.mxu0 0
  %2628 = vmatpush1.bf16.msra.mxu0 0
  %2629 = vmatprep.subr.bf16.mxu0 0
  %2630 = vmatpush1.bf16.msra.mxu0 0
  %2631 = vmatprep.subr.bf16.mxu0 0
  %2632 = vmatpush1.bf16.msra.mxu0 0
  %2633 = vmatprep.subr.bf16.mxu0 0
  %2634 = vmatpush1.bf16.msra.mxu0 0
  %2635 = vmatprep.mubr.bf16.mxu0 0
  %2636 = vmatmul.mubr.bf16.gmra.mrb[0].mxu0 %v2598
  %v2637 = vpop.f32.mrb[0].mxu0
  %v2638 = vadd.f32 0.0, %v2637
  %v2639 = vpop.f32.mrb[0].mxu0
  %v2640 = vadd.f32 0.0, %v2639
  %v2641 = vpop.f32.mrb[0].mxu0
  %v2642 = vadd.f32 0.0, %v2641
  %v2643 = vpop.f32.mrb[0].mxu0
  %v2644 = vadd.f32 0.0, %v2643
  %2645 = vmatprep.mubr.bf16.mxu0 0
  %2646 = vmatmul.mubr.bf16.gmra.mrb[0].mxu0 %v2601
  %v2647 = vpop.f32.mrb[0].mxu0
  %v2648 = vadd.f32 0.0, %v2647
  %v2649 = vpop.f32.mrb[0].mxu0
  %v2650 = vadd.f32 0.0, %v2649
  %v2651 = vpop.f32.mrb[0].mxu0
  %v2652 = vadd.f32 0.0, %v2651
  %v2653 = vpop.f32.mrb[0].mxu0
  %v2654 = vadd.f32 0.0, %v2653
  %2655 = vdwg.mxu0
  %2656 = vmatprep.subr.bf16.mxu0 %v2574
  %2657 = vmatpush1.bf16.msra.mxu0 %v2573
  %2658 = vmatprep.subr.bf16.mxu0 %v2578
  %2659 = vmatpush1.bf16.msra.mxu0 %v2577
  %2660 = vmatprep.subr.bf16.mxu0 %v2582
  %2661 = vmatpush1.bf16.msra.mxu0 %v2581
  %2662 = vmatprep.subr.bf16.mxu0 %v2586
  %2663 = vmatpush1.bf16.msra.mxu0 %v2585
  %2664 = vmatprep.subr.bf16.mxu0 0
  %2665 = vmatpush1.bf16.msra.mxu0 0
  %2666 = vmatprep.subr.bf16.mxu0 0
  %2667 = vmatpush1.bf16.msra.mxu0 0
  %2668 = vmatprep.subr.bf16.mxu0 0
  %2669 = vmatpush1.bf16.msra.mxu0 0
  %2670 = vmatprep.subr.bf16.mxu0 0
  %2671 = vmatpush1.bf16.msra.mxu0 0
  %2672 = vmatprep.subr.bf16.mxu0 0
  %2673 = vmatpush1.bf16.msra.mxu0 0
  %2674 = vmatprep.subr.bf16.mxu0 0
  %2675 = vmatpush1.bf16.msra.mxu0 0
  %2676 = vmatprep.subr.bf16.mxu0 0
  %2677 = vmatpush1.bf16.msra.mxu0 0
  %2678 = vmatprep.subr.bf16.mxu0 0
  %2679 = vmatpush1.bf16.msra.mxu0 0
  %2680 = vmatprep.subr.bf16.mxu0 0
  %2681 = vmatpush1.bf16.msra.mxu0 0
  %2682 = vmatprep.subr.bf16.mxu0 0
  %2683 = vmatpush1.bf16.msra.mxu0 0
  %2684 = vmatprep.subr.bf16.mxu0 0
  %2685 = vmatpush1.bf16.msra.mxu0 0
  %2686 = vmatprep.subr.bf16.mxu0 0
  %2687 = vmatpush1.bf16.msra.mxu0 0
  %2688 = vmatprep.mubr.bf16.mxu0 0
  %2689 = vmatmul.mubr.bf16.gmra.mrb[0].mxu0 %v2598
  %v2690 = vpop.f32.mrb[0].mxu0
  %v2691 = vadd.f32 0.0, %v2690
  %v2692 = vpop.f32.mrb[0].mxu0
  %v2693 = vadd.f32 0.0, %v2692
  %v2694 = vpop.f32.mrb[0].mxu0
  %v2695 = vadd.f32 0.0, %v2694
  %v2696 = vpop.f32.mrb[0].mxu0
  %v2697 = vadd.f32 0.0, %v2696
  %2698 = vmatprep.mubr.bf16.mxu0 0
  %2699 = vmatmul.mubr.bf16.gmra.mrb[0].mxu0 %v2601
  %v2700 = vpop.f32.mrb[0].mxu0
  %v2701 = vadd.f32 0.0, %v2700
  %v2702 = vpop.f32.mrb[0].mxu0
  %v2703 = vadd.f32 0.0, %v2702
  %v2704 = vpop.f32.mrb[0].mxu0
  %v2705 = vadd.f32 0.0, %v2704
  %v2706 = vpop.f32.mrb[0].mxu0
  %v2707 = vadd.f32 0.0, %v2706
  %2708 = vdwg.mxu0
  %v2709 = vadd.f32 %v2398, %v2638
  %v2710 = vadd.f32 %v2399, %v2640
  %v2711 = vadd.f32 %v2400, %v2691
  %v2712 = vadd.f32 %v2401, %v2693
  %v2713 = vadd.f32 %v2402, %v2642
  %v2714 = vadd.f32 %v2403, %v2644
  %v2715 = vadd.f32 %v2404, %v2695
  %v2716 = vadd.f32 %v2405, %v2697
  %v2717 = vadd.f32 %v2406, %v2648
  %v2718 = vadd.f32 %v2407, %v2650
  %v2719 = vadd.f32 %v2408, %v2701
  %v2720 = vadd.f32 %v2409, %v2703
  %v2721 = vadd.f32 %v2410, %v2652
  %v2722 = vadd.f32 %v2411, %v2654
  %v2723 = vadd.f32 %v2412, %v2705
  %v2724 = vadd.f32 %v2413, %v2707
  %2725 = vrot.lane.b32.xlu0 %v388, 111
  %v2726 = vpop.permute.xlu0 %2725
  %2727 = vrot.lane.b32.xlu0 %v392, 111
  %v2728 = vpop.permute.xlu0 %2727
  %2729 = vrot.lane.b32.xlu0 %v396, 111
  %v2730 = vpop.permute.xlu0 %2729
  %2731 = vrot.lane.b32.xlu0 %v400, 111
  %v2732 = vpop.permute.xlu0 %2731
  %2733 = vrot.lane.b32.xlu0 %v404, 111
  %v2734 = vpop.permute.xlu0 %2733
  %2735 = vrot.lane.b32.xlu0 %v408, 111
  %v2736 = vpop.permute.xlu0 %2735
  %2737 = vrot.lane.b32.xlu0 %v412, 111
  %v2738 = vpop.permute.xlu0 %2737
  %2739 = vrot.lane.b32.xlu0 %v416, 111
  %v2740 = vpop.permute.xlu0 %2739
  %2741 = vrot.lane.b32.xlu0 %v389, 111
  %v2742 = vpop.permute.xlu0 %2741
  %2743 = vrot.lane.b32.xlu0 %v393, 111
  %v2744 = vpop.permute.xlu0 %2743
  %2745 = vrot.lane.b32.xlu0 %v397, 111
  %v2746 = vpop.permute.xlu0 %2745
  %2747 = vrot.lane.b32.xlu0 %v401, 111
  %v2748 = vpop.permute.xlu0 %2747
  %2749 = vrot.lane.b32.xlu0 %v405, 111
  %v2750 = vpop.permute.xlu0 %2749
  %2751 = vrot.lane.b32.xlu0 %v409, 111
  %v2752 = vpop.permute.xlu0 %2751
  %2753 = vrot.lane.b32.xlu0 %v413, 111
  %v2754 = vpop.permute.xlu0 %2753
  %2755 = vrot.lane.b32.xlu0 %v417, 111
  %v2756 = vpop.permute.xlu0 %2755
  %2757 = vrot.lane.b32.xlu0 %v390, 111
  %v2758 = vpop.permute.xlu0 %2757
  %2759 = vrot.lane.b32.xlu0 %v394, 111
  %v2760 = vpop.permute.xlu0 %2759
  %2761 = vrot.lane.b32.xlu0 %v398, 111
  %v2762 = vpop.permute.xlu0 %2761
  %2763 = vrot.lane.b32.xlu0 %v402, 111
  %v2764 = vpop.permute.xlu0 %2763
  %2765 = vrot.lane.b32.xlu0 %v406, 111
  %v2766 = vpop.permute.xlu0 %2765
  %2767 = vrot.lane.b32.xlu0 %v410, 111
  %v2768 = vpop.permute.xlu0 %2767
  %2769 = vrot.lane.b32.xlu0 %v414, 111
  %v2770 = vpop.permute.xlu0 %2769
  %2771 = vrot.lane.b32.xlu0 %v418, 111
  %v2772 = vpop.permute.xlu0 %2771
  %2773 = vrot.lane.b32.xlu0 %v391, 111
  %v2774 = vpop.permute.xlu0 %2773
  %2775 = vrot.lane.b32.xlu0 %v395, 111
  %v2776 = vpop.permute.xlu0 %2775
  %2777 = vrot.lane.b32.xlu0 %v399, 111
  %v2778 = vpop.permute.xlu0 %2777
  %2779 = vrot.lane.b32.xlu0 %v403, 111
  %v2780 = vpop.permute.xlu0 %2779
  %2781 = vrot.lane.b32.xlu0 %v407, 111
  %v2782 = vpop.permute.xlu0 %2781
  %2783 = vrot.lane.b32.xlu0 %v411, 111
  %v2784 = vpop.permute.xlu0 %2783
  %2785 = vrot.lane.b32.xlu0 %v415, 111
  %v2786 = vpop.permute.xlu0 %2785
  %2787 = vrot.lane.b32.xlu0 %v419, 111
  %v2788 = vpop.permute.xlu0 %2787
  %vm2789 = vcmp.lt.s32.totalorder %v485, 111
  %v2790 = vsel %vm2789, %v2758, %v2774
  %v2791 = vsel %vm2789, %v2760, %v2776
  %v2792 = vsel %vm2789, %v2762, %v2778
  %v2793 = vsel %vm2789, %v2764, %v2780
  %v2794 = vsel %vm2789, %v2766, %v2782
  %v2795 = vsel %vm2789, %v2768, %v2784
  %v2796 = vsel %vm2789, %v2770, %v2786
  %v2797 = vsel %vm2789, %v2772, %v2788
  %v2798 = vsel %vm2789, %v2742, %v2758
  %v2799 = vsel %vm2789, %v2744, %v2760
  %v2800 = vsel %vm2789, %v2746, %v2762
  %v2801 = vsel %vm2789, %v2748, %v2764
  %v2802 = vsel %vm2789, %v2750, %v2766
  %v2803 = vsel %vm2789, %v2752, %v2768
  %v2804 = vsel %vm2789, %v2754, %v2770
  %v2805 = vsel %vm2789, %v2756, %v2772
  %v2806 = vsel %vm2789, %v2726, %v2742
  %v2807 = vsel %vm2789, %v2728, %v2744
  %v2808 = vsel %vm2789, %v2730, %v2746
  %v2809 = vsel %vm2789, %v2732, %v2748
  %v2810 = vsel %vm2789, %v2734, %v2750
  %v2811 = vsel %vm2789, %v2736, %v2752
  %v2812 = vsel %vm2789, %v2738, %v2754
  %v2813 = vsel %vm2789, %v2740, %v2756
  %v2814 = vsel %vm2789, %v2774, %v2726
  %v2815 = vsel %vm2789, %v2776, %v2728
  %v2816 = vsel %vm2789, %v2778, %v2730
  %v2817 = vsel %vm2789, %v2780, %v2732
  %v2818 = vsel %vm2789, %v2782, %v2734
  %v2819 = vsel %vm2789, %v2784, %v2736
  %v2820 = vsel %vm2789, %v2786, %v2738
  %v2821 = vsel %vm2789, %v2788, %v2740
  %s2822 = scalar_lea.vmem %s2, 32
  %v2823 = vld [vmem:[%s2822] ss:$8 sm:$0xf]
  %v2825 = vlaneseq
  %v2826 = vshrl.u32 %v2825, 7
  %v2827 = vsub.s32 0, %v2826
  %v2828 = vrot.slane %v2823, %v2827
  %v2829 = vlaneseq
  %v2830 = vshrl.u32 %v2829, 7
  %v2831 = vsub.s32 1, %v2830
  %v2832 = vrot.slane %v2823, %v2831
  %v2833 = vlaneseq
  %v2834 = vshrl.u32 %v2833, 7
  %v2835 = vsub.s32 2, %v2834
  %v2836 = vrot.slane %v2823, %v2835
  %v2837 = vlaneseq
  %v2838 = vshrl.u32 %v2837, 7
  %v2839 = vsub.s32 3, %v2838
  %v2840 = vrot.slane %v2823, %v2839
  %v2845 = vmul.f32 %v2806, %v2828
  %v2846 = vmul.f32 %v2798, %v2832
  %v2847 = vmul.f32 %v2790, %v2836
  %v2848 = vmul.f32 %v2814, %v2840
  %v2849 = vmul.f32 %v2807, %v2828
  %v2850 = vmul.f32 %v2799, %v2832
  %v2851 = vmul.f32 %v2791, %v2836
  %v2852 = vmul.f32 %v2815, %v2840
  %v2853 = vmul.f32 %v2808, %v2828
  %v2854 = vmul.f32 %v2800, %v2832
  %v2855 = vmul.f32 %v2792, %v2836
  %v2856 = vmul.f32 %v2816, %v2840
  %v2857 = vmul.f32 %v2809, %v2828
  %v2858 = vmul.f32 %v2801, %v2832
  %v2859 = vmul.f32 %v2793, %v2836
  %v2860 = vmul.f32 %v2817, %v2840
  %v2861 = vmul.f32 %v2810, %v2828
  %v2862 = vmul.f32 %v2802, %v2832
  %v2863 = vmul.f32 %v2794, %v2836
  %v2864 = vmul.f32 %v2818, %v2840
  %v2865 = vmul.f32 %v2811, %v2828
  %v2866 = vmul.f32 %v2803, %v2832
  %v2867 = vmul.f32 %v2795, %v2836
  %v2868 = vmul.f32 %v2819, %v2840
  %v2869 = vmul.f32 %v2812, %v2828
  %v2870 = vmul.f32 %v2804, %v2832
  %v2871 = vmul.f32 %v2796, %v2836
  %v2872 = vmul.f32 %v2820, %v2840
  %v2873 = vmul.f32 %v2813, %v2828
  %v2874 = vmul.f32 %v2805, %v2832
  %v2875 = vmul.f32 %v2797, %v2836
  %v2876 = vmul.f32 %v2821, %v2840
  %s2877 = scalar_lea.vmem %s6, 128
  %v2878 = vld [vmem:[%s2877] sm:$0xf]
  %v2879 = vld [vmem:[%s2877 + $0x4] sm:$0xf]
  %v2880 = vld [vmem:[%s2877 + $0x8] sm:$0xf]
  %v2881 = vld [vmem:[%s2877 + $0xc] sm:$0xf]
  %v2882 = vpack.c.bf16 %v2849, %v2845
  %v2883 = vpack.c.bf16 %v2850, %v2846
  %v2884 = vpack.c.bf16 %v2851, %v2847
  %v2885 = vpack.c.bf16 %v2852, %v2848
  %v2886 = vpack.c.bf16 %v2857, %v2853
  %v2887 = vpack.c.bf16 %v2858, %v2854
  %v2888 = vpack.c.bf16 %v2859, %v2855
  %v2889 = vpack.c.bf16 %v2860, %v2856
  %v2890 = vpack.c.bf16 %v2865, %v2861
  %v2891 = vpack.c.bf16 %v2866, %v2862
  %v2892 = vpack.c.bf16 %v2867, %v2863
  %v2893 = vpack.c.bf16 %v2868, %v2864
  %v2894 = vpack.c.bf16 %v2873, %v2869
  %v2895 = vpack.c.bf16 %v2874, %v2870
  %v2896 = vpack.c.bf16 %v2875, %v2871
  %v2897 = vpack.c.bf16 %v2876, %v2872
  %v2902 = vunpack.c.l.b16 %v2878
  %v2903 = vunpack.c.l.b16 %v2879
  %v2904 = vunpack.c.l.b16 %v2880
  %v2905 = vunpack.c.l.b16 %v2881
  %v2906 = vpack.c.b16 %v2903, %v2902
  %v2907 = vpack.c.b16 %v2905, %v2904
  %v2909 = vsel %vm776, %v2906, 0
  %v2912 = vsel %vm776, %v2907, 0
  %2914 = vmatprep.subr.bf16.mxu0 %v2883
  %2915 = vmatpush1.bf16.msra.mxu0 %v2882
  %2916 = vmatprep.subr.bf16.mxu0 %v2887
  %2917 = vmatpush1.bf16.msra.mxu0 %v2886
  %2918 = vmatprep.subr.bf16.mxu0 %v2891
  %2919 = vmatpush1.bf16.msra.mxu0 %v2890
  %2920 = vmatprep.subr.bf16.mxu0 %v2895
  %2921 = vmatpush1.bf16.msra.mxu0 %v2894
  %2922 = vmatprep.subr.bf16.mxu0 0
  %2923 = vmatpush1.bf16.msra.mxu0 0
  %2924 = vmatprep.subr.bf16.mxu0 0
  %2925 = vmatpush1.bf16.msra.mxu0 0
  %2926 = vmatprep.subr.bf16.mxu0 0
  %2927 = vmatpush1.bf16.msra.mxu0 0
  %2928 = vmatprep.subr.bf16.mxu0 0
  %2929 = vmatpush1.bf16.msra.mxu0 0
  %2930 = vmatprep.subr.bf16.mxu0 0
  %2931 = vmatpush1.bf16.msra.mxu0 0
  %2932 = vmatprep.subr.bf16.mxu0 0
  %2933 = vmatpush1.bf16.msra.mxu0 0
  %2934 = vmatprep.subr.bf16.mxu0 0
  %2935 = vmatpush1.bf16.msra.mxu0 0
  %2936 = vmatprep.subr.bf16.mxu0 0
  %2937 = vmatpush1.bf16.msra.mxu0 0
  %2938 = vmatprep.subr.bf16.mxu0 0
  %2939 = vmatpush1.bf16.msra.mxu0 0
  %2940 = vmatprep.subr.bf16.mxu0 0
  %2941 = vmatpush1.bf16.msra.mxu0 0
  %2942 = vmatprep.subr.bf16.mxu0 0
  %2943 = vmatpush1.bf16.msra.mxu0 0
  %2944 = vmatprep.subr.bf16.mxu0 0
  %2945 = vmatpush1.bf16.msra.mxu0 0
  %2946 = vmatprep.mubr.bf16.mxu0 0
  %2947 = vmatmul.mubr.bf16.gmra.mrb[0].mxu0 %v2909
  %v2948 = vpop.f32.mrb[0].mxu0
  %v2949 = vadd.f32 0.0, %v2948
  %v2950 = vpop.f32.mrb[0].mxu0
  %v2951 = vadd.f32 0.0, %v2950
  %v2952 = vpop.f32.mrb[0].mxu0
  %v2953 = vadd.f32 0.0, %v2952
  %v2954 = vpop.f32.mrb[0].mxu0
  %v2955 = vadd.f32 0.0, %v2954
  %2956 = vmatprep.mubr.bf16.mxu0 0
  %2957 = vmatmul.mubr.bf16.gmra.mrb[0].mxu0 %v2912
  %v2958 = vpop.f32.mrb[0].mxu0
  %v2959 = vadd.f32 0.0, %v2958
  %v2960 = vpop.f32.mrb[0].mxu0
  %v2961 = vadd.f32 0.0, %v2960
  %v2962 = vpop.f32.mrb[0].mxu0
  %v2963 = vadd.f32 0.0, %v2962
  %v2964 = vpop.f32.mrb[0].mxu0
  %v2965 = vadd.f32 0.0, %v2964
  %2966 = vdwg.mxu0
  %2967 = vmatprep.subr.bf16.mxu0 %v2885
  %2968 = vmatpush1.bf16.msra.mxu0 %v2884
  %2969 = vmatprep.subr.bf16.mxu0 %v2889
  %2970 = vmatpush1.bf16.msra.mxu0 %v2888
  %2971 = vmatprep.subr.bf16.mxu0 %v2893
  %2972 = vmatpush1.bf16.msra.mxu0 %v2892
  %2973 = vmatprep.subr.bf16.mxu0 %v2897
  %2974 = vmatpush1.bf16.msra.mxu0 %v2896
  %2975 = vmatprep.subr.bf16.mxu0 0
  %2976 = vmatpush1.bf16.msra.mxu0 0
  %2977 = vmatprep.subr.bf16.mxu0 0
  %2978 = vmatpush1.bf16.msra.mxu0 0
  %2979 = vmatprep.subr.bf16.mxu0 0
  %2980 = vmatpush1.bf16.msra.mxu0 0
  %2981 = vmatprep.subr.bf16.mxu0 0
  %2982 = vmatpush1.bf16.msra.mxu0 0
  %2983 = vmatprep.subr.bf16.mxu0 0
  %2984 = vmatpush1.bf16.msra.mxu0 0
  %2985 = vmatprep.subr.bf16.mxu0 0
  %2986 = vmatpush1.bf16.msra.mxu0 0
  %2987 = vmatprep.subr.bf16.mxu0 0
  %2988 = vmatpush1.bf16.msra.mxu0 0
  %2989 = vmatprep.subr.bf16.mxu0 0
  %2990 = vmatpush1.bf16.msra.mxu0 0
  %2991 = vmatprep.subr.bf16.mxu0 0
  %2992 = vmatpush1.bf16.msra.mxu0 0
  %2993 = vmatprep.subr.bf16.mxu0 0
  %2994 = vmatpush1.bf16.msra.mxu0 0
  %2995 = vmatprep.subr.bf16.mxu0 0
  %2996 = vmatpush1.bf16.msra.mxu0 0
  %2997 = vmatprep.subr.bf16.mxu0 0
  %2998 = vmatpush1.bf16.msra.mxu0 0
  %2999 = vmatprep.mubr.bf16.mxu0 0
  %3000 = vmatmul.mubr.bf16.gmra.mrb[0].mxu0 %v2909
  %v3001 = vpop.f32.mrb[0].mxu0
  %v3002 = vadd.f32 0.0, %v3001
  %v3003 = vpop.f32.mrb[0].mxu0
  %v3004 = vadd.f32 0.0, %v3003
  %v3005 = vpop.f32.mrb[0].mxu0
  %v3006 = vadd.f32 0.0, %v3005
  %v3007 = vpop.f32.mrb[0].mxu0
  %v3008 = vadd.f32 0.0, %v3007
  %3009 = vmatprep.mubr.bf16.mxu0 0
  %3010 = vmatmul.mubr.bf16.gmra.mrb[0].mxu0 %v2912
  %v3011 = vpop.f32.mrb[0].mxu0
  %v3012 = vadd.f32 0.0, %v3011
  %v3013 = vpop.f32.mrb[0].mxu0
  %v3014 = vadd.f32 0.0, %v3013
  %v3015 = vpop.f32.mrb[0].mxu0
  %v3016 = vadd.f32 0.0, %v3015
  %v3017 = vpop.f32.mrb[0].mxu0
  %v3018 = vadd.f32 0.0, %v3017
  %3019 = vdwg.mxu0
  %v3020 = vadd.f32 %v2709, %v2949
  %v3021 = vadd.f32 %v2710, %v2951
  %v3022 = vadd.f32 %v2711, %v3002
  %v3023 = vadd.f32 %v2712, %v3004
  %v3024 = vadd.f32 %v2713, %v2953
  %v3025 = vadd.f32 %v2714, %v2955
  %v3026 = vadd.f32 %v2715, %v3006
  %v3027 = vadd.f32 %v2716, %v3008
  %v3028 = vadd.f32 %v2717, %v2959
  %v3029 = vadd.f32 %v2718, %v2961
  %v3030 = vadd.f32 %v2719, %v3012
  %v3031 = vadd.f32 %v2720, %v3014
  %v3032 = vadd.f32 %v2721, %v2963
  %v3033 = vadd.f32 %v2722, %v2965
  %v3034 = vadd.f32 %v2723, %v3016
  %v3035 = vadd.f32 %v2724, %v3018
  %v3036 = vld [vmem:[%s7] sm:$0xff]
  %v3037 = vld [vmem:[%s7 + $0x8] sm:$0xff]
  %v3038 = vld [vmem:[%s7 + $0x10] sm:$0xff]
  %v3039 = vld [vmem:[%s7 + $0x18] sm:$0xff]
  %3041 = vset.pattern.permute.xlu0 0
  %3042 = vperm.xlu0 %3041, %v3036
  %v3043 = vpop.permute.xlu0 %3042
  %3046 = vset.pattern.permute.xlu0 0
  %3047 = vperm.xlu0 %3046, %v3037
  %v3048 = vpop.permute.xlu0 %3047
  %3051 = vset.pattern.permute.xlu0 0
  %3052 = vperm.xlu0 %3051, %v3038
  %v3053 = vpop.permute.xlu0 %3052
  %3056 = vset.pattern.permute.xlu0 0
  %3057 = vperm.xlu0 %3056, %v3039
  %v3058 = vpop.permute.xlu0 %3057
  %v3060 = vadd.f32 %v3020, %v3043
  %v3061 = vadd.f32 %v3021, %v3043
  %v3062 = vadd.f32 %v3022, %v3043
  %v3063 = vadd.f32 %v3023, %v3043
  %v3064 = vadd.f32 %v3024, %v3048
  %v3065 = vadd.f32 %v3025, %v3048
  %v3066 = vadd.f32 %v3026, %v3048
  %v3067 = vadd.f32 %v3027, %v3048
  %v3068 = vadd.f32 %v3028, %v3053
  %v3069 = vadd.f32 %v3029, %v3053
  %v3070 = vadd.f32 %v3030, %v3053
  %v3071 = vadd.f32 %v3031, %v3053
  %v3072 = vadd.f32 %v3032, %v3058
  %v3073 = vadd.f32 %v3033, %v3058
  %v3074 = vadd.f32 %v3034, %v3058
  %v3075 = vadd.f32 %v3035, %v3058
  %v3076 = vmax.f32 %v3060, 0.0
  %v3077 = vmax.f32 %v3061, 0.0
  %v3078 = vmax.f32 %v3062, 0.0
  %v3079 = vmax.f32 %v3063, 0.0
  %v3080 = vmax.f32 %v3064, 0.0
  %v3081 = vmax.f32 %v3065, 0.0
  %v3082 = vmax.f32 %v3066, 0.0
  %v3083 = vmax.f32 %v3067, 0.0
  %v3084 = vmax.f32 %v3068, 0.0
  %v3085 = vmax.f32 %v3069, 0.0
  %v3086 = vmax.f32 %v3070, 0.0
  %v3087 = vmax.f32 %v3071, 0.0
  %v3088 = vmax.f32 %v3072, 0.0
  %v3089 = vmax.f32 %v3073, 0.0
  %v3090 = vmax.f32 %v3074, 0.0
  %v3091 = vmax.f32 %v3075, 0.0
  %3092 = vrot.lane.b32.xlu0 %v3076, 17
  %v3093 = vpop.permute.xlu0 %3092
  %3094 = vrot.lane.b32.xlu0 %v3080, 17
  %v3095 = vpop.permute.xlu0 %3094
  %3096 = vrot.lane.b32.xlu0 %v3084, 17
  %v3097 = vpop.permute.xlu0 %3096
  %3098 = vrot.lane.b32.xlu0 %v3088, 17
  %v3099 = vpop.permute.xlu0 %3098
  %3100 = vrot.lane.b32.xlu0 %v3077, 17
  %v3101 = vpop.permute.xlu0 %3100
  %3102 = vrot.lane.b32.xlu0 %v3081, 17
  %v3103 = vpop.permute.xlu0 %3102
  %3104 = vrot.lane.b32.xlu0 %v3085, 17
  %v3105 = vpop.permute.xlu0 %3104
  %3106 = vrot.lane.b32.xlu0 %v3089, 17
  %v3107 = vpop.permute.xlu0 %3106
  %3108 = vrot.lane.b32.xlu0 %v3078, 17
  %v3109 = vpop.permute.xlu0 %3108
  %3110 = vrot.lane.b32.xlu0 %v3082, 17
  %v3111 = vpop.permute.xlu0 %3110
  %3112 = vrot.lane.b32.xlu0 %v3086, 17
  %v3113 = vpop.permute.xlu0 %3112
  %3114 = vrot.lane.b32.xlu0 %v3090, 17
  %v3115 = vpop.permute.xlu0 %3114
  %3116 = vrot.lane.b32.xlu0 %v3079, 17
  %v3117 = vpop.permute.xlu0 %3116
  %3118 = vrot.lane.b32.xlu0 %v3083, 17
  %v3119 = vpop.permute.xlu0 %3118
  %3120 = vrot.lane.b32.xlu0 %v3087, 17
  %v3121 = vpop.permute.xlu0 %3120
  %3122 = vrot.lane.b32.xlu0 %v3091, 17
  %v3123 = vpop.permute.xlu0 %3122
  %v3124 = vsel %vm486, %v3109, %v3117
  %v3125 = vsel %vm486, %v3111, %v3119
  %v3126 = vsel %vm486, %v3113, %v3121
  %v3127 = vsel %vm486, %v3115, %v3123
  %v3128 = vsel %vm486, %v3101, %v3109
  %v3129 = vsel %vm486, %v3103, %v3111
  %v3130 = vsel %vm486, %v3105, %v3113
  %v3131 = vsel %vm486, %v3107, %v3115
  %v3132 = vsel %vm486, %v3093, %v3101
  %v3133 = vsel %vm486, %v3095, %v3103
  %v3134 = vsel %vm486, %v3097, %v3105
  %v3135 = vsel %vm486, %v3099, %v3107
  %v3136 = vsel %vm486, %v3117, %v3093
  %v3137 = vsel %vm486, %v3119, %v3095
  %v3138 = vsel %vm486, %v3121, %v3097
  %v3139 = vsel %vm486, %v3123, %v3099
  %v3140 = vmul.f32 %v3136, %v524
  %v3141 = vmul.f32 %v3132, %v528
  %v3142 = vmul.f32 %v3128, %v532
  %v3143 = vmul.f32 %v3124, %v536
  %v3144 = vmul.f32 %v3137, %v524
  %v3145 = vmul.f32 %v3133, %v528
  %v3146 = vmul.f32 %v3129, %v532
  %v3147 = vmul.f32 %v3125, %v536
  %v3148 = vmul.f32 %v3138, %v524
  %v3149 = vmul.f32 %v3134, %v528
  %v3150 = vmul.f32 %v3130, %v532
  %v3151 = vmul.f32 %v3126, %v536
  %v3152 = vmul.f32 %v3139, %v524
  %v3153 = vmul.f32 %v3135, %v528
  %v3154 = vmul.f32 %v3131, %v532
  %v3155 = vmul.f32 %v3127, %v536
  %v3156 = vld [vmem:[%s8] sm:$0x1]
  %v3157 = vpack.c.bf16 %v3144, %v3140
  %v3158 = vpack.c.bf16 %v3145, %v3141
  %v3159 = vpack.c.bf16 %v3146, %v3142
  %v3160 = vpack.c.bf16 %v3147, %v3143
  %v3161 = vpack.c.bf16 %v3152, %v3148
  %v3162 = vpack.c.bf16 %v3153, %v3149
  %v3163 = vpack.c.bf16 %v3154, %v3150
  %v3164 = vpack.c.bf16 %v3155, %v3151
  %3165 = vrot.lane.b32.xlu0 %v3076, 16
  %v3166 = vpop.permute.xlu0 %3165
  %3167 = vrot.lane.b32.xlu0 %v3080, 16
  %v3168 = vpop.permute.xlu0 %3167
  %3169 = vrot.lane.b32.xlu0 %v3084, 16
  %v3170 = vpop.permute.xlu0 %3169
  %3171 = vrot.lane.b32.xlu0 %v3088, 16
  %v3172 = vpop.permute.xlu0 %3171
  %3173 = vrot.lane.b32.xlu0 %v3077, 16
  %v3174 = vpop.permute.xlu0 %3173
  %3175 = vrot.lane.b32.xlu0 %v3081, 16
  %v3176 = vpop.permute.xlu0 %3175
  %3177 = vrot.lane.b32.xlu0 %v3085, 16
  %v3178 = vpop.permute.xlu0 %3177
  %3179 = vrot.lane.b32.xlu0 %v3089, 16
  %v3180 = vpop.permute.xlu0 %3179
  %3181 = vrot.lane.b32.xlu0 %v3078, 16
  %v3182 = vpop.permute.xlu0 %3181
  %3183 = vrot.lane.b32.xlu0 %v3082, 16
  %v3184 = vpop.permute.xlu0 %3183
  %3185 = vrot.lane.b32.xlu0 %v3086, 16
  %v3186 = vpop.permute.xlu0 %3185
  %3187 = vrot.lane.b32.xlu0 %v3090, 16
  %v3188 = vpop.permute.xlu0 %3187
  %3189 = vrot.lane.b32.xlu0 %v3079, 16
  %v3190 = vpop.permute.xlu0 %3189
  %3191 = vrot.lane.b32.xlu0 %v3083, 16
  %v3192 = vpop.permute.xlu0 %3191
  %3193 = vrot.lane.b32.xlu0 %v3087, 16
  %v3194 = vpop.permute.xlu0 %3193
  %3195 = vrot.lane.b32.xlu0 %v3091, 16
  %v3196 = vpop.permute.xlu0 %3195
  %v3197 = vsel %vm657, %v3182, %v3190
  %v3198 = vsel %vm657, %v3184, %v3192
  %v3199 = vsel %vm657, %v3186, %v3194
  %v3200 = vsel %vm657, %v3188, %v3196
  %v3201 = vsel %vm657, %v3174, %v3182
  %v3202 = vsel %vm657, %v3176, %v3184
  %v3203 = vsel %vm657, %v3178, %v3186
  %v3204 = vsel %vm657, %v3180, %v3188
  %v3205 = vsel %vm657, %v3166, %v3174
  %v3206 = vsel %vm657, %v3168, %v3176
  %v3207 = vsel %vm657, %v3170, %v3178
  %v3208 = vsel %vm657, %v3172, %v3180
  %v3209 = vsel %vm657, %v3190, %v3166
  %v3210 = vsel %vm657, %v3192, %v3168
  %v3211 = vsel %vm657, %v3194, %v3170
  %v3212 = vsel %vm657, %v3196, %v3172
  %v3213 = vmul.f32 %v3209, %v696
  %v3214 = vmul.f32 %v3205, %v700
  %v3215 = vmul.f32 %v3201, %v704
  %v3216 = vmul.f32 %v3197, %v708
  %v3217 = vmul.f32 %v3210, %v696
  %v3218 = vmul.f32 %v3206, %v700
  %v3219 = vmul.f32 %v3202, %v704
  %v3220 = vmul.f32 %v3198, %v708
  %v3221 = vmul.f32 %v3211, %v696
  %v3222 = vmul.f32 %v3207, %v700
  %v3223 = vmul.f32 %v3203, %v704
  %v3224 = vmul.f32 %v3199, %v708
  %v3225 = vmul.f32 %v3212, %v696
  %v3226 = vmul.f32 %v3208, %v700
  %v3227 = vmul.f32 %v3204, %v704
  %v3228 = vmul.f32 %v3200, %v708
  %s3229 = scalar_lea.vmem %s8, 1
  %v3230 = vld [vmem:[%s3229] sm:$0x1]
  %v3231 = vpack.c.bf16 %v3217, %v3213
  %v3232 = vpack.c.bf16 %v3218, %v3214
  %v3233 = vpack.c.bf16 %v3219, %v3215
  %v3234 = vpack.c.bf16 %v3220, %v3216
  %v3235 = vpack.c.bf16 %v3225, %v3221
  %v3236 = vpack.c.bf16 %v3226, %v3222
  %v3237 = vpack.c.bf16 %v3227, %v3223
  %v3238 = vpack.c.bf16 %v3228, %v3224
  %vm3239 = vcmask 261120
  %v3241 = vsel %vm3239, %v3230, 0
  %3243 = vmatprep.subr.bf16.mxu0 %v3232
  %3244 = vmatpush1.bf16.msra.mxu0 %v3231
  %3245 = vmatprep.subr.bf16.mxu0 %v3236
  %3246 = vmatpush1.bf16.msra.mxu0 %v3235
  %3247 = vmatprep.subr.bf16.mxu0 0
  %3248 = vmatpush1.bf16.msra.mxu0 0
  %3249 = vmatprep.subr.bf16.mxu0 0
  %3250 = vmatpush1.bf16.msra.mxu0 0
  %3251 = vmatprep.subr.bf16.mxu0 0
  %3252 = vmatpush1.bf16.msra.mxu0 0
  %3253 = vmatprep.subr.bf16.mxu0 0
  %3254 = vmatpush1.bf16.msra.mxu0 0
  %3255 = vmatprep.subr.bf16.mxu0 0
  %3256 = vmatpush1.bf16.msra.mxu0 0
  %3257 = vmatprep.subr.bf16.mxu0 0
  %3258 = vmatpush1.bf16.msra.mxu0 0
  %3259 = vmatprep.subr.bf16.mxu0 0
  %3260 = vmatpush1.bf16.msra.mxu0 0
  %3261 = vmatprep.subr.bf16.mxu0 0
  %3262 = vmatpush1.bf16.msra.mxu0 0
  %3263 = vmatprep.subr.bf16.mxu0 0
  %3264 = vmatpush1.bf16.msra.mxu0 0
  %3265 = vmatprep.subr.bf16.mxu0 0
  %3266 = vmatpush1.bf16.msra.mxu0 0
  %3267 = vmatprep.subr.bf16.mxu0 0
  %3268 = vmatpush1.bf16.msra.mxu0 0
  %3269 = vmatprep.subr.bf16.mxu0 0
  %3270 = vmatpush1.bf16.msra.mxu0 0
  %3271 = vmatprep.subr.bf16.mxu0 0
  %3272 = vmatpush1.bf16.msra.mxu0 0
  %3273 = vmatprep.subr.bf16.mxu0 0
  %3274 = vmatpush1.bf16.msra.mxu0 0
  %3275 = vmatprep.mubr.bf16.mxu0 0
  %3276 = vmatmul.mubr.bf16.gmra.mrb[0].mxu0 %v3241
  %v3277 = vpop.f32.mrb[0].mxu0
  %v3278 = vadd.f32 0.0, %v3277
  %v3279 = vpop.f32.mrb[0].mxu0
  %v3280 = vadd.f32 0.0, %v3279
  %v3281 = vpop.f32.mrb[0].mxu0
  %v3282 = vpop.f32.mrb[0].mxu0
  %3283 = vdwg.mxu0
  %3284 = vmatprep.subr.bf16.mxu0 %v3234
  %3285 = vmatpush1.bf16.msra.mxu0 %v3233
  %3286 = vmatprep.subr.bf16.mxu0 %v3238
  %3287 = vmatpush1.bf16.msra.mxu0 %v3237
  %3288 = vmatprep.subr.bf16.mxu0 0
  %3289 = vmatpush1.bf16.msra.mxu0 0
  %3290 = vmatprep.subr.bf16.mxu0 0
  %3291 = vmatpush1.bf16.msra.mxu0 0
  %3292 = vmatprep.subr.bf16.mxu0 0
  %3293 = vmatpush1.bf16.msra.mxu0 0
  %3294 = vmatprep.subr.bf16.mxu0 0
  %3295 = vmatpush1.bf16.msra.mxu0 0
  %3296 = vmatprep.subr.bf16.mxu0 0
  %3297 = vmatpush1.bf16.msra.mxu0 0
  %3298 = vmatprep.subr.bf16.mxu0 0
  %3299 = vmatpush1.bf16.msra.mxu0 0
  %3300 = vmatprep.subr.bf16.mxu0 0
  %3301 = vmatpush1.bf16.msra.mxu0 0
  %3302 = vmatprep.subr.bf16.mxu0 0
  %3303 = vmatpush1.bf16.msra.mxu0 0
  %3304 = vmatprep.subr.bf16.mxu0 0
  %3305 = vmatpush1.bf16.msra.mxu0 0
  %3306 = vmatprep.subr.bf16.mxu0 0
  %3307 = vmatpush1.bf16.msra.mxu0 0
  %3308 = vmatprep.subr.bf16.mxu0 0
  %3309 = vmatpush1.bf16.msra.mxu0 0
  %3310 = vmatprep.subr.bf16.mxu0 0
  %3311 = vmatpush1.bf16.msra.mxu0 0
  %3312 = vmatprep.subr.bf16.mxu0 0
  %3313 = vmatpush1.bf16.msra.mxu0 0
  %3314 = vmatprep.subr.bf16.mxu0 0
  %3315 = vmatpush1.bf16.msra.mxu0 0
  %3316 = vmatprep.mubr.bf16.mxu0 0
  %3317 = vmatmul.mubr.bf16.gmra.mrb[0].mxu0 %v3241
  %v3318 = vpop.f32.mrb[0].mxu0
  %v3319 = vadd.f32 0.0, %v3318
  %v3320 = vpop.f32.mrb[0].mxu0
  %v3321 = vadd.f32 0.0, %v3320
  %v3322 = vpop.f32.mrb[0].mxu0
  %v3323 = vpop.f32.mrb[0].mxu0
  %3324 = vdwg.mxu0
  %v3326 = vsel %vm3239, %v3156, 0
  %3328 = vmatprep.subr.bf16.mxu0 %v3158
  %3329 = vmatpush1.bf16.msra.mxu0 %v3157
  %3330 = vmatprep.subr.bf16.mxu0 %v3162
  %3331 = vmatpush1.bf16.msra.mxu0 %v3161
  %3332 = vmatprep.subr.bf16.mxu0 0
  %3333 = vmatpush1.bf16.msra.mxu0 0
  %3334 = vmatprep.subr.bf16.mxu0 0
  %3335 = vmatpush1.bf16.msra.mxu0 0
  %3336 = vmatprep.subr.bf16.mxu0 0
  %3337 = vmatpush1.bf16.msra.mxu0 0
  %3338 = vmatprep.subr.bf16.mxu0 0
  %3339 = vmatpush1.bf16.msra.mxu0 0
  %3340 = vmatprep.subr.bf16.mxu0 0
  %3341 = vmatpush1.bf16.msra.mxu0 0
  %3342 = vmatprep.subr.bf16.mxu0 0
  %3343 = vmatpush1.bf16.msra.mxu0 0
  %3344 = vmatprep.subr.bf16.mxu0 0
  %3345 = vmatpush1.bf16.msra.mxu0 0
  %3346 = vmatprep.subr.bf16.mxu0 0
  %3347 = vmatpush1.bf16.msra.mxu0 0
  %3348 = vmatprep.subr.bf16.mxu0 0
  %3349 = vmatpush1.bf16.msra.mxu0 0
  %3350 = vmatprep.subr.bf16.mxu0 0
  %3351 = vmatpush1.bf16.msra.mxu0 0
  %3352 = vmatprep.subr.bf16.mxu0 0
  %3353 = vmatpush1.bf16.msra.mxu0 0
  %3354 = vmatprep.subr.bf16.mxu0 0
  %3355 = vmatpush1.bf16.msra.mxu0 0
  %3356 = vmatprep.subr.bf16.mxu0 0
  %3357 = vmatpush1.bf16.msra.mxu0 0
  %3358 = vmatprep.subr.bf16.mxu0 0
  %3359 = vmatpush1.bf16.msra.mxu0 0
  %3360 = vmatprep.mubr.bf16.mxu0 0
  %3361 = vmatmul.mubr.bf16.gmra.mrb[0].mxu0 %v3326
  %v3362 = vpop.f32.mrb[0].mxu0
  %v3363 = vadd.f32 %v3278, %v3362
  %v3364 = vpop.f32.mrb[0].mxu0
  %v3365 = vadd.f32 %v3280, %v3364
  %v3366 = vpop.f32.mrb[0].mxu0
  %v3367 = vpop.f32.mrb[0].mxu0
  %3368 = vdwg.mxu0
  %3369 = vmatprep.subr.bf16.mxu0 %v3160
  %3370 = vmatpush1.bf16.msra.mxu0 %v3159
  %3371 = vmatprep.subr.bf16.mxu0 %v3164
  %3372 = vmatpush1.bf16.msra.mxu0 %v3163
  %3373 = vmatprep.subr.bf16.mxu0 0
  %3374 = vmatpush1.bf16.msra.mxu0 0
  %3375 = vmatprep.subr.bf16.mxu0 0
  %3376 = vmatpush1.bf16.msra.mxu0 0
  %3377 = vmatprep.subr.bf16.mxu0 0
  %3378 = vmatpush1.bf16.msra.mxu0 0
  %3379 = vmatprep.subr.bf16.mxu0 0
  %3380 = vmatpush1.bf16.msra.mxu0 0
  %3381 = vmatprep.subr.bf16.mxu0 0
  %3382 = vmatpush1.bf16.msra.mxu0 0
  %3383 = vmatprep.subr.bf16.mxu0 0
  %3384 = vmatpush1.bf16.msra.mxu0 0
  %3385 = vmatprep.subr.bf16.mxu0 0
  %3386 = vmatpush1.bf16.msra.mxu0 0
  %3387 = vmatprep.subr.bf16.mxu0 0
  %3388 = vmatpush1.bf16.msra.mxu0 0
  %3389 = vmatprep.subr.bf16.mxu0 0
  %3390 = vmatpush1.bf16.msra.mxu0 0
  %3391 = vmatprep.subr.bf16.mxu0 0
  %3392 = vmatpush1.bf16.msra.mxu0 0
  %3393 = vmatprep.subr.bf16.mxu0 0
  %3394 = vmatpush1.bf16.msra.mxu0 0
  %3395 = vmatprep.subr.bf16.mxu0 0
  %3396 = vmatpush1.bf16.msra.mxu0 0
  %3397 = vmatprep.subr.bf16.mxu0 0
  %3398 = vmatpush1.bf16.msra.mxu0 0
  %3399 = vmatprep.subr.bf16.mxu0 0
  %3400 = vmatpush1.bf16.msra.mxu0 0
  %3401 = vmatprep.mubr.bf16.mxu0 0
  %3402 = vmatmul.mubr.bf16.gmra.mrb[0].mxu0 %v3326
  %v3403 = vpop.f32.mrb[0].mxu0
  %v3404 = vadd.f32 %v3319, %v3403
  %v3405 = vpop.f32.mrb[0].mxu0
  %v3406 = vadd.f32 %v3321, %v3405
  %v3407 = vpop.f32.mrb[0].mxu0
  %v3408 = vpop.f32.mrb[0].mxu0
  %3409 = vdwg.mxu0
  %3410 = vrot.lane.b32.xlu0 %v3076, 15
  %v3411 = vpop.permute.xlu0 %3410
  %3412 = vrot.lane.b32.xlu0 %v3080, 15
  %v3413 = vpop.permute.xlu0 %3412
  %3414 = vrot.lane.b32.xlu0 %v3084, 15
  %v3415 = vpop.permute.xlu0 %3414
  %3416 = vrot.lane.b32.xlu0 %v3088, 15
  %v3417 = vpop.permute.xlu0 %3416
  %3418 = vrot.lane.b32.xlu0 %v3077, 15
  %v3419 = vpop.permute.xlu0 %3418
  %3420 = vrot.lane.b32.xlu0 %v3081, 15
  %v3421 = vpop.permute.xlu0 %3420
  %3422 = vrot.lane.b32.xlu0 %v3085, 15
  %v3423 = vpop.permute.xlu0 %3422
  %3424 = vrot.lane.b32.xlu0 %v3089, 15
  %v3425 = vpop.permute.xlu0 %3424
  %3426 = vrot.lane.b32.xlu0 %v3078, 15
  %v3427 = vpop.permute.xlu0 %3426
  %3428 = vrot.lane.b32.xlu0 %v3082, 15
  %v3429 = vpop.permute.xlu0 %3428
  %3430 = vrot.lane.b32.xlu0 %v3086, 15
  %v3431 = vpop.permute.xlu0 %3430
  %3432 = vrot.lane.b32.xlu0 %v3090, 15
  %v3433 = vpop.permute.xlu0 %3432
  %3434 = vrot.lane.b32.xlu0 %v3079, 15
  %v3435 = vpop.permute.xlu0 %3434
  %3436 = vrot.lane.b32.xlu0 %v3083, 15
  %v3437 = vpop.permute.xlu0 %3436
  %3438 = vrot.lane.b32.xlu0 %v3087, 15
  %v3439 = vpop.permute.xlu0 %3438
  %3440 = vrot.lane.b32.xlu0 %v3091, 15
  %v3441 = vpop.permute.xlu0 %3440
  %v3442 = vsel %vm1075, %v3427, %v3435
  %v3443 = vsel %vm1075, %v3429, %v3437
  %v3444 = vsel %vm1075, %v3431, %v3439
  %v3445 = vsel %vm1075, %v3433, %v3441
  %v3446 = vsel %vm1075, %v3419, %v3427
  %v3447 = vsel %vm1075, %v3421, %v3429
  %v3448 = vsel %vm1075, %v3423, %v3431
  %v3449 = vsel %vm1075, %v3425, %v3433
  %v3450 = vsel %vm1075, %v3411, %v3419
  %v3451 = vsel %vm1075, %v3413, %v3421
  %v3452 = vsel %vm1075, %v3415, %v3423
  %v3453 = vsel %vm1075, %v3417, %v3425
  %v3454 = vsel %vm1075, %v3435, %v3411
  %v3455 = vsel %vm1075, %v3437, %v3413
  %v3456 = vsel %vm1075, %v3439, %v3415
  %v3457 = vsel %vm1075, %v3441, %v3417
  %v3458 = vmul.f32 %v3454, %v1114
  %v3459 = vmul.f32 %v3450, %v1118
  %v3460 = vmul.f32 %v3446, %v1122
  %v3461 = vmul.f32 %v3442, %v1126
  %v3462 = vmul.f32 %v3455, %v1114
  %v3463 = vmul.f32 %v3451, %v1118
  %v3464 = vmul.f32 %v3447, %v1122
  %v3465 = vmul.f32 %v3443, %v1126
  %v3466 = vmul.f32 %v3456, %v1114
  %v3467 = vmul.f32 %v3452, %v1118
  %v3468 = vmul.f32 %v3448, %v1122
  %v3469 = vmul.f32 %v3444, %v1126
  %v3470 = vmul.f32 %v3457, %v1114
  %v3471 = vmul.f32 %v3453, %v1118
  %v3472 = vmul.f32 %v3449, %v1122
  %v3473 = vmul.f32 %v3445, %v1126
  %s3474 = scalar_lea.vmem %s8, 2
  %v3475 = vld [vmem:[%s3474] sm:$0x1]
  %v3476 = vpack.c.bf16 %v3462, %v3458
  %v3477 = vpack.c.bf16 %v3463, %v3459
  %v3478 = vpack.c.bf16 %v3464, %v3460
  %v3479 = vpack.c.bf16 %v3465, %v3461
  %v3480 = vpack.c.bf16 %v3470, %v3466
  %v3481 = vpack.c.bf16 %v3471, %v3467
  %v3482 = vpack.c.bf16 %v3472, %v3468
  %v3483 = vpack.c.bf16 %v3473, %v3469
  %v3485 = vsel %vm3239, %v3475, 0
  %3487 = vmatprep.subr.bf16.mxu0 %v3477
  %3488 = vmatpush1.bf16.msra.mxu0 %v3476
  %3489 = vmatprep.subr.bf16.mxu0 %v3481
  %3490 = vmatpush1.bf16.msra.mxu0 %v3480
  %3491 = vmatprep.subr.bf16.mxu0 0
  %3492 = vmatpush1.bf16.msra.mxu0 0
  %3493 = vmatprep.subr.bf16.mxu0 0
  %3494 = vmatpush1.bf16.msra.mxu0 0
  %3495 = vmatprep.subr.bf16.mxu0 0
  %3496 = vmatpush1.bf16.msra.mxu0 0
  %3497 = vmatprep.subr.bf16.mxu0 0
  %3498 = vmatpush1.bf16.msra.mxu0 0
  %3499 = vmatprep.subr.bf16.mxu0 0
  %3500 = vmatpush1.bf16.msra.mxu0 0
  %3501 = vmatprep.subr.bf16.mxu0 0
  %3502 = vmatpush1.bf16.msra.mxu0 0
  %3503 = vmatprep.subr.bf16.mxu0 0
  %3504 = vmatpush1.bf16.msra.mxu0 0
  %3505 = vmatprep.subr.bf16.mxu0 0
  %3506 = vmatpush1.bf16.msra.mxu0 0
  %3507 = vmatprep.subr.bf16.mxu0 0
  %3508 = vmatpush1.bf16.msra.mxu0 0
  %3509 = vmatprep.subr.bf16.mxu0 0
  %3510 = vmatpush1.bf16.msra.mxu0 0
  %3511 = vmatprep.subr.bf16.mxu0 0
  %3512 = vmatpush1.bf16.msra.mxu0 0
  %3513 = vmatprep.subr.bf16.mxu0 0
  %3514 = vmatpush1.bf16.msra.mxu0 0
  %3515 = vmatprep.subr.bf16.mxu0 0
  %3516 = vmatpush1.bf16.msra.mxu0 0
  %3517 = vmatprep.subr.bf16.mxu0 0
  %3518 = vmatpush1.bf16.msra.mxu0 0
  %3519 = vmatprep.mubr.bf16.mxu0 0
  %3520 = vmatmul.mubr.bf16.gmra.mrb[0].mxu0 %v3485
  %v3521 = vpop.f32.mrb[0].mxu0
  %v3522 = vadd.f32 0.0, %v3521
  %v3523 = vpop.f32.mrb[0].mxu0
  %v3524 = vadd.f32 0.0, %v3523
  %v3525 = vpop.f32.mrb[0].mxu0
  %v3526 = vpop.f32.mrb[0].mxu0
  %3527 = vdwg.mxu0
  %3528 = vmatprep.subr.bf16.mxu0 %v3479
  %3529 = vmatpush1.bf16.msra.mxu0 %v3478
  %3530 = vmatprep.subr.bf16.mxu0 %v3483
  %3531 = vmatpush1.bf16.msra.mxu0 %v3482
  %3532 = vmatprep.subr.bf16.mxu0 0
  %3533 = vmatpush1.bf16.msra.mxu0 0
  %3534 = vmatprep.subr.bf16.mxu0 0
  %3535 = vmatpush1.bf16.msra.mxu0 0
  %3536 = vmatprep.subr.bf16.mxu0 0
  %3537 = vmatpush1.bf16.msra.mxu0 0
  %3538 = vmatprep.subr.bf16.mxu0 0
  %3539 = vmatpush1.bf16.msra.mxu0 0
  %3540 = vmatprep.subr.bf16.mxu0 0
  %3541 = vmatpush1.bf16.msra.mxu0 0
  %3542 = vmatprep.subr.bf16.mxu0 0
  %3543 = vmatpush1.bf16.msra.mxu0 0
  %3544 = vmatprep.subr.bf16.mxu0 0
  %3545 = vmatpush1.bf16.msra.mxu0 0
  %3546 = vmatprep.subr.bf16.mxu0 0
  %3547 = vmatpush1.bf16.msra.mxu0 0
  %3548 = vmatprep.subr.bf16.mxu0 0
  %3549 = vmatpush1.bf16.msra.mxu0 0
  %3550 = vmatprep.subr.bf16.mxu0 0
  %3551 = vmatpush1.bf16.msra.mxu0 0
  %3552 = vmatprep.subr.bf16.mxu0 0
  %3553 = vmatpush1.bf16.msra.mxu0 0
  %3554 = vmatprep.subr.bf16.mxu0 0
  %3555 = vmatpush1.bf16.msra.mxu0 0
  %3556 = vmatprep.subr.bf16.mxu0 0
  %3557 = vmatpush1.bf16.msra.mxu0 0
  %3558 = vmatprep.subr.bf16.mxu0 0
  %3559 = vmatpush1.bf16.msra.mxu0 0
  %3560 = vmatprep.mubr.bf16.mxu0 0
  %3561 = vmatmul.mubr.bf16.gmra.mrb[0].mxu0 %v3485
  %v3562 = vpop.f32.mrb[0].mxu0
  %v3563 = vadd.f32 0.0, %v3562
  %v3564 = vpop.f32.mrb[0].mxu0
  %v3565 = vadd.f32 0.0, %v3564
  %v3566 = vpop.f32.mrb[0].mxu0
  %v3567 = vpop.f32.mrb[0].mxu0
  %3568 = vdwg.mxu0
  %v3569 = vadd.f32 %v3363, %v3522
  %v3570 = vadd.f32 %v3365, %v3524
  %v3571 = vadd.f32 %v3404, %v3563
  %v3572 = vadd.f32 %v3406, %v3565
  %3573 = vrot.lane.b32.xlu0 %v3076, 1
  %v3574 = vpop.permute.xlu0 %3573
  %3575 = vrot.lane.b32.xlu0 %v3080, 1
  %v3576 = vpop.permute.xlu0 %3575
  %3577 = vrot.lane.b32.xlu0 %v3084, 1
  %v3578 = vpop.permute.xlu0 %3577
  %3579 = vrot.lane.b32.xlu0 %v3088, 1
  %v3580 = vpop.permute.xlu0 %3579
  %3581 = vrot.lane.b32.xlu0 %v3077, 1
  %v3582 = vpop.permute.xlu0 %3581
  %3583 = vrot.lane.b32.xlu0 %v3081, 1
  %v3584 = vpop.permute.xlu0 %3583
  %3585 = vrot.lane.b32.xlu0 %v3085, 1
  %v3586 = vpop.permute.xlu0 %3585
  %3587 = vrot.lane.b32.xlu0 %v3089, 1
  %v3588 = vpop.permute.xlu0 %3587
  %3589 = vrot.lane.b32.xlu0 %v3078, 1
  %v3590 = vpop.permute.xlu0 %3589
  %3591 = vrot.lane.b32.xlu0 %v3082, 1
  %v3592 = vpop.permute.xlu0 %3591
  %3593 = vrot.lane.b32.xlu0 %v3086, 1
  %v3594 = vpop.permute.xlu0 %3593
  %3595 = vrot.lane.b32.xlu0 %v3090, 1
  %v3596 = vpop.permute.xlu0 %3595
  %3597 = vrot.lane.b32.xlu0 %v3079, 1
  %v3598 = vpop.permute.xlu0 %3597
  %3599 = vrot.lane.b32.xlu0 %v3083, 1
  %v3600 = vpop.permute.xlu0 %3599
  %3601 = vrot.lane.b32.xlu0 %v3087, 1
  %v3602 = vpop.permute.xlu0 %3601
  %3603 = vrot.lane.b32.xlu0 %v3091, 1
  %v3604 = vpop.permute.xlu0 %3603
  %v3605 = vsel %vm1386, %v3590, %v3598
  %v3606 = vsel %vm1386, %v3592, %v3600
  %v3607 = vsel %vm1386, %v3594, %v3602
  %v3608 = vsel %vm1386, %v3596, %v3604
  %v3609 = vsel %vm1386, %v3582, %v3590
  %v3610 = vsel %vm1386, %v3584, %v3592
  %v3611 = vsel %vm1386, %v3586, %v3594
  %v3612 = vsel %vm1386, %v3588, %v3596
  %v3613 = vsel %vm1386, %v3574, %v3582
  %v3614 = vsel %vm1386, %v3576, %v3584
  %v3615 = vsel %vm1386, %v3578, %v3586
  %v3616 = vsel %vm1386, %v3580, %v3588
  %v3617 = vsel %vm1386, %v3598, %v3574
  %v3618 = vsel %vm1386, %v3600, %v3576
  %v3619 = vsel %vm1386, %v3602, %v3578
  %v3620 = vsel %vm1386, %v3604, %v3580
  %v3621 = vmul.f32 %v3617, %v1425
  %v3622 = vmul.f32 %v3613, %v1429
  %v3623 = vmul.f32 %v3609, %v1433
  %v3624 = vmul.f32 %v3605, %v1437
  %v3625 = vmul.f32 %v3618, %v1425
  %v3626 = vmul.f32 %v3614, %v1429
  %v3627 = vmul.f32 %v3610, %v1433
  %v3628 = vmul.f32 %v3606, %v1437
  %v3629 = vmul.f32 %v3619, %v1425
  %v3630 = vmul.f32 %v3615, %v1429
  %v3631 = vmul.f32 %v3611, %v1433
  %v3632 = vmul.f32 %v3607, %v1437
  %v3633 = vmul.f32 %v3620, %v1425
  %v3634 = vmul.f32 %v3616, %v1429
  %v3635 = vmul.f32 %v3612, %v1433
  %v3636 = vmul.f32 %v3608, %v1437
  %s3637 = scalar_lea.vmem %s8, 3
  %v3638 = vld [vmem:[%s3637] sm:$0x1]
  %v3639 = vpack.c.bf16 %v3625, %v3621
  %v3640 = vpack.c.bf16 %v3626, %v3622
  %v3641 = vpack.c.bf16 %v3627, %v3623
  %v3642 = vpack.c.bf16 %v3628, %v3624
  %v3643 = vpack.c.bf16 %v3633, %v3629
  %v3644 = vpack.c.bf16 %v3634, %v3630
  %v3645 = vpack.c.bf16 %v3635, %v3631
  %v3646 = vpack.c.bf16 %v3636, %v3632
  %v3648 = vsel %vm3239, %v3638, 0
  %3650 = vmatprep.subr.bf16.mxu0 %v3640
  %3651 = vmatpush1.bf16.msra.mxu0 %v3639
  %3652 = vmatprep.subr.bf16.mxu0 %v3644
  %3653 = vmatpush1.bf16.msra.mxu0 %v3643
  %3654 = vmatprep.subr.bf16.mxu0 0
  %3655 = vmatpush1.bf16.msra.mxu0 0
  %3656 = vmatprep.subr.bf16.mxu0 0
  %3657 = vmatpush1.bf16.msra.mxu0 0
  %3658 = vmatprep.subr.bf16.mxu0 0
  %3659 = vmatpush1.bf16.msra.mxu0 0
  %3660 = vmatprep.subr.bf16.mxu0 0
  %3661 = vmatpush1.bf16.msra.mxu0 0
  %3662 = vmatprep.subr.bf16.mxu0 0
  %3663 = vmatpush1.bf16.msra.mxu0 0
  %3664 = vmatprep.subr.bf16.mxu0 0
  %3665 = vmatpush1.bf16.msra.mxu0 0
  %3666 = vmatprep.subr.bf16.mxu0 0
  %3667 = vmatpush1.bf16.msra.mxu0 0
  %3668 = vmatprep.subr.bf16.mxu0 0
  %3669 = vmatpush1.bf16.msra.mxu0 0
  %3670 = vmatprep.subr.bf16.mxu0 0
  %3671 = vmatpush1.bf16.msra.mxu0 0
  %3672 = vmatprep.subr.bf16.mxu0 0
  %3673 = vmatpush1.bf16.msra.mxu0 0
  %3674 = vmatprep.subr.bf16.mxu0 0
  %3675 = vmatpush1.bf16.msra.mxu0 0
  %3676 = vmatprep.subr.bf16.mxu0 0
  %3677 = vmatpush1.bf16.msra.mxu0 0
  %3678 = vmatprep.subr.bf16.mxu0 0
  %3679 = vmatpush1.bf16.msra.mxu0 0
  %3680 = vmatprep.subr.bf16.mxu0 0
  %3681 = vmatpush1.bf16.msra.mxu0 0
  %3682 = vmatprep.mubr.bf16.mxu0 0
  %3683 = vmatmul.mubr.bf16.gmra.mrb[0].mxu0 %v3648
  %v3684 = vpop.f32.mrb[0].mxu0
  %v3685 = vadd.f32 0.0, %v3684
  %v3686 = vpop.f32.mrb[0].mxu0
  %v3687 = vadd.f32 0.0, %v3686
  %v3688 = vpop.f32.mrb[0].mxu0
  %v3689 = vpop.f32.mrb[0].mxu0
  %3690 = vdwg.mxu0
  %3691 = vmatprep.subr.bf16.mxu0 %v3642
  %3692 = vmatpush1.bf16.msra.mxu0 %v3641
  %3693 = vmatprep.subr.bf16.mxu0 %v3646
  %3694 = vmatpush1.bf16.msra.mxu0 %v3645
  %3695 = vmatprep.subr.bf16.mxu0 0
  %3696 = vmatpush1.bf16.msra.mxu0 0
  %3697 = vmatprep.subr.bf16.mxu0 0
  %3698 = vmatpush1.bf16.msra.mxu0 0
  %3699 = vmatprep.subr.bf16.mxu0 0
  %3700 = vmatpush1.bf16.msra.mxu0 0
  %3701 = vmatprep.subr.bf16.mxu0 0
  %3702 = vmatpush1.bf16.msra.mxu0 0
  %3703 = vmatprep.subr.bf16.mxu0 0
  %3704 = vmatpush1.bf16.msra.mxu0 0
  %3705 = vmatprep.subr.bf16.mxu0 0
  %3706 = vmatpush1.bf16.msra.mxu0 0
  %3707 = vmatprep.subr.bf16.mxu0 0
  %3708 = vmatpush1.bf16.msra.mxu0 0
  %3709 = vmatprep.subr.bf16.mxu0 0
  %3710 = vmatpush1.bf16.msra.mxu0 0
  %3711 = vmatprep.subr.bf16.mxu0 0
  %3712 = vmatpush1.bf16.msra.mxu0 0
  %3713 = vmatprep.subr.bf16.mxu0 0
  %3714 = vmatpush1.bf16.msra.mxu0 0
  %3715 = vmatprep.subr.bf16.mxu0 0
  %3716 = vmatpush1.bf16.msra.mxu0 0
  %3717 = vmatprep.subr.bf16.mxu0 0
  %3718 = vmatpush1.bf16.msra.mxu0 0
  %3719 = vmatprep.subr.bf16.mxu0 0
  %3720 = vmatpush1.bf16.msra.mxu0 0
  %3721 = vmatprep.subr.bf16.mxu0 0
  %3722 = vmatpush1.bf16.msra.mxu0 0
  %3723 = vmatprep.mubr.bf16.mxu0 0
  %3724 = vmatmul.mubr.bf16.gmra.mrb[0].mxu0 %v3648
  %v3725 = vpop.f32.mrb[0].mxu0
  %v3726 = vadd.f32 0.0, %v3725
  %v3727 = vpop.f32.mrb[0].mxu0
  %v3728 = vadd.f32 0.0, %v3727
  %v3729 = vpop.f32.mrb[0].mxu0
  %v3730 = vpop.f32.mrb[0].mxu0
  %3731 = vdwg.mxu0
  %v3732 = vadd.f32 %v3569, %v3685
  %v3733 = vadd.f32 %v3570, %v3687
  %v3734 = vadd.f32 %v3571, %v3726
  %v3735 = vadd.f32 %v3572, %v3728
  %s3736 = scalar_lea.vmem %s8, 4
  %v3737 = vld [vmem:[%s3736] sm:$0x1]
  %v3738 = vpack.c.bf16 %v3080, %v3076
  %v3739 = vpack.c.bf16 %v3081, %v3077
  %v3740 = vpack.c.bf16 %v3082, %v3078
  %v3741 = vpack.c.bf16 %v3083, %v3079
  %v3742 = vpack.c.bf16 %v3088, %v3084
  %v3743 = vpack.c.bf16 %v3089, %v3085
  %v3744 = vpack.c.bf16 %v3090, %v3086
  %v3745 = vpack.c.bf16 %v3091, %v3087
  %v3747 = vsel %vm3239, %v3737, 0
  %3749 = vmatprep.subr.bf16.mxu0 %v3739
  %3750 = vmatpush1.bf16.msra.mxu0 %v3738
  %3751 = vmatprep.subr.bf16.mxu0 %v3743
  %3752 = vmatpush1.bf16.msra.mxu0 %v3742
  %3753 = vmatprep.subr.bf16.mxu0 0
  %3754 = vmatpush1.bf16.msra.mxu0 0
  %3755 = vmatprep.subr.bf16.mxu0 0
  %3756 = vmatpush1.bf16.msra.mxu0 0
  %3757 = vmatprep.subr.bf16.mxu0 0
  %3758 = vmatpush1.bf16.msra.mxu0 0
  %3759 = vmatprep.subr.bf16.mxu0 0
  %3760 = vmatpush1.bf16.msra.mxu0 0
  %3761 = vmatprep.subr.bf16.mxu0 0
  %3762 = vmatpush1.bf16.msra.mxu0 0
  %3763 = vmatprep.subr.bf16.mxu0 0
  %3764 = vmatpush1.bf16.msra.mxu0 0
  %3765 = vmatprep.subr.bf16.mxu0 0
  %3766 = vmatpush1.bf16.msra.mxu0 0
  %3767 = vmatprep.subr.bf16.mxu0 0
  %3768 = vmatpush1.bf16.msra.mxu0 0
  %3769 = vmatprep.subr.bf16.mxu0 0
  %3770 = vmatpush1.bf16.msra.mxu0 0
  %3771 = vmatprep.subr.bf16.mxu0 0
  %3772 = vmatpush1.bf16.msra.mxu0 0
  %3773 = vmatprep.subr.bf16.mxu0 0
  %3774 = vmatpush1.bf16.msra.mxu0 0
  %3775 = vmatprep.subr.bf16.mxu0 0
  %3776 = vmatpush1.bf16.msra.mxu0 0
  %3777 = vmatprep.subr.bf16.mxu0 0
  %3778 = vmatpush1.bf16.msra.mxu0 0
  %3779 = vmatprep.subr.bf16.mxu0 0
  %3780 = vmatpush1.bf16.msra.mxu0 0
  %3781 = vmatprep.mubr.bf16.mxu0 0
  %3782 = vmatmul.mubr.bf16.gmra.mrb[0].mxu0 %v3747
  %v3783 = vpop.f32.mrb[0].mxu0
  %v3784 = vadd.f32 0.0, %v3783
  %v3785 = vpop.f32.mrb[0].mxu0
  %v3786 = vadd.f32 0.0, %v3785
  %v3787 = vpop.f32.mrb[0].mxu0
  %v3788 = vpop.f32.mrb[0].mxu0
  %3789 = vdwg.mxu0
  %3790 = vmatprep.subr.bf16.mxu0 %v3741
  %3791 = vmatpush1.bf16.msra.mxu0 %v3740
  %3792 = vmatprep.subr.bf16.mxu0 %v3745
  %3793 = vmatpush1.bf16.msra.mxu0 %v3744
  %3794 = vmatprep.subr.bf16.mxu0 0
  %3795 = vmatpush1.bf16.msra.mxu0 0
  %3796 = vmatprep.subr.bf16.mxu0 0
  %3797 = vmatpush1.bf16.msra.mxu0 0
  %3798 = vmatprep.subr.bf16.mxu0 0
  %3799 = vmatpush1.bf16.msra.mxu0 0
  %3800 = vmatprep.subr.bf16.mxu0 0
  %3801 = vmatpush1.bf16.msra.mxu0 0
  %3802 = vmatprep.subr.bf16.mxu0 0
  %3803 = vmatpush1.bf16.msra.mxu0 0
  %3804 = vmatprep.subr.bf16.mxu0 0
  %3805 = vmatpush1.bf16.msra.mxu0 0
  %3806 = vmatprep.subr.bf16.mxu0 0
  %3807 = vmatpush1.bf16.msra.mxu0 0
  %3808 = vmatprep.subr.bf16.mxu0 0
  %3809 = vmatpush1.bf16.msra.mxu0 0
  %3810 = vmatprep.subr.bf16.mxu0 0
  %3811 = vmatpush1.bf16.msra.mxu0 0
  %3812 = vmatprep.subr.bf16.mxu0 0
  %3813 = vmatpush1.bf16.msra.mxu0 0
  %3814 = vmatprep.subr.bf16.mxu0 0
  %3815 = vmatpush1.bf16.msra.mxu0 0
  %3816 = vmatprep.subr.bf16.mxu0 0
  %3817 = vmatpush1.bf16.msra.mxu0 0
  %3818 = vmatprep.subr.bf16.mxu0 0
  %3819 = vmatpush1.bf16.msra.mxu0 0
  %3820 = vmatprep.subr.bf16.mxu0 0
  %3821 = vmatpush1.bf16.msra.mxu0 0
  %3822 = vmatprep.mubr.bf16.mxu0 0
  %3823 = vmatmul.mubr.bf16.gmra.mrb[0].mxu0 %v3747
  %v3824 = vpop.f32.mrb[0].mxu0
  %v3825 = vadd.f32 0.0, %v3824
  %v3826 = vpop.f32.mrb[0].mxu0
  %v3827 = vadd.f32 0.0, %v3826
  %v3828 = vpop.f32.mrb[0].mxu0
  %v3829 = vpop.f32.mrb[0].mxu0
  %3830 = vdwg.mxu0
  %v3831 = vadd.f32 %v3732, %v3784
  %v3832 = vadd.f32 %v3733, %v3786
  %v3833 = vadd.f32 %v3734, %v3825
  %v3834 = vadd.f32 %v3735, %v3827
  %3835 = vrot.lane.b32.xlu0 %v3076, 127
  %v3836 = vpop.permute.xlu0 %3835
  %3837 = vrot.lane.b32.xlu0 %v3080, 127
  %v3838 = vpop.permute.xlu0 %3837
  %3839 = vrot.lane.b32.xlu0 %v3084, 127
  %v3840 = vpop.permute.xlu0 %3839
  %3841 = vrot.lane.b32.xlu0 %v3088, 127
  %v3842 = vpop.permute.xlu0 %3841
  %3843 = vrot.lane.b32.xlu0 %v3077, 127
  %v3844 = vpop.permute.xlu0 %3843
  %3845 = vrot.lane.b32.xlu0 %v3081, 127
  %v3846 = vpop.permute.xlu0 %3845
  %3847 = vrot.lane.b32.xlu0 %v3085, 127
  %v3848 = vpop.permute.xlu0 %3847
  %3849 = vrot.lane.b32.xlu0 %v3089, 127
  %v3850 = vpop.permute.xlu0 %3849
  %3851 = vrot.lane.b32.xlu0 %v3078, 127
  %v3852 = vpop.permute.xlu0 %3851
  %3853 = vrot.lane.b32.xlu0 %v3082, 127
  %v3854 = vpop.permute.xlu0 %3853
  %3855 = vrot.lane.b32.xlu0 %v3086, 127
  %v3856 = vpop.permute.xlu0 %3855
  %3857 = vrot.lane.b32.xlu0 %v3090, 127
  %v3858 = vpop.permute.xlu0 %3857
  %3859 = vrot.lane.b32.xlu0 %v3079, 127
  %v3860 = vpop.permute.xlu0 %3859
  %3861 = vrot.lane.b32.xlu0 %v3083, 127
  %v3862 = vpop.permute.xlu0 %3861
  %3863 = vrot.lane.b32.xlu0 %v3087, 127
  %v3864 = vpop.permute.xlu0 %3863
  %3865 = vrot.lane.b32.xlu0 %v3091, 127
  %v3866 = vpop.permute.xlu0 %3865
  %v3867 = vsel %vm1856, %v3852, %v3860
  %v3868 = vsel %vm1856, %v3854, %v3862
  %v3869 = vsel %vm1856, %v3856, %v3864
  %v3870 = vsel %vm1856, %v3858, %v3866
  %v3871 = vsel %vm1856, %v3844, %v3852
  %v3872 = vsel %vm1856, %v3846, %v3854
  %v3873 = vsel %vm1856, %v3848, %v3856
  %v3874 = vsel %vm1856, %v3850, %v3858
  %v3875 = vsel %vm1856, %v3836, %v3844
  %v3876 = vsel %vm1856, %v3838, %v3846
  %v3877 = vsel %vm1856, %v3840, %v3848
  %v3878 = vsel %vm1856, %v3842, %v3850
  %v3879 = vsel %vm1856, %v3860, %v3836
  %v3880 = vsel %vm1856, %v3862, %v3838
  %v3881 = vsel %vm1856, %v3864, %v3840
  %v3882 = vsel %vm1856, %v3866, %v3842
  %v3883 = vmul.f32 %v3875, %v1895
  %v3884 = vmul.f32 %v3871, %v1899
  %v3885 = vmul.f32 %v3867, %v1903
  %v3886 = vmul.f32 %v3879, %v1907
  %v3887 = vmul.f32 %v3876, %v1895
  %v3888 = vmul.f32 %v3872, %v1899
  %v3889 = vmul.f32 %v3868, %v1903
  %v3890 = vmul.f32 %v3880, %v1907
  %v3891 = vmul.f32 %v3877, %v1895
  %v3892 = vmul.f32 %v3873, %v1899
  %v3893 = vmul.f32 %v3869, %v1903
  %v3894 = vmul.f32 %v3881, %v1907
  %v3895 = vmul.f32 %v3878, %v1895
  %v3896 = vmul.f32 %v3874, %v1899
  %v3897 = vmul.f32 %v3870, %v1903
  %v3898 = vmul.f32 %v3882, %v1907
  %s3899 = scalar_lea.vmem %s8, 5
  %v3900 = vld [vmem:[%s3899] sm:$0x1]
  %v3901 = vpack.c.bf16 %v3887, %v3883
  %v3902 = vpack.c.bf16 %v3888, %v3884
  %v3903 = vpack.c.bf16 %v3889, %v3885
  %v3904 = vpack.c.bf16 %v3890, %v3886
  %v3905 = vpack.c.bf16 %v3895, %v3891
  %v3906 = vpack.c.bf16 %v3896, %v3892
  %v3907 = vpack.c.bf16 %v3897, %v3893
  %v3908 = vpack.c.bf16 %v3898, %v3894
  %v3910 = vsel %vm3239, %v3900, 0
  %3912 = vmatprep.subr.bf16.mxu0 %v3902
  %3913 = vmatpush1.bf16.msra.mxu0 %v3901
  %3914 = vmatprep.subr.bf16.mxu0 %v3906
  %3915 = vmatpush1.bf16.msra.mxu0 %v3905
  %3916 = vmatprep.subr.bf16.mxu0 0
  %3917 = vmatpush1.bf16.msra.mxu0 0
  %3918 = vmatprep.subr.bf16.mxu0 0
  %3919 = vmatpush1.bf16.msra.mxu0 0
  %3920 = vmatprep.subr.bf16.mxu0 0
  %3921 = vmatpush1.bf16.msra.mxu0 0
  %3922 = vmatprep.subr.bf16.mxu0 0
  %3923 = vmatpush1.bf16.msra.mxu0 0
  %3924 = vmatprep.subr.bf16.mxu0 0
  %3925 = vmatpush1.bf16.msra.mxu0 0
  %3926 = vmatprep.subr.bf16.mxu0 0
  %3927 = vmatpush1.bf16.msra.mxu0 0
  %3928 = vmatprep.subr.bf16.mxu0 0
  %3929 = vmatpush1.bf16.msra.mxu0 0
  %3930 = vmatprep.subr.bf16.mxu0 0
  %3931 = vmatpush1.bf16.msra.mxu0 0
  %3932 = vmatprep.subr.bf16.mxu0 0
  %3933 = vmatpush1.bf16.msra.mxu0 0
  %3934 = vmatprep.subr.bf16.mxu0 0
  %3935 = vmatpush1.bf16.msra.mxu0 0
  %3936 = vmatprep.subr.bf16.mxu0 0
  %3937 = vmatpush1.bf16.msra.mxu0 0
  %3938 = vmatprep.subr.bf16.mxu0 0
  %3939 = vmatpush1.bf16.msra.mxu0 0
  %3940 = vmatprep.subr.bf16.mxu0 0
  %3941 = vmatpush1.bf16.msra.mxu0 0
  %3942 = vmatprep.subr.bf16.mxu0 0
  %3943 = vmatpush1.bf16.msra.mxu0 0
  %3944 = vmatprep.mubr.bf16.mxu0 0
  %3945 = vmatmul.mubr.bf16.gmra.mrb[0].mxu0 %v3910
  %v3946 = vpop.f32.mrb[0].mxu0
  %v3947 = vadd.f32 0.0, %v3946
  %v3948 = vpop.f32.mrb[0].mxu0
  %v3949 = vadd.f32 0.0, %v3948
  %v3950 = vpop.f32.mrb[0].mxu0
  %v3951 = vpop.f32.mrb[0].mxu0
  %3952 = vdwg.mxu0
  %3953 = vmatprep.subr.bf16.mxu0 %v3904
  %3954 = vmatpush1.bf16.msra.mxu0 %v3903
  %3955 = vmatprep.subr.bf16.mxu0 %v3908
  %3956 = vmatpush1.bf16.msra.mxu0 %v3907
  %3957 = vmatprep.subr.bf16.mxu0 0
  %3958 = vmatpush1.bf16.msra.mxu0 0
  %3959 = vmatprep.subr.bf16.mxu0 0
  %3960 = vmatpush1.bf16.msra.mxu0 0
  %3961 = vmatprep.subr.bf16.mxu0 0
  %3962 = vmatpush1.bf16.msra.mxu0 0
  %3963 = vmatprep.subr.bf16.mxu0 0
  %3964 = vmatpush1.bf16.msra.mxu0 0
  %3965 = vmatprep.subr.bf16.mxu0 0
  %3966 = vmatpush1.bf16.msra.mxu0 0
  %3967 = vmatprep.subr.bf16.mxu0 0
  %3968 = vmatpush1.bf16.msra.mxu0 0
  %3969 = vmatprep.subr.bf16.mxu0 0
  %3970 = vmatpush1.bf16.msra.mxu0 0
  %3971 = vmatprep.subr.bf16.mxu0 0
  %3972 = vmatpush1.bf16.msra.mxu0 0
  %3973 = vmatprep.subr.bf16.mxu0 0
  %3974 = vmatpush1.bf16.msra.mxu0 0
  %3975 = vmatprep.subr.bf16.mxu0 0
  %3976 = vmatpush1.bf16.msra.mxu0 0
  %3977 = vmatprep.subr.bf16.mxu0 0
  %3978 = vmatpush1.bf16.msra.mxu0 0
  %3979 = vmatprep.subr.bf16.mxu0 0
  %3980 = vmatpush1.bf16.msra.mxu0 0
  %3981 = vmatprep.subr.bf16.mxu0 0
  %3982 = vmatpush1.bf16.msra.mxu0 0
  %3983 = vmatprep.subr.bf16.mxu0 0
  %3984 = vmatpush1.bf16.msra.mxu0 0
  %3985 = vmatprep.mubr.bf16.mxu0 0
  %3986 = vmatmul.mubr.bf16.gmra.mrb[0].mxu0 %v3910
  %v3987 = vpop.f32.mrb[0].mxu0
  %v3988 = vadd.f32 0.0, %v3987
  %v3989 = vpop.f32.mrb[0].mxu0
  %v3990 = vadd.f32 0.0, %v3989
  %v3991 = vpop.f32.mrb[0].mxu0
  %v3992 = vpop.f32.mrb[0].mxu0
  %3993 = vdwg.mxu0
  %v3994 = vadd.f32 %v3831, %v3947
  %v3995 = vadd.f32 %v3832, %v3949
  %v3996 = vadd.f32 %v3833, %v3988
  %v3997 = vadd.f32 %v3834, %v3990
  %3998 = vrot.lane.b32.xlu0 %v3076, 113
  %v3999 = vpop.permute.xlu0 %3998
  %4000 = vrot.lane.b32.xlu0 %v3080, 113
  %v4001 = vpop.permute.xlu0 %4000
  %4002 = vrot.lane.b32.xlu0 %v3084, 113
  %v4003 = vpop.permute.xlu0 %4002
  %4004 = vrot.lane.b32.xlu0 %v3088, 113
  %v4005 = vpop.permute.xlu0 %4004
  %4006 = vrot.lane.b32.xlu0 %v3077, 113
  %v4007 = vpop.permute.xlu0 %4006
  %4008 = vrot.lane.b32.xlu0 %v3081, 113
  %v4009 = vpop.permute.xlu0 %4008
  %4010 = vrot.lane.b32.xlu0 %v3085, 113
  %v4011 = vpop.permute.xlu0 %4010
  %4012 = vrot.lane.b32.xlu0 %v3089, 113
  %v4013 = vpop.permute.xlu0 %4012
  %4014 = vrot.lane.b32.xlu0 %v3078, 113
  %v4015 = vpop.permute.xlu0 %4014
  %4016 = vrot.lane.b32.xlu0 %v3082, 113
  %v4017 = vpop.permute.xlu0 %4016
  %4018 = vrot.lane.b32.xlu0 %v3086, 113
  %v4019 = vpop.permute.xlu0 %4018
  %4020 = vrot.lane.b32.xlu0 %v3090, 113
  %v4021 = vpop.permute.xlu0 %4020
  %4022 = vrot.lane.b32.xlu0 %v3079, 113
  %v4023 = vpop.permute.xlu0 %4022
  %4024 = vrot.lane.b32.xlu0 %v3083, 113
  %v4025 = vpop.permute.xlu0 %4024
  %4026 = vrot.lane.b32.xlu0 %v3087, 113
  %v4027 = vpop.permute.xlu0 %4026
  %4028 = vrot.lane.b32.xlu0 %v3091, 113
  %v4029 = vpop.permute.xlu0 %4028
  %v4030 = vsel %vm2167, %v4015, %v4023
  %v4031 = vsel %vm2167, %v4017, %v4025
  %v4032 = vsel %vm2167, %v4019, %v4027
  %v4033 = vsel %vm2167, %v4021, %v4029
  %v4034 = vsel %vm2167, %v4007, %v4015
  %v4035 = vsel %vm2167, %v4009, %v4017
  %v4036 = vsel %vm2167, %v4011, %v4019
  %v4037 = vsel %vm2167, %v4013, %v4021
  %v4038 = vsel %vm2167, %v3999, %v4007
  %v4039 = vsel %vm2167, %v4001, %v4009
  %v4040 = vsel %vm2167, %v4003, %v4011
  %v4041 = vsel %vm2167, %v4005, %v4013
  %v4042 = vsel %vm2167, %v4023, %v3999
  %v4043 = vsel %vm2167, %v4025, %v4001
  %v4044 = vsel %vm2167, %v4027, %v4003
  %v4045 = vsel %vm2167, %v4029, %v4005
  %v4046 = vmul.f32 %v4038, %v2206
  %v4047 = vmul.f32 %v4034, %v2210
  %v4048 = vmul.f32 %v4030, %v2214
  %v4049 = vmul.f32 %v4042, %v2218
  %v4050 = vmul.f32 %v4039, %v2206
  %v4051 = vmul.f32 %v4035, %v2210
  %v4052 = vmul.f32 %v4031, %v2214
  %v4053 = vmul.f32 %v4043, %v2218
  %v4054 = vmul.f32 %v4040, %v2206
  %v4055 = vmul.f32 %v4036, %v2210
  %v4056 = vmul.f32 %v4032, %v2214
  %v4057 = vmul.f32 %v4044, %v2218
  %v4058 = vmul.f32 %v4041, %v2206
  %v4059 = vmul.f32 %v4037, %v2210
  %v4060 = vmul.f32 %v4033, %v2214
  %v4061 = vmul.f32 %v4045, %v2218
  %s4062 = scalar_lea.vmem %s8, 6
  %v4063 = vld [vmem:[%s4062] sm:$0x1]
  %v4064 = vpack.c.bf16 %v4050, %v4046
  %v4065 = vpack.c.bf16 %v4051, %v4047
  %v4066 = vpack.c.bf16 %v4052, %v4048
  %v4067 = vpack.c.bf16 %v4053, %v4049
  %v4068 = vpack.c.bf16 %v4058, %v4054
  %v4069 = vpack.c.bf16 %v4059, %v4055
  %v4070 = vpack.c.bf16 %v4060, %v4056
  %v4071 = vpack.c.bf16 %v4061, %v4057
  %v4073 = vsel %vm3239, %v4063, 0
  %4075 = vmatprep.subr.bf16.mxu0 %v4065
  %4076 = vmatpush1.bf16.msra.mxu0 %v4064
  %4077 = vmatprep.subr.bf16.mxu0 %v4069
  %4078 = vmatpush1.bf16.msra.mxu0 %v4068
  %4079 = vmatprep.subr.bf16.mxu0 0
  %4080 = vmatpush1.bf16.msra.mxu0 0
  %4081 = vmatprep.subr.bf16.mxu0 0
  %4082 = vmatpush1.bf16.msra.mxu0 0
  %4083 = vmatprep.subr.bf16.mxu0 0
  %4084 = vmatpush1.bf16.msra.mxu0 0
  %4085 = vmatprep.subr.bf16.mxu0 0
  %4086 = vmatpush1.bf16.msra.mxu0 0
  %4087 = vmatprep.subr.bf16.mxu0 0
  %4088 = vmatpush1.bf16.msra.mxu0 0
  %4089 = vmatprep.subr.bf16.mxu0 0
  %4090 = vmatpush1.bf16.msra.mxu0 0
  %4091 = vmatprep.subr.bf16.mxu0 0
  %4092 = vmatpush1.bf16.msra.mxu0 0
  %4093 = vmatprep.subr.bf16.mxu0 0
  %4094 = vmatpush1.bf16.msra.mxu0 0
  %4095 = vmatprep.subr.bf16.mxu0 0
  %4096 = vmatpush1.bf16.msra.mxu0 0
  %4097 = vmatprep.subr.bf16.mxu0 0
  %4098 = vmatpush1.bf16.msra.mxu0 0
  %4099 = vmatprep.subr.bf16.mxu0 0
  %4100 = vmatpush1.bf16.msra.mxu0 0
  %4101 = vmatprep.subr.bf16.mxu0 0
  %4102 = vmatpush1.bf16.msra.mxu0 0
  %4103 = vmatprep.subr.bf16.mxu0 0
  %4104 = vmatpush1.bf16.msra.mxu0 0
  %4105 = vmatprep.subr.bf16.mxu0 0
  %4106 = vmatpush1.bf16.msra.mxu0 0
  %4107 = vmatprep.mubr.bf16.mxu0 0
  %4108 = vmatmul.mubr.bf16.gmra.mrb[0].mxu0 %v4073
  %v4109 = vpop.f32.mrb[0].mxu0
  %v4110 = vadd.f32 0.0, %v4109
  %v4111 = vpop.f32.mrb[0].mxu0
  %v4112 = vadd.f32 0.0, %v4111
  %v4113 = vpop.f32.mrb[0].mxu0
  %v4114 = vpop.f32.mrb[0].mxu0
  %4115 = vdwg.mxu0
  %4116 = vmatprep.subr.bf16.mxu0 %v4067
  %4117 = vmatpush1.bf16.msra.mxu0 %v4066
  %4118 = vmatprep.subr.bf16.mxu0 %v4071
  %4119 = vmatpush1.bf16.msra.mxu0 %v4070
  %4120 = vmatprep.subr.bf16.mxu0 0
  %4121 = vmatpush1.bf16.msra.mxu0 0
  %4122 = vmatprep.subr.bf16.mxu0 0
  %4123 = vmatpush1.bf16.msra.mxu0 0
  %4124 = vmatprep.subr.bf16.mxu0 0
  %4125 = vmatpush1.bf16.msra.mxu0 0
  %4126 = vmatprep.subr.bf16.mxu0 0
  %4127 = vmatpush1.bf16.msra.mxu0 0
  %4128 = vmatprep.subr.bf16.mxu0 0
  %4129 = vmatpush1.bf16.msra.mxu0 0
  %4130 = vmatprep.subr.bf16.mxu0 0
  %4131 = vmatpush1.bf16.msra.mxu0 0
  %4132 = vmatprep.subr.bf16.mxu0 0
  %4133 = vmatpush1.bf16.msra.mxu0 0
  %4134 = vmatprep.subr.bf16.mxu0 0
  %4135 = vmatpush1.bf16.msra.mxu0 0
  %4136 = vmatprep.subr.bf16.mxu0 0
  %4137 = vmatpush1.bf16.msra.mxu0 0
  %4138 = vmatprep.subr.bf16.mxu0 0
  %4139 = vmatpush1.bf16.msra.mxu0 0
  %4140 = vmatprep.subr.bf16.mxu0 0
  %4141 = vmatpush1.bf16.msra.mxu0 0
  %4142 = vmatprep.subr.bf16.mxu0 0
  %4143 = vmatpush1.bf16.msra.mxu0 0
  %4144 = vmatprep.subr.bf16.mxu0 0
  %4145 = vmatpush1.bf16.msra.mxu0 0
  %4146 = vmatprep.subr.bf16.mxu0 0
  %4147 = vmatpush1.bf16.msra.mxu0 0
  %4148 = vmatprep.mubr.bf16.mxu0 0
  %4149 = vmatmul.mubr.bf16.gmra.mrb[0].mxu0 %v4073
  %v4150 = vpop.f32.mrb[0].mxu0
  %v4151 = vadd.f32 0.0, %v4150
  %v4152 = vpop.f32.mrb[0].mxu0
  %v4153 = vadd.f32 0.0, %v4152
  %v4154 = vpop.f32.mrb[0].mxu0
  %v4155 = vpop.f32.mrb[0].mxu0
  %4156 = vdwg.mxu0
  %v4157 = vadd.f32 %v3994, %v4110
  %v4158 = vadd.f32 %v3995, %v4112
  %v4159 = vadd.f32 %v3996, %v4151
  %v4160 = vadd.f32 %v3997, %v4153
  %4161 = vrot.lane.b32.xlu0 %v3076, 112
  %v4162 = vpop.permute.xlu0 %4161
  %4163 = vrot.lane.b32.xlu0 %v3080, 112
  %v4164 = vpop.permute.xlu0 %4163
  %4165 = vrot.lane.b32.xlu0 %v3084, 112
  %v4166 = vpop.permute.xlu0 %4165
  %4167 = vrot.lane.b32.xlu0 %v3088, 112
  %v4168 = vpop.permute.xlu0 %4167
  %4169 = vrot.lane.b32.xlu0 %v3077, 112
  %v4170 = vpop.permute.xlu0 %4169
  %4171 = vrot.lane.b32.xlu0 %v3081, 112
  %v4172 = vpop.permute.xlu0 %4171
  %4173 = vrot.lane.b32.xlu0 %v3085, 112
  %v4174 = vpop.permute.xlu0 %4173
  %4175 = vrot.lane.b32.xlu0 %v3089, 112
  %v4176 = vpop.permute.xlu0 %4175
  %4177 = vrot.lane.b32.xlu0 %v3078, 112
  %v4178 = vpop.permute.xlu0 %4177
  %4179 = vrot.lane.b32.xlu0 %v3082, 112
  %v4180 = vpop.permute.xlu0 %4179
  %4181 = vrot.lane.b32.xlu0 %v3086, 112
  %v4182 = vpop.permute.xlu0 %4181
  %4183 = vrot.lane.b32.xlu0 %v3090, 112
  %v4184 = vpop.permute.xlu0 %4183
  %4185 = vrot.lane.b32.xlu0 %v3079, 112
  %v4186 = vpop.permute.xlu0 %4185
  %4187 = vrot.lane.b32.xlu0 %v3083, 112
  %v4188 = vpop.permute.xlu0 %4187
  %4189 = vrot.lane.b32.xlu0 %v3087, 112
  %v4190 = vpop.permute.xlu0 %4189
  %4191 = vrot.lane.b32.xlu0 %v3091, 112
  %v4192 = vpop.permute.xlu0 %4191
  %v4193 = vsel %vm2478, %v4178, %v4186
  %v4194 = vsel %vm2478, %v4180, %v4188
  %v4195 = vsel %vm2478, %v4182, %v4190
  %v4196 = vsel %vm2478, %v4184, %v4192
  %v4197 = vsel %vm2478, %v4170, %v4178
  %v4198 = vsel %vm2478, %v4172, %v4180
  %v4199 = vsel %vm2478, %v4174, %v4182
  %v4200 = vsel %vm2478, %v4176, %v4184
  %v4201 = vsel %vm2478, %v4162, %v4170
  %v4202 = vsel %vm2478, %v4164, %v4172
  %v4203 = vsel %vm2478, %v4166, %v4174
  %v4204 = vsel %vm2478, %v4168, %v4176
  %v4205 = vsel %vm2478, %v4186, %v4162
  %v4206 = vsel %vm2478, %v4188, %v4164
  %v4207 = vsel %vm2478, %v4190, %v4166
  %v4208 = vsel %vm2478, %v4192, %v4168
  %v4209 = vmul.f32 %v4201, %v2517
  %v4210 = vmul.f32 %v4197, %v2521
  %v4211 = vmul.f32 %v4193, %v2525
  %v4212 = vmul.f32 %v4205, %v2529
  %v4213 = vmul.f32 %v4202, %v2517
  %v4214 = vmul.f32 %v4198, %v2521
  %v4215 = vmul.f32 %v4194, %v2525
  %v4216 = vmul.f32 %v4206, %v2529
  %v4217 = vmul.f32 %v4203, %v2517
  %v4218 = vmul.f32 %v4199, %v2521
  %v4219 = vmul.f32 %v4195, %v2525
  %v4220 = vmul.f32 %v4207, %v2529
  %v4221 = vmul.f32 %v4204, %v2517
  %v4222 = vmul.f32 %v4200, %v2521
  %v4223 = vmul.f32 %v4196, %v2525
  %v4224 = vmul.f32 %v4208, %v2529
  %s4225 = scalar_lea.vmem %s8, 7
  %v4226 = vld [vmem:[%s4225] sm:$0x1]
  %v4227 = vpack.c.bf16 %v4213, %v4209
  %v4228 = vpack.c.bf16 %v4214, %v4210
  %v4229 = vpack.c.bf16 %v4215, %v4211
  %v4230 = vpack.c.bf16 %v4216, %v4212
  %v4231 = vpack.c.bf16 %v4221, %v4217
  %v4232 = vpack.c.bf16 %v4222, %v4218
  %v4233 = vpack.c.bf16 %v4223, %v4219
  %v4234 = vpack.c.bf16 %v4224, %v4220
  %v4236 = vsel %vm3239, %v4226, 0
  %4238 = vmatprep.subr.bf16.mxu0 %v4228
  %4239 = vmatpush1.bf16.msra.mxu0 %v4227
  %4240 = vmatprep.subr.bf16.mxu0 %v4232
  %4241 = vmatpush1.bf16.msra.mxu0 %v4231
  %4242 = vmatprep.subr.bf16.mxu0 0
  %4243 = vmatpush1.bf16.msra.mxu0 0
  %4244 = vmatprep.subr.bf16.mxu0 0
  %4245 = vmatpush1.bf16.msra.mxu0 0
  %4246 = vmatprep.subr.bf16.mxu0 0
  %4247 = vmatpush1.bf16.msra.mxu0 0
  %4248 = vmatprep.subr.bf16.mxu0 0
  %4249 = vmatpush1.bf16.msra.mxu0 0
  %4250 = vmatprep.subr.bf16.mxu0 0
  %4251 = vmatpush1.bf16.msra.mxu0 0
  %4252 = vmatprep.subr.bf16.mxu0 0
  %4253 = vmatpush1.bf16.msra.mxu0 0
  %4254 = vmatprep.subr.bf16.mxu0 0
  %4255 = vmatpush1.bf16.msra.mxu0 0
  %4256 = vmatprep.subr.bf16.mxu0 0
  %4257 = vmatpush1.bf16.msra.mxu0 0
  %4258 = vmatprep.subr.bf16.mxu0 0
  %4259 = vmatpush1.bf16.msra.mxu0 0
  %4260 = vmatprep.subr.bf16.mxu0 0
  %4261 = vmatpush1.bf16.msra.mxu0 0
  %4262 = vmatprep.subr.bf16.mxu0 0
  %4263 = vmatpush1.bf16.msra.mxu0 0
  %4264 = vmatprep.subr.bf16.mxu0 0
  %4265 = vmatpush1.bf16.msra.mxu0 0
  %4266 = vmatprep.subr.bf16.mxu0 0
  %4267 = vmatpush1.bf16.msra.mxu0 0
  %4268 = vmatprep.subr.bf16.mxu0 0
  %4269 = vmatpush1.bf16.msra.mxu0 0
  %4270 = vmatprep.mubr.bf16.mxu0 0
  %4271 = vmatmul.mubr.bf16.gmra.mrb[0].mxu0 %v4236
  %v4272 = vpop.f32.mrb[0].mxu0
  %v4273 = vadd.f32 0.0, %v4272
  %v4274 = vpop.f32.mrb[0].mxu0
  %v4275 = vadd.f32 0.0, %v4274
  %v4276 = vpop.f32.mrb[0].mxu0
  %v4277 = vpop.f32.mrb[0].mxu0
  %4278 = vdwg.mxu0
  %4279 = vmatprep.subr.bf16.mxu0 %v4230
  %4280 = vmatpush1.bf16.msra.mxu0 %v4229
  %4281 = vmatprep.subr.bf16.mxu0 %v4234
  %4282 = vmatpush1.bf16.msra.mxu0 %v4233
  %4283 = vmatprep.subr.bf16.mxu0 0
  %4284 = vmatpush1.bf16.msra.mxu0 0
  %4285 = vmatprep.subr.bf16.mxu0 0
  %4286 = vmatpush1.bf16.msra.mxu0 0
  %4287 = vmatprep.subr.bf16.mxu0 0
  %4288 = vmatpush1.bf16.msra.mxu0 0
  %4289 = vmatprep.subr.bf16.mxu0 0
  %4290 = vmatpush1.bf16.msra.mxu0 0
  %4291 = vmatprep.subr.bf16.mxu0 0
  %4292 = vmatpush1.bf16.msra.mxu0 0
  %4293 = vmatprep.subr.bf16.mxu0 0
  %4294 = vmatpush1.bf16.msra.mxu0 0
  %4295 = vmatprep.subr.bf16.mxu0 0
  %4296 = vmatpush1.bf16.msra.mxu0 0
  %4297 = vmatprep.subr.bf16.mxu0 0
  %4298 = vmatpush1.bf16.msra.mxu0 0
  %4299 = vmatprep.subr.bf16.mxu0 0
  %4300 = vmatpush1.bf16.msra.mxu0 0
  %4301 = vmatprep.subr.bf16.mxu0 0
  %4302 = vmatpush1.bf16.msra.mxu0 0
  %4303 = vmatprep.subr.bf16.mxu0 0
  %4304 = vmatpush1.bf16.msra.mxu0 0
  %4305 = vmatprep.subr.bf16.mxu0 0
  %4306 = vmatpush1.bf16.msra.mxu0 0
  %4307 = vmatprep.subr.bf16.mxu0 0
  %4308 = vmatpush1.bf16.msra.mxu0 0
  %4309 = vmatprep.subr.bf16.mxu0 0
  %4310 = vmatpush1.bf16.msra.mxu0 0
  %4311 = vmatprep.mubr.bf16.mxu0 0
  %4312 = vmatmul.mubr.bf16.gmra.mrb[0].mxu0 %v4236
  %v4313 = vpop.f32.mrb[0].mxu0
  %v4314 = vadd.f32 0.0, %v4313
  %v4315 = vpop.f32.mrb[0].mxu0
  %v4316 = vadd.f32 0.0, %v4315
  %v4317 = vpop.f32.mrb[0].mxu0
  %v4318 = vpop.f32.mrb[0].mxu0
  %4319 = vdwg.mxu0
  %v4320 = vadd.f32 %v4157, %v4273
  %v4321 = vadd.f32 %v4158, %v4275
  %v4322 = vadd.f32 %v4159, %v4314
  %v4323 = vadd.f32 %v4160, %v4316
  %4324 = vrot.lane.b32.xlu0 %v3076, 111
  %v4325 = vpop.permute.xlu0 %4324
  %4326 = vrot.lane.b32.xlu0 %v3080, 111
  %v4327 = vpop.permute.xlu0 %4326
  %4328 = vrot.lane.b32.xlu0 %v3084, 111
  %v4329 = vpop.permute.xlu0 %4328
  %4330 = vrot.lane.b32.xlu0 %v3088, 111
  %v4331 = vpop.permute.xlu0 %4330
  %4332 = vrot.lane.b32.xlu0 %v3077, 111
  %v4333 = vpop.permute.xlu0 %4332
  %4334 = vrot.lane.b32.xlu0 %v3081, 111
  %v4335 = vpop.permute.xlu0 %4334
  %4336 = vrot.lane.b32.xlu0 %v3085, 111
  %v4337 = vpop.permute.xlu0 %4336
  %4338 = vrot.lane.b32.xlu0 %v3089, 111
  %v4339 = vpop.permute.xlu0 %4338
  %4340 = vrot.lane.b32.xlu0 %v3078, 111
  %v4341 = vpop.permute.xlu0 %4340
  %4342 = vrot.lane.b32.xlu0 %v3082, 111
  %v4343 = vpop.permute.xlu0 %4342
  %4344 = vrot.lane.b32.xlu0 %v3086, 111
  %v4345 = vpop.permute.xlu0 %4344
  %4346 = vrot.lane.b32.xlu0 %v3090, 111
  %v4347 = vpop.permute.xlu0 %4346
  %4348 = vrot.lane.b32.xlu0 %v3079, 111
  %v4349 = vpop.permute.xlu0 %4348
  %4350 = vrot.lane.b32.xlu0 %v3083, 111
  %v4351 = vpop.permute.xlu0 %4350
  %4352 = vrot.lane.b32.xlu0 %v3087, 111
  %v4353 = vpop.permute.xlu0 %4352
  %4354 = vrot.lane.b32.xlu0 %v3091, 111
  %v4355 = vpop.permute.xlu0 %4354
  %v4356 = vsel %vm2789, %v4341, %v4349
  %v4357 = vsel %vm2789, %v4343, %v4351
  %v4358 = vsel %vm2789, %v4345, %v4353
  %v4359 = vsel %vm2789, %v4347, %v4355
  %v4360 = vsel %vm2789, %v4333, %v4341
  %v4361 = vsel %vm2789, %v4335, %v4343
  %v4362 = vsel %vm2789, %v4337, %v4345
  %v4363 = vsel %vm2789, %v4339, %v4347
  %v4364 = vsel %vm2789, %v4325, %v4333
  %v4365 = vsel %vm2789, %v4327, %v4335
  %v4366 = vsel %vm2789, %v4329, %v4337
  %v4367 = vsel %vm2789, %v4331, %v4339
  %v4368 = vsel %vm2789, %v4349, %v4325
  %v4369 = vsel %vm2789, %v4351, %v4327
  %v4370 = vsel %vm2789, %v4353, %v4329
  %v4371 = vsel %vm2789, %v4355, %v4331
  %v4372 = vmul.f32 %v4364, %v2828
  %v4373 = vmul.f32 %v4360, %v2832
  %v4374 = vmul.f32 %v4356, %v2836
  %v4375 = vmul.f32 %v4368, %v2840
  %v4376 = vmul.f32 %v4365, %v2828
  %v4377 = vmul.f32 %v4361, %v2832
  %v4378 = vmul.f32 %v4357, %v2836
  %v4379 = vmul.f32 %v4369, %v2840
  %v4380 = vmul.f32 %v4366, %v2828
  %v4381 = vmul.f32 %v4362, %v2832
  %v4382 = vmul.f32 %v4358, %v2836
  %v4383 = vmul.f32 %v4370, %v2840
  %v4384 = vmul.f32 %v4367, %v2828
  %v4385 = vmul.f32 %v4363, %v2832
  %v4386 = vmul.f32 %v4359, %v2836
  %v4387 = vmul.f32 %v4371, %v2840
  %s4388 = scalar_lea.vmem %s8, 8
  %v4389 = vld [vmem:[%s4388] sm:$0x1]
  %v4390 = vpack.c.bf16 %v4376, %v4372
  %v4391 = vpack.c.bf16 %v4377, %v4373
  %v4392 = vpack.c.bf16 %v4378, %v4374
  %v4393 = vpack.c.bf16 %v4379, %v4375
  %v4394 = vpack.c.bf16 %v4384, %v4380
  %v4395 = vpack.c.bf16 %v4385, %v4381
  %v4396 = vpack.c.bf16 %v4386, %v4382
  %v4397 = vpack.c.bf16 %v4387, %v4383
  %v4399 = vsel %vm3239, %v4389, 0
  %4401 = vmatprep.subr.bf16.mxu0 %v4391
  %4402 = vmatpush1.bf16.msra.mxu0 %v4390
  %4403 = vmatprep.subr.bf16.mxu0 %v4395
  %4404 = vmatpush1.bf16.msra.mxu0 %v4394
  %4405 = vmatprep.subr.bf16.mxu0 0
  %4406 = vmatpush1.bf16.msra.mxu0 0
  %4407 = vmatprep.subr.bf16.mxu0 0
  %4408 = vmatpush1.bf16.msra.mxu0 0
  %4409 = vmatprep.subr.bf16.mxu0 0
  %4410 = vmatpush1.bf16.msra.mxu0 0
  %4411 = vmatprep.subr.bf16.mxu0 0
  %4412 = vmatpush1.bf16.msra.mxu0 0
  %4413 = vmatprep.subr.bf16.mxu0 0
  %4414 = vmatpush1.bf16.msra.mxu0 0
  %4415 = vmatprep.subr.bf16.mxu0 0
  %4416 = vmatpush1.bf16.msra.mxu0 0
  %4417 = vmatprep.subr.bf16.mxu0 0
  %4418 = vmatpush1.bf16.msra.mxu0 0
  %4419 = vmatprep.subr.bf16.mxu0 0
  %4420 = vmatpush1.bf16.msra.mxu0 0
  %4421 = vmatprep.subr.bf16.mxu0 0
  %4422 = vmatpush1.bf16.msra.mxu0 0
  %4423 = vmatprep.subr.bf16.mxu0 0
  %4424 = vmatpush1.bf16.msra.mxu0 0
  %4425 = vmatprep.subr.bf16.mxu0 0
  %4426 = vmatpush1.bf16.msra.mxu0 0
  %4427 = vmatprep.subr.bf16.mxu0 0
  %4428 = vmatpush1.bf16.msra.mxu0 0
  %4429 = vmatprep.subr.bf16.mxu0 0
  %4430 = vmatpush1.bf16.msra.mxu0 0
  %4431 = vmatprep.subr.bf16.mxu0 0
  %4432 = vmatpush1.bf16.msra.mxu0 0
  %4433 = vmatprep.mubr.bf16.mxu0 0
  %4434 = vmatmul.mubr.bf16.gmra.mrb[0].mxu0 %v4399
  %v4435 = vpop.f32.mrb[0].mxu0
  %v4436 = vadd.f32 0.0, %v4435
  %v4437 = vpop.f32.mrb[0].mxu0
  %v4438 = vadd.f32 0.0, %v4437
  %v4439 = vpop.f32.mrb[0].mxu0
  %v4440 = vpop.f32.mrb[0].mxu0
  %4441 = vdwg.mxu0
  %4442 = vmatprep.subr.bf16.mxu0 %v4393
  %4443 = vmatpush1.bf16.msra.mxu0 %v4392
  %4444 = vmatprep.subr.bf16.mxu0 %v4397
  %4445 = vmatpush1.bf16.msra.mxu0 %v4396
  %4446 = vmatprep.subr.bf16.mxu0 0
  %4447 = vmatpush1.bf16.msra.mxu0 0
  %4448 = vmatprep.subr.bf16.mxu0 0
  %4449 = vmatpush1.bf16.msra.mxu0 0
  %4450 = vmatprep.subr.bf16.mxu0 0
  %4451 = vmatpush1.bf16.msra.mxu0 0
  %4452 = vmatprep.subr.bf16.mxu0 0
  %4453 = vmatpush1.bf16.msra.mxu0 0
  %4454 = vmatprep.subr.bf16.mxu0 0
  %4455 = vmatpush1.bf16.msra.mxu0 0
  %4456 = vmatprep.subr.bf16.mxu0 0
  %4457 = vmatpush1.bf16.msra.mxu0 0
  %4458 = vmatprep.subr.bf16.mxu0 0
  %4459 = vmatpush1.bf16.msra.mxu0 0
  %4460 = vmatprep.subr.bf16.mxu0 0
  %4461 = vmatpush1.bf16.msra.mxu0 0
  %4462 = vmatprep.subr.bf16.mxu0 0
  %4463 = vmatpush1.bf16.msra.mxu0 0
  %4464 = vmatprep.subr.bf16.mxu0 0
  %4465 = vmatpush1.bf16.msra.mxu0 0
  %4466 = vmatprep.subr.bf16.mxu0 0
  %4467 = vmatpush1.bf16.msra.mxu0 0
  %4468 = vmatprep.subr.bf16.mxu0 0
  %4469 = vmatpush1.bf16.msra.mxu0 0
  %4470 = vmatprep.subr.bf16.mxu0 0
  %4471 = vmatpush1.bf16.msra.mxu0 0
  %4472 = vmatprep.subr.bf16.mxu0 0
  %4473 = vmatpush1.bf16.msra.mxu0 0
  %4474 = vmatprep.mubr.bf16.mxu0 0
  %4475 = vmatmul.mubr.bf16.gmra.mrb[0].mxu0 %v4399
  %v4476 = vpop.f32.mrb[0].mxu0
  %v4477 = vadd.f32 0.0, %v4476
  %v4478 = vpop.f32.mrb[0].mxu0
  %v4479 = vadd.f32 0.0, %v4478
  %v4480 = vpop.f32.mrb[0].mxu0
  %v4481 = vpop.f32.mrb[0].mxu0
  %4482 = vdwg.mxu0
  %v4483 = vadd.f32 %v4320, %v4436
  %v4484 = vadd.f32 %v4321, %v4438
  %v4485 = vadd.f32 %v4322, %v4477
  %v4486 = vadd.f32 %v4323, %v4479
  %v4487 = vld [vmem:[#allocation2] sm:$0x1]
  %4489 = vset.pattern.permute.xlu0 0
  %4490 = vperm.xlu0 %4489, %v4487
  %v4491 = vpop.permute.xlu0 %4490
  %v4493 = vlaneseq
  %v4494 = vshrl.u32 %v4493, 7
  %v4495 = vsub.s32 0, %v4494
  %v4496 = vrot.slane %v4491, %v4495
  %v4497 = vadd.f32 %v4483, %v4496
  %v4498 = vadd.f32 %v4484, %v4496
  %v4499 = vadd.f32 %v4485, %v4496
  %v4500 = vadd.f32 %v4486, %v4496
  %v4501 = vsub.f32 0.0, %v4497
  %v4502 = vsub.f32 0.0, %v4498
  %v4503 = vsub.f32 0.0, %v4499
  %v4504 = vsub.f32 0.0, %v4500
  %v4505 = vmul.f32 %v4501, 1.442695
  %v4506 = vpow.pop %v4505
  %v4507 = vmul.f32 %v4502, 1.442695
  %v4508 = vpow.pop %v4507
  %v4509 = vmul.f32 %v4503, 1.442695
  %v4510 = vpow.pop %v4509
  %v4511 = vmul.f32 %v4504, 1.442695
  %v4512 = vpow.pop %v4511
  %v4513 = vadd.f32 %v4506, 1.0
  %v4514 = vadd.f32 %v4508, 1.0
  %v4515 = vadd.f32 %v4510, 1.0
  %v4516 = vadd.f32 %v4512, 1.0
  %v4517 = vrcp.pop %v4513
  %v4518 = vmul.f32 1.0, %v4517
  %v4519 = vrcp.pop %v4514
  %v4520 = vmul.f32 1.0, %v4519
  %v4521 = vrcp.pop %v4515
  %v4522 = vmul.f32 1.0, %v4521
  %v4523 = vrcp.pop %v4516
  %v4524 = vmul.f32 1.0, %v4523
  %v4525 = vlaneseq
  %v4526 = vshrl.u32 %v4525, 7
  %v4527 = vsub.s32 0, %v4526
  %v4528 = vrot.slane %v4518, %v4527
  %v4529 = vlaneseq
  %v4530 = vshrl.u32 %v4529, 7
  %v4531 = vsub.s32 0, %v4530
  %v4532 = vrot.slane %v4520, %v4531
  %v4533 = vlaneseq
  %v4534 = vshrl.u32 %v4533, 7
  %v4535 = vsub.s32 0, %v4534
  %v4536 = vrot.slane %v4522, %v4535
  %v4537 = vlaneseq
  %v4538 = vshrl.u32 %v4537, 7
  %v4539 = vsub.s32 0, %v4538
  %v4540 = vrot.slane %v4524, %v4539
  %v4545 = vcombine.low %v4528, %v4532
  %v4546 = vcombine.low %v4536, %v4540
  %v4549 = vmul.f32 %v38, %v4545
  %v4550 = vmul.f32 %v39, %v4546
  %4551 = vst [vmem:[%s10] sm:$0xff] %v4549
  %4552 = vst [vmem:[%s10 + $0x8] sm:$0xff] %v4550
  // Predicated region
  $region42: #{daff_forward.4} parent=0 // pred_check
    _
  $region43: #{daff_forward.4} parent=0 // pred_check_branch
    %4554 = sbr.rel (0) target = $region45
  $region44: #{daff_forward.4} parent=0 // pred_region
    _
  $region45: #{daff_forward.4} parent=0 // pred_fallthru
    _
  // Predicated region
  $region46: #{daff_forward.4} parent=0 // pred_check
    _
  $region47: #{daff_forward.4} parent=0 // pred_check_branch
    %4556 = sbr.rel (0) target = $region49
  $region48: #{daff_forward.4} parent=0 // pred_region
    _
  $region49: #{daff_forward.4} parent=0 // pred_fallthru
    _

// kernel: daff_forward.6
$region0: #{daff_forward.6}
  #allocation0 [shape = 'u32[]', space=smem, size = 0x4, offset = 0x4, fixed_abs, tag = 'smem constant byte address 0x4 - core index']
  #allocation1 [shape = 'u32[144,128]{1,0:T(1,128)}', space=vmem, size = 0x12000, scoped, tag = 'internal scratch']
  %s0 = inlined_call_operand.vmem [shape: bf16[512,294], index: 0, kind: input, shape index: {}]
  %s1 = inlined_call_operand.vmem [shape: bf16[294,3], index: 1, kind: input, shape index: {}]
  %s2 = inlined_call_operand.vmem [shape: f32[1,3], index: 2, kind: input, shape index: {}]
  %s3 = inlined_call_operand.vmem [shape: f32[512,4], index: 3, kind: input, shape index: {}]
  %s4 = inlined_call_operand.vmem [shape: f32[512,4], index: 4, kind: input, shape index: {}]
  %s5 = inlined_call_operand.vmem [shape: f32[512,4], index: 5, kind: output, shape index: {}]
  %s6 = sld [smem:[#allocation0]]
  $region53: #{daff_forward.6} parent=0
    _
  %s8 = ssub.s32 1, %s6
  %s9 = scalar_select 0, %s8, %s6
  loop: start=0, step=1, limit=4
  $region2: #{daff_forward.6} parent=0 // loop_pre_header
    _
  $region3: #{daff_forward.6} parent=0 // loop_header
    %s11 = sphi 0, %s15
    %p12 = scmp.ge.s32.totalorder %s11, 4
    %s21 = sphi 0, %s23
    %s24 = sphi 0, %s21
    %s25 = sphi 0, %s24
    %s41 = sphi 0, %s25
    %s45 = sphi 0, %s45
    %s47 = sphi 0, %s45
    %s48 = sphi 0, %s47
    %s62 = sphi 0, %s48
    %s66 = sphi 0, %s66
    %s68 = sphi 0, %s66
    %s69 = sphi 0, %s68
    %s83 = sphi 0, %s69
    %s89 = sphi 0, %s91
    %s92 = sphi 0, %s89
    %s93 = sphi 0, %s92
    %s109 = sphi 0, %s93
    %s115 = sphi 0, %s117
    %s118 = sphi 0, %s115
    %s119 = sphi 0, %s118
    %s135 = sphi 0, %s119
    %s141 = sphi 0, %s143
    %s144 = sphi 0, %s141
    %s145 = sphi 0, %s144
    %s161 = sphi 0, %s145
  $region4: #{daff_forward.6} parent=0 // loop_header_branch
    %14 = sbr.rel (%p12) target = $region8
  $region5: #{daff_forward.6} parent=0 // loop_body
    %s16 = ssub.s32 %s11, 1
    %s17 = ssub.s32 %s11, 2
    %s18 = sadd.s32 %s11, 1
    %s19 = ssub.s32 %s11, %s18
    %p20 = scmp.eq.s32.totalorder %s19, 0
    %s22 = sadd.s32 %s21, 1
    %s23 = scalar_select %p20, %s21, %s22
    %p26 = pneg %p20
    %p27 = scmp.eq.s32.totalorder %s11, 1
    %p28 = por %p26, %p27
    %p29 = scmp.ne.s32.totalorder %s21, %s24
    %p30 = scmp.eq.s32.totalorder %s11, 0
    %p31 = por %p29, %p30
    %p32 = scmp.ne.s32.totalorder %s21, %s24
    %p33 = scmp.eq.s32.totalorder %s16, 1
    %p34 = por %p32, %p33
    %p35 = scmp.ne.s32.totalorder %s24, %s25
    %p36 = scmp.eq.s32.totalorder %s16, 0
    %p37 = por %p35, %p36
    %p38 = scmp.ne.s32.totalorder %s24, %s25
    %p39 = scmp.eq.s32.totalorder %s17, 1
    %p40 = por %p38, %p39
    %p42 = scmp.ne.s32.totalorder %s25, %s41
    %p43 = scmp.eq.s32.totalorder %s17, 0
    %p44 = por %p42, %p43
    %s46 = sadd.s32 %s45, 1
    %p49 = scmp.eq.s32.totalorder %s11, 1
    %p50 = scmp.ne.s32.totalorder %s45, %s47
    %p51 = scmp.eq.s32.totalorder %s11, 0
    %p52 = por %p50, %p51
    %p53 = scmp.ne.s32.totalorder %s45, %s47
    %p54 = scmp.eq.s32.totalorder %s16, 1
    %p55 = por %p53, %p54
    %p56 = scmp.ne.s32.totalorder %s47, %s48
    %p57 = scmp.eq.s32.totalorder %s16, 0
    %p58 = por %p56, %p57
    %p59 = scmp.ne.s32.totalorder %s47, %s48
    %p60 = scmp.eq.s32.totalorder %s17, 1
    %p61 = por %p59, %p60
    %p63 = scmp.ne.s32.totalorder %s48, %s62
    %p64 = scmp.eq.s32.totalorder %s17, 0
    %p65 = por %p63, %p64
    %s67 = sadd.s32 %s66, 1
    %p70 = scmp.eq.s32.totalorder %s11, 1
    %p71 = scmp.ne.s32.totalorder %s66, %s68
    %p72 = scmp.eq.s32.totalorder %s11, 0
    %p73 = por %p71, %p72
    %p74 = scmp.ne.s32.totalorder %s66, %s68
    %p75 = scmp.eq.s32.totalorder %s16, 1
    %p76 = por %p74, %p75
    %p77 = scmp.ne.s32.totalorder %s68, %s69
    %p78 = scmp.eq.s32.totalorder %s16, 0
    %p79 = por %p77, %p78
    %p80 = scmp.ne.s32.totalorder %s68, %s69
    %p81 = scmp.eq.s32.totalorder %s17, 1
    %p82 = por %p80, %p81
    %p84 = scmp.ne.s32.totalorder %s69, %s83
    %p85 = scmp.eq.s32.totalorder %s17, 0
    %p86 = por %p84, %p85
    %s87 = ssub.s32 %s11, %s18
    %p88 = scmp.eq.s32.totalorder %s87, 0
    %s90 = sadd.s32 %s89, 1
    %s91 = scalar_select %p88, %s89, %s90
    %p94 = pneg %p88
    %p95 = scmp.eq.s32.totalorder %s11, 1
    %p96 = por %p94, %p95
    %p97 = scmp.ne.s32.totalorder %s89, %s92
    %p98 = scmp.eq.s32.totalorder %s11, 0
    %p99 = por %p97, %p98
    %p100 = scmp.ne.s32.totalorder %s89, %s92
    %p101 = scmp.eq.s32.totalorder %s16, 1
    %p102 = por %p100, %p101
    %p103 = scmp.ne.s32.totalorder %s92, %s93
    %p104 = scmp.eq.s32.totalorder %s16, 0
    %p105 = por %p103, %p104
    %p106 = scmp.ne.s32.totalorder %s92, %s93
    %p107 = scmp.eq.s32.totalorder %s17, 1
    %p108 = por %p106, %p107
    %p110 = scmp.ne.s32.totalorder %s93, %s109
    %p111 = scmp.eq.s32.totalorder %s17, 0
    %p112 = por %p110, %p111
    %s113 = ssub.s32 %s11, %s18
    %p114 = scmp.eq.s32.totalorder %s113, 0
    %s116 = sadd.s32 %s115, 1
    %s117 = scalar_select %p114, %s115, %s116
    %p120 = pneg %p114
    %p121 = scmp.eq.s32.totalorder %s11, 1
    %p122 = por %p120, %p121
    %p123 = scmp.ne.s32.totalorder %s115, %s118
    %p124 = scmp.eq.s32.totalorder %s11, 0
    %p125 = por %p123, %p124
    %p126 = scmp.ne.s32.totalorder %s115, %s118
    %p127 = scmp.eq.s32.totalorder %s16, 1
    %p128 = por %p126, %p127
    %p129 = scmp.ne.s32.totalorder %s118, %s119
    %p130 = scmp.eq.s32.totalorder %s16, 0
    %p131 = por %p129, %p130
    %p132 = scmp.ne.s32.totalorder %s118, %s119
    %p133 = scmp.eq.s32.totalorder %s17, 1
    %p134 = por %p132, %p133
    %p136 = scmp.ne.s32.totalorder %s119, %s135
    %p137 = scmp.eq.s32.totalorder %s17, 0
    %p138 = por %p136, %p137
    %s139 = ssub.s32 %s11, %s18
    %p140 = scmp.eq.s32.totalorder %s139, 0
    %s142 = sadd.s32 %s141, 1
    %s143 = scalar_select %p140, %s141, %s142
    %p146 = pneg %p140
    %p147 = scmp.eq.s32.totalorder %s11, 1
    %p148 = por %p146, %p147
    %p149 = scmp.ne.s32.totalorder %s141, %s144
    %p150 = scmp.eq.s32.totalorder %s11, 0
    %p151 = por %p149, %p150
    %p152 = scmp.ne.s32.totalorder %s141, %s144
    %p153 = scmp.eq.s32.totalorder %s16, 1
    %p154 = por %p152, %p153
    %p155 = scmp.ne.s32.totalorder %s144, %s145
    %p156 = scmp.eq.s32.totalorder %s16, 0
    %p157 = por %p155, %p156
    %p158 = scmp.ne.s32.totalorder %s144, %s145
    %p159 = scmp.eq.s32.totalorder %s17, 1
    %p160 = por %p158, %p159
    %p162 = scmp.ne.s32.totalorder %s145, %s161
    %p163 = scmp.eq.s32.totalorder %s17, 0
    %p164 = por %p162, %p163
    %p165 = scmp.le.s32.totalorder 1, %s11
    %p166 = scmp.lt.s32.totalorder %s11, 3
    %p167 = pnand %p165, %p166
    %p168 = pneg %p167
    // Predicated region
    $region9: #{daff_forward.6} parent=5 // pred_check
      _
    $region10: #{daff_forward.6} parent=5 // pred_check_branch
      %170 = sbr.rel (%p167) target = $region12
    $region11: #{daff_forward.6} parent=5 // pred_region
      %s171 = ssub.s32 %s11, 1
      // Predicated region
      $region13: #{daff_forward.6} parent=11 // pred_check
        %p172 = pneg %p58
      $region14: #{daff_forward.6} parent=11 // pred_check_branch
        %174 = sbr.rel (%p172) target = $region16
      $region15: #{daff_forward.6} parent=11 // pred_region
        _
      $region16: #{daff_forward.6} parent=11 // pred_fallthru
        _
      // Predicated region
      $region17: #{daff_forward.6} parent=11 // pred_check
        %p175 = pneg %p79
      $region18: #{daff_forward.6} parent=11 // pred_check_branch
        %177 = sbr.rel (%p175) target = $region20
      $region19: #{daff_forward.6} parent=11 // pred_region
        _
      $region20: #{daff_forward.6} parent=11 // pred_fallthru
        _
    $region12: #{daff_forward.6} parent=5 // pred_fallthru
      _
    %p178 = scmp.lt.s32.totalorder %s11, 2
    // Predicated region
    $region21: #{daff_forward.6} parent=5 // pred_check
      %p179 = pneg %p178
    $region22: #{daff_forward.6} parent=5 // pred_check_branch
      %181 = sbr.rel (%p179) target = $region24
    $region23: #{daff_forward.6} parent=5 // pred_region
      // Predicated region
      $region25: #{daff_forward.6} parent=23 // pred_check
        %p182 = pneg %p31
      $region26: #{daff_forward.6} parent=23 // pred_check_branch
        %184 = sbr.rel (%p182) target = $region28
      $region27: #{daff_forward.6} parent=23 // pred_region
        %s185 = smul.u32 32, %s11
        %p186 = scmp.lt.s32.totalorder %s185, 63
        %s187 = scalar_select %p186, %s185, 63
        %s188 = smul.addr %s187, 3
        %s189 = smul.addr %s188, 4
        %s190 = scalar_lea.vmem %s0, %s189
        %s191 = smul.u32 32, %s11
      $region28: #{daff_forward.6} parent=23 // pred_fallthru
        _
      // Predicated region
      $region29: #{daff_forward.6} parent=23 // pred_check
        %p192 = pneg %p99
      $region30: #{daff_forward.6} parent=23 // pred_check_branch
        %194 = sbr.rel (%p192) target = $region32
      $region31: #{daff_forward.6} parent=23 // pred_region
        %s195 = smul.u32 32, %s11
        %p196 = scmp.lt.s32.totalorder %s195, 63
        %s197 = scalar_select %p196, %s195, 63
        %s198 = smul.addr %s197, 8
        %s199 = scalar_lea.vmem %s3, %s198
        %s200 = smul.u32 32, %s11
      $region32: #{daff_forward.6} parent=23 // pred_fallthru
        _
      // Predicated region
      $region33: #{daff_forward.6} parent=23 // pred_check
        %p201 = pneg %p125
      $region34: #{daff_forward.6} parent=23 // pred_check_branch
        %203 = sbr.rel (%p201) target = $region36
      $region35: #{daff_forward.6} parent=23 // pred_region
        %s204 = smul.u32 32, %s11
        %p205 = scmp.lt.s32.totalorder %s204, 63
        %s206 = scalar_select %p205, %s204, 63
        %s207 = smul.addr %s206, 8
        %s208 = scalar_lea.vmem %s4, %s207
        %s209 = smul.u32 32, %s11
      $region36: #{daff_forward.6} parent=23 // pred_fallthru
        _
    $region24: #{daff_forward.6} parent=5 // pred_fallthru
      _
    %p210 = scmp.le.s32.totalorder 1, %s11
    %p211 = scmp.lt.s32.totalorder %s11, 3
    %p212 = pnand %p210, %p211
    %p213 = pneg %p212
    // Predicated region
    $region37: #{daff_forward.6} parent=5 // pred_check
      _
    $region38: #{daff_forward.6} parent=5 // pred_check_branch
      %215 = sbr.rel (%p212) target = $region40
    $region39: #{daff_forward.6} parent=5 // pred_region
      %s216 = ssub.s32 %s11, 1
      %s217 = smul.u32 32, %s16
      %p218 = scmp.lt.s32.totalorder %s217, 63
      %s219 = scalar_select %p218, %s217, 63
      %s220 = smul.addr %s219, 3
      %s221 = smul.addr %s220, 4
      %s222 = scalar_lea.vmem %s0, %s221
      %p223 = pneg %p37
      %p224 = pneg %p34
      %p225 = pneg %p58
      %p226 = pneg %p55
      %p227 = pneg %p79
      %p228 = pneg %p76
      %s229 = smul.u32 32, %s16
      %p230 = scmp.lt.s32.totalorder %s229, 63
      %s231 = scalar_select %p230, %s229, 63
      %s232 = smul.addr %s231, 8
      %s233 = scalar_lea.vmem %s3, %s232
      %p234 = pneg %p105
      %p235 = pneg %p102
      %s236 = smul.u32 32, %s16
      %p237 = scmp.lt.s32.totalorder %s236, 63
      %s238 = scalar_select %p237, %s236, 63
      %s239 = smul.addr %s238, 8
      %s240 = scalar_lea.vmem %s4, %s239
      %p241 = pneg %p131
      %p242 = pneg %p128
      %p243 = pneg %p157
      %p244 = pneg %p154
      %s245 = smul.u32 32, %s16
      %p246 = scmp.lt.s32.totalorder %s245, 63
      %s247 = scalar_select %p246, %s245, 63
      %s248 = smul.addr %s247, 8
      %s249 = scalar_lea.vmem %s5, %s248
      %s250 = smul.u32 32, %s16
      %p251 = scmp.lt.s32.totalorder %s250, 63
      %s252 = scalar_select %p251, %s250, 63
      %s253 = smul.addr %s252, 3
      %s254 = smul.addr %s253, 4
      %s255 = scalar_lea.vmem %s0, %s254
      %s256 = smul.u32 32, %s16
      %s257 = smul.u32 32, %s16
      %p258 = scmp.lt.s32.totalorder %s257, 63
      %s259 = scalar_select %p258, %s257, 63
      %s260 = smul.addr %s259, 8
      %s261 = scalar_lea.vmem %s3, %s260
      %s262 = smul.u32 32, %s16
      %s263 = smul.u32 32, %s16
      %p264 = scmp.lt.s32.totalorder %s263, 63
      %s265 = scalar_select %p264, %s263, 63
      %s266 = smul.addr %s265, 8
      %s267 = scalar_lea.vmem %s4, %s266
      %s268 = smul.u32 32, %s16
      %s269 = smul.u32 32, %s16
      %p270 = scmp.lt.s32.totalorder %s269, 63
      %s271 = scalar_select %p270, %s269, 63
      %s272 = smul.addr %s271, 8
      %s273 = scalar_lea.vmem %s5, %s272
      %s274 = smul.u32 32, %s16
      %v276 = vld [vmem:[%s255] sm:$0xff]
      %v277 = vld [vmem:[%s255 + $0x8] sm:$0xf]
      %v278 = vld [vmem:[%s255 + $0xc] sm:$0xff]
      %v279 = vld [vmem:[%s255 + $0x14] sm:$0xf]
      %v280 = vld [vmem:[%s255 + $0x18] sm:$0xff]
      %v281 = vld [vmem:[%s255 + $0x20] sm:$0xf]
      %v282 = vld [vmem:[%s255 + $0x24] sm:$0xff]
      %v283 = vld [vmem:[%s255 + $0x2c] sm:$0xf]
      %v284 = vld [vmem:[%s255 + $0x30] sm:$0xff]
      %v285 = vld [vmem:[%s255 + $0x38] sm:$0xf]
      %v286 = vld [vmem:[%s255 + $0x3c] sm:$0xff]
      %v287 = vld [vmem:[%s255 + $0x44] sm:$0xf]
      %v288 = vld [vmem:[%s255 + $0x48] sm:$0xff]
      %v289 = vld [vmem:[%s255 + $0x50] sm:$0xf]
      %v290 = vld [vmem:[%s255 + $0x54] sm:$0xff]
      %v291 = vld [vmem:[%s255 + $0x5c] sm:$0xf]
      %v292 = vld [vmem:[%s255 + $0x60] sm:$0xff]
      %v293 = vld [vmem:[%s255 + $0x68] sm:$0xf]
      %v294 = vld [vmem:[%s255 + $0x6c] sm:$0xff]
      %v295 = vld [vmem:[%s255 + $0x74] sm:$0xf]
      %v296 = vld [vmem:[%s255 + $0x78] sm:$0xff]
      %v297 = vld [vmem:[%s255 + $0x80] sm:$0xf]
      %v298 = vld [vmem:[%s255 + $0x84] sm:$0xff]
      %v299 = vld [vmem:[%s255 + $0x8c] sm:$0xf]
      %v300 = vld [vmem:[%s255 + $0x90] sm:$0xff]
      %v301 = vld [vmem:[%s255 + $0x98] sm:$0xf]
      %v302 = vld [vmem:[%s255 + $0x9c] sm:$0xff]
      %v303 = vld [vmem:[%s255 + $0xa4] sm:$0xf]
      %v304 = vld [vmem:[%s255 + $0xa8] sm:$0xff]
      %v305 = vld [vmem:[%s255 + $0xb0] sm:$0xf]
      %v306 = vld [vmem:[%s255 + $0xb4] sm:$0xff]
      %v307 = vld [vmem:[%s255 + $0xbc] sm:$0xf]
      %v308 = vld [vmem:[%s255 + $0xc0] sm:$0xff]
      %v309 = vld [vmem:[%s255 + $0xc8] sm:$0xf]
      %v310 = vld [vmem:[%s255 + $0xcc] sm:$0xff]
      %v311 = vld [vmem:[%s255 + $0xd4] sm:$0xf]
      %v312 = vld [vmem:[%s255 + $0xd8] sm:$0xff]
      %v313 = vld [vmem:[%s255 + $0xe0] sm:$0xf]
      %v314 = vld [vmem:[%s255 + $0xe4] sm:$0xff]
      %v315 = vld [vmem:[%s255 + $0xec] sm:$0xf]
      %v316 = vld [vmem:[%s255 + $0xf0] sm:$0xff]
      %v317 = vld [vmem:[%s255 + $0xf8] sm:$0xf]
      %v318 = vld [vmem:[%s255 + $0xfc] sm:$0xff]
      %v319 = vld [vmem:[%s255 + $0x104] sm:$0xf]
      %v320 = vld [vmem:[%s255 + $0x108] sm:$0xff]
      %v321 = vld [vmem:[%s255 + $0x110] sm:$0xf]
      %v322 = vld [vmem:[%s255 + $0x114] sm:$0xff]
      %v323 = vld [vmem:[%s255 + $0x11c] sm:$0xf]
      %v324 = vld [vmem:[%s255 + $0x120] sm:$0xff]
      %v325 = vld [vmem:[%s255 + $0x128] sm:$0xf]
      %v326 = vld [vmem:[%s255 + $0x12c] sm:$0xff]
      %v327 = vld [vmem:[%s255 + $0x134] sm:$0xf]
      %v328 = vld [vmem:[%s255 + $0x138] sm:$0xff]
      %v329 = vld [vmem:[%s255 + $0x140] sm:$0xf]
      %v330 = vld [vmem:[%s255 + $0x144] sm:$0xff]
      %v331 = vld [vmem:[%s255 + $0x14c] sm:$0xf]
      %v332 = vld [vmem:[%s255 + $0x150] sm:$0xff]
      %v333 = vld [vmem:[%s255 + $0x158] sm:$0xf]
      %v334 = vld [vmem:[%s255 + $0x15c] sm:$0xff]
      %v335 = vld [vmem:[%s255 + $0x164] sm:$0xf]
      %v336 = vld [vmem:[%s255 + $0x168] sm:$0xff]
      %v337 = vld [vmem:[%s255 + $0x170] sm:$0xf]
      %v338 = vld [vmem:[%s255 + $0x174] sm:$0xff]
      %v339 = vld [vmem:[%s255 + $0x17c] sm:$0xf]
      %v340 = vld [vmem:[%s1] sm:$0xf]
      %v341 = vld [vmem:[%s1 + $0x4] sm:$0xf]
      %v342 = vld [vmem:[%s1 + $0x8] sm:$0xf]
      %v343 = vld [vmem:[%s1 + $0xc] sm:$0xf]
      %v344 = vld [vmem:[%s1 + $0x10] sm:$0xf]
      %v345 = vld [vmem:[%s1 + $0x14] sm:$0xf]
      %v346 = vld [vmem:[%s1 + $0x18] sm:$0xf]
      %v347 = vld [vmem:[%s1 + $0x1c] sm:$0xf]
      %v348 = vld [vmem:[%s1 + $0x20] sm:$0xf]
      %v349 = vld [vmem:[%s1 + $0x24] sm:$0xf]
      %v350 = vld [vmem:[%s1 + $0x28] sm:$0xf]
      %v351 = vld [vmem:[%s1 + $0x2c] sm:$0xf]
      %v352 = vld [vmem:[%s1 + $0x30] sm:$0xf]
      %v353 = vld [vmem:[%s1 + $0x34] sm:$0xf]
      %v354 = vld [vmem:[%s1 + $0x38] sm:$0xf]
      %v355 = vld [vmem:[%s1 + $0x3c] sm:$0xf]
      %v356 = vld [vmem:[%s1 + $0x40] sm:$0xf]
      %v357 = vld [vmem:[%s1 + $0x44] sm:$0xf]
      %v358 = vld [vmem:[%s1 + $0x48] sm:$0xf]
      %v359 = vld [vmem:[%s1 + $0x4c] sm:$0xf]
      %v360 = vld [vmem:[%s1 + $0x50] sm:$0xf]
      %v361 = vld [vmem:[%s1 + $0x54] sm:$0xf]
      %v362 = vld [vmem:[%s1 + $0x58] sm:$0xf]
      %v363 = vld [vmem:[%s1 + $0x5c] sm:$0xf]
      %v364 = vld [vmem:[%s1 + $0x60] sm:$0xf]
      %v365 = vld [vmem:[%s1 + $0x64] sm:$0xf]
      %v366 = vld [vmem:[%s1 + $0x68] sm:$0xf]
      %v367 = vld [vmem:[%s1 + $0x6c] sm:$0xf]
      %v368 = vld [vmem:[%s1 + $0x70] sm:$0xf]
      %v369 = vld [vmem:[%s1 + $0x74] sm:$0xf]
      %v370 = vld [vmem:[%s1 + $0x78] sm:$0xf]
      %v371 = vld [vmem:[%s1 + $0x7c] sm:$0xf]
      %v372 = vld [vmem:[%s1 + $0x80] sm:$0xf]
      %v373 = vld [vmem:[%s1 + $0x84] sm:$0xf]
      %v374 = vld [vmem:[%s1 + $0x88] sm:$0xf]
      %v375 = vld [vmem:[%s1 + $0x8c] sm:$0xf]
      %v376 = vld [vmem:[%s1 + $0x90] sm:$0x7]
      %v377 = vld [vmem:[%s2] sm:$0x1]
      %v379 = vlaneseq
      %v380 = vshrl.u32 %v379, 7
      %v381 = vsub.s32 0, %v380
      %v382 = vrot.slane %v377, %v381
      %v448 = vunpack.c.l.b16 %v276
      %v449 = vunpack.c.h.b16 %v276
      %v450 = vunpack.c.l.b16 %v277
      %v451 = vunpack.c.l.b16 %v278
      %v452 = vunpack.c.h.b16 %v278
      %v453 = vunpack.c.l.b16 %v279
      %v454 = vunpack.c.l.b16 %v280
      %v455 = vunpack.c.h.b16 %v280
      %v456 = vunpack.c.l.b16 %v281
      %v457 = vunpack.c.l.b16 %v282
      %v458 = vunpack.c.h.b16 %v282
      %v459 = vunpack.c.l.b16 %v283
      %v460 = vunpack.c.l.b16 %v284
      %v461 = vunpack.c.h.b16 %v284
      %v462 = vunpack.c.l.b16 %v285
      %v463 = vunpack.c.l.b16 %v286
      %v464 = vunpack.c.h.b16 %v286
      %v465 = vunpack.c.l.b16 %v287
      %v466 = vunpack.c.l.b16 %v288
      %v467 = vunpack.c.h.b16 %v288
      %v468 = vunpack.c.l.b16 %v289
      %v469 = vunpack.c.l.b16 %v290
      %v470 = vunpack.c.h.b16 %v290
      %v471 = vunpack.c.l.b16 %v291
      %v472 = vunpack.c.l.b16 %v292
      %v473 = vunpack.c.h.b16 %v292
      %v474 = vunpack.c.l.b16 %v293
      %v475 = vunpack.c.l.b16 %v294
      %v476 = vunpack.c.h.b16 %v294
      %v477 = vunpack.c.l.b16 %v295
      %v478 = vunpack.c.l.b16 %v296
      %v479 = vunpack.c.h.b16 %v296
      %v480 = vunpack.c.l.b16 %v297
      %v481 = vunpack.c.l.b16 %v298
      %v482 = vunpack.c.h.b16 %v298
      %v483 = vunpack.c.l.b16 %v299
      %v484 = vunpack.c.l.b16 %v300
      %v485 = vunpack.c.h.b16 %v300
      %v486 = vunpack.c.l.b16 %v301
      %v487 = vunpack.c.l.b16 %v302
      %v488 = vunpack.c.h.b16 %v302
      %v489 = vunpack.c.l.b16 %v303
      %v490 = vunpack.c.l.b16 %v304
      %v491 = vunpack.c.h.b16 %v304
      %v492 = vunpack.c.l.b16 %v305
      %v493 = vunpack.c.l.b16 %v306
      %v494 = vunpack.c.h.b16 %v306
      %v495 = vunpack.c.l.b16 %v307
      %v496 = vunpack.c.l.b16 %v308
      %v497 = vunpack.c.h.b16 %v308
      %v498 = vunpack.c.l.b16 %v309
      %v499 = vunpack.c.l.b16 %v310
      %v500 = vunpack.c.h.b16 %v310
      %v501 = vunpack.c.l.b16 %v311
      %v502 = vunpack.c.l.b16 %v312
      %v503 = vunpack.c.h.b16 %v312
      %v504 = vunpack.c.l.b16 %v313
      %v505 = vunpack.c.l.b16 %v314
      %v506 = vunpack.c.h.b16 %v314
      %v507 = vunpack.c.l.b16 %v315
      %v508 = vunpack.c.l.b16 %v316
      %v509 = vunpack.c.h.b16 %v316
      %v510 = vunpack.c.l.b16 %v317
      %v511 = vunpack.c.l.b16 %v318
      %v512 = vunpack.c.h.b16 %v318
      %v513 = vunpack.c.l.b16 %v319
      %v514 = vunpack.c.l.b16 %v320
      %v515 = vunpack.c.h.b16 %v320
      %v516 = vunpack.c.l.b16 %v321
      %v517 = vunpack.c.l.b16 %v322
      %v518 = vunpack.c.h.b16 %v322
      %v519 = vunpack.c.l.b16 %v323
      %v520 = vunpack.c.l.b16 %v324
      %v521 = vunpack.c.h.b16 %v324
      %v522 = vunpack.c.l.b16 %v325
      %v523 = vunpack.c.l.b16 %v326
      %v524 = vunpack.c.h.b16 %v326
      %v525 = vunpack.c.l.b16 %v327
      %v526 = vunpack.c.l.b16 %v328
      %v527 = vunpack.c.h.b16 %v328
      %v528 = vunpack.c.l.b16 %v329
      %v529 = vunpack.c.l.b16 %v330
      %v530 = vunpack.c.h.b16 %v330
      %v531 = vunpack.c.l.b16 %v331
      %v532 = vunpack.c.l.b16 %v332
      %v533 = vunpack.c.h.b16 %v332
      %v534 = vunpack.c.l.b16 %v333
      %v535 = vunpack.c.l.b16 %v334
      %v536 = vunpack.c.h.b16 %v334
      %v537 = vunpack.c.l.b16 %v335
      %v538 = vunpack.c.l.b16 %v336
      %v539 = vunpack.c.h.b16 %v336
      %v540 = vunpack.c.l.b16 %v337
      %v541 = vunpack.c.l.b16 %v338
      %v542 = vunpack.c.h.b16 %v338
      %v543 = vunpack.c.l.b16 %v339
      %v544 = vpack.c.b16 %v451, %v448
      %v545 = vpack.c.b16 %v452, %v449
      %v546 = vpack.c.b16 %v453, %v450
      %v547 = vpack.c.b16 %v457, %v454
      %v548 = vpack.c.b16 %v458, %v455
      %v549 = vpack.c.b16 %v459, %v456
      %v550 = vpack.c.b16 %v463, %v460
      %v551 = vpack.c.b16 %v464, %v461
      %v552 = vpack.c.b16 %v465, %v462
      %v553 = vpack.c.b16 %v469, %v466
      %v554 = vpack.c.b16 %v470, %v467
      %v555 = vpack.c.b16 %v471, %v468
      %v556 = vpack.c.b16 %v475, %v472
      %v557 = vpack.c.b16 %v476, %v473
      %v558 = vpack.c.b16 %v477, %v474
      %v559 = vpack.c.b16 %v481, %v478
      %v560 = vpack.c.b16 %v482, %v479
      %v561 = vpack.c.b16 %v483, %v480
      %v562 = vpack.c.b16 %v487, %v484
      %v563 = vpack.c.b16 %v488, %v485
      %v564 = vpack.c.b16 %v489, %v486
      %v565 = vpack.c.b16 %v493, %v490
      %v566 = vpack.c.b16 %v494, %v491
      %v567 = vpack.c.b16 %v495, %v492
      %v568 = vpack.c.b16 %v499, %v496
      %v569 = vpack.c.b16 %v500, %v497
      %v570 = vpack.c.b16 %v501, %v498
      %v571 = vpack.c.b16 %v505, %v502
      %v572 = vpack.c.b16 %v506, %v503
      %v573 = vpack.c.b16 %v507, %v504
      %v574 = vpack.c.b16 %v511, %v508
      %v575 = vpack.c.b16 %v512, %v509
      %v576 = vpack.c.b16 %v513, %v510
      %v577 = vpack.c.b16 %v517, %v514
      %v578 = vpack.c.b16 %v518, %v515
      %v579 = vpack.c.b16 %v519, %v516
      %v580 = vpack.c.b16 %v523, %v520
      %v581 = vpack.c.b16 %v524, %v521
      %v582 = vpack.c.b16 %v525, %v522
      %v583 = vpack.c.b16 %v529, %v526
      %v584 = vpack.c.b16 %v530, %v527
      %v585 = vpack.c.b16 %v531, %v528
      %v586 = vpack.c.b16 %v535, %v532
      %v587 = vpack.c.b16 %v536, %v533
      %v588 = vpack.c.b16 %v537, %v534
      %v589 = vpack.c.b16 %v541, %v538
      %v590 = vpack.c.b16 %v542, %v539
      %v591 = vpack.c.b16 %v543, %v540
      %v661 = vunpack.c.l.b16 %v340
      %v662 = vunpack.c.l.b16 %v341
      %v663 = vunpack.c.l.b16 %v342
      %v664 = vunpack.c.l.b16 %v343
      %v665 = vunpack.c.l.b16 %v344
      %v666 = vunpack.c.l.b16 %v345
      %v667 = vunpack.c.l.b16 %v346
      %v668 = vunpack.c.l.b16 %v347
      %v669 = vunpack.c.l.b16 %v348
      %v670 = vunpack.c.l.b16 %v349
      %v671 = vunpack.c.l.b16 %v350
      %v672 = vunpack.c.l.b16 %v351
      %v673 = vunpack.c.l.b16 %v352
      %v674 = vunpack.c.l.b16 %v353
      %v675 = vunpack.c.l.b16 %v354
      %v676 = vunpack.c.l.b16 %v355
      %v677 = vunpack.c.l.b16 %v356
      %v678 = vunpack.c.l.b16 %v357
      %v679 = vunpack.c.l.b16 %v358
      %v680 = vunpack.c.l.b16 %v359
      %v681 = vunpack.c.l.b16 %v360
      %v682 = vunpack.c.l.b16 %v361
      %v683 = vunpack.c.l.b16 %v362
      %v684 = vunpack.c.l.b16 %v363
      %v685 = vunpack.c.l.b16 %v364
      %v686 = vunpack.c.l.b16 %v365
      %v687 = vunpack.c.l.b16 %v366
      %v688 = vunpack.c.l.b16 %v367
      %v689 = vunpack.c.l.b16 %v368
      %v690 = vunpack.c.l.b16 %v369
      %v691 = vunpack.c.l.b16 %v370
      %v692 = vunpack.c.l.b16 %v371
      %v693 = vunpack.c.l.b16 %v372
      %v694 = vunpack.c.l.b16 %v373
      %v695 = vunpack.c.l.b16 %v374
      %v696 = vunpack.c.l.b16 %v375
      %v697 = vunpack.c.l.b16 %v376
      %v698 = vpack.c.b16 %v662, %v661
      %v699 = vpack.c.b16 %v664, %v663
      %v700 = vpack.c.b16 %v666, %v665
      %v701 = vpack.c.b16 %v668, %v667
      %v702 = vpack.c.b16 %v670, %v669
      %v703 = vpack.c.b16 %v672, %v671
      %v704 = vpack.c.b16 %v674, %v673
      %v705 = vpack.c.b16 %v676, %v675
      %v706 = vpack.c.b16 %v678, %v677
      %v707 = vpack.c.b16 %v680, %v679
      %v708 = vpack.c.b16 %v682, %v681
      %v709 = vpack.c.b16 %v684, %v683
      %v710 = vpack.c.b16 %v686, %v685
      %v711 = vpack.c.b16 %v688, %v687
      %v712 = vpack.c.b16 %v690, %v689
      %v713 = vpack.c.b16 %v692, %v691
      %v714 = vpack.c.b16 %v694, %v693
      %v715 = vpack.c.b16 %v696, %v695
      %v716 = vpack.c.b16 %v697, %v697
      %vm735 = vcmask 310272
      %v737 = vsel %vm735, %v546, 0
      %v740 = vsel %vm735, %v549, 0
      %v743 = vsel %vm735, %v552, 0
      %v746 = vsel %vm735, %v555, 0
      %v749 = vsel %vm735, %v558, 0
      %v752 = vsel %vm735, %v561, 0
      %v755 = vsel %vm735, %v564, 0
      %v758 = vsel %vm735, %v567, 0
      %v761 = vsel %vm735, %v570, 0
      %v764 = vsel %vm735, %v573, 0
      %v767 = vsel %vm735, %v576, 0
      %v770 = vsel %vm735, %v579, 0
      %v773 = vsel %vm735, %v582, 0
      %v776 = vsel %vm735, %v585, 0
      %v779 = vsel %vm735, %v588, 0
      %v782 = vsel %vm735, %v591, 0
      %vm784 = vcmask 1042432
      %v786 = vsel %vm784, %v716, 0
      %788 = vmatprep.subr.bf16.mxu0 0
      %789 = vmatpush1.bf16.msra.mxu0 %v698
      %790 = vmatprep.subr.bf16.mxu0 0
      %791 = vmatpush1.bf16.msra.mxu0 %v699
      %792 = vmatprep.subr.bf16.mxu0 0
      %793 = vmatpush1.bf16.msra.mxu0 %v700
      %794 = vmatprep.subr.bf16.mxu0 0
      %795 = vmatpush1.bf16.msra.mxu0 %v701
      %796 = vmatprep.subr.bf16.mxu0 0
      %797 = vmatpush1.bf16.msra.mxu0 %v702
      %798 = vmatprep.subr.bf16.mxu0 0
      %799 = vmatpush1.bf16.msra.mxu0 %v703
      %800 = vmatprep.subr.bf16.mxu0 0
      %801 = vmatpush1.bf16.msra.mxu0 %v704
      %802 = vmatprep.subr.bf16.mxu0 0
      %803 = vmatpush1.bf16.msra.mxu0 %v705
      %804 = vmatprep.subr.bf16.mxu0 0
      %805 = vmatpush1.bf16.msra.mxu0 %v706
      %806 = vmatprep.subr.bf16.mxu0 0
      %807 = vmatpush1.bf16.msra.mxu0 %v707
      %808 = vmatprep.subr.bf16.mxu0 0
      %809 = vmatpush1.bf16.msra.mxu0 %v708
      %810 = vmatprep.subr.bf16.mxu0 0
      %811 = vmatpush1.bf16.msra.mxu0 %v709
      %812 = vmatprep.subr.bf16.mxu0 0
      %813 = vmatpush1.bf16.msra.mxu0 %v710
      %814 = vmatprep.subr.bf16.mxu0 0
      %815 = vmatpush1.bf16.msra.mxu0 %v711
      %816 = vmatprep.subr.bf16.mxu0 0
      %817 = vmatpush1.bf16.msra.mxu0 %v712
      %818 = vmatprep.subr.bf16.mxu0 0
      %819 = vmatpush1.bf16.msra.mxu0 %v713
      %820 = vmatprep.mubr.bf16.mxu0 %v545
      %821 = vmatmul.mubr.bf16.gmra.mrb[0].mxu0 %v544
      %v822 = vpop.f32.mrb[0].mxu0
      %v823 = vadd.f32 %v382, %v822
      %v824 = vpop.f32.mrb[0].mxu0
      %v825 = vpop.f32.mrb[0].mxu0
      %v826 = vadd.f32 %v382, %v825
      %v827 = vpop.f32.mrb[0].mxu0
      %828 = vmatprep.mubr.bf16.mxu0 %v548
      %829 = vmatmul.mubr.bf16.gmra.mrb[0].mxu0 %v547
      %v830 = vpop.f32.mrb[0].mxu0
      %v831 = vadd.f32 %v382, %v830
      %v832 = vpop.f32.mrb[0].mxu0
      %v833 = vpop.f32.mrb[0].mxu0
      %v834 = vadd.f32 %v382, %v833
      %v835 = vpop.f32.mrb[0].mxu0
      %836 = vmatprep.mubr.bf16.mxu0 %v551
      %837 = vmatmul.mubr.bf16.gmra.mrb[0].mxu0 %v550
      %v838 = vpop.f32.mrb[0].mxu0
      %v839 = vadd.f32 %v382, %v838
      %v840 = vpop.f32.mrb[0].mxu0
      %v841 = vpop.f32.mrb[0].mxu0
      %v842 = vadd.f32 %v382, %v841
      %v843 = vpop.f32.mrb[0].mxu0
      %844 = vmatprep.mubr.bf16.mxu0 %v554
      %845 = vmatmul.mubr.bf16.gmra.mrb[0].mxu0 %v553
      %v846 = vpop.f32.mrb[0].mxu0
      %v847 = vadd.f32 %v382, %v846
      %v848 = vpop.f32.mrb[0].mxu0
      %v849 = vpop.f32.mrb[0].mxu0
      %v850 = vadd.f32 %v382, %v849
      %v851 = vpop.f32.mrb[0].mxu0
      %852 = vmatprep.mubr.bf16.mxu0 %v557
      %853 = vmatmul.mubr.bf16.gmra.mrb[0].mxu0 %v556
      %v854 = vpop.f32.mrb[0].mxu0
      %v855 = vadd.f32 %v382, %v854
      %v856 = vpop.f32.mrb[0].mxu0
      %v857 = vpop.f32.mrb[0].mxu0
      %v858 = vadd.f32 %v382, %v857
      %v859 = vpop.f32.mrb[0].mxu0
      %860 = vmatprep.mubr.bf16.mxu0 %v560
      %861 = vmatmul.mubr.bf16.gmra.mrb[0].mxu0 %v559
      %v862 = vpop.f32.mrb[0].mxu0
      %v863 = vadd.f32 %v382, %v862
      %v864 = vpop.f32.mrb[0].mxu0
      %v865 = vpop.f32.mrb[0].mxu0
      %v866 = vadd.f32 %v382, %v865
      %v867 = vpop.f32.mrb[0].mxu0
      %868 = vmatprep.mubr.bf16.mxu0 %v563
      %869 = vmatmul.mubr.bf16.gmra.mrb[0].mxu0 %v562
      %v870 = vpop.f32.mrb[0].mxu0
      %v871 = vadd.f32 %v382, %v870
      %v872 = vpop.f32.mrb[0].mxu0
      %v873 = vpop.f32.mrb[0].mxu0
      %v874 = vadd.f32 %v382, %v873
      %v875 = vpop.f32.mrb[0].mxu0
      %876 = vmatprep.mubr.bf16.mxu0 %v566
      %877 = vmatmul.mubr.bf16.gmra.mrb[0].mxu0 %v565
      %v878 = vpop.f32.mrb[0].mxu0
      %v879 = vadd.f32 %v382, %v878
      %v880 = vpop.f32.mrb[0].mxu0
      %v881 = vpop.f32.mrb[0].mxu0
      %v882 = vadd.f32 %v382, %v881
      %v883 = vpop.f32.mrb[0].mxu0
      %884 = vmatprep.mubr.bf16.mxu0 %v569
      %885 = vmatmul.mubr.bf16.gmra.mrb[0].mxu0 %v568
      %v886 = vpop.f32.mrb[0].mxu0
      %v887 = vadd.f32 %v382, %v886
      %v888 = vpop.f32.mrb[0].mxu0
      %v889 = vpop.f32.mrb[0].mxu0
      %v890 = vadd.f32 %v382, %v889
      %v891 = vpop.f32.mrb[0].mxu0
      %892 = vmatprep.mubr.bf16.mxu0 %v572
      %893 = vmatmul.mubr.bf16.gmra.mrb[0].mxu0 %v571
      %v894 = vpop.f32.mrb[0].mxu0
      %v895 = vadd.f32 %v382, %v894
      %v896 = vpop.f32.mrb[0].mxu0
      %v897 = vpop.f32.mrb[0].mxu0
      %v898 = vadd.f32 %v382, %v897
      %v899 = vpop.f32.mrb[0].mxu0
      %900 = vmatprep.mubr.bf16.mxu0 %v575
      %901 = vmatmul.mubr.bf16.gmra.mrb[0].mxu0 %v574
      %v902 = vpop.f32.mrb[0].mxu0
      %v903 = vadd.f32 %v382, %v902
      %v904 = vpop.f32.mrb[0].mxu0
      %v905 = vpop.f32.mrb[0].mxu0
      %v906 = vadd.f32 %v382, %v905
      %v907 = vpop.f32.mrb[0].mxu0
      %908 = vmatprep.mubr.bf16.mxu0 %v578
      %909 = vmatmul.mubr.bf16.gmra.mrb[0].mxu0 %v577
      %v910 = vpop.f32.mrb[0].mxu0
      %v911 = vadd.f32 %v382, %v910
      %v912 = vpop.f32.mrb[0].mxu0
      %v913 = vpop.f32.mrb[0].mxu0
      %v914 = vadd.f32 %v382, %v913
      %v915 = vpop.f32.mrb[0].mxu0
      %916 = vmatprep.mubr.bf16.mxu0 %v581
      %917 = vmatmul.mubr.bf16.gmra.mrb[0].mxu0 %v580
      %v918 = vpop.f32.mrb[0].mxu0
      %v919 = vadd.f32 %v382, %v918
      %v920 = vpop.f32.mrb[0].mxu0
      %v921 = vpop.f32.mrb[0].mxu0
      %v922 = vadd.f32 %v382, %v921
      %v923 = vpop.f32.mrb[0].mxu0
      %924 = vmatprep.mubr.bf16.mxu0 %v584
      %925 = vmatmul.mubr.bf16.gmra.mrb[0].mxu0 %v583
      %v926 = vpop.f32.mrb[0].mxu0
      %v927 = vadd.f32 %v382, %v926
      %v928 = vpop.f32.mrb[0].mxu0
      %v929 = vpop.f32.mrb[0].mxu0
      %v930 = vadd.f32 %v382, %v929
      %v931 = vpop.f32.mrb[0].mxu0
      %932 = vmatprep.mubr.bf16.mxu0 %v587
      %933 = vmatmul.mubr.bf16.gmra.mrb[0].mxu0 %v586
      %v934 = vpop.f32.mrb[0].mxu0
      %v935 = vadd.f32 %v382, %v934
      %v936 = vpop.f32.mrb[0].mxu0
      %v937 = vpop.f32.mrb[0].mxu0
      %v938 = vadd.f32 %v382, %v937
      %v939 = vpop.f32.mrb[0].mxu0
      %940 = vmatprep.mubr.bf16.mxu0 %v590
      %941 = vmatmul.mubr.bf16.gmra.mrb[0].mxu0 %v589
      %v942 = vpop.f32.mrb[0].mxu0
      %v943 = vadd.f32 %v382, %v942
      %v944 = vpop.f32.mrb[0].mxu0
      %v945 = vpop.f32.mrb[0].mxu0
      %v946 = vadd.f32 %v382, %v945
      %v947 = vpop.f32.mrb[0].mxu0
      %948 = vdwg.mxu0
      %949 = vmatprep.subr.bf16.mxu0 0
      %950 = vmatpush1.bf16.msra.mxu0 %v714
      %951 = vmatprep.subr.bf16.mxu0 0
      %952 = vmatpush1.bf16.msra.mxu0 %v715
      %953 = vmatprep.subr.bf16.mxu0 0
      %954 = vmatpush1.bf16.msra.mxu0 %v786
      %955 = vmatprep.subr.bf16.mxu0 0
      %956 = vmatpush1.bf16.msra.mxu0 0
      %957 = vmatprep.subr.bf16.mxu0 0
      %958 = vmatpush1.bf16.msra.mxu0 0
      %959 = vmatprep.subr.bf16.mxu0 0
      %960 = vmatpush1.bf16.msra.mxu0 0
      %961 = vmatprep.subr.bf16.mxu0 0
      %962 = vmatpush1.bf16.msra.mxu0 0
      %963 = vmatprep.subr.bf16.mxu0 0
      %964 = vmatpush1.bf16.msra.mxu0 0
      %965 = vmatprep.subr.bf16.mxu0 0
      %966 = vmatpush1.bf16.msra.mxu0 0
      %967 = vmatprep.subr.bf16.mxu0 0
      %968 = vmatpush1.bf16.msra.mxu0 0
      %969 = vmatprep.subr.bf16.mxu0 0
      %970 = vmatpush1.bf16.msra.mxu0 0
      %971 = vmatprep.subr.bf16.mxu0 0
      %972 = vmatpush1.bf16.msra.mxu0 0
      %973 = vmatprep.subr.bf16.mxu0 0
      %974 = vmatpush1.bf16.msra.mxu0 0
      %975 = vmatprep.subr.bf16.mxu0 0
      %976 = vmatpush1.bf16.msra.mxu0 0
      %977 = vmatprep.subr.bf16.mxu0 0
      %978 = vmatpush1.bf16.msra.mxu0 0
      %979 = vmatprep.subr.bf16.mxu0 0
      %980 = vmatpush1.bf16.msra.mxu0 0
      %981 = vmatprep.mubr.bf16.mxu0 0
      %982 = vmatmul.mubr.bf16.gmra.mrb[0].mxu0 %v737
      %v983 = vpop.f32.mrb[0].mxu0
      %v984 = vadd.f32 %v823, %v983
      %v985 = vpop.f32.mrb[0].mxu0
      %v986 = vpop.f32.mrb[0].mxu0
      %v987 = vadd.f32 %v826, %v986
      %v988 = vpop.f32.mrb[0].mxu0
      %989 = vmatprep.mubr.bf16.mxu0 0
      %990 = vmatmul.mubr.bf16.gmra.mrb[0].mxu0 %v740
      %v991 = vpop.f32.mrb[0].mxu0
      %v992 = vadd.f32 %v831, %v991
      %v993 = vpop.f32.mrb[0].mxu0
      %v994 = vpop.f32.mrb[0].mxu0
      %v995 = vadd.f32 %v834, %v994
      %v996 = vpop.f32.mrb[0].mxu0
      %997 = vmatprep.mubr.bf16.mxu0 0
      %998 = vmatmul.mubr.bf16.gmra.mrb[0].mxu0 %v743
      %v999 = vpop.f32.mrb[0].mxu0
      %v1000 = vadd.f32 %v839, %v999
      %v1001 = vpop.f32.mrb[0].mxu0
      %v1002 = vpop.f32.mrb[0].mxu0
      %v1003 = vadd.f32 %v842, %v1002
      %v1004 = vpop.f32.mrb[0].mxu0
      %1005 = vmatprep.mubr.bf16.mxu0 0
      %1006 = vmatmul.mubr.bf16.gmra.mrb[0].mxu0 %v746
      %v1007 = vpop.f32.mrb[0].mxu0
      %v1008 = vadd.f32 %v847, %v1007
      %v1009 = vpop.f32.mrb[0].mxu0
      %v1010 = vpop.f32.mrb[0].mxu0
      %v1011 = vadd.f32 %v850, %v1010
      %v1012 = vpop.f32.mrb[0].mxu0
      %1013 = vmatprep.mubr.bf16.mxu0 0
      %1014 = vmatmul.mubr.bf16.gmra.mrb[0].mxu0 %v749
      %v1015 = vpop.f32.mrb[0].mxu0
      %v1016 = vadd.f32 %v855, %v1015
      %v1017 = vpop.f32.mrb[0].mxu0
      %v1018 = vpop.f32.mrb[0].mxu0
      %v1019 = vadd.f32 %v858, %v1018
      %v1020 = vpop.f32.mrb[0].mxu0
      %1021 = vmatprep.mubr.bf16.mxu0 0
      %1022 = vmatmul.mubr.bf16.gmra.mrb[0].mxu0 %v752
      %v1023 = vpop.f32.mrb[0].mxu0
      %v1024 = vadd.f32 %v863, %v1023
      %v1025 = vpop.f32.mrb[0].mxu0
      %v1026 = vpop.f32.mrb[0].mxu0
      %v1027 = vadd.f32 %v866, %v1026
      %v1028 = vpop.f32.mrb[0].mxu0
      %1029 = vmatprep.mubr.bf16.mxu0 0
      %1030 = vmatmul.mubr.bf16.gmra.mrb[0].mxu0 %v755
      %v1031 = vpop.f32.mrb[0].mxu0
      %v1032 = vadd.f32 %v871, %v1031
      %v1033 = vpop.f32.mrb[0].mxu0
      %v1034 = vpop.f32.mrb[0].mxu0
      %v1035 = vadd.f32 %v874, %v1034
      %v1036 = vpop.f32.mrb[0].mxu0
      %1037 = vmatprep.mubr.bf16.mxu0 0
      %1038 = vmatmul.mubr.bf16.gmra.mrb[0].mxu0 %v758
      %v1039 = vpop.f32.mrb[0].mxu0
      %v1040 = vadd.f32 %v879, %v1039
      %v1041 = vpop.f32.mrb[0].mxu0
      %v1042 = vpop.f32.mrb[0].mxu0
      %v1043 = vadd.f32 %v882, %v1042
      %v1044 = vpop.f32.mrb[0].mxu0
      %1045 = vmatprep.mubr.bf16.mxu0 0
      %1046 = vmatmul.mubr.bf16.gmra.mrb[0].mxu0 %v761
      %v1047 = vpop.f32.mrb[0].mxu0
      %v1048 = vadd.f32 %v887, %v1047
      %v1049 = vpop.f32.mrb[0].mxu0
      %v1050 = vpop.f32.mrb[0].mxu0
      %v1051 = vadd.f32 %v890, %v1050
      %v1052 = vpop.f32.mrb[0].mxu0
      %1053 = vmatprep.mubr.bf16.mxu0 0
      %1054 = vmatmul.mubr.bf16.gmra.mrb[0].mxu0 %v764
      %v1055 = vpop.f32.mrb[0].mxu0
      %v1056 = vadd.f32 %v895, %v1055
      %v1057 = vpop.f32.mrb[0].mxu0
      %v1058 = vpop.f32.mrb[0].mxu0
      %v1059 = vadd.f32 %v898, %v1058
      %v1060 = vpop.f32.mrb[0].mxu0
      %1061 = vmatprep.mubr.bf16.mxu0 0
      %1062 = vmatmul.mubr.bf16.gmra.mrb[0].mxu0 %v767
      %v1063 = vpop.f32.mrb[0].mxu0
      %v1064 = vadd.f32 %v903, %v1063
      %v1065 = vpop.f32.mrb[0].mxu0
      %v1066 = vpop.f32.mrb[0].mxu0
      %v1067 = vadd.f32 %v906, %v1066
      %v1068 = vpop.f32.mrb[0].mxu0
      %1069 = vmatprep.mubr.bf16.mxu0 0
      %1070 = vmatmul.mubr.bf16.gmra.mrb[0].mxu0 %v770
      %v1071 = vpop.f32.mrb[0].mxu0
      %v1072 = vadd.f32 %v911, %v1071
      %v1073 = vpop.f32.mrb[0].mxu0
      %v1074 = vpop.f32.mrb[0].mxu0
      %v1075 = vadd.f32 %v914, %v1074
      %v1076 = vpop.f32.mrb[0].mxu0
      %1077 = vmatprep.mubr.bf16.mxu0 0
      %1078 = vmatmul.mubr.bf16.gmra.mrb[0].mxu0 %v773
      %v1079 = vpop.f32.mrb[0].mxu0
      %v1080 = vadd.f32 %v919, %v1079
      %v1081 = vpop.f32.mrb[0].mxu0
      %v1082 = vpop.f32.mrb[0].mxu0
      %v1083 = vadd.f32 %v922, %v1082
      %v1084 = vpop.f32.mrb[0].mxu0
      %1085 = vmatprep.mubr.bf16.mxu0 0
      %1086 = vmatmul.mubr.bf16.gmra.mrb[0].mxu0 %v776
      %v1087 = vpop.f32.mrb[0].mxu0
      %v1088 = vadd.f32 %v927, %v1087
      %v1089 = vpop.f32.mrb[0].mxu0
      %v1090 = vpop.f32.mrb[0].mxu0
      %v1091 = vadd.f32 %v930, %v1090
      %v1092 = vpop.f32.mrb[0].mxu0
      %1093 = vmatprep.mubr.bf16.mxu0 0
      %1094 = vmatmul.mubr.bf16.gmra.mrb[0].mxu0 %v779
      %v1095 = vpop.f32.mrb[0].mxu0
      %v1096 = vadd.f32 %v935, %v1095
      %v1097 = vpop.f32.mrb[0].mxu0
      %v1098 = vpop.f32.mrb[0].mxu0
      %v1099 = vadd.f32 %v938, %v1098
      %v1100 = vpop.f32.mrb[0].mxu0
      %1101 = vmatprep.mubr.bf16.mxu0 0
      %1102 = vmatmul.mubr.bf16.gmra.mrb[0].mxu0 %v782
      %v1103 = vpop.f32.mrb[0].mxu0
      %v1104 = vadd.f32 %v943, %v1103
      %v1105 = vpop.f32.mrb[0].mxu0
      %v1106 = vpop.f32.mrb[0].mxu0
      %v1107 = vadd.f32 %v946, %v1106
      %v1108 = vpop.f32.mrb[0].mxu0
      %1109 = vdwg.mxu0
      %1142 = vrot.lane.b32.xlu0 %v984, 126
      %v1143 = vpop.permute.xlu0 %1142
      %1144 = vrot.lane.b32.xlu0 %v987, 126
      %v1145 = vpop.permute.xlu0 %1144
      %1146 = vrot.lane.b32.xlu0 %v992, 126
      %v1147 = vpop.permute.xlu0 %1146
      %1148 = vrot.lane.b32.xlu0 %v995, 126
      %v1149 = vpop.permute.xlu0 %1148
      %1150 = vrot.lane.b32.xlu0 %v1000, 126
      %v1151 = vpop.permute.xlu0 %1150
      %1152 = vrot.lane.b32.xlu0 %v1003, 126
      %v1153 = vpop.permute.xlu0 %1152
      %1154 = vrot.lane.b32.xlu0 %v1008, 126
      %v1155 = vpop.permute.xlu0 %1154
      %1156 = vrot.lane.b32.xlu0 %v1011, 126
      %v1157 = vpop.permute.xlu0 %1156
      %1158 = vrot.lane.b32.xlu0 %v1016, 126
      %v1159 = vpop.permute.xlu0 %1158
      %1160 = vrot.lane.b32.xlu0 %v1019, 126
      %v1161 = vpop.permute.xlu0 %1160
      %1162 = vrot.lane.b32.xlu0 %v1024, 126
      %v1163 = vpop.permute.xlu0 %1162
      %1164 = vrot.lane.b32.xlu0 %v1027, 126
      %v1165 = vpop.permute.xlu0 %1164
      %1166 = vrot.lane.b32.xlu0 %v1032, 126
      %v1167 = vpop.permute.xlu0 %1166
      %1168 = vrot.lane.b32.xlu0 %v1035, 126
      %v1169 = vpop.permute.xlu0 %1168
      %1170 = vrot.lane.b32.xlu0 %v1040, 126
      %v1171 = vpop.permute.xlu0 %1170
      %1172 = vrot.lane.b32.xlu0 %v1043, 126
      %v1173 = vpop.permute.xlu0 %1172
      %1174 = vrot.lane.b32.xlu0 %v1048, 126
      %v1175 = vpop.permute.xlu0 %1174
      %1176 = vrot.lane.b32.xlu0 %v1051, 126
      %v1177 = vpop.permute.xlu0 %1176
      %1178 = vrot.lane.b32.xlu0 %v1056, 126
      %v1179 = vpop.permute.xlu0 %1178
      %1180 = vrot.lane.b32.xlu0 %v1059, 126
      %v1181 = vpop.permute.xlu0 %1180
      %1182 = vrot.lane.b32.xlu0 %v1064, 126
      %v1183 = vpop.permute.xlu0 %1182
      %1184 = vrot.lane.b32.xlu0 %v1067, 126
      %v1185 = vpop.permute.xlu0 %1184
      %1186 = vrot.lane.b32.xlu0 %v1072, 126
      %v1187 = vpop.permute.xlu0 %1186
      %1188 = vrot.lane.b32.xlu0 %v1075, 126
      %v1189 = vpop.permute.xlu0 %1188
      %1190 = vrot.lane.b32.xlu0 %v1080, 126
      %v1191 = vpop.permute.xlu0 %1190
      %1192 = vrot.lane.b32.xlu0 %v1083, 126
      %v1193 = vpop.permute.xlu0 %1192
      %1194 = vrot.lane.b32.xlu0 %v1088, 126
      %v1195 = vpop.permute.xlu0 %1194
      %1196 = vrot.lane.b32.xlu0 %v1091, 126
      %v1197 = vpop.permute.xlu0 %1196
      %1198 = vrot.lane.b32.xlu0 %v1096, 126
      %v1199 = vpop.permute.xlu0 %1198
      %1200 = vrot.lane.b32.xlu0 %v1099, 126
      %v1201 = vpop.permute.xlu0 %1200
      %1202 = vrot.lane.b32.xlu0 %v1104, 126
      %v1203 = vpop.permute.xlu0 %1202
      %1204 = vrot.lane.b32.xlu0 %v1107, 126
      %v1205 = vpop.permute.xlu0 %1204
      %v1238 = vmul.f32 %v984, %v1143
      %v1239 = vmul.f32 %v987, %v1145
      %v1240 = vmul.f32 %v992, %v1147
      %v1241 = vmul.f32 %v995, %v1149
      %v1242 = vmul.f32 %v1000, %v1151
      %v1243 = vmul.f32 %v1003, %v1153
      %v1244 = vmul.f32 %v1008, %v1155
      %v1245 = vmul.f32 %v1011, %v1157
      %v1246 = vmul.f32 %v1016, %v1159
      %v1247 = vmul.f32 %v1019, %v1161
      %v1248 = vmul.f32 %v1024, %v1163
      %v1249 = vmul.f32 %v1027, %v1165
      %v1250 = vmul.f32 %v1032, %v1167
      %v1251 = vmul.f32 %v1035, %v1169
      %v1252 = vmul.f32 %v1040, %v1171
      %v1253 = vmul.f32 %v1043, %v1173
      %v1254 = vmul.f32 %v1048, %v1175
      %v1255 = vmul.f32 %v1051, %v1177
      %v1256 = vmul.f32 %v1056, %v1179
      %v1257 = vmul.f32 %v1059, %v1181
      %v1258 = vmul.f32 %v1064, %v1183
      %v1259 = vmul.f32 %v1067, %v1185
      %v1260 = vmul.f32 %v1072, %v1187
      %v1261 = vmul.f32 %v1075, %v1189
      %v1262 = vmul.f32 %v1080, %v1191
      %v1263 = vmul.f32 %v1083, %v1193
      %v1264 = vmul.f32 %v1088, %v1195
      %v1265 = vmul.f32 %v1091, %v1197
      %v1266 = vmul.f32 %v1096, %v1199
      %v1267 = vmul.f32 %v1099, %v1201
      %v1268 = vmul.f32 %v1104, %v1203
      %v1269 = vmul.f32 %v1107, %v1205
      %1270 = vrot.lane.b32.xlu0 %v984, 127
      %v1271 = vpop.permute.xlu0 %1270
      %1272 = vrot.lane.b32.xlu0 %v987, 127
      %v1273 = vpop.permute.xlu0 %1272
      %1274 = vrot.lane.b32.xlu0 %v992, 127
      %v1275 = vpop.permute.xlu0 %1274
      %1276 = vrot.lane.b32.xlu0 %v995, 127
      %v1277 = vpop.permute.xlu0 %1276
      %1278 = vrot.lane.b32.xlu0 %v1000, 127
      %v1279 = vpop.permute.xlu0 %1278
      %1280 = vrot.lane.b32.xlu0 %v1003, 127
      %v1281 = vpop.permute.xlu0 %1280
      %1282 = vrot.lane.b32.xlu0 %v1008, 127
      %v1283 = vpop.permute.xlu0 %1282
      %1284 = vrot.lane.b32.xlu0 %v1011, 127
      %v1285 = vpop.permute.xlu0 %1284
      %1286 = vrot.lane.b32.xlu0 %v1016, 127
      %v1287 = vpop.permute.xlu0 %1286
      %1288 = vrot.lane.b32.xlu0 %v1019, 127
      %v1289 = vpop.permute.xlu0 %1288
      %1290 = vrot.lane.b32.xlu0 %v1024, 127
      %v1291 = vpop.permute.xlu0 %1290
      %1292 = vrot.lane.b32.xlu0 %v1027, 127
      %v1293 = vpop.permute.xlu0 %1292
      %1294 = vrot.lane.b32.xlu0 %v1032, 127
      %v1295 = vpop.permute.xlu0 %1294
      %1296 = vrot.lane.b32.xlu0 %v1035, 127
      %v1297 = vpop.permute.xlu0 %1296
      %1298 = vrot.lane.b32.xlu0 %v1040, 127
      %v1299 = vpop.permute.xlu0 %1298
      %1300 = vrot.lane.b32.xlu0 %v1043, 127
      %v1301 = vpop.permute.xlu0 %1300
      %1302 = vrot.lane.b32.xlu0 %v1048, 127
      %v1303 = vpop.permute.xlu0 %1302
      %1304 = vrot.lane.b32.xlu0 %v1051, 127
      %v1305 = vpop.permute.xlu0 %1304
      %1306 = vrot.lane.b32.xlu0 %v1056, 127
      %v1307 = vpop.permute.xlu0 %1306
      %1308 = vrot.lane.b32.xlu0 %v1059, 127
      %v1309 = vpop.permute.xlu0 %1308
      %1310 = vrot.lane.b32.xlu0 %v1064, 127
      %v1311 = vpop.permute.xlu0 %1310
      %1312 = vrot.lane.b32.xlu0 %v1067, 127
      %v1313 = vpop.permute.xlu0 %1312
      %1314 = vrot.lane.b32.xlu0 %v1072, 127
      %v1315 = vpop.permute.xlu0 %1314
      %1316 = vrot.lane.b32.xlu0 %v1075, 127
      %v1317 = vpop.permute.xlu0 %1316
      %1318 = vrot.lane.b32.xlu0 %v1080, 127
      %v1319 = vpop.permute.xlu0 %1318
      %1320 = vrot.lane.b32.xlu0 %v1083, 127
      %v1321 = vpop.permute.xlu0 %1320
      %1322 = vrot.lane.b32.xlu0 %v1088, 127
      %v1323 = vpop.permute.xlu0 %1322
      %1324 = vrot.lane.b32.xlu0 %v1091, 127
      %v1325 = vpop.permute.xlu0 %1324
      %1326 = vrot.lane.b32.xlu0 %v1096, 127
      %v1327 = vpop.permute.xlu0 %1326
      %1328 = vrot.lane.b32.xlu0 %v1099, 127
      %v1329 = vpop.permute.xlu0 %1328
      %1330 = vrot.lane.b32.xlu0 %v1104, 127
      %v1331 = vpop.permute.xlu0 %1330
      %1332 = vrot.lane.b32.xlu0 %v1107, 127
      %v1333 = vpop.permute.xlu0 %1332
      %v1366 = vmul.f32 %v984, %v1271
      %v1367 = vmul.f32 %v987, %v1273
      %v1368 = vmul.f32 %v992, %v1275
      %v1369 = vmul.f32 %v995, %v1277
      %v1370 = vmul.f32 %v1000, %v1279
      %v1371 = vmul.f32 %v1003, %v1281
      %v1372 = vmul.f32 %v1008, %v1283
      %v1373 = vmul.f32 %v1011, %v1285
      %v1374 = vmul.f32 %v1016, %v1287
      %v1375 = vmul.f32 %v1019, %v1289
      %v1376 = vmul.f32 %v1024, %v1291
      %v1377 = vmul.f32 %v1027, %v1293
      %v1378 = vmul.f32 %v1032, %v1295
      %v1379 = vmul.f32 %v1035, %v1297
      %v1380 = vmul.f32 %v1040, %v1299
      %v1381 = vmul.f32 %v1043, %v1301
      %v1382 = vmul.f32 %v1048, %v1303
      %v1383 = vmul.f32 %v1051, %v1305
      %v1384 = vmul.f32 %v1056, %v1307
      %v1385 = vmul.f32 %v1059, %v1309
      %v1386 = vmul.f32 %v1064, %v1311
      %v1387 = vmul.f32 %v1067, %v1313
      %v1388 = vmul.f32 %v1072, %v1315
      %v1389 = vmul.f32 %v1075, %v1317
      %v1390 = vmul.f32 %v1080, %v1319
      %v1391 = vmul.f32 %v1083, %v1321
      %v1392 = vmul.f32 %v1088, %v1323
      %v1393 = vmul.f32 %v1091, %v1325
      %v1394 = vmul.f32 %v1096, %v1327
      %v1395 = vmul.f32 %v1099, %v1329
      %v1396 = vmul.f32 %v1104, %v1331
      %v1397 = vmul.f32 %v1107, %v1333
      %1430 = vrot.lane.b32.xlu0 %v1366, 127
      %v1431 = vpop.permute.xlu0 %1430
      %1432 = vrot.lane.b32.xlu0 %v1367, 127
      %v1433 = vpop.permute.xlu0 %1432
      %1434 = vrot.lane.b32.xlu0 %v1368, 127
      %v1435 = vpop.permute.xlu0 %1434
      %1436 = vrot.lane.b32.xlu0 %v1369, 127
      %v1437 = vpop.permute.xlu0 %1436
      %1438 = vrot.lane.b32.xlu0 %v1370, 127
      %v1439 = vpop.permute.xlu0 %1438
      %1440 = vrot.lane.b32.xlu0 %v1371, 127
      %v1441 = vpop.permute.xlu0 %1440
      %1442 = vrot.lane.b32.xlu0 %v1372, 127
      %v1443 = vpop.permute.xlu0 %1442
      %1444 = vrot.lane.b32.xlu0 %v1373, 127
      %v1445 = vpop.permute.xlu0 %1444
      %1446 = vrot.lane.b32.xlu0 %v1374, 127
      %v1447 = vpop.permute.xlu0 %1446
      %1448 = vrot.lane.b32.xlu0 %v1375, 127
      %v1449 = vpop.permute.xlu0 %1448
      %1450 = vrot.lane.b32.xlu0 %v1376, 127
      %v1451 = vpop.permute.xlu0 %1450
      %1452 = vrot.lane.b32.xlu0 %v1377, 127
      %v1453 = vpop.permute.xlu0 %1452
      %1454 = vrot.lane.b32.xlu0 %v1378, 127
      %v1455 = vpop.permute.xlu0 %1454
      %1456 = vrot.lane.b32.xlu0 %v1379, 127
      %v1457 = vpop.permute.xlu0 %1456
      %1458 = vrot.lane.b32.xlu0 %v1380, 127
      %v1459 = vpop.permute.xlu0 %1458
      %1460 = vrot.lane.b32.xlu0 %v1381, 127
      %v1461 = vpop.permute.xlu0 %1460
      %1462 = vrot.lane.b32.xlu0 %v1382, 127
      %v1463 = vpop.permute.xlu0 %1462
      %1464 = vrot.lane.b32.xlu0 %v1383, 127
      %v1465 = vpop.permute.xlu0 %1464
      %1466 = vrot.lane.b32.xlu0 %v1384, 127
      %v1467 = vpop.permute.xlu0 %1466
      %1468 = vrot.lane.b32.xlu0 %v1385, 127
      %v1469 = vpop.permute.xlu0 %1468
      %1470 = vrot.lane.b32.xlu0 %v1386, 127
      %v1471 = vpop.permute.xlu0 %1470
      %1472 = vrot.lane.b32.xlu0 %v1387, 127
      %v1473 = vpop.permute.xlu0 %1472
      %1474 = vrot.lane.b32.xlu0 %v1388, 127
      %v1475 = vpop.permute.xlu0 %1474
      %1476 = vrot.lane.b32.xlu0 %v1389, 127
      %v1477 = vpop.permute.xlu0 %1476
      %1478 = vrot.lane.b32.xlu0 %v1390, 127
      %v1479 = vpop.permute.xlu0 %1478
      %1480 = vrot.lane.b32.xlu0 %v1391, 127
      %v1481 = vpop.permute.xlu0 %1480
      %1482 = vrot.lane.b32.xlu0 %v1392, 127
      %v1483 = vpop.permute.xlu0 %1482
      %1484 = vrot.lane.b32.xlu0 %v1393, 127
      %v1485 = vpop.permute.xlu0 %1484
      %1486 = vrot.lane.b32.xlu0 %v1394, 127
      %v1487 = vpop.permute.xlu0 %1486
      %1488 = vrot.lane.b32.xlu0 %v1395, 127
      %v1489 = vpop.permute.xlu0 %1488
      %1490 = vrot.lane.b32.xlu0 %v1396, 127
      %v1491 = vpop.permute.xlu0 %1490
      %1492 = vrot.lane.b32.xlu0 %v1397, 127
      %v1493 = vpop.permute.xlu0 %1492
      %v1526 = vadd.f32 %v1238, %v1431
      %v1527 = vadd.f32 %v1239, %v1433
      %v1528 = vadd.f32 %v1240, %v1435
      %v1529 = vadd.f32 %v1241, %v1437
      %v1530 = vadd.f32 %v1242, %v1439
      %v1531 = vadd.f32 %v1243, %v1441
      %v1532 = vadd.f32 %v1244, %v1443
      %v1533 = vadd.f32 %v1245, %v1445
      %v1534 = vadd.f32 %v1246, %v1447
      %v1535 = vadd.f32 %v1247, %v1449
      %v1536 = vadd.f32 %v1248, %v1451
      %v1537 = vadd.f32 %v1249, %v1453
      %v1538 = vadd.f32 %v1250, %v1455
      %v1539 = vadd.f32 %v1251, %v1457
      %v1540 = vadd.f32 %v1252, %v1459
      %v1541 = vadd.f32 %v1253, %v1461
      %v1542 = vadd.f32 %v1254, %v1463
      %v1543 = vadd.f32 %v1255, %v1465
      %v1544 = vadd.f32 %v1256, %v1467
      %v1545 = vadd.f32 %v1257, %v1469
      %v1546 = vadd.f32 %v1258, %v1471
      %v1547 = vadd.f32 %v1259, %v1473
      %v1548 = vadd.f32 %v1260, %v1475
      %v1549 = vadd.f32 %v1261, %v1477
      %v1550 = vadd.f32 %v1262, %v1479
      %v1551 = vadd.f32 %v1263, %v1481
      %v1552 = vadd.f32 %v1264, %v1483
      %v1553 = vadd.f32 %v1265, %v1485
      %v1554 = vadd.f32 %v1266, %v1487
      %v1555 = vadd.f32 %v1267, %v1489
      %v1556 = vadd.f32 %v1268, %v1491
      %v1557 = vadd.f32 %v1269, %v1493
      %v1558 = vadd.f32 %v1526, %v1143
      %v1559 = vadd.f32 %v1527, %v1145
      %v1560 = vadd.f32 %v1528, %v1147
      %v1561 = vadd.f32 %v1529, %v1149
      %v1562 = vadd.f32 %v1530, %v1151
      %v1563 = vadd.f32 %v1531, %v1153
      %v1564 = vadd.f32 %v1532, %v1155
      %v1565 = vadd.f32 %v1533, %v1157
      %v1566 = vadd.f32 %v1534, %v1159
      %v1567 = vadd.f32 %v1535, %v1161
      %v1568 = vadd.f32 %v1536, %v1163
      %v1569 = vadd.f32 %v1537, %v1165
      %v1570 = vadd.f32 %v1538, %v1167
      %v1571 = vadd.f32 %v1539, %v1169
      %v1572 = vadd.f32 %v1540, %v1171
      %v1573 = vadd.f32 %v1541, %v1173
      %v1574 = vadd.f32 %v1542, %v1175
      %v1575 = vadd.f32 %v1543, %v1177
      %v1576 = vadd.f32 %v1544, %v1179
      %v1577 = vadd.f32 %v1545, %v1181
      %v1578 = vadd.f32 %v1546, %v1183
      %v1579 = vadd.f32 %v1547, %v1185
      %v1580 = vadd.f32 %v1548, %v1187
      %v1581 = vadd.f32 %v1549, %v1189
      %v1582 = vadd.f32 %v1550, %v1191
      %v1583 = vadd.f32 %v1551, %v1193
      %v1584 = vadd.f32 %v1552, %v1195
      %v1585 = vadd.f32 %v1553, %v1197
      %v1586 = vadd.f32 %v1554, %v1199
      %v1587 = vadd.f32 %v1555, %v1201
      %v1588 = vadd.f32 %v1556, %v1203
      %v1589 = vadd.f32 %v1557, %v1205
      %v1590 = vsub.f32 0.0, %v1558
      %v1591 = vsub.f32 0.0, %v1559
      %v1592 = vsub.f32 0.0, %v1560
      %v1593 = vsub.f32 0.0, %v1561
      %v1594 = vsub.f32 0.0, %v1562
      %v1595 = vsub.f32 0.0, %v1563
      %v1596 = vsub.f32 0.0, %v1564
      %v1597 = vsub.f32 0.0, %v1565
      %v1598 = vsub.f32 0.0, %v1566
      %v1599 = vsub.f32 0.0, %v1567
      %v1600 = vsub.f32 0.0, %v1568
      %v1601 = vsub.f32 0.0, %v1569
      %v1602 = vsub.f32 0.0, %v1570
      %v1603 = vsub.f32 0.0, %v1571
      %v1604 = vsub.f32 0.0, %v1572
      %v1605 = vsub.f32 0.0, %v1573
      %v1606 = vsub.f32 0.0, %v1574
      %v1607 = vsub.f32 0.0, %v1575
      %v1608 = vsub.f32 0.0, %v1576
      %v1609 = vsub.f32 0.0, %v1577
      %v1610 = vsub.f32 0.0, %v1578
      %v1611 = vsub.f32 0.0, %v1579
      %v1612 = vsub.f32 0.0, %v1580
      %v1613 = vsub.f32 0.0, %v1581
      %v1614 = vsub.f32 0.0, %v1582
      %v1615 = vsub.f32 0.0, %v1583
      %v1616 = vsub.f32 0.0, %v1584
      %v1617 = vsub.f32 0.0, %v1585
      %v1618 = vsub.f32 0.0, %v1586
      %v1619 = vsub.f32 0.0, %v1587
      %v1620 = vsub.f32 0.0, %v1588
      %v1621 = vsub.f32 0.0, %v1589
      %v1622 = vmul.f32 %v1590, 1.442695
      %v1623 = vpow.pop %v1622
      %v1624 = vmul.f32 %v1591, 1.442695
      %v1625 = vpow.pop %v1624
      %v1626 = vmul.f32 %v1592, 1.442695
      %v1627 = vpow.pop %v1626
      %v1628 = vmul.f32 %v1593, 1.442695
      %v1629 = vpow.pop %v1628
      %v1630 = vmul.f32 %v1594, 1.442695
      %v1631 = vpow.pop %v1630
      %v1632 = vmul.f32 %v1595, 1.442695
      %v1633 = vpow.pop %v1632
      %v1634 = vmul.f32 %v1596, 1.442695
      %v1635 = vpow.pop %v1634
      %v1636 = vmul.f32 %v1597, 1.442695
      %v1637 = vpow.pop %v1636
      %v1638 = vmul.f32 %v1598, 1.442695
      %v1639 = vpow.pop %v1638
      %v1640 = vmul.f32 %v1599, 1.442695
      %v1641 = vpow.pop %v1640
      %v1642 = vmul.f32 %v1600, 1.442695
      %v1643 = vpow.pop %v1642
      %v1644 = vmul.f32 %v1601, 1.442695
      %v1645 = vpow.pop %v1644
      %v1646 = vmul.f32 %v1602, 1.442695
      %v1647 = vpow.pop %v1646
      %v1648 = vmul.f32 %v1603, 1.442695
      %v1649 = vpow.pop %v1648
      %v1650 = vmul.f32 %v1604, 1.442695
      %v1651 = vpow.pop %v1650
      %v1652 = vmul.f32 %v1605, 1.442695
      %v1653 = vpow.pop %v1652
      %v1654 = vmul.f32 %v1606, 1.442695
      %v1655 = vpow.pop %v1654
      %v1656 = vmul.f32 %v1607, 1.442695
      %v1657 = vpow.pop %v1656
      %v1658 = vmul.f32 %v1608, 1.442695
      %v1659 = vpow.pop %v1658
      %v1660 = vmul.f32 %v1609, 1.442695
      %v1661 = vpow.pop %v1660
      %v1662 = vmul.f32 %v1610, 1.442695
      %v1663 = vpow.pop %v1662
      %v1664 = vmul.f32 %v1611, 1.442695
      %v1665 = vpow.pop %v1664
      %v1666 = vmul.f32 %v1612, 1.442695
      %v1667 = vpow.pop %v1666
      %v1668 = vmul.f32 %v1613, 1.442695
      %v1669 = vpow.pop %v1668
      %v1670 = vmul.f32 %v1614, 1.442695
      %v1671 = vpow.pop %v1670
      %v1672 = vmul.f32 %v1615, 1.442695
      %v1673 = vpow.pop %v1672
      %v1674 = vmul.f32 %v1616, 1.442695
      %v1675 = vpow.pop %v1674
      %v1676 = vmul.f32 %v1617, 1.442695
      %v1677 = vpow.pop %v1676
      %v1678 = vmul.f32 %v1618, 1.442695
      %v1679 = vpow.pop %v1678
      %v1680 = vmul.f32 %v1619, 1.442695
      %v1681 = vpow.pop %v1680
      %v1682 = vmul.f32 %v1620, 1.442695
      %v1683 = vpow.pop %v1682
      %v1684 = vmul.f32 %v1621, 1.442695
      %v1685 = vpow.pop %v1684
      %v1686 = vadd.f32 %v1623, 1.0
      %v1687 = vadd.f32 %v1625, 1.0
      %v1688 = vadd.f32 %v1627, 1.0
      %v1689 = vadd.f32 %v1629, 1.0
      %v1690 = vadd.f32 %v1631, 1.0
      %v1691 = vadd.f32 %v1633, 1.0
      %v1692 = vadd.f32 %v1635, 1.0
      %v1693 = vadd.f32 %v1637, 1.0
      %v1694 = vadd.f32 %v1639, 1.0
      %v1695 = vadd.f32 %v1641, 1.0
      %v1696 = vadd.f32 %v1643, 1.0
      %v1697 = vadd.f32 %v1645, 1.0
      %v1698 = vadd.f32 %v1647, 1.0
      %v1699 = vadd.f32 %v1649, 1.0
      %v1700 = vadd.f32 %v1651, 1.0
      %v1701 = vadd.f32 %v1653, 1.0
      %v1702 = vadd.f32 %v1655, 1.0
      %v1703 = vadd.f32 %v1657, 1.0
      %v1704 = vadd.f32 %v1659, 1.0
      %v1705 = vadd.f32 %v1661, 1.0
      %v1706 = vadd.f32 %v1663, 1.0
      %v1707 = vadd.f32 %v1665, 1.0
      %v1708 = vadd.f32 %v1667, 1.0
      %v1709 = vadd.f32 %v1669, 1.0
      %v1710 = vadd.f32 %v1671, 1.0
      %v1711 = vadd.f32 %v1673, 1.0
      %v1712 = vadd.f32 %v1675, 1.0
      %v1713 = vadd.f32 %v1677, 1.0
      %v1714 = vadd.f32 %v1679, 1.0
      %v1715 = vadd.f32 %v1681, 1.0
      %v1716 = vadd.f32 %v1683, 1.0
      %v1717 = vadd.f32 %v1685, 1.0
      %v1718 = vrcp.pop %v1686
      %v1719 = vrcp.pop %v1687
      %v1720 = vrcp.pop %v1688
      %v1721 = vrcp.pop %v1689
      %v1722 = vrcp.pop %v1690
      %v1723 = vrcp.pop %v1691
      %v1724 = vrcp.pop %v1692
      %v1725 = vrcp.pop %v1693
      %v1726 = vrcp.pop %v1694
      %v1727 = vrcp.pop %v1695
      %v1728 = vrcp.pop %v1696
      %v1729 = vrcp.pop %v1697
      %v1730 = vrcp.pop %v1698
      %v1731 = vrcp.pop %v1699
      %v1732 = vrcp.pop %v1700
      %v1733 = vrcp.pop %v1701
      %v1734 = vrcp.pop %v1702
      %v1735 = vrcp.pop %v1703
      %v1736 = vrcp.pop %v1704
      %v1737 = vrcp.pop %v1705
      %v1738 = vrcp.pop %v1706
      %v1739 = vrcp.pop %v1707
      %v1740 = vrcp.pop %v1708
      %v1741 = vrcp.pop %v1709
      %v1742 = vrcp.pop %v1710
      %v1743 = vrcp.pop %v1711
      %v1744 = vrcp.pop %v1712
      %v1745 = vrcp.pop %v1713
      %v1746 = vrcp.pop %v1714
      %v1747 = vrcp.pop %v1715
      %v1748 = vrcp.pop %v1716
      %v1749 = vrcp.pop %v1717
      %v1750 = vld [vmem:[%s261] sm:$0xff]
      %v1751 = vld [vmem:[%s261 + $0x8] sm:$0xff]
      %v1752 = vld [vmem:[%s261 + $0x10] sm:$0xff]
      %v1753 = vld [vmem:[%s261 + $0x18] sm:$0xff]
      %v1754 = vld [vmem:[%s261 + $0x20] sm:$0xff]
      %v1755 = vld [vmem:[%s261 + $0x28] sm:$0xff]
      %v1756 = vld [vmem:[%s261 + $0x30] sm:$0xff]
      %v1757 = vld [vmem:[%s261 + $0x38] sm:$0xff]
      %v1758 = vld [vmem:[%s261 + $0x40] sm:$0xff]
      %v1759 = vld [vmem:[%s261 + $0x48] sm:$0xff]
      %v1760 = vld [vmem:[%s261 + $0x50] sm:$0xff]
      %v1761 = vld [vmem:[%s261 + $0x58] sm:$0xff]
      %v1762 = vld [vmem:[%s261 + $0x60] sm:$0xff]
      %v1763 = vld [vmem:[%s261 + $0x68] sm:$0xff]
      %v1764 = vld [vmem:[%s261 + $0x70] sm:$0xff]
      %v1765 = vld [vmem:[%s261 + $0x78] sm:$0xff]
      %v1766 = vld [vmem:[%s261 + $0x80] sm:$0xff]
      %v1767 = vld [vmem:[%s261 + $0x88] sm:$0xff]
      %v1768 = vld [vmem:[%s261 + $0x90] sm:$0xff]
      %v1769 = vld [vmem:[%s261 + $0x98] sm:$0xff]
      %v1770 = vld [vmem:[%s261 + $0xa0] sm:$0xff]
      %v1771 = vld [vmem:[%s261 + $0xa8] sm:$0xff]
      %v1772 = vld [vmem:[%s261 + $0xb0] sm:$0xff]
      %v1773 = vld [vmem:[%s261 + $0xb8] sm:$0xff]
      %v1774 = vld [vmem:[%s261 + $0xc0] sm:$0xff]
      %v1775 = vld [vmem:[%s261 + $0xc8] sm:$0xff]
      %v1776 = vld [vmem:[%s261 + $0xd0] sm:$0xff]
      %v1777 = vld [vmem:[%s261 + $0xd8] sm:$0xff]
      %v1778 = vld [vmem:[%s261 + $0xe0] sm:$0xff]
      %v1779 = vld [vmem:[%s261 + $0xe8] sm:$0xff]
      %v1780 = vld [vmem:[%s261 + $0xf0] sm:$0xff]
      %v1781 = vld [vmem:[%s261 + $0xf8] sm:$0xff]
      %1783 = vset.pattern.permute.xlu0 0
      %1784 = vperm.xlu0 %1783, %v1718
      %v1785 = vpop.permute.xlu0 %1784
      %1788 = vset.pattern.permute.xlu0 0
      %1789 = vperm.xlu0 %1788, %v1719
      %v1790 = vpop.permute.xlu0 %1789
      %1793 = vset.pattern.permute.xlu0 0
      %1794 = vperm.xlu0 %1793, %v1720
      %v1795 = vpop.permute.xlu0 %1794
      %1798 = vset.pattern.permute.xlu0 0
      %1799 = vperm.xlu0 %1798, %v1721
      %v1800 = vpop.permute.xlu0 %1799
      %1803 = vset.pattern.permute.xlu0 0
      %1804 = vperm.xlu0 %1803, %v1722
      %v1805 = vpop.permute.xlu0 %1804
      %1808 = vset.pattern.permute.xlu0 0
      %1809 = vperm.xlu0 %1808, %v1723
      %v1810 = vpop.permute.xlu0 %1809
      %1813 = vset.pattern.permute.xlu0 0
      %1814 = vperm.xlu0 %1813, %v1724
      %v1815 = vpop.permute.xlu0 %1814
      %1818 = vset.pattern.permute.xlu0 0
      %1819 = vperm.xlu0 %1818, %v1725
      %v1820 = vpop.permute.xlu0 %1819
      %1823 = vset.pattern.permute.xlu0 0
      %1824 = vperm.xlu0 %1823, %v1726
      %v1825 = vpop.permute.xlu0 %1824
      %1828 = vset.pattern.permute.xlu0 0
      %1829 = vperm.xlu0 %1828, %v1727
      %v1830 = vpop.permute.xlu0 %1829
      %1833 = vset.pattern.permute.xlu0 0
      %1834 = vperm.xlu0 %1833, %v1728
      %v1835 = vpop.permute.xlu0 %1834
      %1838 = vset.pattern.permute.xlu0 0
      %1839 = vperm.xlu0 %1838, %v1729
      %v1840 = vpop.permute.xlu0 %1839
      %1843 = vset.pattern.permute.xlu0 0
      %1844 = vperm.xlu0 %1843, %v1730
      %v1845 = vpop.permute.xlu0 %1844
      %1848 = vset.pattern.permute.xlu0 0
      %1849 = vperm.xlu0 %1848, %v1731
      %v1850 = vpop.permute.xlu0 %1849
      %1853 = vset.pattern.permute.xlu0 0
      %1854 = vperm.xlu0 %1853, %v1732
      %v1855 = vpop.permute.xlu0 %1854
      %1858 = vset.pattern.permute.xlu0 0
      %1859 = vperm.xlu0 %1858, %v1733
      %v1860 = vpop.permute.xlu0 %1859
      %1863 = vset.pattern.permute.xlu0 0
      %1864 = vperm.xlu0 %1863, %v1734
      %v1865 = vpop.permute.xlu0 %1864
      %1868 = vset.pattern.permute.xlu0 0
      %1869 = vperm.xlu0 %1868, %v1735
      %v1870 = vpop.permute.xlu0 %1869
      %1873 = vset.pattern.permute.xlu0 0
      %1874 = vperm.xlu0 %1873, %v1736
      %v1875 = vpop.permute.xlu0 %1874
      %1878 = vset.pattern.permute.xlu0 0
      %1879 = vperm.xlu0 %1878, %v1737
      %v1880 = vpop.permute.xlu0 %1879
      %1883 = vset.pattern.permute.xlu0 0
      %1884 = vperm.xlu0 %1883, %v1738
      %v1885 = vpop.permute.xlu0 %1884
      %1888 = vset.pattern.permute.xlu0 0
      %1889 = vperm.xlu0 %1888, %v1739
      %v1890 = vpop.permute.xlu0 %1889
      %1893 = vset.pattern.permute.xlu0 0
      %1894 = vperm.xlu0 %1893, %v1740
      %v1895 = vpop.permute.xlu0 %1894
      %1898 = vset.pattern.permute.xlu0 0
      %1899 = vperm.xlu0 %1898, %v1741
      %v1900 = vpop.permute.xlu0 %1899
      %1903 = vset.pattern.permute.xlu0 0
      %1904 = vperm.xlu0 %1903, %v1742
      %v1905 = vpop.permute.xlu0 %1904
      %1908 = vset.pattern.permute.xlu0 0
      %1909 = vperm.xlu0 %1908, %v1743
      %v1910 = vpop.permute.xlu0 %1909
      %1913 = vset.pattern.permute.xlu0 0
      %1914 = vperm.xlu0 %1913, %v1744
      %v1915 = vpop.permute.xlu0 %1914
      %1918 = vset.pattern.permute.xlu0 0
      %1919 = vperm.xlu0 %1918, %v1745
      %v1920 = vpop.permute.xlu0 %1919
      %1923 = vset.pattern.permute.xlu0 0
      %1924 = vperm.xlu0 %1923, %v1746
      %v1925 = vpop.permute.xlu0 %1924
      %1928 = vset.pattern.permute.xlu0 0
      %1929 = vperm.xlu0 %1928, %v1747
      %v1930 = vpop.permute.xlu0 %1929
      %1933 = vset.pattern.permute.xlu0 0
      %1934 = vperm.xlu0 %1933, %v1748
      %v1935 = vpop.permute.xlu0 %1934
      %1938 = vset.pattern.permute.xlu0 0
      %1939 = vperm.xlu0 %1938, %v1749
      %v1940 = vpop.permute.xlu0 %1939
      %v1942 = vmul.f32 %v1785, %v1750
      %v1943 = vmul.f32 %v1790, %v1751
      %v1944 = vmul.f32 %v1795, %v1752
      %v1945 = vmul.f32 %v1800, %v1753
      %v1946 = vmul.f32 %v1805, %v1754
      %v1947 = vmul.f32 %v1810, %v1755
      %v1948 = vmul.f32 %v1815, %v1756
      %v1949 = vmul.f32 %v1820, %v1757
      %v1950 = vmul.f32 %v1825, %v1758
      %v1951 = vmul.f32 %v1830, %v1759
      %v1952 = vmul.f32 %v1835, %v1760
      %v1953 = vmul.f32 %v1840, %v1761
      %v1954 = vmul.f32 %v1845, %v1762
      %v1955 = vmul.f32 %v1850, %v1763
      %v1956 = vmul.f32 %v1855, %v1764
      %v1957 = vmul.f32 %v1860, %v1765
      %v1958 = vmul.f32 %v1865, %v1766
      %v1959 = vmul.f32 %v1870, %v1767
      %v1960 = vmul.f32 %v1875, %v1768
      %v1961 = vmul.f32 %v1880, %v1769
      %v1962 = vmul.f32 %v1885, %v1770
      %v1963 = vmul.f32 %v1890, %v1771
      %v1964 = vmul.f32 %v1895, %v1772
      %v1965 = vmul.f32 %v1900, %v1773
      %v1966 = vmul.f32 %v1905, %v1774
      %v1967 = vmul.f32 %v1910, %v1775
      %v1968 = vmul.f32 %v1915, %v1776
      %v1969 = vmul.f32 %v1920, %v1777
      %v1970 = vmul.f32 %v1925, %v1778
      %v1971 = vmul.f32 %v1930, %v1779
      %v1972 = vmul.f32 %v1935, %v1780
      %v1973 = vmul.f32 %v1940, %v1781
      %v1974 = vadd.f32 %v1942, %v1750
      %v1975 = vadd.f32 %v1943, %v1751
      %v1976 = vadd.f32 %v1944, %v1752
      %v1977 = vadd.f32 %v1945, %v1753
      %v1978 = vadd.f32 %v1946, %v1754
      %v1979 = vadd.f32 %v1947, %v1755
      %v1980 = vadd.f32 %v1948, %v1756
      %v1981 = vadd.f32 %v1949, %v1757
      %v1982 = vadd.f32 %v1950, %v1758
      %v1983 = vadd.f32 %v1951, %v1759
      %v1984 = vadd.f32 %v1952, %v1760
      %v1985 = vadd.f32 %v1953, %v1761
      %v1986 = vadd.f32 %v1954, %v1762
      %v1987 = vadd.f32 %v1955, %v1763
      %v1988 = vadd.f32 %v1956, %v1764
      %v1989 = vadd.f32 %v1957, %v1765
      %v1990 = vadd.f32 %v1958, %v1766
      %v1991 = vadd.f32 %v1959, %v1767
      %v1992 = vadd.f32 %v1960, %v1768
      %v1993 = vadd.f32 %v1961, %v1769
      %v1994 = vadd.f32 %v1962, %v1770
      %v1995 = vadd.f32 %v1963, %v1771
      %v1996 = vadd.f32 %v1964, %v1772
      %v1997 = vadd.f32 %v1965, %v1773
      %v1998 = vadd.f32 %v1966, %v1774
      %v1999 = vadd.f32 %v1967, %v1775
      %v2000 = vadd.f32 %v1968, %v1776
      %v2001 = vadd.f32 %v1969, %v1777
      %v2002 = vadd.f32 %v1970, %v1778
      %v2003 = vadd.f32 %v1971, %v1779
      %v2004 = vadd.f32 %v1972, %v1780
      %v2005 = vadd.f32 %v1973, %v1781
      %v2006 = vld [vmem:[%s267] sm:$0xff]
      %v2007 = vld [vmem:[%s267 + $0x8] sm:$0xff]
      %v2008 = vld [vmem:[%s267 + $0x10] sm:$0xff]
      %v2009 = vld [vmem:[%s267 + $0x18] sm:$0xff]
      %v2010 = vld [vmem:[%s267 + $0x20] sm:$0xff]
      %v2011 = vld [vmem:[%s267 + $0x28] sm:$0xff]
      %v2012 = vld [vmem:[%s267 + $0x30] sm:$0xff]
      %v2013 = vld [vmem:[%s267 + $0x38] sm:$0xff]
      %v2014 = vld [vmem:[%s267 + $0x40] sm:$0xff]
      %v2015 = vld [vmem:[%s267 + $0x48] sm:$0xff]
      %v2016 = vld [vmem:[%s267 + $0x50] sm:$0xff]
      %v2017 = vld [vmem:[%s267 + $0x58] sm:$0xff]
      %v2018 = vld [vmem:[%s267 + $0x60] sm:$0xff]
      %v2019 = vld [vmem:[%s267 + $0x68] sm:$0xff]
      %v2020 = vld [vmem:[%s267 + $0x70] sm:$0xff]
      %v2021 = vld [vmem:[%s267 + $0x78] sm:$0xff]
      %v2022 = vld [vmem:[%s267 + $0x80] sm:$0xff]
      %v2023 = vld [vmem:[%s267 + $0x88] sm:$0xff]
      %v2024 = vld [vmem:[%s267 + $0x90] sm:$0xff]
      %v2025 = vld [vmem:[%s267 + $0x98] sm:$0xff]
      %v2026 = vld [vmem:[%s267 + $0xa0] sm:$0xff]
      %v2027 = vld [vmem:[%s267 + $0xa8] sm:$0xff]
      %v2028 = vld [vmem:[%s267 + $0xb0] sm:$0xff]
      %v2029 = vld [vmem:[%s267 + $0xb8] sm:$0xff]
      %v2030 = vld [vmem:[%s267 + $0xc0] sm:$0xff]
      %v2031 = vld [vmem:[%s267 + $0xc8] sm:$0xff]
      %v2032 = vld [vmem:[%s267 + $0xd0] sm:$0xff]
      %v2033 = vld [vmem:[%s267 + $0xd8] sm:$0xff]
      %v2034 = vld [vmem:[%s267 + $0xe0] sm:$0xff]
      %v2035 = vld [vmem:[%s267 + $0xe8] sm:$0xff]
      %v2036 = vld [vmem:[%s267 + $0xf0] sm:$0xff]
      %v2037 = vld [vmem:[%s267 + $0xf8] sm:$0xff]
      %v2038 = vadd.f32 %v1974, %v2006
      %v2039 = vadd.f32 %v1975, %v2007
      %v2040 = vadd.f32 %v1976, %v2008
      %v2041 = vadd.f32 %v1977, %v2009
      %v2042 = vadd.f32 %v1978, %v2010
      %v2043 = vadd.f32 %v1979, %v2011
      %v2044 = vadd.f32 %v1980, %v2012
      %v2045 = vadd.f32 %v1981, %v2013
      %v2046 = vadd.f32 %v1982, %v2014
      %v2047 = vadd.f32 %v1983, %v2015
      %v2048 = vadd.f32 %v1984, %v2016
      %v2049 = vadd.f32 %v1985, %v2017
      %v2050 = vadd.f32 %v1986, %v2018
      %v2051 = vadd.f32 %v1987, %v2019
      %v2052 = vadd.f32 %v1988, %v2020
      %v2053 = vadd.f32 %v1989, %v2021
      %v2054 = vadd.f32 %v1990, %v2022
      %v2055 = vadd.f32 %v1991, %v2023
      %v2056 = vadd.f32 %v1992, %v2024
      %v2057 = vadd.f32 %v1993, %v2025
      %v2058 = vadd.f32 %v1994, %v2026
      %v2059 = vadd.f32 %v1995, %v2027
      %v2060 = vadd.f32 %v1996, %v2028
      %v2061 = vadd.f32 %v1997, %v2029
      %v2062 = vadd.f32 %v1998, %v2030
      %v2063 = vadd.f32 %v1999, %v2031
      %v2064 = vadd.f32 %v2000, %v2032
      %v2065 = vadd.f32 %v2001, %v2033
      %v2066 = vadd.f32 %v2002, %v2034
      %v2067 = vadd.f32 %v2003, %v2035
      %v2068 = vadd.f32 %v2004, %v2036
      %v2069 = vadd.f32 %v2005, %v2037
      %vm2070 = vcmask 31744
      %2071 = vst.msk [vmem:[%s273] sm:$0xff] %vm2070, %v2038
      %2072 = vst.msk [vmem:[%s273 + $0x8] sm:$0xff] %vm2070, %v2039
      %2073 = vst.msk [vmem:[%s273 + $0x10] sm:$0xff] %vm2070, %v2040
      %2074 = vst.msk [vmem:[%s273 + $0x18] sm:$0xff] %vm2070, %v2041
      %2075 = vst.msk [vmem:[%s273 + $0x20] sm:$0xff] %vm2070, %v2042
      %2076 = vst.msk [vmem:[%s273 + $0x28] sm:$0xff] %vm2070, %v2043
      %2077 = vst.msk [vmem:[%s273 + $0x30] sm:$0xff] %vm2070, %v2044
      %2078 = vst.msk [vmem:[%s273 + $0x38] sm:$0xff] %vm2070, %v2045
      %2079 = vst.msk [vmem:[%s273 + $0x40] sm:$0xff] %vm2070, %v2046
      %2080 = vst.msk [vmem:[%s273 + $0x48] sm:$0xff] %vm2070, %v2047
      %2081 = vst.msk [vmem:[%s273 + $0x50] sm:$0xff] %vm2070, %v2048
      %2082 = vst.msk [vmem:[%s273 + $0x58] sm:$0xff] %vm2070, %v2049
      %2083 = vst.msk [vmem:[%s273 + $0x60] sm:$0xff] %vm2070, %v2050
      %2084 = vst.msk [vmem:[%s273 + $0x68] sm:$0xff] %vm2070, %v2051
      %2085 = vst.msk [vmem:[%s273 + $0x70] sm:$0xff] %vm2070, %v2052
      %2086 = vst.msk [vmem:[%s273 + $0x78] sm:$0xff] %vm2070, %v2053
      %2087 = vst.msk [vmem:[%s273 + $0x80] sm:$0xff] %vm2070, %v2054
      %2088 = vst.msk [vmem:[%s273 + $0x88] sm:$0xff] %vm2070, %v2055
      %2089 = vst.msk [vmem:[%s273 + $0x90] sm:$0xff] %vm2070, %v2056
      %2090 = vst.msk [vmem:[%s273 + $0x98] sm:$0xff] %vm2070, %v2057
      %2091 = vst.msk [vmem:[%s273 + $0xa0] sm:$0xff] %vm2070, %v2058
      %2092 = vst.msk [vmem:[%s273 + $0xa8] sm:$0xff] %vm2070, %v2059
      %2093 = vst.msk [vmem:[%s273 + $0xb0] sm:$0xff] %vm2070, %v2060
      %2094 = vst.msk [vmem:[%s273 + $0xb8] sm:$0xff] %vm2070, %v2061
      %2095 = vst.msk [vmem:[%s273 + $0xc0] sm:$0xff] %vm2070, %v2062
      %2096 = vst.msk [vmem:[%s273 + $0xc8] sm:$0xff] %vm2070, %v2063
      %2097 = vst.msk [vmem:[%s273 + $0xd0] sm:$0xff] %vm2070, %v2064
      %2098 = vst.msk [vmem:[%s273 + $0xd8] sm:$0xff] %vm2070, %v2065
      %2099 = vst.msk [vmem:[%s273 + $0xe0] sm:$0xff] %vm2070, %v2066
      %2100 = vst.msk [vmem:[%s273 + $0xe8] sm:$0xff] %vm2070, %v2067
      %2101 = vst.msk [vmem:[%s273 + $0xf0] sm:$0xff] %vm2070, %v2068
      %2102 = vst.msk [vmem:[%s273 + $0xf8] sm:$0xff] %vm2070, %v2069
      %s2103 = smul.u32 32, %s16
      %p2104 = scmp.lt.s32.totalorder %s2103, 63
      %s2105 = scalar_select %p2104, %s2103, 63
      %s2106 = smul.addr %s2105, 8
      %s2107 = scalar_lea.vmem %s5, %s2106
      // Predicated region
      $region41: #{daff_forward.6} parent=39 // pred_check
        %p2108 = pneg %p154
      $region42: #{daff_forward.6} parent=39 // pred_check_branch
        %2110 = sbr.rel (%p2108) target = $region44
      $region43: #{daff_forward.6} parent=39 // pred_region
        %s2111 = smul.u32 32, %s16
      $region44: #{daff_forward.6} parent=39 // pred_fallthru
        _
    $region40: #{daff_forward.6} parent=5 // pred_fallthru
      _
    %p2112 = scmp.le.s32.totalorder 2, %s11
    // Predicated region
    $region45: #{daff_forward.6} parent=5 // pred_check
      %p2113 = pneg %p2112
    $region46: #{daff_forward.6} parent=5 // pred_check_branch
      %2115 = sbr.rel (%p2113) target = $region48
    $region47: #{daff_forward.6} parent=5 // pred_region
      %s2116 = ssub.s32 %s11, 2
      // Predicated region
      $region49: #{daff_forward.6} parent=47 // pred_check
        %p2117 = pneg %p160
      $region50: #{daff_forward.6} parent=47 // pred_check_branch
        %2119 = sbr.rel (%p2117) target = $region52
      $region51: #{daff_forward.6} parent=47 // pred_region
        %s2120 = smul.u32 32, %s17
        %p2121 = scmp.lt.s32.totalorder %s2120, 63
        %s2122 = scalar_select %p2121, %s2120, 63
        %s2123 = smul.addr %s2122, 8
        %s2124 = scalar_lea.vmem %s5, %s2123
      $region52: #{daff_forward.6} parent=47 // pred_fallthru
        _
    $region48: #{daff_forward.6} parent=5 // pred_fallthru
      _
  $region6: #{daff_forward.6} parent=0 // loop_footer
    %s15 = sadd.s32 1, %s11
  $region7: #{daff_forward.6} parent=0 // loop_footer_branch
    %10 = sbr.rel target = $region3
  $region8: #{daff_forward.6} parent=0 // loop_exit
    _

// kernel: daff_forward.7
$region0: #{daff_forward.7}
  #allocation0 [shape = 'u32[]', space=smem, size = 0x4, offset = 0x4, fixed_abs, tag = 'smem constant byte address 0x4 - core index']
  #allocation1 [shape = 'u32[144,128]{1,0:T(1,128)}', space=vmem, size = 0x12000, scoped, tag = 'internal scratch']
  %s0 = inlined_call_operand.vmem [shape: bf16[512,72], index: 0, kind: input, shape index: {}]
  %s1 = inlined_call_operand.vmem [shape: bf16[72,8], index: 1, kind: input, shape index: {}]
  %s2 = inlined_call_operand.vmem [shape: f32[1,8], index: 2, kind: input, shape index: {}]
  %s3 = inlined_call_operand.vmem [shape: f32[1,8], index: 3, kind: input, shape index: {}]
  %s4 = inlined_call_operand.vmem [shape: f32[1,8], index: 4, kind: input, shape index: {}]
  %s5 = inlined_call_operand.vmem [shape: f32[512,8], index: 5, kind: output, shape index: {}]
  %s6 = sld [smem:[#allocation0]]
  $region30: #{daff_forward.7} parent=0
    _
  %s8 = ssub.s32 1, %s6
  %s9 = scalar_select 0, %s8, %s6
  // Predicated region
  $region2: #{daff_forward.7} parent=0 // pred_check
    _
  $region3: #{daff_forward.7} parent=0 // pred_check_branch
    %11 = sbr.rel (0) target = $region5
  $region4: #{daff_forward.7} parent=0 // pred_region
    _
  $region5: #{daff_forward.7} parent=0 // pred_fallthru
    _
  // Predicated region
  $region6: #{daff_forward.7} parent=0 // pred_check
    _
  $region7: #{daff_forward.7} parent=0 // pred_check_branch
    %13 = sbr.rel (0) target = $region9
  $region8: #{daff_forward.7} parent=0 // pred_region
    _
  $region9: #{daff_forward.7} parent=0 // pred_fallthru
    _
  // Predicated region
  $region10: #{daff_forward.7} parent=0 // pred_check
    _
  $region11: #{daff_forward.7} parent=0 // pred_check_branch
    %15 = sbr.rel (0) target = $region13
  $region12: #{daff_forward.7} parent=0 // pred_region
    _
  $region13: #{daff_forward.7} parent=0 // pred_fallthru
    _
  // Predicated region
  $region14: #{daff_forward.7} parent=0 // pred_check
    _
  $region15: #{daff_forward.7} parent=0 // pred_check_branch
    %17 = sbr.rel (0) target = $region17
  $region16: #{daff_forward.7} parent=0 // pred_region
    _
  $region17: #{daff_forward.7} parent=0 // pred_fallthru
    _
  // Predicated region
  $region18: #{daff_forward.7} parent=0 // pred_check
    _
  $region19: #{daff_forward.7} parent=0 // pred_check_branch
    %19 = sbr.rel (0) target = $region21
  $region20: #{daff_forward.7} parent=0 // pred_region
    _
  $region21: #{daff_forward.7} parent=0 // pred_fallthru
    _
  %v21 = vld [vmem:[%s0] sm:$0xf]
  %v22 = vld [vmem:[%s0 + $0x4] sm:$0xf]
  %v23 = vld [vmem:[%s0 + $0x8] sm:$0xf]
  %v24 = vld [vmem:[%s0 + $0xc] sm:$0xf]
  %v25 = vld [vmem:[%s0 + $0x10] sm:$0xf]
  %v26 = vld [vmem:[%s0 + $0x14] sm:$0xf]
  %v27 = vld [vmem:[%s0 + $0x18] sm:$0xf]
  %v28 = vld [vmem:[%s0 + $0x1c] sm:$0xf]
  %v29 = vld [vmem:[%s0 + $0x20] sm:$0xf]
  %v30 = vld [vmem:[%s0 + $0x24] sm:$0xf]
  %v31 = vld [vmem:[%s0 + $0x28] sm:$0xf]
  %v32 = vld [vmem:[%s0 + $0x2c] sm:$0xf]
  %v33 = vld [vmem:[%s0 + $0x30] sm:$0xf]
  %v34 = vld [vmem:[%s0 + $0x34] sm:$0xf]
  %v35 = vld [vmem:[%s0 + $0x38] sm:$0xf]
  %v36 = vld [vmem:[%s0 + $0x3c] sm:$0xf]
  %v37 = vld [vmem:[%s0 + $0x40] sm:$0xf]
  %v38 = vld [vmem:[%s0 + $0x44] sm:$0xf]
  %v39 = vld [vmem:[%s0 + $0x48] sm:$0xf]
  %v40 = vld [vmem:[%s0 + $0x4c] sm:$0xf]
  %v41 = vld [vmem:[%s0 + $0x50] sm:$0xf]
  %v42 = vld [vmem:[%s0 + $0x54] sm:$0xf]
  %v43 = vld [vmem:[%s0 + $0x58] sm:$0xf]
  %v44 = vld [vmem:[%s0 + $0x5c] sm:$0xf]
  %v45 = vld [vmem:[%s0 + $0x60] sm:$0xf]
  %v46 = vld [vmem:[%s0 + $0x64] sm:$0xf]
  %v47 = vld [vmem:[%s0 + $0x68] sm:$0xf]
  %v48 = vld [vmem:[%s0 + $0x6c] sm:$0xf]
  %v49 = vld [vmem:[%s0 + $0x70] sm:$0xf]
  %v50 = vld [vmem:[%s0 + $0x74] sm:$0xf]
  %v51 = vld [vmem:[%s0 + $0x78] sm:$0xf]
  %v52 = vld [vmem:[%s0 + $0x7c] sm:$0xf]
  %v53 = vld [vmem:[%s0 + $0x80] sm:$0xf]
  %v54 = vld [vmem:[%s0 + $0x84] sm:$0xf]
  %v55 = vld [vmem:[%s0 + $0x88] sm:$0xf]
  %v56 = vld [vmem:[%s0 + $0x8c] sm:$0xf]
  %v57 = vld [vmem:[%s0 + $0x90] sm:$0xf]
  %v58 = vld [vmem:[%s0 + $0x94] sm:$0xf]
  %v59 = vld [vmem:[%s0 + $0x98] sm:$0xf]
  %v60 = vld [vmem:[%s0 + $0x9c] sm:$0xf]
  %v61 = vld [vmem:[%s0 + $0xa0] sm:$0xf]
  %v62 = vld [vmem:[%s0 + $0xa4] sm:$0xf]
  %v63 = vld [vmem:[%s0 + $0xa8] sm:$0xf]
  %v64 = vld [vmem:[%s0 + $0xac] sm:$0xf]
  %v65 = vld [vmem:[%s0 + $0xb0] sm:$0xf]
  %v66 = vld [vmem:[%s0 + $0xb4] sm:$0xf]
  %v67 = vld [vmem:[%s0 + $0xb8] sm:$0xf]
  %v68 = vld [vmem:[%s0 + $0xbc] sm:$0xf]
  %v69 = vld [vmem:[%s0 + $0xc0] sm:$0xf]
  %v70 = vld [vmem:[%s0 + $0xc4] sm:$0xf]
  %v71 = vld [vmem:[%s0 + $0xc8] sm:$0xf]
  %v72 = vld [vmem:[%s0 + $0xcc] sm:$0xf]
  %v73 = vld [vmem:[%s0 + $0xd0] sm:$0xf]
  %v74 = vld [vmem:[%s0 + $0xd4] sm:$0xf]
  %v75 = vld [vmem:[%s0 + $0xd8] sm:$0xf]
  %v76 = vld [vmem:[%s0 + $0xdc] sm:$0xf]
  %v77 = vld [vmem:[%s0 + $0xe0] sm:$0xf]
  %v78 = vld [vmem:[%s0 + $0xe4] sm:$0xf]
  %v79 = vld [vmem:[%s0 + $0xe8] sm:$0xf]
  %v80 = vld [vmem:[%s0 + $0xec] sm:$0xf]
  %v81 = vld [vmem:[%s0 + $0xf0] sm:$0xf]
  %v82 = vld [vmem:[%s0 + $0xf4] sm:$0xf]
  %v83 = vld [vmem:[%s0 + $0xf8] sm:$0xf]
  %v84 = vld [vmem:[%s0 + $0xfc] sm:$0xf]
  %v85 = vld [vmem:[%s1] sm:$0xf]
  %v86 = vld [vmem:[%s1 + $0x4] sm:$0xf]
  %v87 = vld [vmem:[%s1 + $0x8] sm:$0xf]
  %v88 = vld [vmem:[%s1 + $0xc] sm:$0xf]
  %v89 = vld [vmem:[%s1 + $0x10] sm:$0xf]
  %v90 = vld [vmem:[%s1 + $0x14] sm:$0xf]
  %v91 = vld [vmem:[%s1 + $0x18] sm:$0xf]
  %v92 = vld [vmem:[%s1 + $0x1c] sm:$0xf]
  %v93 = vld [vmem:[%s1 + $0x20] sm:$0xf]
  %v94 = vld [vmem:[%s2] sm:$0x1]
  %v96 = vlaneseq
  %v97 = vshrl.u32 %v96, 7
  %v98 = vsub.s32 0, %v97
  %v99 = vrot.slane %v94, %v98
  %v165 = vunpack.c.l.b16 %v21
  %v166 = vunpack.c.l.b16 %v22
  %v167 = vunpack.c.l.b16 %v23
  %v168 = vunpack.c.l.b16 %v24
  %v169 = vunpack.c.l.b16 %v25
  %v170 = vunpack.c.l.b16 %v26
  %v171 = vunpack.c.l.b16 %v27
  %v172 = vunpack.c.l.b16 %v28
  %v173 = vunpack.c.l.b16 %v29
  %v174 = vunpack.c.l.b16 %v30
  %v175 = vunpack.c.l.b16 %v31
  %v176 = vunpack.c.l.b16 %v32
  %v177 = vunpack.c.l.b16 %v33
  %v178 = vunpack.c.l.b16 %v34
  %v179 = vunpack.c.l.b16 %v35
  %v180 = vunpack.c.l.b16 %v36
  %v181 = vunpack.c.l.b16 %v37
  %v182 = vunpack.c.l.b16 %v38
  %v183 = vunpack.c.l.b16 %v39
  %v184 = vunpack.c.l.b16 %v40
  %v185 = vunpack.c.l.b16 %v41
  %v186 = vunpack.c.l.b16 %v42
  %v187 = vunpack.c.l.b16 %v43
  %v188 = vunpack.c.l.b16 %v44
  %v189 = vunpack.c.l.b16 %v45
  %v190 = vunpack.c.l.b16 %v46
  %v191 = vunpack.c.l.b16 %v47
  %v192 = vunpack.c.l.b16 %v48
  %v193 = vunpack.c.l.b16 %v49
  %v194 = vunpack.c.l.b16 %v50
  %v195 = vunpack.c.l.b16 %v51
  %v196 = vunpack.c.l.b16 %v52
  %v197 = vunpack.c.l.b16 %v53
  %v198 = vunpack.c.l.b16 %v54
  %v199 = vunpack.c.l.b16 %v55
  %v200 = vunpack.c.l.b16 %v56
  %v201 = vunpack.c.l.b16 %v57
  %v202 = vunpack.c.l.b16 %v58
  %v203 = vunpack.c.l.b16 %v59
  %v204 = vunpack.c.l.b16 %v60
  %v205 = vunpack.c.l.b16 %v61
  %v206 = vunpack.c.l.b16 %v62
  %v207 = vunpack.c.l.b16 %v63
  %v208 = vunpack.c.l.b16 %v64
  %v209 = vunpack.c.l.b16 %v65
  %v210 = vunpack.c.l.b16 %v66
  %v211 = vunpack.c.l.b16 %v67
  %v212 = vunpack.c.l.b16 %v68
  %v213 = vunpack.c.l.b16 %v69
  %v214 = vunpack.c.l.b16 %v70
  %v215 = vunpack.c.l.b16 %v71
  %v216 = vunpack.c.l.b16 %v72
  %v217 = vunpack.c.l.b16 %v73
  %v218 = vunpack.c.l.b16 %v74
  %v219 = vunpack.c.l.b16 %v75
  %v220 = vunpack.c.l.b16 %v76
  %v221 = vunpack.c.l.b16 %v77
  %v222 = vunpack.c.l.b16 %v78
  %v223 = vunpack.c.l.b16 %v79
  %v224 = vunpack.c.l.b16 %v80
  %v225 = vunpack.c.l.b16 %v81
  %v226 = vunpack.c.l.b16 %v82
  %v227 = vunpack.c.l.b16 %v83
  %v228 = vunpack.c.l.b16 %v84
  %v229 = vpack.c.b16 %v166, %v165
  %v230 = vpack.c.b16 %v168, %v167
  %v231 = vpack.c.b16 %v170, %v169
  %v232 = vpack.c.b16 %v172, %v171
  %v233 = vpack.c.b16 %v174, %v173
  %v234 = vpack.c.b16 %v176, %v175
  %v235 = vpack.c.b16 %v178, %v177
  %v236 = vpack.c.b16 %v180, %v179
  %v237 = vpack.c.b16 %v182, %v181
  %v238 = vpack.c.b16 %v184, %v183
  %v239 = vpack.c.b16 %v186, %v185
  %v240 = vpack.c.b16 %v188, %v187
  %v241 = vpack.c.b16 %v190, %v189
  %v242 = vpack.c.b16 %v192, %v191
  %v243 = vpack.c.b16 %v194, %v193
  %v244 = vpack.c.b16 %v196, %v195
  %v245 = vpack.c.b16 %v198, %v197
  %v246 = vpack.c.b16 %v200, %v199
  %v247 = vpack.c.b16 %v202, %v201
  %v248 = vpack.c.b16 %v204, %v203
  %v249 = vpack.c.b16 %v206, %v205
  %v250 = vpack.c.b16 %v208, %v207
  %v251 = vpack.c.b16 %v210, %v209
  %v252 = vpack.c.b16 %v212, %v211
  %v253 = vpack.c.b16 %v214, %v213
  %v254 = vpack.c.b16 %v216, %v215
  %v255 = vpack.c.b16 %v218, %v217
  %v256 = vpack.c.b16 %v220, %v219
  %v257 = vpack.c.b16 %v222, %v221
  %v258 = vpack.c.b16 %v224, %v223
  %v259 = vpack.c.b16 %v226, %v225
  %v260 = vpack.c.b16 %v228, %v227
  %v270 = vunpack.c.l.b16 %v85
  %v271 = vunpack.c.l.b16 %v86
  %v272 = vunpack.c.l.b16 %v87
  %v273 = vunpack.c.l.b16 %v88
  %v274 = vunpack.c.l.b16 %v89
  %v275 = vunpack.c.l.b16 %v90
  %v276 = vunpack.c.l.b16 %v91
  %v277 = vunpack.c.l.b16 %v92
  %v278 = vunpack.c.l.b16 %v93
  %v279 = vpack.c.b16 %v271, %v270
  %v280 = vpack.c.b16 %v273, %v272
  %v281 = vpack.c.b16 %v275, %v274
  %v282 = vpack.c.b16 %v277, %v276
  %v283 = vpack.c.b16 %v278, %v278
  %vm288 = vcmask 588800
  %v290 = vsel %vm288, %v229, 0
  %v293 = vsel %vm288, %v230, 0
  %v296 = vsel %vm288, %v231, 0
  %v299 = vsel %vm288, %v232, 0
  %v302 = vsel %vm288, %v233, 0
  %v305 = vsel %vm288, %v234, 0
  %v308 = vsel %vm288, %v235, 0
  %v311 = vsel %vm288, %v236, 0
  %v314 = vsel %vm288, %v237, 0
  %v317 = vsel %vm288, %v238, 0
  %v320 = vsel %vm288, %v239, 0
  %v323 = vsel %vm288, %v240, 0
  %v326 = vsel %vm288, %v241, 0
  %v329 = vsel %vm288, %v242, 0
  %v332 = vsel %vm288, %v243, 0
  %v335 = vsel %vm288, %v244, 0
  %v338 = vsel %vm288, %v245, 0
  %v341 = vsel %vm288, %v246, 0
  %v344 = vsel %vm288, %v247, 0
  %v347 = vsel %vm288, %v248, 0
  %v350 = vsel %vm288, %v249, 0
  %v353 = vsel %vm288, %v250, 0
  %v356 = vsel %vm288, %v251, 0
  %v359 = vsel %vm288, %v252, 0
  %v362 = vsel %vm288, %v253, 0
  %v365 = vsel %vm288, %v254, 0
  %v368 = vsel %vm288, %v255, 0
  %v371 = vsel %vm288, %v256, 0
  %v374 = vsel %vm288, %v257, 0
  %v377 = vsel %vm288, %v258, 0
  %v380 = vsel %vm288, %v259, 0
  %v383 = vsel %vm288, %v260, 0
  %vm385 = vcmask 1043456
  %v387 = vsel %vm385, %v283, 0
  %389 = vmatprep.subr.bf16.mxu0 0
  %390 = vmatpush1.bf16.msra.mxu0 %v279
  %391 = vmatprep.subr.bf16.mxu0 0
  %392 = vmatpush1.bf16.msra.mxu0 %v280
  %393 = vmatprep.subr.bf16.mxu0 0
  %394 = vmatpush1.bf16.msra.mxu0 %v281
  %395 = vmatprep.subr.bf16.mxu0 0
  %396 = vmatpush1.bf16.msra.mxu0 %v282
  %397 = vmatprep.subr.bf16.mxu0 0
  %398 = vmatpush1.bf16.msra.mxu0 %v387
  %399 = vmatprep.subr.bf16.mxu0 0
  %400 = vmatpush1.bf16.msra.mxu0 0
  %401 = vmatprep.subr.bf16.mxu0 0
  %402 = vmatpush1.bf16.msra.mxu0 0
  %403 = vmatprep.subr.bf16.mxu0 0
  %404 = vmatpush1.bf16.msra.mxu0 0
  %405 = vmatprep.subr.bf16.mxu0 0
  %406 = vmatpush1.bf16.msra.mxu0 0
  %407 = vmatprep.subr.bf16.mxu0 0
  %408 = vmatpush1.bf16.msra.mxu0 0
  %409 = vmatprep.subr.bf16.mxu0 0
  %410 = vmatpush1.bf16.msra.mxu0 0
  %411 = vmatprep.subr.bf16.mxu0 0
  %412 = vmatpush1.bf16.msra.mxu0 0
  %413 = vmatprep.subr.bf16.mxu0 0
  %414 = vmatpush1.bf16.msra.mxu0 0
  %415 = vmatprep.subr.bf16.mxu0 0
  %416 = vmatpush1.bf16.msra.mxu0 0
  %417 = vmatprep.subr.bf16.mxu0 0
  %418 = vmatpush1.bf16.msra.mxu0 0
  %419 = vmatprep.subr.bf16.mxu0 0
  %420 = vmatpush1.bf16.msra.mxu0 0
  %421 = vmatprep.mubr.bf16.mxu0 0
  %422 = vmatmul.mubr.bf16.gmra.mrb[0].mxu0 %v290
  %v423 = vpop.f32.mrb[0].mxu0
  %v424 = vadd.f32 %v99, %v423
  %v425 = vpop.f32.mrb[0].mxu0
  %v426 = vpop.f32.mrb[0].mxu0
  %v427 = vadd.f32 %v99, %v426
  %v428 = vpop.f32.mrb[0].mxu0
  %429 = vmatprep.mubr.bf16.mxu0 0
  %430 = vmatmul.mubr.bf16.gmra.mrb[0].mxu0 %v293
  %v431 = vpop.f32.mrb[0].mxu0
  %v432 = vadd.f32 %v99, %v431
  %v433 = vpop.f32.mrb[0].mxu0
  %v434 = vpop.f32.mrb[0].mxu0
  %v435 = vadd.f32 %v99, %v434
  %v436 = vpop.f32.mrb[0].mxu0
  %437 = vmatprep.mubr.bf16.mxu0 0
  %438 = vmatmul.mubr.bf16.gmra.mrb[0].mxu0 %v296
  %v439 = vpop.f32.mrb[0].mxu0
  %v440 = vadd.f32 %v99, %v439
  %v441 = vpop.f32.mrb[0].mxu0
  %v442 = vpop.f32.mrb[0].mxu0
  %v443 = vadd.f32 %v99, %v442
  %v444 = vpop.f32.mrb[0].mxu0
  %445 = vmatprep.mubr.bf16.mxu0 0
  %446 = vmatmul.mubr.bf16.gmra.mrb[0].mxu0 %v299
  %v447 = vpop.f32.mrb[0].mxu0
  %v448 = vadd.f32 %v99, %v447
  %v449 = vpop.f32.mrb[0].mxu0
  %v450 = vpop.f32.mrb[0].mxu0
  %v451 = vadd.f32 %v99, %v450
  %v452 = vpop.f32.mrb[0].mxu0
  %453 = vmatprep.mubr.bf16.mxu0 0
  %454 = vmatmul.mubr.bf16.gmra.mrb[0].mxu0 %v302
  %v455 = vpop.f32.mrb[0].mxu0
  %v456 = vadd.f32 %v99, %v455
  %v457 = vpop.f32.mrb[0].mxu0
  %v458 = vpop.f32.mrb[0].mxu0
  %v459 = vadd.f32 %v99, %v458
  %v460 = vpop.f32.mrb[0].mxu0
  %461 = vmatprep.mubr.bf16.mxu0 0
  %462 = vmatmul.mubr.bf16.gmra.mrb[0].mxu0 %v305
  %v463 = vpop.f32.mrb[0].mxu0
  %v464 = vadd.f32 %v99, %v463
  %v465 = vpop.f32.mrb[0].mxu0
  %v466 = vpop.f32.mrb[0].mxu0
  %v467 = vadd.f32 %v99, %v466
  %v468 = vpop.f32.mrb[0].mxu0
  %469 = vmatprep.mubr.bf16.mxu0 0
  %470 = vmatmul.mubr.bf16.gmra.mrb[0].mxu0 %v308
  %v471 = vpop.f32.mrb[0].mxu0
  %v472 = vadd.f32 %v99, %v471
  %v473 = vpop.f32.mrb[0].mxu0
  %v474 = vpop.f32.mrb[0].mxu0
  %v475 = vadd.f32 %v99, %v474
  %v476 = vpop.f32.mrb[0].mxu0
  %477 = vmatprep.mubr.bf16.mxu0 0
  %478 = vmatmul.mubr.bf16.gmra.mrb[0].mxu0 %v311
  %v479 = vpop.f32.mrb[0].mxu0
  %v480 = vadd.f32 %v99, %v479
  %v481 = vpop.f32.mrb[0].mxu0
  %v482 = vpop.f32.mrb[0].mxu0
  %v483 = vadd.f32 %v99, %v482
  %v484 = vpop.f32.mrb[0].mxu0
  %485 = vmatprep.mubr.bf16.mxu0 0
  %486 = vmatmul.mubr.bf16.gmra.mrb[0].mxu0 %v314
  %v487 = vpop.f32.mrb[0].mxu0
  %v488 = vadd.f32 %v99, %v487
  %v489 = vpop.f32.mrb[0].mxu0
  %v490 = vpop.f32.mrb[0].mxu0
  %v491 = vadd.f32 %v99, %v490
  %v492 = vpop.f32.mrb[0].mxu0
  %493 = vmatprep.mubr.bf16.mxu0 0
  %494 = vmatmul.mubr.bf16.gmra.mrb[0].mxu0 %v317
  %v495 = vpop.f32.mrb[0].mxu0
  %v496 = vadd.f32 %v99, %v495
  %v497 = vpop.f32.mrb[0].mxu0
  %v498 = vpop.f32.mrb[0].mxu0
  %v499 = vadd.f32 %v99, %v498
  %v500 = vpop.f32.mrb[0].mxu0
  %501 = vmatprep.mubr.bf16.mxu0 0
  %502 = vmatmul.mubr.bf16.gmra.mrb[0].mxu0 %v320
  %v503 = vpop.f32.mrb[0].mxu0
  %v504 = vadd.f32 %v99, %v503
  %v505 = vpop.f32.mrb[0].mxu0
  %v506 = vpop.f32.mrb[0].mxu0
  %v507 = vadd.f32 %v99, %v506
  %v508 = vpop.f32.mrb[0].mxu0
  %509 = vmatprep.mubr.bf16.mxu0 0
  %510 = vmatmul.mubr.bf16.gmra.mrb[0].mxu0 %v323
  %v511 = vpop.f32.mrb[0].mxu0
  %v512 = vadd.f32 %v99, %v511
  %v513 = vpop.f32.mrb[0].mxu0
  %v514 = vpop.f32.mrb[0].mxu0
  %v515 = vadd.f32 %v99, %v514
  %v516 = vpop.f32.mrb[0].mxu0
  %517 = vmatprep.mubr.bf16.mxu0 0
  %518 = vmatmul.mubr.bf16.gmra.mrb[0].mxu0 %v326
  %v519 = vpop.f32.mrb[0].mxu0
  %v520 = vadd.f32 %v99, %v519
  %v521 = vpop.f32.mrb[0].mxu0
  %v522 = vpop.f32.mrb[0].mxu0
  %v523 = vadd.f32 %v99, %v522
  %v524 = vpop.f32.mrb[0].mxu0
  %525 = vmatprep.mubr.bf16.mxu0 0
  %526 = vmatmul.mubr.bf16.gmra.mrb[0].mxu0 %v329
  %v527 = vpop.f32.mrb[0].mxu0
  %v528 = vadd.f32 %v99, %v527
  %v529 = vpop.f32.mrb[0].mxu0
  %v530 = vpop.f32.mrb[0].mxu0
  %v531 = vadd.f32 %v99, %v530
  %v532 = vpop.f32.mrb[0].mxu0
  %533 = vmatprep.mubr.bf16.mxu0 0
  %534 = vmatmul.mubr.bf16.gmra.mrb[0].mxu0 %v332
  %v535 = vpop.f32.mrb[0].mxu0
  %v536 = vadd.f32 %v99, %v535
  %v537 = vpop.f32.mrb[0].mxu0
  %v538 = vpop.f32.mrb[0].mxu0
  %v539 = vadd.f32 %v99, %v538
  %v540 = vpop.f32.mrb[0].mxu0
  %541 = vmatprep.mubr.bf16.mxu0 0
  %542 = vmatmul.mubr.bf16.gmra.mrb[0].mxu0 %v335
  %v543 = vpop.f32.mrb[0].mxu0
  %v544 = vadd.f32 %v99, %v543
  %v545 = vpop.f32.mrb[0].mxu0
  %v546 = vpop.f32.mrb[0].mxu0
  %v547 = vadd.f32 %v99, %v546
  %v548 = vpop.f32.mrb[0].mxu0
  %549 = vmatprep.mubr.bf16.mxu0 0
  %550 = vmatmul.mubr.bf16.gmra.mrb[0].mxu0 %v338
  %v551 = vpop.f32.mrb[0].mxu0
  %v552 = vadd.f32 %v99, %v551
  %v553 = vpop.f32.mrb[0].mxu0
  %v554 = vpop.f32.mrb[0].mxu0
  %v555 = vadd.f32 %v99, %v554
  %v556 = vpop.f32.mrb[0].mxu0
  %557 = vmatprep.mubr.bf16.mxu0 0
  %558 = vmatmul.mubr.bf16.gmra.mrb[0].mxu0 %v341
  %v559 = vpop.f32.mrb[0].mxu0
  %v560 = vadd.f32 %v99, %v559
  %v561 = vpop.f32.mrb[0].mxu0
  %v562 = vpop.f32.mrb[0].mxu0
  %v563 = vadd.f32 %v99, %v562
  %v564 = vpop.f32.mrb[0].mxu0
  %565 = vmatprep.mubr.bf16.mxu0 0
  %566 = vmatmul.mubr.bf16.gmra.mrb[0].mxu0 %v344
  %v567 = vpop.f32.mrb[0].mxu0
  %v568 = vadd.f32 %v99, %v567
  %v569 = vpop.f32.mrb[0].mxu0
  %v570 = vpop.f32.mrb[0].mxu0
  %v571 = vadd.f32 %v99, %v570
  %v572 = vpop.f32.mrb[0].mxu0
  %573 = vmatprep.mubr.bf16.mxu0 0
  %574 = vmatmul.mubr.bf16.gmra.mrb[0].mxu0 %v347
  %v575 = vpop.f32.mrb[0].mxu0
  %v576 = vadd.f32 %v99, %v575
  %v577 = vpop.f32.mrb[0].mxu0
  %v578 = vpop.f32.mrb[0].mxu0
  %v579 = vadd.f32 %v99, %v578
  %v580 = vpop.f32.mrb[0].mxu0
  %581 = vmatprep.mubr.bf16.mxu0 0
  %582 = vmatmul.mubr.bf16.gmra.mrb[0].mxu0 %v350
  %v583 = vpop.f32.mrb[0].mxu0
  %v584 = vadd.f32 %v99, %v583
  %v585 = vpop.f32.mrb[0].mxu0
  %v586 = vpop.f32.mrb[0].mxu0
  %v587 = vadd.f32 %v99, %v586
  %v588 = vpop.f32.mrb[0].mxu0
  %589 = vmatprep.mubr.bf16.mxu0 0
  %590 = vmatmul.mubr.bf16.gmra.mrb[0].mxu0 %v353
  %v591 = vpop.f32.mrb[0].mxu0
  %v592 = vadd.f32 %v99, %v591
  %v593 = vpop.f32.mrb[0].mxu0
  %v594 = vpop.f32.mrb[0].mxu0
  %v595 = vadd.f32 %v99, %v594
  %v596 = vpop.f32.mrb[0].mxu0
  %597 = vmatprep.mubr.bf16.mxu0 0
  %598 = vmatmul.mubr.bf16.gmra.mrb[0].mxu0 %v356
  %v599 = vpop.f32.mrb[0].mxu0
  %v600 = vadd.f32 %v99, %v599
  %v601 = vpop.f32.mrb[0].mxu0
  %v602 = vpop.f32.mrb[0].mxu0
  %v603 = vadd.f32 %v99, %v602
  %v604 = vpop.f32.mrb[0].mxu0
  %605 = vmatprep.mubr.bf16.mxu0 0
  %606 = vmatmul.mubr.bf16.gmra.mrb[0].mxu0 %v359
  %v607 = vpop.f32.mrb[0].mxu0
  %v608 = vadd.f32 %v99, %v607
  %v609 = vpop.f32.mrb[0].mxu0
  %v610 = vpop.f32.mrb[0].mxu0
  %v611 = vadd.f32 %v99, %v610
  %v612 = vpop.f32.mrb[0].mxu0
  %613 = vmatprep.mubr.bf16.mxu0 0
  %614 = vmatmul.mubr.bf16.gmra.mrb[0].mxu0 %v362
  %v615 = vpop.f32.mrb[0].mxu0
  %v616 = vadd.f32 %v99, %v615
  %v617 = vpop.f32.mrb[0].mxu0
  %v618 = vpop.f32.mrb[0].mxu0
  %v619 = vadd.f32 %v99, %v618
  %v620 = vpop.f32.mrb[0].mxu0
  %621 = vmatprep.mubr.bf16.mxu0 0
  %622 = vmatmul.mubr.bf16.gmra.mrb[0].mxu0 %v365
  %v623 = vpop.f32.mrb[0].mxu0
  %v624 = vadd.f32 %v99, %v623
  %v625 = vpop.f32.mrb[0].mxu0
  %v626 = vpop.f32.mrb[0].mxu0
  %v627 = vadd.f32 %v99, %v626
  %v628 = vpop.f32.mrb[0].mxu0
  %629 = vmatprep.mubr.bf16.mxu0 0
  %630 = vmatmul.mubr.bf16.gmra.mrb[0].mxu0 %v368
  %v631 = vpop.f32.mrb[0].mxu0
  %v632 = vadd.f32 %v99, %v631
  %v633 = vpop.f32.mrb[0].mxu0
  %v634 = vpop.f32.mrb[0].mxu0
  %v635 = vadd.f32 %v99, %v634
  %v636 = vpop.f32.mrb[0].mxu0
  %637 = vmatprep.mubr.bf16.mxu0 0
  %638 = vmatmul.mubr.bf16.gmra.mrb[0].mxu0 %v371
  %v639 = vpop.f32.mrb[0].mxu0
  %v640 = vadd.f32 %v99, %v639
  %v641 = vpop.f32.mrb[0].mxu0
  %v642 = vpop.f32.mrb[0].mxu0
  %v643 = vadd.f32 %v99, %v642
  %v644 = vpop.f32.mrb[0].mxu0
  %645 = vmatprep.mubr.bf16.mxu0 0
  %646 = vmatmul.mubr.bf16.gmra.mrb[0].mxu0 %v374
  %v647 = vpop.f32.mrb[0].mxu0
  %v648 = vadd.f32 %v99, %v647
  %v649 = vpop.f32.mrb[0].mxu0
  %v650 = vpop.f32.mrb[0].mxu0
  %v651 = vadd.f32 %v99, %v650
  %v652 = vpop.f32.mrb[0].mxu0
  %653 = vmatprep.mubr.bf16.mxu0 0
  %654 = vmatmul.mubr.bf16.gmra.mrb[0].mxu0 %v377
  %v655 = vpop.f32.mrb[0].mxu0
  %v656 = vadd.f32 %v99, %v655
  %v657 = vpop.f32.mrb[0].mxu0
  %v658 = vpop.f32.mrb[0].mxu0
  %v659 = vadd.f32 %v99, %v658
  %v660 = vpop.f32.mrb[0].mxu0
  %661 = vmatprep.mubr.bf16.mxu0 0
  %662 = vmatmul.mubr.bf16.gmra.mrb[0].mxu0 %v380
  %v663 = vpop.f32.mrb[0].mxu0
  %v664 = vadd.f32 %v99, %v663
  %v665 = vpop.f32.mrb[0].mxu0
  %v666 = vpop.f32.mrb[0].mxu0
  %v667 = vadd.f32 %v99, %v666
  %v668 = vpop.f32.mrb[0].mxu0
  %669 = vmatprep.mubr.bf16.mxu0 0
  %670 = vmatmul.mubr.bf16.gmra.mrb[0].mxu0 %v383
  %v671 = vpop.f32.mrb[0].mxu0
  %v672 = vadd.f32 %v99, %v671
  %v673 = vpop.f32.mrb[0].mxu0
  %v674 = vpop.f32.mrb[0].mxu0
  %v675 = vadd.f32 %v99, %v674
  %v676 = vpop.f32.mrb[0].mxu0
  %677 = vdwg.mxu0
  %vm678 = vcmask 64512
  %v679 = vsel %vm678, %v424, 0.0
  %v680 = vsel %vm678, %v427, 0.0
  %v681 = vadd.f32 %v679, %v680
  %v682 = vsel %vm678, %v432, 0.0
  %v683 = vadd.f32 %v681, %v682
  %v684 = vsel %vm678, %v435, 0.0
  %v685 = vadd.f32 %v683, %v684
  %v686 = vsel %vm678, %v440, 0.0
  %v687 = vadd.f32 %v685, %v686
  %v688 = vsel %vm678, %v443, 0.0
  %v689 = vadd.f32 %v687, %v688
  %v690 = vsel %vm678, %v448, 0.0
  %v691 = vadd.f32 %v689, %v690
  %v692 = vsel %vm678, %v451, 0.0
  %v693 = vadd.f32 %v691, %v692
  %v694 = vsel %vm678, %v456, 0.0
  %v695 = vadd.f32 %v693, %v694
  %v696 = vsel %vm678, %v459, 0.0
  %v697 = vadd.f32 %v695, %v696
  %v698 = vsel %vm678, %v464, 0.0
  %v699 = vadd.f32 %v697, %v698
  %v700 = vsel %vm678, %v467, 0.0
  %v701 = vadd.f32 %v699, %v700
  %v702 = vsel %vm678, %v472, 0.0
  %v703 = vadd.f32 %v701, %v702
  %v704 = vsel %vm678, %v475, 0.0
  %v705 = vadd.f32 %v703, %v704
  %v706 = vsel %vm678, %v480, 0.0
  %v707 = vadd.f32 %v705, %v706
  %v708 = vsel %vm678, %v483, 0.0
  %v709 = vadd.f32 %v707, %v708
  %v710 = vsel %vm678, %v488, 0.0
  %v711 = vadd.f32 %v709, %v710
  %v712 = vsel %vm678, %v491, 0.0
  %v713 = vadd.f32 %v711, %v712
  %v714 = vsel %vm678, %v496, 0.0
  %v715 = vadd.f32 %v713, %v714
  %v716 = vsel %vm678, %v499, 0.0
  %v717 = vadd.f32 %v715, %v716
  %v718 = vsel %vm678, %v504, 0.0
  %v719 = vadd.f32 %v717, %v718
  %v720 = vsel %vm678, %v507, 0.0
  %v721 = vadd.f32 %v719, %v720
  %v722 = vsel %vm678, %v512, 0.0
  %v723 = vadd.f32 %v721, %v722
  %v724 = vsel %vm678, %v515, 0.0
  %v725 = vadd.f32 %v723, %v724
  %v726 = vsel %vm678, %v520, 0.0
  %v727 = vadd.f32 %v725, %v726
  %v728 = vsel %vm678, %v523, 0.0
  %v729 = vadd.f32 %v727, %v728
  %v730 = vsel %vm678, %v528, 0.0
  %v731 = vadd.f32 %v729, %v730
  %v732 = vsel %vm678, %v531, 0.0
  %v733 = vadd.f32 %v731, %v732
  %v734 = vsel %vm678, %v536, 0.0
  %v735 = vadd.f32 %v733, %v734
  %v736 = vsel %vm678, %v539, 0.0
  %v737 = vadd.f32 %v735, %v736
  %v738 = vsel %vm678, %v544, 0.0
  %v739 = vadd.f32 %v737, %v738
  %v740 = vsel %vm678, %v547, 0.0
  %v741 = vadd.f32 %v739, %v740
  %v742 = vsel %vm678, %v552, 0.0
  %v743 = vadd.f32 %v741, %v742
  %v744 = vsel %vm678, %v555, 0.0
  %v745 = vadd.f32 %v743, %v744
  %v746 = vsel %vm678, %v560, 0.0
  %v747 = vadd.f32 %v745, %v746
  %v748 = vsel %vm678, %v563, 0.0
  %v749 = vadd.f32 %v747, %v748
  %v750 = vsel %vm678, %v568, 0.0
  %v751 = vadd.f32 %v749, %v750
  %v752 = vsel %vm678, %v571, 0.0
  %v753 = vadd.f32 %v751, %v752
  %v754 = vsel %vm678, %v576, 0.0
  %v755 = vadd.f32 %v753, %v754
  %v756 = vsel %vm678, %v579, 0.0
  %v757 = vadd.f32 %v755, %v756
  %v758 = vsel %vm678, %v584, 0.0
  %v759 = vadd.f32 %v757, %v758
  %v760 = vsel %vm678, %v587, 0.0
  %v761 = vadd.f32 %v759, %v760
  %v762 = vsel %vm678, %v592, 0.0
  %v763 = vadd.f32 %v761, %v762
  %v764 = vsel %vm678, %v595, 0.0
  %v765 = vadd.f32 %v763, %v764
  %v766 = vsel %vm678, %v600, 0.0
  %v767 = vadd.f32 %v765, %v766
  %v768 = vsel %vm678, %v603, 0.0
  %v769 = vadd.f32 %v767, %v768
  %v770 = vsel %vm678, %v608, 0.0
  %v771 = vadd.f32 %v769, %v770
  %v772 = vsel %vm678, %v611, 0.0
  %v773 = vadd.f32 %v771, %v772
  %v774 = vsel %vm678, %v616, 0.0
  %v775 = vadd.f32 %v773, %v774
  %v776 = vsel %vm678, %v619, 0.0
  %v777 = vadd.f32 %v775, %v776
  %v778 = vsel %vm678, %v624, 0.0
  %v779 = vadd.f32 %v777, %v778
  %v780 = vsel %vm678, %v627, 0.0
  %v781 = vadd.f32 %v779, %v780
  %v782 = vsel %vm678, %v632, 0.0
  %v783 = vadd.f32 %v781, %v782
  %v784 = vsel %vm678, %v635, 0.0
  %v785 = vadd.f32 %v783, %v784
  %v786 = vsel %vm678, %v640, 0.0
  %v787 = vadd.f32 %v785, %v786
  %v788 = vsel %vm678, %v643, 0.0
  %v789 = vadd.f32 %v787, %v788
  %v790 = vsel %vm678, %v648, 0.0
  %v791 = vadd.f32 %v789, %v790
  %v792 = vsel %vm678, %v651, 0.0
  %v793 = vadd.f32 %v791, %v792
  %v794 = vsel %vm678, %v656, 0.0
  %v795 = vadd.f32 %v793, %v794
  %v796 = vsel %vm678, %v659, 0.0
  %v797 = vadd.f32 %v795, %v796
  %v798 = vsel %vm678, %v664, 0.0
  %v799 = vadd.f32 %v797, %v798
  %v800 = vsel %vm678, %v667, 0.0
  %v801 = vadd.f32 %v799, %v800
  %v802 = vsel %vm678, %v672, 0.0
  %v803 = vadd.f32 %v801, %v802
  %v804 = vsel %vm678, %v675, 0.0
  %v805 = vadd.f32 %v803, %v804
  %v806 = vrot.slane %v805, 4
  %v807 = vadd.f32 %v805, %v806
  %v808 = vrot.slane %v807, 2
  %v809 = vadd.f32 %v807, %v808
  %v810 = vrot.slane %v809, 1
  %v811 = vadd.f32 %v809, %v810
  %v812 = vmul.f32 %v811, 0.001953125
  %v813 = vsub.f32 %v424, %v812
  %v814 = vsub.f32 %v427, %v812
  %v815 = vsub.f32 %v432, %v812
  %v816 = vsub.f32 %v435, %v812
  %v817 = vsub.f32 %v440, %v812
  %v818 = vsub.f32 %v443, %v812
  %v819 = vsub.f32 %v448, %v812
  %v820 = vsub.f32 %v451, %v812
  %v821 = vsub.f32 %v456, %v812
  %v822 = vsub.f32 %v459, %v812
  %v823 = vsub.f32 %v464, %v812
  %v824 = vsub.f32 %v467, %v812
  %v825 = vsub.f32 %v472, %v812
  %v826 = vsub.f32 %v475, %v812
  %v827 = vsub.f32 %v480, %v812
  %v828 = vsub.f32 %v483, %v812
  %v829 = vsub.f32 %v488, %v812
  %v830 = vsub.f32 %v491, %v812
  %v831 = vsub.f32 %v496, %v812
  %v832 = vsub.f32 %v499, %v812
  %v833 = vsub.f32 %v504, %v812
  %v834 = vsub.f32 %v507, %v812
  %v835 = vsub.f32 %v512, %v812
  %v836 = vsub.f32 %v515, %v812
  %v837 = vsub.f32 %v520, %v812
  %v838 = vsub.f32 %v523, %v812
  %v839 = vsub.f32 %v528, %v812
  %v840 = vsub.f32 %v531, %v812
  %v841 = vsub.f32 %v536, %v812
  %v842 = vsub.f32 %v539, %v812
  %v843 = vsub.f32 %v544, %v812
  %v844 = vsub.f32 %v547, %v812
  %v845 = vsub.f32 %v552, %v812
  %v846 = vsub.f32 %v555, %v812
  %v847 = vsub.f32 %v560, %v812
  %v848 = vsub.f32 %v563, %v812
  %v849 = vsub.f32 %v568, %v812
  %v850 = vsub.f32 %v571, %v812
  %v851 = vsub.f32 %v576, %v812
  %v852 = vsub.f32 %v579, %v812
  %v853 = vsub.f32 %v584, %v812
  %v854 = vsub.f32 %v587, %v812
  %v855 = vsub.f32 %v592, %v812
  %v856 = vsub.f32 %v595, %v812
  %v857 = vsub.f32 %v600, %v812
  %v858 = vsub.f32 %v603, %v812
  %v859 = vsub.f32 %v608, %v812
  %v860 = vsub.f32 %v611, %v812
  %v861 = vsub.f32 %v616, %v812
  %v862 = vsub.f32 %v619, %v812
  %v863 = vsub.f32 %v624, %v812
  %v864 = vsub.f32 %v627, %v812
  %v865 = vsub.f32 %v632, %v812
  %v866 = vsub.f32 %v635, %v812
  %v867 = vsub.f32 %v640, %v812
  %v868 = vsub.f32 %v643, %v812
  %v869 = vsub.f32 %v648, %v812
  %v870 = vsub.f32 %v651, %v812
  %v871 = vsub.f32 %v656, %v812
  %v872 = vsub.f32 %v659, %v812
  %v873 = vsub.f32 %v664, %v812
  %v874 = vsub.f32 %v667, %v812
  %v875 = vsub.f32 %v672, %v812
  %v876 = vsub.f32 %v675, %v812
  %v877 = vmul.f32 %v813, %v813
  %v878 = vmul.f32 %v814, %v814
  %v879 = vmul.f32 %v815, %v815
  %v880 = vmul.f32 %v816, %v816
  %v881 = vmul.f32 %v817, %v817
  %v882 = vmul.f32 %v818, %v818
  %v883 = vmul.f32 %v819, %v819
  %v884 = vmul.f32 %v820, %v820
  %v885 = vmul.f32 %v821, %v821
  %v886 = vmul.f32 %v822, %v822
  %v887 = vmul.f32 %v823, %v823
  %v888 = vmul.f32 %v824, %v824
  %v889 = vmul.f32 %v825, %v825
  %v890 = vmul.f32 %v826, %v826
  %v891 = vmul.f32 %v827, %v827
  %v892 = vmul.f32 %v828, %v828
  %v893 = vmul.f32 %v829, %v829
  %v894 = vmul.f32 %v830, %v830
  %v895 = vmul.f32 %v831, %v831
  %v896 = vmul.f32 %v832, %v832
  %v897 = vmul.f32 %v833, %v833
  %v898 = vmul.f32 %v834, %v834
  %v899 = vmul.f32 %v835, %v835
  %v900 = vmul.f32 %v836, %v836
  %v901 = vmul.f32 %v837, %v837
  %v902 = vmul.f32 %v838, %v838
  %v903 = vmul.f32 %v839, %v839
  %v904 = vmul.f32 %v840, %v840
  %v905 = vmul.f32 %v841, %v841
  %v906 = vmul.f32 %v842, %v842
  %v907 = vmul.f32 %v843, %v843
  %v908 = vmul.f32 %v844, %v844
  %v909 = vmul.f32 %v845, %v845
  %v910 = vmul.f32 %v846, %v846
  %v911 = vmul.f32 %v847, %v847
  %v912 = vmul.f32 %v848, %v848
  %v913 = vmul.f32 %v849, %v849
  %v914 = vmul.f32 %v850, %v850
  %v915 = vmul.f32 %v851, %v851
  %v916 = vmul.f32 %v852, %v852
  %v917 = vmul.f32 %v853, %v853
  %v918 = vmul.f32 %v854, %v854
  %v919 = vmul.f32 %v855, %v855
  %v920 = vmul.f32 %v856, %v856
  %v921 = vmul.f32 %v857, %v857
  %v922 = vmul.f32 %v858, %v858
  %v923 = vmul.f32 %v859, %v859
  %v924 = vmul.f32 %v860, %v860
  %v925 = vmul.f32 %v861, %v861
  %v926 = vmul.f32 %v862, %v862
  %v927 = vmul.f32 %v863, %v863
  %v928 = vmul.f32 %v864, %v864
  %v929 = vmul.f32 %v865, %v865
  %v930 = vmul.f32 %v866, %v866
  %v931 = vmul.f32 %v867, %v867
  %v932 = vmul.f32 %v868, %v868
  %v933 = vmul.f32 %v869, %v869
  %v934 = vmul.f32 %v870, %v870
  %v935 = vmul.f32 %v871, %v871
  %v936 = vmul.f32 %v872, %v872
  %v937 = vmul.f32 %v873, %v873
  %v938 = vmul.f32 %v874, %v874
  %v939 = vmul.f32 %v875, %v875
  %v940 = vmul.f32 %v876, %v876
  %v941 = vsel %vm678, %v877, 0.0
  %v942 = vsel %vm678, %v878, 0.0
  %v943 = vadd.f32 %v941, %v942
  %v944 = vsel %vm678, %v879, 0.0
  %v945 = vadd.f32 %v943, %v944
  %v946 = vsel %vm678, %v880, 0.0
  %v947 = vadd.f32 %v945, %v946
  %v948 = vsel %vm678, %v881, 0.0
  %v949 = vadd.f32 %v947, %v948
  %v950 = vsel %vm678, %v882, 0.0
  %v951 = vadd.f32 %v949, %v950
  %v952 = vsel %vm678, %v883, 0.0
  %v953 = vadd.f32 %v951, %v952
  %v954 = vsel %vm678, %v884, 0.0
  %v955 = vadd.f32 %v953, %v954
  %v956 = vsel %vm678, %v885, 0.0
  %v957 = vadd.f32 %v955, %v956
  %v958 = vsel %vm678, %v886, 0.0
  %v959 = vadd.f32 %v957, %v958
  %v960 = vsel %vm678, %v887, 0.0
  %v961 = vadd.f32 %v959, %v960
  %v962 = vsel %vm678, %v888, 0.0
  %v963 = vadd.f32 %v961, %v962
  %v964 = vsel %vm678, %v889, 0.0
  %v965 = vadd.f32 %v963, %v964
  %v966 = vsel %vm678, %v890, 0.0
  %v967 = vadd.f32 %v965, %v966
  %v968 = vsel %vm678, %v891, 0.0
  %v969 = vadd.f32 %v967, %v968
  %v970 = vsel %vm678, %v892, 0.0
  %v971 = vadd.f32 %v969, %v970
  %v972 = vsel %vm678, %v893, 0.0
  %v973 = vadd.f32 %v971, %v972
  %v974 = vsel %vm678, %v894, 0.0
  %v975 = vadd.f32 %v973, %v974
  %v976 = vsel %vm678, %v895, 0.0
  %v977 = vadd.f32 %v975, %v976
  %v978 = vsel %vm678, %v896, 0.0
  %v979 = vadd.f32 %v977, %v978
  %v980 = vsel %vm678, %v897, 0.0
  %v981 = vadd.f32 %v979, %v980
  %v982 = vsel %vm678, %v898, 0.0
  %v983 = vadd.f32 %v981, %v982
  %v984 = vsel %vm678, %v899, 0.0
  %v985 = vadd.f32 %v983, %v984
  %v986 = vsel %vm678, %v900, 0.0
  %v987 = vadd.f32 %v985, %v986
  %v988 = vsel %vm678, %v901, 0.0
  %v989 = vadd.f32 %v987, %v988
  %v990 = vsel %vm678, %v902, 0.0
  %v991 = vadd.f32 %v989, %v990
  %v992 = vsel %vm678, %v903, 0.0
  %v993 = vadd.f32 %v991, %v992
  %v994 = vsel %vm678, %v904, 0.0
  %v995 = vadd.f32 %v993, %v994
  %v996 = vsel %vm678, %v905, 0.0
  %v997 = vadd.f32 %v995, %v996
  %v998 = vsel %vm678, %v906, 0.0
  %v999 = vadd.f32 %v997, %v998
  %v1000 = vsel %vm678, %v907, 0.0
  %v1001 = vadd.f32 %v999, %v1000
  %v1002 = vsel %vm678, %v908, 0.0
  %v1003 = vadd.f32 %v1001, %v1002
  %v1004 = vsel %vm678, %v909, 0.0
  %v1005 = vadd.f32 %v1003, %v1004
  %v1006 = vsel %vm678, %v910, 0.0
  %v1007 = vadd.f32 %v1005, %v1006
  %v1008 = vsel %vm678, %v911, 0.0
  %v1009 = vadd.f32 %v1007, %v1008
  %v1010 = vsel %vm678, %v912, 0.0
  %v1011 = vadd.f32 %v1009, %v1010
  %v1012 = vsel %vm678, %v913, 0.0
  %v1013 = vadd.f32 %v1011, %v1012
  %v1014 = vsel %vm678, %v914, 0.0
  %v1015 = vadd.f32 %v1013, %v1014
  %v1016 = vsel %vm678, %v915, 0.0
  %v1017 = vadd.f32 %v1015, %v1016
  %v1018 = vsel %vm678, %v916, 0.0
  %v1019 = vadd.f32 %v1017, %v1018
  %v1020 = vsel %vm678, %v917, 0.0
  %v1021 = vadd.f32 %v1019, %v1020
  %v1022 = vsel %vm678, %v918, 0.0
  %v1023 = vadd.f32 %v1021, %v1022
  %v1024 = vsel %vm678, %v919, 0.0
  %v1025 = vadd.f32 %v1023, %v1024
  %v1026 = vsel %vm678, %v920, 0.0
  %v1027 = vadd.f32 %v1025, %v1026
  %v1028 = vsel %vm678, %v921, 0.0
  %v1029 = vadd.f32 %v1027, %v1028
  %v1030 = vsel %vm678, %v922, 0.0
  %v1031 = vadd.f32 %v1029, %v1030
  %v1032 = vsel %vm678, %v923, 0.0
  %v1033 = vadd.f32 %v1031, %v1032
  %v1034 = vsel %vm678, %v924, 0.0
  %v1035 = vadd.f32 %v1033, %v1034
  %v1036 = vsel %vm678, %v925, 0.0
  %v1037 = vadd.f32 %v1035, %v1036
  %v1038 = vsel %vm678, %v926, 0.0
  %v1039 = vadd.f32 %v1037, %v1038
  %v1040 = vsel %vm678, %v927, 0.0
  %v1041 = vadd.f32 %v1039, %v1040
  %v1042 = vsel %vm678, %v928, 0.0
  %v1043 = vadd.f32 %v1041, %v1042
  %v1044 = vsel %vm678, %v929, 0.0
  %v1045 = vadd.f32 %v1043, %v1044
  %v1046 = vsel %vm678, %v930, 0.0
  %v1047 = vadd.f32 %v1045, %v1046
  %v1048 = vsel %vm678, %v931, 0.0
  %v1049 = vadd.f32 %v1047, %v1048
  %v1050 = vsel %vm678, %v932, 0.0
  %v1051 = vadd.f32 %v1049, %v1050
  %v1052 = vsel %vm678, %v933, 0.0
  %v1053 = vadd.f32 %v1051, %v1052
  %v1054 = vsel %vm678, %v934, 0.0
  %v1055 = vadd.f32 %v1053, %v1054
  %v1056 = vsel %vm678, %v935, 0.0
  %v1057 = vadd.f32 %v1055, %v1056
  %v1058 = vsel %vm678, %v936, 0.0
  %v1059 = vadd.f32 %v1057, %v1058
  %v1060 = vsel %vm678, %v937, 0.0
  %v1061 = vadd.f32 %v1059, %v1060
  %v1062 = vsel %vm678, %v938, 0.0
  %v1063 = vadd.f32 %v1061, %v1062
  %v1064 = vsel %vm678, %v939, 0.0
  %v1065 = vadd.f32 %v1063, %v1064
  %v1066 = vsel %vm678, %v940, 0.0
  %v1067 = vadd.f32 %v1065, %v1066
  %v1068 = vrot.slane %v1067, 4
  %v1069 = vadd.f32 %v1067, %v1068
  %v1070 = vrot.slane %v1069, 2
  %v1071 = vadd.f32 %v1069, %v1070
  %v1072 = vrot.slane %v1071, 1
  %v1073 = vadd.f32 %v1071, %v1072
  %v1074 = vmul.f32 %v1073, 0.001953125
  %v1075 = vadd.f32 %v1074, 1e-05
  %v1076 = vrsqrt.pop %v1075
  %v1077 = vmul.f32 %v813, %v1076
  %v1078 = vmul.f32 %v814, %v1076
  %v1079 = vmul.f32 %v815, %v1076
  %v1080 = vmul.f32 %v816, %v1076
  %v1081 = vmul.f32 %v817, %v1076
  %v1082 = vmul.f32 %v818, %v1076
  %v1083 = vmul.f32 %v819, %v1076
  %v1084 = vmul.f32 %v820, %v1076
  %v1085 = vmul.f32 %v821, %v1076
  %v1086 = vmul.f32 %v822, %v1076
  %v1087 = vmul.f32 %v823, %v1076
  %v1088 = vmul.f32 %v824, %v1076
  %v1089 = vmul.f32 %v825, %v1076
  %v1090 = vmul.f32 %v826, %v1076
  %v1091 = vmul.f32 %v827, %v1076
  %v1092 = vmul.f32 %v828, %v1076
  %v1093 = vmul.f32 %v829, %v1076
  %v1094 = vmul.f32 %v830, %v1076
  %v1095 = vmul.f32 %v831, %v1076
  %v1096 = vmul.f32 %v832, %v1076
  %v1097 = vmul.f32 %v833, %v1076
  %v1098 = vmul.f32 %v834, %v1076
  %v1099 = vmul.f32 %v835, %v1076
  %v1100 = vmul.f32 %v836, %v1076
  %v1101 = vmul.f32 %v837, %v1076
  %v1102 = vmul.f32 %v838, %v1076
  %v1103 = vmul.f32 %v839, %v1076
  %v1104 = vmul.f32 %v840, %v1076
  %v1105 = vmul.f32 %v841, %v1076
  %v1106 = vmul.f32 %v842, %v1076
  %v1107 = vmul.f32 %v843, %v1076
  %v1108 = vmul.f32 %v844, %v1076
  %v1109 = vmul.f32 %v845, %v1076
  %v1110 = vmul.f32 %v846, %v1076
  %v1111 = vmul.f32 %v847, %v1076
  %v1112 = vmul.f32 %v848, %v1076
  %v1113 = vmul.f32 %v849, %v1076
  %v1114 = vmul.f32 %v850, %v1076
  %v1115 = vmul.f32 %v851, %v1076
  %v1116 = vmul.f32 %v852, %v1076
  %v1117 = vmul.f32 %v853, %v1076
  %v1118 = vmul.f32 %v854, %v1076
  %v1119 = vmul.f32 %v855, %v1076
  %v1120 = vmul.f32 %v856, %v1076
  %v1121 = vmul.f32 %v857, %v1076
  %v1122 = vmul.f32 %v858, %v1076
  %v1123 = vmul.f32 %v859, %v1076
  %v1124 = vmul.f32 %v860, %v1076
  %v1125 = vmul.f32 %v861, %v1076
  %v1126 = vmul.f32 %v862, %v1076
  %v1127 = vmul.f32 %v863, %v1076
  %v1128 = vmul.f32 %v864, %v1076
  %v1129 = vmul.f32 %v865, %v1076
  %v1130 = vmul.f32 %v866, %v1076
  %v1131 = vmul.f32 %v867, %v1076
  %v1132 = vmul.f32 %v868, %v1076
  %v1133 = vmul.f32 %v869, %v1076
  %v1134 = vmul.f32 %v870, %v1076
  %v1135 = vmul.f32 %v871, %v1076
  %v1136 = vmul.f32 %v872, %v1076
  %v1137 = vmul.f32 %v873, %v1076
  %v1138 = vmul.f32 %v874, %v1076
  %v1139 = vmul.f32 %v875, %v1076
  %v1140 = vmul.f32 %v876, %v1076
  %v1141 = vld [vmem:[%s3] sm:$0x1]
  %v1143 = vlaneseq
  %v1144 = vshrl.u32 %v1143, 7
  %v1145 = vsub.s32 0, %v1144
  %v1146 = vrot.slane %v1141, %v1145
  %v1148 = vmul.f32 %v1077, %v1146
  %v1149 = vmul.f32 %v1078, %v1146
  %v1150 = vmul.f32 %v1079, %v1146
  %v1151 = vmul.f32 %v1080, %v1146
  %v1152 = vmul.f32 %v1081, %v1146
  %v1153 = vmul.f32 %v1082, %v1146
  %v1154 = vmul.f32 %v1083, %v1146
  %v1155 = vmul.f32 %v1084, %v1146
  %v1156 = vmul.f32 %v1085, %v1146
  %v1157 = vmul.f32 %v1086, %v1146
  %v1158 = vmul.f32 %v1087, %v1146
  %v1159 = vmul.f32 %v1088, %v1146
  %v1160 = vmul.f32 %v1089, %v1146
  %v1161 = vmul.f32 %v1090, %v1146
  %v1162 = vmul.f32 %v1091, %v1146
  %v1163 = vmul.f32 %v1092, %v1146
  %v1164 = vmul.f32 %v1093, %v1146
  %v1165 = vmul.f32 %v1094, %v1146
  %v1166 = vmul.f32 %v1095, %v1146
  %v1167 = vmul.f32 %v1096, %v1146
  %v1168 = vmul.f32 %v1097, %v1146
  %v1169 = vmul.f32 %v1098, %v1146
  %v1170 = vmul.f32 %v1099, %v1146
  %v1171 = vmul.f32 %v1100, %v1146
  %v1172 = vmul.f32 %v1101, %v1146
  %v1173 = vmul.f32 %v1102, %v1146
  %v1174 = vmul.f32 %v1103, %v1146
  %v1175 = vmul.f32 %v1104, %v1146
  %v1176 = vmul.f32 %v1105, %v1146
  %v1177 = vmul.f32 %v1106, %v1146
  %v1178 = vmul.f32 %v1107, %v1146
  %v1179 = vmul.f32 %v1108, %v1146
  %v1180 = vmul.f32 %v1109, %v1146
  %v1181 = vmul.f32 %v1110, %v1146
  %v1182 = vmul.f32 %v1111, %v1146
  %v1183 = vmul.f32 %v1112, %v1146
  %v1184 = vmul.f32 %v1113, %v1146
  %v1185 = vmul.f32 %v1114, %v1146
  %v1186 = vmul.f32 %v1115, %v1146
  %v1187 = vmul.f32 %v1116, %v1146
  %v1188 = vmul.f32 %v1117, %v1146
  %v1189 = vmul.f32 %v1118, %v1146
  %v1190 = vmul.f32 %v1119, %v1146
  %v1191 = vmul.f32 %v1120, %v1146
  %v1192 = vmul.f32 %v1121, %v1146
  %v1193 = vmul.f32 %v1122, %v1146
  %v1194 = vmul.f32 %v1123, %v1146
  %v1195 = vmul.f32 %v1124, %v1146
  %v1196 = vmul.f32 %v1125, %v1146
  %v1197 = vmul.f32 %v1126, %v1146
  %v1198 = vmul.f32 %v1127, %v1146
  %v1199 = vmul.f32 %v1128, %v1146
  %v1200 = vmul.f32 %v1129, %v1146
  %v1201 = vmul.f32 %v1130, %v1146
  %v1202 = vmul.f32 %v1131, %v1146
  %v1203 = vmul.f32 %v1132, %v1146
  %v1204 = vmul.f32 %v1133, %v1146
  %v1205 = vmul.f32 %v1134, %v1146
  %v1206 = vmul.f32 %v1135, %v1146
  %v1207 = vmul.f32 %v1136, %v1146
  %v1208 = vmul.f32 %v1137, %v1146
  %v1209 = vmul.f32 %v1138, %v1146
  %v1210 = vmul.f32 %v1139, %v1146
  %v1211 = vmul.f32 %v1140, %v1146
  %v1212 = vld [vmem:[%s4] sm:$0x1]
  %v1214 = vlaneseq
  %v1215 = vshrl.u32 %v1214, 7
  %v1216 = vsub.s32 0, %v1215
  %v1217 = vrot.slane %v1212, %v1216
  %v1219 = vadd.f32 %v1148, %v1217
  %v1220 = vadd.f32 %v1149, %v1217
  %v1221 = vadd.f32 %v1150, %v1217
  %v1222 = vadd.f32 %v1151, %v1217
  %v1223 = vadd.f32 %v1152, %v1217
  %v1224 = vadd.f32 %v1153, %v1217
  %v1225 = vadd.f32 %v1154, %v1217
  %v1226 = vadd.f32 %v1155, %v1217
  %v1227 = vadd.f32 %v1156, %v1217
  %v1228 = vadd.f32 %v1157, %v1217
  %v1229 = vadd.f32 %v1158, %v1217
  %v1230 = vadd.f32 %v1159, %v1217
  %v1231 = vadd.f32 %v1160, %v1217
  %v1232 = vadd.f32 %v1161, %v1217
  %v1233 = vadd.f32 %v1162, %v1217
  %v1234 = vadd.f32 %v1163, %v1217
  %v1235 = vadd.f32 %v1164, %v1217
  %v1236 = vadd.f32 %v1165, %v1217
  %v1237 = vadd.f32 %v1166, %v1217
  %v1238 = vadd.f32 %v1167, %v1217
  %v1239 = vadd.f32 %v1168, %v1217
  %v1240 = vadd.f32 %v1169, %v1217
  %v1241 = vadd.f32 %v1170, %v1217
  %v1242 = vadd.f32 %v1171, %v1217
  %v1243 = vadd.f32 %v1172, %v1217
  %v1244 = vadd.f32 %v1173, %v1217
  %v1245 = vadd.f32 %v1174, %v1217
  %v1246 = vadd.f32 %v1175, %v1217
  %v1247 = vadd.f32 %v1176, %v1217
  %v1248 = vadd.f32 %v1177, %v1217
  %v1249 = vadd.f32 %v1178, %v1217
  %v1250 = vadd.f32 %v1179, %v1217
  %v1251 = vadd.f32 %v1180, %v1217
  %v1252 = vadd.f32 %v1181, %v1217
  %v1253 = vadd.f32 %v1182, %v1217
  %v1254 = vadd.f32 %v1183, %v1217
  %v1255 = vadd.f32 %v1184, %v1217
  %v1256 = vadd.f32 %v1185, %v1217
  %v1257 = vadd.f32 %v1186, %v1217
  %v1258 = vadd.f32 %v1187, %v1217
  %v1259 = vadd.f32 %v1188, %v1217
  %v1260 = vadd.f32 %v1189, %v1217
  %v1261 = vadd.f32 %v1190, %v1217
  %v1262 = vadd.f32 %v1191, %v1217
  %v1263 = vadd.f32 %v1192, %v1217
  %v1264 = vadd.f32 %v1193, %v1217
  %v1265 = vadd.f32 %v1194, %v1217
  %v1266 = vadd.f32 %v1195, %v1217
  %v1267 = vadd.f32 %v1196, %v1217
  %v1268 = vadd.f32 %v1197, %v1217
  %v1269 = vadd.f32 %v1198, %v1217
  %v1270 = vadd.f32 %v1199, %v1217
  %v1271 = vadd.f32 %v1200, %v1217
  %v1272 = vadd.f32 %v1201, %v1217
  %v1273 = vadd.f32 %v1202, %v1217
  %v1274 = vadd.f32 %v1203, %v1217
  %v1275 = vadd.f32 %v1204, %v1217
  %v1276 = vadd.f32 %v1205, %v1217
  %v1277 = vadd.f32 %v1206, %v1217
  %v1278 = vadd.f32 %v1207, %v1217
  %v1279 = vadd.f32 %v1208, %v1217
  %v1280 = vadd.f32 %v1209, %v1217
  %v1281 = vadd.f32 %v1210, %v1217
  %v1282 = vadd.f32 %v1211, %v1217
  %v1283 = vmax.f32 %v1219, 0.0
  %v1284 = vmax.f32 %v1220, 0.0
  %v1285 = vmax.f32 %v1221, 0.0
  %v1286 = vmax.f32 %v1222, 0.0
  %v1287 = vmax.f32 %v1223, 0.0
  %v1288 = vmax.f32 %v1224, 0.0
  %v1289 = vmax.f32 %v1225, 0.0
  %v1290 = vmax.f32 %v1226, 0.0
  %v1291 = vmax.f32 %v1227, 0.0
  %v1292 = vmax.f32 %v1228, 0.0
  %v1293 = vmax.f32 %v1229, 0.0
  %v1294 = vmax.f32 %v1230, 0.0
  %v1295 = vmax.f32 %v1231, 0.0
  %v1296 = vmax.f32 %v1232, 0.0
  %v1297 = vmax.f32 %v1233, 0.0
  %v1298 = vmax.f32 %v1234, 0.0
  %v1299 = vmax.f32 %v1235, 0.0
  %v1300 = vmax.f32 %v1236, 0.0
  %v1301 = vmax.f32 %v1237, 0.0
  %v1302 = vmax.f32 %v1238, 0.0
  %v1303 = vmax.f32 %v1239, 0.0
  %v1304 = vmax.f32 %v1240, 0.0
  %v1305 = vmax.f32 %v1241, 0.0
  %v1306 = vmax.f32 %v1242, 0.0
  %v1307 = vmax.f32 %v1243, 0.0
  %v1308 = vmax.f32 %v1244, 0.0
  %v1309 = vmax.f32 %v1245, 0.0
  %v1310 = vmax.f32 %v1246, 0.0
  %v1311 = vmax.f32 %v1247, 0.0
  %v1312 = vmax.f32 %v1248, 0.0
  %v1313 = vmax.f32 %v1249, 0.0
  %v1314 = vmax.f32 %v1250, 0.0
  %v1315 = vmax.f32 %v1251, 0.0
  %v1316 = vmax.f32 %v1252, 0.0
  %v1317 = vmax.f32 %v1253, 0.0
  %v1318 = vmax.f32 %v1254, 0.0
  %v1319 = vmax.f32 %v1255, 0.0
  %v1320 = vmax.f32 %v1256, 0.0
  %v1321 = vmax.f32 %v1257, 0.0
  %v1322 = vmax.f32 %v1258, 0.0
  %v1323 = vmax.f32 %v1259, 0.0
  %v1324 = vmax.f32 %v1260, 0.0
  %v1325 = vmax.f32 %v1261, 0.0
  %v1326 = vmax.f32 %v1262, 0.0
  %v1327 = vmax.f32 %v1263, 0.0
  %v1328 = vmax.f32 %v1264, 0.0
  %v1329 = vmax.f32 %v1265, 0.0
  %v1330 = vmax.f32 %v1266, 0.0
  %v1331 = vmax.f32 %v1267, 0.0
  %v1332 = vmax.f32 %v1268, 0.0
  %v1333 = vmax.f32 %v1269, 0.0
  %v1334 = vmax.f32 %v1270, 0.0
  %v1335 = vmax.f32 %v1271, 0.0
  %v1336 = vmax.f32 %v1272, 0.0
  %v1337 = vmax.f32 %v1273, 0.0
  %v1338 = vmax.f32 %v1274, 0.0
  %v1339 = vmax.f32 %v1275, 0.0
  %v1340 = vmax.f32 %v1276, 0.0
  %v1341 = vmax.f32 %v1277, 0.0
  %v1342 = vmax.f32 %v1278, 0.0
  %v1343 = vmax.f32 %v1279, 0.0
  %v1344 = vmax.f32 %v1280, 0.0
  %v1345 = vmax.f32 %v1281, 0.0
  %v1346 = vmax.f32 %v1282, 0.0
  %1347 = vst.msk [vmem:[%s5] sm:$0xff] %vm678, %v1283
  %1348 = vst.msk [vmem:[%s5 + $0x8] sm:$0xff] %vm678, %v1284
  %1349 = vst.msk [vmem:[%s5 + $0x10] sm:$0xff] %vm678, %v1285
  %1350 = vst.msk [vmem:[%s5 + $0x18] sm:$0xff] %vm678, %v1286
  %1351 = vst.msk [vmem:[%s5 + $0x20] sm:$0xff] %vm678, %v1287
  %1352 = vst.msk [vmem:[%s5 + $0x28] sm:$0xff] %vm678, %v1288
  %1353 = vst.msk [vmem:[%s5 + $0x30] sm:$0xff] %vm678, %v1289
  %1354 = vst.msk [vmem:[%s5 + $0x38] sm:$0xff] %vm678, %v1290
  %1355 = vst.msk [vmem:[%s5 + $0x40] sm:$0xff] %vm678, %v1291
  %1356 = vst.msk [vmem:[%s5 + $0x48] sm:$0xff] %vm678, %v1292
  %1357 = vst.msk [vmem:[%s5 + $0x50] sm:$0xff] %vm678, %v1293
  %1358 = vst.msk [vmem:[%s5 + $0x58] sm:$0xff] %vm678, %v1294
  %1359 = vst.msk [vmem:[%s5 + $0x60] sm:$0xff] %vm678, %v1295
  %1360 = vst.msk [vmem:[%s5 + $0x68] sm:$0xff] %vm678, %v1296
  %1361 = vst.msk [vmem:[%s5 + $0x70] sm:$0xff] %vm678, %v1297
  %1362 = vst.msk [vmem:[%s5 + $0x78] sm:$0xff] %vm678, %v1298
  %1363 = vst.msk [vmem:[%s5 + $0x80] sm:$0xff] %vm678, %v1299
  %1364 = vst.msk [vmem:[%s5 + $0x88] sm:$0xff] %vm678, %v1300
  %1365 = vst.msk [vmem:[%s5 + $0x90] sm:$0xff] %vm678, %v1301
  %1366 = vst.msk [vmem:[%s5 + $0x98] sm:$0xff] %vm678, %v1302
  %1367 = vst.msk [vmem:[%s5 + $0xa0] sm:$0xff] %vm678, %v1303
  %1368 = vst.msk [vmem:[%s5 + $0xa8] sm:$0xff] %vm678, %v1304
  %1369 = vst.msk [vmem:[%s5 + $0xb0] sm:$0xff] %vm678, %v1305
  %1370 = vst.msk [vmem:[%s5 + $0xb8] sm:$0xff] %vm678, %v1306
  %1371 = vst.msk [vmem:[%s5 + $0xc0] sm:$0xff] %vm678, %v1307
  %1372 = vst.msk [vmem:[%s5 + $0xc8] sm:$0xff] %vm678, %v1308
  %1373 = vst.msk [vmem:[%s5 + $0xd0] sm:$0xff] %vm678, %v1309
  %1374 = vst.msk [vmem:[%s5 + $0xd8] sm:$0xff] %vm678, %v1310
  %1375 = vst.msk [vmem:[%s5 + $0xe0] sm:$0xff] %vm678, %v1311
  %1376 = vst.msk [vmem:[%s5 + $0xe8] sm:$0xff] %vm678, %v1312
  %1377 = vst.msk [vmem:[%s5 + $0xf0] sm:$0xff] %vm678, %v1313
  %1378 = vst.msk [vmem:[%s5 + $0xf8] sm:$0xff] %vm678, %v1314
  %1379 = vst.msk [vmem:[%s5 + $0x100] sm:$0xff] %vm678, %v1315
  %1380 = vst.msk [vmem:[%s5 + $0x108] sm:$0xff] %vm678, %v1316
  %1381 = vst.msk [vmem:[%s5 + $0x110] sm:$0xff] %vm678, %v1317
  %1382 = vst.msk [vmem:[%s5 + $0x118] sm:$0xff] %vm678, %v1318
  %1383 = vst.msk [vmem:[%s5 + $0x120] sm:$0xff] %vm678, %v1319
  %1384 = vst.msk [vmem:[%s5 + $0x128] sm:$0xff] %vm678, %v1320
  %1385 = vst.msk [vmem:[%s5 + $0x130] sm:$0xff] %vm678, %v1321
  %1386 = vst.msk [vmem:[%s5 + $0x138] sm:$0xff] %vm678, %v1322
  %1387 = vst.msk [vmem:[%s5 + $0x140] sm:$0xff] %vm678, %v1323
  %1388 = vst.msk [vmem:[%s5 + $0x148] sm:$0xff] %vm678, %v1324
  %1389 = vst.msk [vmem:[%s5 + $0x150] sm:$0xff] %vm678, %v1325
  %1390 = vst.msk [vmem:[%s5 + $0x158] sm:$0xff] %vm678, %v1326
  %1391 = vst.msk [vmem:[%s5 + $0x160] sm:$0xff] %vm678, %v1327
  %1392 = vst.msk [vmem:[%s5 + $0x168] sm:$0xff] %vm678, %v1328
  %1393 = vst.msk [vmem:[%s5 + $0x170] sm:$0xff] %vm678, %v1329
  %1394 = vst.msk [vmem:[%s5 + $0x178] sm:$0xff] %vm678, %v1330
  %1395 = vst.msk [vmem:[%s5 + $0x180] sm:$0xff] %vm678, %v1331
  %1396 = vst.msk [vmem:[%s5 + $0x188] sm:$0xff] %vm678, %v1332
  %1397 = vst.msk [vmem:[%s5 + $0x190] sm:$0xff] %vm678, %v1333
  %1398 = vst.msk [vmem:[%s5 + $0x198] sm:$0xff] %vm678, %v1334
  %1399 = vst.msk [vmem:[%s5 + $0x1a0] sm:$0xff] %vm678, %v1335
  %1400 = vst.msk [vmem:[%s5 + $0x1a8] sm:$0xff] %vm678, %v1336
  %1401 = vst.msk [vmem:[%s5 + $0x1b0] sm:$0xff] %vm678, %v1337
  %1402 = vst.msk [vmem:[%s5 + $0x1b8] sm:$0xff] %vm678, %v1338
  %1403 = vst.msk [vmem:[%s5 + $0x1c0] sm:$0xff] %vm678, %v1339
  %1404 = vst.msk [vmem:[%s5 + $0x1c8] sm:$0xff] %vm678, %v1340
  %1405 = vst.msk [vmem:[%s5 + $0x1d0] sm:$0xff] %vm678, %v1341
  %1406 = vst.msk [vmem:[%s5 + $0x1d8] sm:$0xff] %vm678, %v1342
  %1407 = vst.msk [vmem:[%s5 + $0x1e0] sm:$0xff] %vm678, %v1343
  %1408 = vst.msk [vmem:[%s5 + $0x1e8] sm:$0xff] %vm678, %v1344
  %1409 = vst.msk [vmem:[%s5 + $0x1f0] sm:$0xff] %vm678, %v1345
  %1410 = vst.msk [vmem:[%s5 + $0x1f8] sm:$0xff] %vm678, %v1346
  // Predicated region
  $region22: #{daff_forward.7} parent=0 // pred_check
    _
  $region23: #{daff_forward.7} parent=0 // pred_check_branch
    %1412 = sbr.rel (0) target = $region25
  $region24: #{daff_forward.7} parent=0 // pred_region
    _
  $region25: #{daff_forward.7} parent=0 // pred_fallthru
    _
  // Predicated region
  $region26: #{daff_forward.7} parent=0 // pred_check
    _
  $region27: #{daff_forward.7} parent=0 // pred_check_branch
    %1414 = sbr.rel (0) target = $region29
  $region28: #{daff_forward.7} parent=0 // pred_region
    _
  $region29: #{daff_forward.7} parent=0 // pred_fallthru
    _

</llo_original>
